<compile_context>
chip_gen: v5e
topology: v5e:2x2
jax: 0.10.0
libtpu: 0.0.40
codegen_flags: <defaults>
</compile_context>

<pallas_src>
import jax
import jax.numpy as jnp
from jax import lax
from jax.experimental import pallas as pl
from jax.experimental.pallas import tpu as pltpu

LEAKY_SLOPE = 0.01
LN_EPS = 1e-5
LANE = 128


def _leaky_relu(x):
    return jnp.where(x >= 0, x, LEAKY_SLOPE * x)


def _round8(v):
    return ((v + 7) // 8) * 8


# ----------------------------------------------------------------------------
# Fused encoder kernel (all conv blocks + FC) for one batch block.
# ----------------------------------------------------------------------------
def make_encoder_kernel(n_b, layer_shapes, map_size, latent_pad):
    """layer_shapes: list of (c_in, l_in, c_out, l_out) per conv block."""
    n_layers = len(layer_shapes)
    c_last = layer_shapes[-1][2]

    def kernel(*refs):
        # refs: x | (w_flat, b, gamma, beta) x n_layers | fc_w, fc_b | out |
        #       pad scratch x (n_layers-1) | fc flatten scratch
        x_ref = refs[0]
        pos = 1
        layer_refs = []
        for _ in range(n_layers):
            layer_refs.append(refs[pos:pos + 4])
            pos += 4
        wfc_ref, bfc_ref = refs[pos], refs[pos + 1]
        out_ref = refs[pos + 2]
        pad_scratch = refs[pos + 3: pos + 3 + (n_layers - 1)]
        flat_ref = refs[pos + 3 + (n_layers - 1)]

        h = None
        for l, (c_in, l_in, c_out, l_out) in enumerate(layer_shapes):
            if l == 0:
                src = x_ref                                     # (n_b, l_in + 1, c_in), left-padded
            else:
                src = pad_scratch[l - 1]                        # (n_b, l_in + 1, c_in)
                # Zero ONLY the left-pad row (right pad never read for k=3,s=2,p=1).
                # Done every grid step: with dimension_semantics=("parallel",) a v7x
                # core may never execute grid index 0, so no pl.when(pid==0) init.
                src[:, 0:1, :] = jnp.zeros((n_b, 1, c_in), jnp.float32)
                src[:, 1:l_in + 1, :] = h                       # interior = prev activation

            w_ref, b_ref, g_ref, bt_ref = layer_refs[l]

            # im2col: 3 stride-2 sublane tap reads, concatenated along lanes, folded
            # into ONE MXU dot with K = 3*c_in (bf16 operands, f32 accumulation).
            taps = [src[:, pl.ds(k, l_out, stride=2), :] for k in range(3)]
            patches = jnp.concatenate(taps, axis=-1)            # (n_b, l_out, 3*c_in) f32
            patches = patches.reshape(n_b * l_out, 3 * c_in).astype(jnp.bfloat16)
            acc = jnp.dot(patches, w_ref[...],
                          preferred_element_type=jnp.float32)   # (n_b*l_out, c_out) f32
            s = (acc + b_ref[...]).reshape(n_b, l_out, c_out)

            # LayerNorm over the length axis (axis=1); one-pass variance.
            mean = jnp.mean(s, axis=1, keepdims=True)
            msq = jnp.mean(s * s, axis=1, keepdims=True)
            var = msq - mean * mean
            y = (s - mean) * lax.rsqrt(var + LN_EPS)
            y = y * g_ref[...] + bt_ref[...]                    # (l_out, 1) broadcast
            h = _leaky_relu(y)                                  # (n_b, l_out, c_out) f32

        # Flatten (t, c) -> lanes via a few static lane-offset stores into a VMEM
        # scratch, then ONE FC dot with K = map_size*c_last, lane-dense N = latent_pad.
        for t in range(map_size):
            flat_ref[:, t * c_last:(t + 1) * c_last] = h[:, t, :]
        flat = flat_ref[...].astype(jnp.bfloat16)               # (n_b, map_size*c_last)
        z = jnp.dot(flat, wfc_ref[...], preferred_element_type=jnp.float32)
        out_ref[...] = _leaky_relu(z + bfc_ref[...])

    return kernel


# ----------------------------------------------------------------------------
# Wrapper: layout plumbing + pallas_call
# ----------------------------------------------------------------------------
def encoder_forward(x_ncl, prep, *, n_block=None):
    """x_ncl: (N, C_in, L) float32, exactly the PyTorch module's input layout."""
    n = x_ncl.shape[0]
    layer_shapes = prep["layer_shapes"]
    map_size = prep["map_size"]
    latent = prep["latent"]
    latent_pad = prep["latent_pad"]
    c_last = layer_shapes[-1][2]
    l_out_last = layer_shapes[-1][3]

    # Batch-block sizing: target MXU M-dim >= 256 at the smallest (last) layer, but keep
    # >= 2 grid steps whenever the batch allows so v7x's 2 TensorCores both get work.
    if n_block is None:
        n_block = max(8, min(128, _round8(pl.cdiv(256, l_out_last))))
        if 8 < n < 2 * n_block:
            n_block = max(8, _round8(pl.cdiv(n, 2)))
    n_block = max(8, _round8(n_block))
    n_pad = pl.cdiv(n, n_block) * n_block

    c_in0, l0 = layer_shapes[0][0], layer_shapes[0][1]

    # Glue on the raw input only: channels-last + left length pad of 1
    # (the right pad is never read for kernel=3, stride=2, padding=1).
    x_nlc = jnp.transpose(x_ncl, (0, 2, 1))
    x_p = jnp.pad(x_nlc, ((0, n_pad - n), (1, 0), (0, 0)))

    in_specs = [pl.BlockSpec((n_block, l0 + 1, c_in0), lambda i: (i, 0, 0))]
    inputs = [x_p]
    for (w_flat, b2, g2, bt2), (c_in, _l_in, c_out, l_out) in zip(prep["conv"], layer_shapes):
        in_specs += [
            pl.BlockSpec((3 * c_in, c_out), lambda i: (0, 0)),
            pl.BlockSpec((1, c_out), lambda i: (0, 0)),
            pl.BlockSpec((l_out, 1), lambda i: (0, 0)),
            pl.BlockSpec((l_out, 1), lambda i: (0, 0)),
        ]
        inputs += [w_flat, b2, g2, bt2]
    in_specs += [
        pl.BlockSpec((map_size * c_last, latent_pad), lambda i: (0, 0)),
        pl.BlockSpec((1, latent_pad), lambda i: (0, 0)),
    ]
    inputs += [prep["lin_w"], prep["lin_b"]]

    # One (left-padded) activation VMEM buffer per conv layer after the first,
    # plus a small lane-contiguous scratch for the FC flatten.
    scratch_shapes = [
        pltpu.VMEM((n_block, l_in + 1, c_in), jnp.float32)
        for (c_in, l_in, _, _) in layer_shapes[1:]
    ] + [pltpu.VMEM((n_block, map_size * c_last), jnp.float32)]

    # Explicit VMEM budget (default scoped limit is 16 MiB v5e / 32 MiB v6e,v7x;
    # physical is 128 MiB v5e/v6e, 64 MiB per-TC on v7x).
    def _nbytes(a):
        return int(a.size) * a.dtype.itemsize

    param_bytes = sum(_nbytes(t) for quad in prep["conv"] for t in quad)
    param_bytes += _nbytes(prep["lin_w"]) + _nbytes(prep["lin_b"])
    act_bytes = n_block * (l0 + 1) * c_in0 * 4 + n_block * latent_pad * 4
    scratch_bytes = sum(n_block * (li + 1) * ci * 4 for (ci, li, _, _) in layer_shapes[1:])
    scratch_bytes += n_block * map_size * c_last * 4
    working = 2 * (param_bytes + act_bytes) + scratch_bytes    # in/out are double-buffered
    vmem_limit = int(min(max(4 * working, 16 * 2 ** 20), 64 * 2 ** 20))

    kernel = make_encoder_kernel(n_block, layer_shapes, map_size, latent_pad)

    out = pl.pallas_call(
        kernel,
        out_shape=jax.ShapeDtypeStruct((n_pad, latent_pad), jnp.float32),
        grid=(n_pad // n_block,),
        in_specs=in_specs,
        out_specs=pl.BlockSpec((n_block, latent_pad), lambda i: (i, 0)),
        scratch_shapes=scratch_shapes,
        compiler_params=pltpu.CompilerParams(
            dimension_semantics=("parallel",),
            vmem_limit_bytes=vmem_limit,
        ),
    )(*inputs)
    return out[:n, :latent]


def prepare_params(params, map_size):
    """One-time repack of PyTorch-layout params into kernel-friendly layouts."""
    prep = {"conv": [], "layer_shapes": [], "map_size": map_size}
    for (w, b, gamma, beta) in params["conv"]:
        c_out, c_in, k = w.shape
        l_out = gamma.shape[0]
        l_in = 2 * l_out
        prep["layer_shapes"].append((c_in, l_in, c_out, l_out))
        # Tap-major, flattened to (3*c_in, c_out) so the 3 taps fold into one MXU dot.
        w_flat = jnp.transpose(w, (2, 1, 0)).reshape(k * c_in, c_out).astype(jnp.bfloat16)
        prep["conv"].append((
            w_flat,
            b.reshape(1, c_out).astype(jnp.float32),
            gamma.reshape(l_out, 1).astype(jnp.float32),
            beta.reshape(l_out, 1).astype(jnp.float32),
        ))
    latent, f = params["lin_w"].shape
    c_last = prep["layer_shapes"][-1][2]
    l_last = prep["layer_shapes"][-1][3]
    assert l_last == map_size and f == c_last * l_last
    latent_pad = pl.cdiv(latent, LANE) * LANE
    # Fold the PyTorch C-major Flatten into the FC weight, flat order = (t, c):
    #   flat[n, t*C + c] == h_nlc[n, t, c]  ->  w_fc[t*C + c, :] = W[:, c*L + t]
    w3 = jnp.transpose(params["lin_w"].reshape(latent, c_last, l_last), (2, 1, 0))
    w_fc = w3.reshape(l_last * c_last, latent)
    w_fc = jnp.pad(w_fc, ((0, 0), (0, latent_pad - latent))).astype(jnp.bfloat16)
    b_fc = jnp.pad(params["lin_b"], (0, latent_pad - latent)).reshape(1, latent_pad)
    prep["lin_w"] = w_fc
    prep["lin_b"] = b_fc.astype(jnp.float32)
    prep["latent"] = latent
    prep["latent_pad"] = latent_pad
    return prep


# ----------------------------------------------------------------------------
# Pure-JAX f32 reference (correctness check only; kernel uses bf16 MXU operands)
# ----------------------------------------------------------------------------
def encoder_reference(x_ncl, params):
    h = x_ncl
    for (w, b, gamma, beta) in params["conv"]:
        h = lax.conv_general_dilated(
            h, w, window_strides=(2,), padding=((1, 1),),
            dimension_numbers=("NCH", "OIH", "NCH"),
        )
        h = h + b[None, :, None]
        mean = jnp.mean(h, axis=-1, keepdims=True)
        var = jnp.var(h, axis=-1, keepdims=True)
        h = (h - mean) / jnp.sqrt(var + LN_EPS)
        h = h * gamma[None, None, :] + beta[None, None, :]
        h = jnp.where(h >= 0, h, LEAKY_SLOPE * h)
    flat = h.reshape(h.shape[0], -1)
    y = flat @ params["lin_w"].T + params["lin_b"]
    return jnp.where(y >= 0, y, LEAKY_SLOPE * y)


# ----------------------------------------------------------------------------
# Deterministic parameter construction
# ----------------------------------------------------------------------------
def make_params(key, in_channels, hidden_dims, latent_dim, map_size, length):
    params = {"conv": []}
    c_in = in_channels
    cur_len = length
    for h_dim in hidden_dims:
        cur_len //= 2
        key, k1, k2, k3, k4 = jax.random.split(key, 5)
        w = 0.1 * jax.random.normal(k1, (h_dim, c_in, 3), jnp.float32)
        b = 0.1 * jax.random.normal(k2, (h_dim,), jnp.float32)
        gamma = 1.0 + 0.1 * jax.random.normal(k3, (cur_len,), jnp.float32)
        beta = 0.1 * jax.random.normal(k4, (cur_len,), jnp.float32)
        params["conv"].append((w, b, gamma, beta))
        c_in = h_dim
    key, k1, k2 = jax.random.split(key, 3)
    f = hidden_dims[-1] * map_size
    params["lin_w"] = 0.1 * jax.random.normal(k1, (latent_dim, f), jnp.float32)
    params["lin_b"] = 0.1 * jax.random.normal(k2, (latent_dim,), jnp.float32)
    return params


# ----------------------------------------------------------------------------
if __name__ == "__main__":
    # in_channels=4, length=16, hidden_dims=[8,16] -> final length 4 = map_size.
    # Batch 128 so the batch-block grid has 2 steps (v7x: one per TensorCore) with
    # n_block=64 -> last-layer MXU M-dim = 256.
    N, C_IN, LENGTH = 128, 4, 16
    HIDDEN_DIMS = [8, 16]
    LATENT = 32
    MAP_SIZE = LENGTH // (2 ** len(HIDDEN_DIMS))

    key = jax.random.PRNGKey(0)
    key, xkey = jax.random.split(key)
    x = jax.random.normal(xkey, (N, C_IN, LENGTH), jnp.float32)

    params = make_params(key, C_IN, HIDDEN_DIMS, LATENT, MAP_SIZE, LENGTH)
    prep = prepare_params(params, MAP_SIZE)

    fwd = jax.jit(lambda xx: encoder_forward(xx, prep))
    out = jax.block_until_ready(fwd(x))
    ref = jax.block_until_ready(encoder_reference(x, params))

    assert out.shape == (N, LATENT), out.shape
    # bf16 MXU operands (f32 accumulation) across 2 conv layers + FC: relaxed tolerance
    # vs. the pure-f32 reference (review item).
    err = float(jnp.max(jnp.abs(out - ref)))
    assert jnp.allclose(out, ref, rtol=5e-2, atol=5e-2), err
    print("KERNEL_OK")
</pallas_src>

<mosaic_0001>
module attributes {stable_mosaic.version = 11 : i64} {
  func.func @kernel(%arg0: i32, %arg1: memref<64x17x4xf32, #tpu.memory_space<vmem>>, %arg2: memref<12x8xbf16, #tpu.memory_space<vmem>>, %arg3: memref<1x8xf32, #tpu.memory_space<vmem>>, %arg4: memref<8x1xf32, #tpu.memory_space<vmem>>, %arg5: memref<8x1xf32, #tpu.memory_space<vmem>>, %arg6: memref<24x16xbf16, #tpu.memory_space<vmem>>, %arg7: memref<1x16xf32, #tpu.memory_space<vmem>>, %arg8: memref<4x1xf32, #tpu.memory_space<vmem>>, %arg9: memref<4x1xf32, #tpu.memory_space<vmem>>, %arg10: memref<64x128xbf16, #tpu.memory_space<vmem>>, %arg11: memref<1x128xf32, #tpu.memory_space<vmem>>, %arg12: memref<64x128xf32, #tpu.memory_space<vmem>>, %arg13: memref<64x9x8xf32, #tpu.memory_space<vmem>>, %arg14: memref<64x64xf32, #tpu.memory_space<vmem>>) attributes {dimension_semantics = [#tpu.dimension_semantics<parallel>], iteration_bounds = array<i64: 2>, scalar_prefetch = 0 : i64, scratch_operands = 2 : i64, tpu.core_type = #tpu.core_type<tc>, window_params = [{transform_indices = @transform_0, window_bounds = array<i64: 64, 17, 4>}, {pipeline_mode = #tpu.pipeline_mode<synchronous>, transform_indices = @transform_1, window_bounds = array<i64: 12, 8>}, {pipeline_mode = #tpu.pipeline_mode<synchronous>, transform_indices = @transform_2, window_bounds = array<i64: 1, 8>}, {pipeline_mode = #tpu.pipeline_mode<synchronous>, transform_indices = @transform_3, window_bounds = array<i64: 8, 1>}, {pipeline_mode = #tpu.pipeline_mode<synchronous>, transform_indices = @transform_4, window_bounds = array<i64: 8, 1>}, {pipeline_mode = #tpu.pipeline_mode<synchronous>, transform_indices = @transform_5, window_bounds = array<i64: 24, 16>}, {pipeline_mode = #tpu.pipeline_mode<synchronous>, transform_indices = @transform_6, window_bounds = array<i64: 1, 16>}, {pipeline_mode = #tpu.pipeline_mode<synchronous>, transform_indices = @transform_7, window_bounds = array<i64: 4, 1>}, {pipeline_mode = #tpu.pipeline_mode<synchronous>, transform_indices = @transform_8, window_bounds = array<i64: 4, 1>}, {pipeline_mode = #tpu.pipeline_mode<synchronous>, transform_indices = @transform_9, window_bounds = array<i64: 64, 128>}, {pipeline_mode = #tpu.pipeline_mode<synchronous>, transform_indices = @transform_10, window_bounds = array<i64: 1, 128>}, {transform_indices = @transform_11, window_bounds = array<i64: 64, 128>}]} {
    %c0 = arith.constant 0 : index
    %c0_0 = arith.constant 0 : index
    %c0_1 = arith.constant 0 : index
    %0 = tpu.strided_load %arg1[%c0, %c0_0, %c0_1] {strides = array<i32: 1, 2, 1>} : memref<64x17x4xf32, #tpu.memory_space<vmem>>, vector<64x8x4xf32>
    %c0_2 = arith.constant 0 : index
    %c1 = arith.constant 1 : index
    %c0_3 = arith.constant 0 : index
    %1 = tpu.strided_load %arg1[%c0_2, %c1, %c0_3] {strides = array<i32: 1, 2, 1>} : memref<64x17x4xf32, #tpu.memory_space<vmem>>, vector<64x8x4xf32>
    %c0_4 = arith.constant 0 : index
    %c2 = arith.constant 2 : index
    %c0_5 = arith.constant 0 : index
    %2 = tpu.strided_load %arg1[%c0_4, %c2, %c0_5] {strides = array<i32: 1, 2, 1>} : memref<64x17x4xf32, #tpu.memory_space<vmem>>, vector<64x8x4xf32>
    %3 = tpu.concatenate %0, %1, %2 in 2 : vector<64x8x4xf32>, vector<64x8x4xf32>, vector<64x8x4xf32> -> vector<64x8x12xf32>
    %4 = vector.shape_cast %3 : vector<64x8x12xf32> to vector<512x12xf32>
    %5 = arith.truncf %4 : vector<512x12xf32> to vector<512x12xbf16>
    %c0_6 = arith.constant 0 : index
    %c0_7 = arith.constant 0 : index
    %6 = vector.load %arg2[%c0_6, %c0_7] : memref<12x8xbf16, #tpu.memory_space<vmem>>, vector<12x8xbf16>
    %cst = arith.constant dense<0.000000e+00> : vector<512x8xf32>
    %7 = tpu.matmul %5, %6, %cst {dimension_numbers = #tpu.dot_dimension_numbers<[1], [0], [0], [1], [0, 0, 1, 1], [], []>} : vector<512x12xbf16>, vector<12x8xbf16>, vector<512x8xf32> -> vector<512x8xf32>
    %c0_8 = arith.constant 0 : index
    %c0_9 = arith.constant 0 : index
    %8 = vector.load %arg3[%c0_8, %c0_9] : memref<1x8xf32, #tpu.memory_space<vmem>>, vector<1x8xf32>
    %9 = vector.broadcast %8 : vector<1x8xf32> to vector<512x8xf32>
    %10 = arith.addf %7, %9 : vector<512x8xf32>
    %11 = vector.shape_cast %10 : vector<512x8xf32> to vector<64x8x8xf32>
    %cst_10 = arith.constant dense<0.000000e+00> : vector<64x8xf32>
    %12 = vector.multi_reduction <add>, %11, %cst_10 [1] : vector<64x8x8xf32> to vector<64x8xf32>
    %13 = vector.shape_cast %12 : vector<64x8xf32> to vector<64x1x8xf32>
    %cst_11 = arith.constant 8.000000e+00 : f32
    %14 = vector.broadcast %cst_11 : f32 to vector<64x1x8xf32>
    %15 = arith.divf %13, %14 : vector<64x1x8xf32>
    %16 = arith.mulf %11, %11 : vector<64x8x8xf32>
    %cst_12 = arith.constant dense<0.000000e+00> : vector<64x8xf32>
    %17 = vector.multi_reduction <add>, %16, %cst_12 [1] : vector<64x8x8xf32> to vector<64x8xf32>
    %18 = vector.shape_cast %17 : vector<64x8xf32> to vector<64x1x8xf32>
    %cst_13 = arith.constant 8.000000e+00 : f32
    %19 = vector.broadcast %cst_13 : f32 to vector<64x1x8xf32>
    %20 = arith.divf %18, %19 : vector<64x1x8xf32>
    %21 = arith.mulf %15, %15 : vector<64x1x8xf32>
    %22 = arith.subf %20, %21 : vector<64x1x8xf32>
    %23 = vector.broadcast %15 : vector<64x1x8xf32> to vector<64x8x8xf32>
    %24 = arith.subf %11, %23 : vector<64x8x8xf32>
    %cst_14 = arith.constant 9.99999974E-6 : f32
    %25 = vector.broadcast %cst_14 : f32 to vector<64x1x8xf32>
    %26 = arith.addf %22, %25 : vector<64x1x8xf32>
    %27 = math.rsqrt %26 : vector<64x1x8xf32>
    %28 = vector.broadcast %27 : vector<64x1x8xf32> to vector<64x8x8xf32>
    %29 = arith.mulf %24, %28 : vector<64x8x8xf32>
    %c0_15 = arith.constant 0 : index
    %c0_16 = arith.constant 0 : index
    %30 = vector.load %arg4[%c0_15, %c0_16] : memref<8x1xf32, #tpu.memory_space<vmem>>, vector<8x1xf32>
    %31 = vector.shape_cast %30 : vector<8x1xf32> to vector<1x8x1xf32>
    %32 = vector.broadcast %31 : vector<1x8x1xf32> to vector<64x8x8xf32>
    %33 = arith.mulf %29, %32 : vector<64x8x8xf32>
    %c0_17 = arith.constant 0 : index
    %c0_18 = arith.constant 0 : index
    %34 = vector.load %arg5[%c0_17, %c0_18] : memref<8x1xf32, #tpu.memory_space<vmem>>, vector<8x1xf32>
    %35 = vector.shape_cast %34 : vector<8x1xf32> to vector<1x8x1xf32>
    %36 = vector.broadcast %35 : vector<1x8x1xf32> to vector<64x8x8xf32>
    %37 = arith.addf %33, %36 : vector<64x8x8xf32>
    %cst_19 = arith.constant 0.000000e+00 : f32
    %38 = vector.broadcast %cst_19 : f32 to vector<64x8x8xf32>
    %39 = arith.cmpf oge, %37, %38 : vector<64x8x8xf32>
    %cst_20 = arith.constant 0.00999999977 : f32
    %40 = vector.broadcast %cst_20 : f32 to vector<64x8x8xf32>
    %41 = arith.mulf %40, %37 : vector<64x8x8xf32>
    %42 = arith.select %39, %37, %41 : vector<64x8x8xi1>, vector<64x8x8xf32>
    %cst_21 = arith.constant 0.000000e+00 : f32
    %43 = vector.broadcast %cst_21 : f32 to vector<64x1x8xf32>
    %c0_22 = arith.constant 0 : index
    %c0_23 = arith.constant 0 : index
    %c0_24 = arith.constant 0 : index
    %44 = vector.load %arg13[%c0_22, %c0_23, %c0_24] : memref<64x9x8xf32, #tpu.memory_space<vmem>>, vector<64x1x8xf32>
    tpu.vector_store %arg13[%c0_22, %c0_23, %c0_24], %43 {strides = array<i32>} : memref<64x9x8xf32, #tpu.memory_space<vmem>>, vector<64x1x8xf32>,
    %c0_25 = arith.constant 0 : index
    %c1_26 = arith.constant 1 : index
    %c0_27 = arith.constant 0 : index
    %45 = vector.load %arg13[%c0_25, %c1_26, %c0_27] : memref<64x9x8xf32, #tpu.memory_space<vmem>>, vector<64x8x8xf32>
    tpu.vector_store %arg13[%c0_25, %c1_26, %c0_27], %42 {strides = array<i32>} : memref<64x9x8xf32, #tpu.memory_space<vmem>>, vector<64x8x8xf32>,
    %c0_28 = arith.constant 0 : index
    %c0_29 = arith.constant 0 : index
    %c0_30 = arith.constant 0 : index
    %46 = tpu.strided_load %arg13[%c0_28, %c0_29, %c0_30] {strides = array<i32: 1, 2, 1>} : memref<64x9x8xf32, #tpu.memory_space<vmem>>, vector<64x4x8xf32>
    %c0_31 = arith.constant 0 : index
    %c1_32 = arith.constant 1 : index
    %c0_33 = arith.constant 0 : index
    %47 = tpu.strided_load %arg13[%c0_31, %c1_32, %c0_33] {strides = array<i32: 1, 2, 1>} : memref<64x9x8xf32, #tpu.memory_space<vmem>>, vector<64x4x8xf32>
    %c0_34 = arith.constant 0 : index
    %c2_35 = arith.constant 2 : index
    %c0_36 = arith.constant 0 : index
    %48 = tpu.strided_load %arg13[%c0_34, %c2_35, %c0_36] {strides = array<i32: 1, 2, 1>} : memref<64x9x8xf32, #tpu.memory_space<vmem>>, vector<64x4x8xf32>
    %49 = tpu.concatenate %46, %47, %48 in 2 : vector<64x4x8xf32>, vector<64x4x8xf32>, vector<64x4x8xf32> -> vector<64x4x24xf32>
    %50 = vector.shape_cast %49 : vector<64x4x24xf32> to vector<256x24xf32>
    %51 = arith.truncf %50 : vector<256x24xf32> to vector<256x24xbf16>
    %c0_37 = arith.constant 0 : index
    %c0_38 = arith.constant 0 : index
    %52 = vector.load %arg6[%c0_37, %c0_38] : memref<24x16xbf16, #tpu.memory_space<vmem>>, vector<24x16xbf16>
    %cst_39 = arith.constant dense<0.000000e+00> : vector<256x16xf32>
    %53 = tpu.matmul %51, %52, %cst_39 {dimension_numbers = #tpu.dot_dimension_numbers<[1], [0], [0], [1], [0, 0, 1, 1], [], []>} : vector<256x24xbf16>, vector<24x16xbf16>, vector<256x16xf32> -> vector<256x16xf32>
    %c0_40 = arith.constant 0 : index
    %c0_41 = arith.constant 0 : index
    %54 = vector.load %arg7[%c0_40, %c0_41] : memref<1x16xf32, #tpu.memory_space<vmem>>, vector<1x16xf32>
    %55 = vector.broadcast %54 : vector<1x16xf32> to vector<256x16xf32>
    %56 = arith.addf %53, %55 : vector<256x16xf32>
    %57 = vector.shape_cast %56 : vector<256x16xf32> to vector<64x4x16xf32>
    %cst_42 = arith.constant dense<0.000000e+00> : vector<64x16xf32>
    %58 = vector.multi_reduction <add>, %57, %cst_42 [1] : vector<64x4x16xf32> to vector<64x16xf32>
    %59 = vector.shape_cast %58 : vector<64x16xf32> to vector<64x1x16xf32>
    %cst_43 = arith.constant 4.000000e+00 : f32
    %60 = vector.broadcast %cst_43 : f32 to vector<64x1x16xf32>
    %61 = arith.divf %59, %60 : vector<64x1x16xf32>
    %62 = arith.mulf %57, %57 : vector<64x4x16xf32>
    %cst_44 = arith.constant dense<0.000000e+00> : vector<64x16xf32>
    %63 = vector.multi_reduction <add>, %62, %cst_44 [1] : vector<64x4x16xf32> to vector<64x16xf32>
    %64 = vector.shape_cast %63 : vector<64x16xf32> to vector<64x1x16xf32>
    %cst_45 = arith.constant 4.000000e+00 : f32
    %65 = vector.broadcast %cst_45 : f32 to vector<64x1x16xf32>
    %66 = arith.divf %64, %65 : vector<64x1x16xf32>
    %67 = arith.mulf %61, %61 : vector<64x1x16xf32>
    %68 = arith.subf %66, %67 : vector<64x1x16xf32>
    %69 = vector.broadcast %61 : vector<64x1x16xf32> to vector<64x4x16xf32>
    %70 = arith.subf %57, %69 : vector<64x4x16xf32>
    %cst_46 = arith.constant 9.99999974E-6 : f32
    %71 = vector.broadcast %cst_46 : f32 to vector<64x1x16xf32>
    %72 = arith.addf %68, %71 : vector<64x1x16xf32>
    %73 = math.rsqrt %72 : vector<64x1x16xf32>
    %74 = vector.broadcast %73 : vector<64x1x16xf32> to vector<64x4x16xf32>
    %75 = arith.mulf %70, %74 : vector<64x4x16xf32>
    %c0_47 = arith.constant 0 : index
    %c0_48 = arith.constant 0 : index
    %76 = vector.load %arg8[%c0_47, %c0_48] : memref<4x1xf32, #tpu.memory_space<vmem>>, vector<4x1xf32>
    %77 = vector.shape_cast %76 : vector<4x1xf32> to vector<1x4x1xf32>
    %78 = vector.broadcast %77 : vector<1x4x1xf32> to vector<64x4x16xf32>
    %79 = arith.mulf %75, %78 : vector<64x4x16xf32>
    %c0_49 = arith.constant 0 : index
    %c0_50 = arith.constant 0 : index
    %80 = vector.load %arg9[%c0_49, %c0_50] : memref<4x1xf32, #tpu.memory_space<vmem>>, vector<4x1xf32>
    %81 = vector.shape_cast %80 : vector<4x1xf32> to vector<1x4x1xf32>
    %82 = vector.broadcast %81 : vector<1x4x1xf32> to vector<64x4x16xf32>
    %83 = arith.addf %79, %82 : vector<64x4x16xf32>
    %cst_51 = arith.constant 0.000000e+00 : f32
    %84 = vector.broadcast %cst_51 : f32 to vector<64x4x16xf32>
    %85 = arith.cmpf oge, %83, %84 : vector<64x4x16xf32>
    %cst_52 = arith.constant 0.00999999977 : f32
    %86 = vector.broadcast %cst_52 : f32 to vector<64x4x16xf32>
    %87 = arith.mulf %86, %83 : vector<64x4x16xf32>
    %88 = arith.select %85, %83, %87 : vector<64x4x16xi1>, vector<64x4x16xf32>
    %89 = vector.extract_strided_slice %88 {offsets = [0, 0, 0], sizes = [64, 1, 16], strides = [1, 1, 1]} : vector<64x4x16xf32> to vector<64x1x16xf32>
    %90 = vector.shape_cast %89 : vector<64x1x16xf32> to vector<64x16xf32>
    %c0_53 = arith.constant 0 : index
    %c0_54 = arith.constant 0 : index
    %91 = vector.load %arg14[%c0_53, %c0_54] : memref<64x64xf32, #tpu.memory_space<vmem>>, vector<64x16xf32>
    tpu.vector_store %arg14[%c0_53, %c0_54], %90 {strides = array<i32>} : memref<64x64xf32, #tpu.memory_space<vmem>>, vector<64x16xf32>,
    %92 = vector.extract_strided_slice %88 {offsets = [0, 1, 0], sizes = [64, 1, 16], strides = [1, 1, 1]} : vector<64x4x16xf32> to vector<64x1x16xf32>
    %93 = vector.shape_cast %92 : vector<64x1x16xf32> to vector<64x16xf32>
    %c0_55 = arith.constant 0 : index
    %c16 = arith.constant 16 : index
    %94 = vector.load %arg14[%c0_55, %c16] : memref<64x64xf32, #tpu.memory_space<vmem>>, vector<64x16xf32>
    tpu.vector_store %arg14[%c0_55, %c16], %93 {strides = array<i32>} : memref<64x64xf32, #tpu.memory_space<vmem>>, vector<64x16xf32>,
    %95 = vector.extract_strided_slice %88 {offsets = [0, 2, 0], sizes = [64, 1, 16], strides = [1, 1, 1]} : vector<64x4x16xf32> to vector<64x1x16xf32>
    %96 = vector.shape_cast %95 : vector<64x1x16xf32> to vector<64x16xf32>
    %c0_56 = arith.constant 0 : index
    %c32 = arith.constant 32 : index
    %97 = vector.load %arg14[%c0_56, %c32] : memref<64x64xf32, #tpu.memory_space<vmem>>, vector<64x16xf32>
    tpu.vector_store %arg14[%c0_56, %c32], %96 {strides = array<i32>} : memref<64x64xf32, #tpu.memory_space<vmem>>, vector<64x16xf32>,
    %98 = vector.extract_strided_slice %88 {offsets = [0, 3, 0], sizes = [64, 1, 16], strides = [1, 1, 1]} : vector<64x4x16xf32> to vector<64x1x16xf32>
    %99 = vector.shape_cast %98 : vector<64x1x16xf32> to vector<64x16xf32>
    %c0_57 = arith.constant 0 : index
    %c48 = arith.constant 48 : index
    %100 = vector.load %arg14[%c0_57, %c48] : memref<64x64xf32, #tpu.memory_space<vmem>>, vector<64x16xf32>
    tpu.vector_store %arg14[%c0_57, %c48], %99 {strides = array<i32>} : memref<64x64xf32, #tpu.memory_space<vmem>>, vector<64x16xf32>,
    %c0_58 = arith.constant 0 : index
    %c0_59 = arith.constant 0 : index
    %101 = vector.load %arg14[%c0_58, %c0_59] : memref<64x64xf32, #tpu.memory_space<vmem>>, vector<64x64xf32>
    %102 = arith.truncf %101 : vector<64x64xf32> to vector<64x64xbf16>
    %c0_60 = arith.constant 0 : index
    %c0_61 = arith.constant 0 : index
    %103 = vector.load %arg10[%c0_60, %c0_61] : memref<64x128xbf16, #tpu.memory_space<vmem>>, vector<64x128xbf16>
    %cst_62 = arith.constant dense<0.000000e+00> : vector<64x128xf32>
    %104 = tpu.matmul %102, %103, %cst_62 {dimension_numbers = #tpu.dot_dimension_numbers<[1], [0], [0], [1], [0, 0, 1, 1], [], []>} : vector<64x64xbf16>, vector<64x128xbf16>, vector<64x128xf32> -> vector<64x128xf32>
    %c0_63 = arith.constant 0 : index
    %c0_64 = arith.constant 0 : index
    %105 = vector.load %arg11[%c0_63, %c0_64] : memref<1x128xf32, #tpu.memory_space<vmem>>, vector<1x128xf32>
    %106 = vector.broadcast %105 : vector<1x128xf32> to vector<64x128xf32>
    %107 = arith.addf %104, %106 : vector<64x128xf32>
    %cst_65 = arith.constant 0.000000e+00 : f32
    %108 = vector.broadcast %cst_65 : f32 to vector<64x128xf32>
    %109 = arith.cmpf oge, %107, %108 : vector<64x128xf32>
    %cst_66 = arith.constant 0.00999999977 : f32
    %110 = vector.broadcast %cst_66 : f32 to vector<64x128xf32>
    %111 = arith.mulf %110, %107 : vector<64x128xf32>
    %112 = arith.select %109, %107, %111 : vector<64x128xi1>, vector<64x128xf32>
    %c0_67 = arith.constant 0 : index
    %c0_68 = arith.constant 0 : index
    %113 = vector.load %arg12[%c0_67, %c0_68] : memref<64x128xf32, #tpu.memory_space<vmem>>, vector<64x128xf32>
    tpu.vector_store %arg12[%c0_67, %c0_68], %112 {strides = array<i32>} : memref<64x128xf32, #tpu.memory_space<vmem>>, vector<64x128xf32>,
    return
  }
  func.func @transform_0(%arg0: i32) -> (i32, i32, i32) {
    %c0_i32 = arith.constant 0 : i32
    %c0_i32_0 = arith.constant 0 : i32
    %c0_i32_1 = arith.constant 0 : i32
    return %arg0, %c0_i32, %c0_i32_0 : i32, i32, i32
  }
  func.func @transform_1(%arg0: i32) -> (i32, i32) {
    %c0_i32 = arith.constant 0 : i32
    %c0_i32_0 = arith.constant 0 : i32
    %c0_i32_1 = arith.constant 0 : i32
    return %c0_i32, %c0_i32_0 : i32, i32
  }
  func.func @transform_2(%arg0: i32) -> (i32, i32) {
    %c0_i32 = arith.constant 0 : i32
    %c0_i32_0 = arith.constant 0 : i32
    %c0_i32_1 = arith.constant 0 : i32
    return %c0_i32, %c0_i32_0 : i32, i32
  }
  func.func @transform_3(%arg0: i32) -> (i32, i32) {
    %c0_i32 = arith.constant 0 : i32
    %c0_i32_0 = arith.constant 0 : i32
    %c0_i32_1 = arith.constant 0 : i32
    return %c0_i32, %c0_i32_0 : i32, i32
  }
  func.func @transform_4(%arg0: i32) -> (i32, i32) {
    %c0_i32 = arith.constant 0 : i32
    %c0_i32_0 = arith.constant 0 : i32
    %c0_i32_1 = arith.constant 0 : i32
    return %c0_i32, %c0_i32_0 : i32, i32
  }
  func.func @transform_5(%arg0: i32) -> (i32, i32) {
    %c0_i32 = arith.constant 0 : i32
    %c0_i32_0 = arith.constant 0 : i32
    %c0_i32_1 = arith.constant 0 : i32
    return %c0_i32, %c0_i32_0 : i32, i32
  }
  func.func @transform_6(%arg0: i32) -> (i32, i32) {
    %c0_i32 = arith.constant 0 : i32
    %c0_i32_0 = arith.constant 0 : i32
    %c0_i32_1 = arith.constant 0 : i32
    return %c0_i32, %c0_i32_0 : i32, i32
  }
  func.func @transform_7(%arg0: i32) -> (i32, i32) {
    %c0_i32 = arith.constant 0 : i32
    %c0_i32_0 = arith.constant 0 : i32
    %c0_i32_1 = arith.constant 0 : i32
    return %c0_i32, %c0_i32_0 : i32, i32
  }
  func.func @transform_8(%arg0: i32) -> (i32, i32) {
    %c0_i32 = arith.constant 0 : i32
    %c0_i32_0 = arith.constant 0 : i32
    %c0_i32_1 = arith.constant 0 : i32
    return %c0_i32, %c0_i32_0 : i32, i32
  }
  func.func @transform_9(%arg0: i32) -> (i32, i32) {
    %c0_i32 = arith.constant 0 : i32
    %c0_i32_0 = arith.constant 0 : i32
    %c0_i32_1 = arith.constant 0 : i32
    return %c0_i32, %c0_i32_0 : i32, i32
  }
  func.func @transform_10(%arg0: i32) -> (i32, i32) {
    %c0_i32 = arith.constant 0 : i32
    %c0_i32_0 = arith.constant 0 : i32
    %c0_i32_1 = arith.constant 0 : i32
    return %c0_i32, %c0_i32_0 : i32, i32
  }
  func.func @transform_11(%arg0: i32) -> (i32, i32) {
    %c0_i32 = arith.constant 0 : i32
    %c0_i32_0 = arith.constant 0 : i32
    return %arg0, %c0_i32 : i32, i32
  }
}

</mosaic_0001>

<llo_original>
// kernel: _lambda_.1
$region0: #{_lambda_.1}
  #allocation0 [shape = 'u32[]', space=smem, size = 0x4, offset = 0x4, fixed_abs, tag = 'smem constant byte address 0x4 - core index']
  #allocation1 [shape = 'u32[72,128]{1,0:T(1,128)}', space=vmem, size = 0x9000, scoped, tag = 'internal scratch']
  #allocation2 [shape = 'f32[64,9,8]{2,1,0:T(8,128)}', space=vmem, size = 0x80000, scoped, tag = 'scratch operand']
  #allocation3 [shape = 'f32[64,64]{1,0:T(8,128)}', space=vmem, size = 0x8000, scoped, tag = 'scratch operand']
  %s0 = inlined_call_operand.vmem [shape: f32[128,17,4], index: 0, kind: input, shape index: {}]
  %s1 = inlined_call_operand.vmem [shape: bf16[12,8], index: 1, kind: input, shape index: {}]
  %s2 = inlined_call_operand.vmem [shape: f32[1,8], index: 2, kind: input, shape index: {}]
  %s3 = inlined_call_operand.vmem [shape: f32[8,1], index: 3, kind: input, shape index: {}]
  %s4 = inlined_call_operand.vmem [shape: f32[8,1], index: 4, kind: input, shape index: {}]
  %s5 = inlined_call_operand.vmem [shape: bf16[24,16], index: 5, kind: input, shape index: {}]
  %s6 = inlined_call_operand.vmem [shape: f32[1,16], index: 6, kind: input, shape index: {}]
  %s7 = inlined_call_operand.vmem [shape: f32[4,1], index: 7, kind: input, shape index: {}]
  %s8 = inlined_call_operand.vmem [shape: f32[4,1], index: 8, kind: input, shape index: {}]
  %s9 = inlined_call_operand.vmem [shape: bf16[64,128], index: 9, kind: input, shape index: {}]
  %s10 = inlined_call_operand.vmem [shape: f32[1,128], index: 10, kind: input, shape index: {}]
  %s11 = inlined_call_operand.vmem [shape: f32[128,128], index: 11, kind: output, shape index: {}]
  %s12 = sld [smem:[#allocation0]]
  $region77: #{_lambda_.1} parent=0
    _
  %s14 = ssub.s32 1, %s12
  %s15 = scalar_select 0, %s14, %s12
  loop: start=0, step=1, limit=4
  $region2: #{_lambda_.1} parent=0 // loop_pre_header
    _
  $region3: #{_lambda_.1} parent=0 // loop_header
    %s17 = sphi 0, %s21
    %p18 = scmp.ge.s32.totalorder %s17, 4
    %s27 = sphi 0, %s29
    %s30 = sphi 0, %s27
    %s31 = sphi 0, %s30
    %s47 = sphi 0, %s31
    %s51 = sphi 0, %s51
    %s53 = sphi 0, %s51
    %s54 = sphi 0, %s53
    %s68 = sphi 0, %s54
    %s72 = sphi 0, %s72
    %s74 = sphi 0, %s72
    %s75 = sphi 0, %s74
    %s89 = sphi 0, %s75
    %s93 = sphi 0, %s93
    %s95 = sphi 0, %s93
    %s96 = sphi 0, %s95
    %s110 = sphi 0, %s96
    %s114 = sphi 0, %s114
    %s116 = sphi 0, %s114
    %s117 = sphi 0, %s116
    %s131 = sphi 0, %s117
    %s135 = sphi 0, %s135
    %s137 = sphi 0, %s135
    %s138 = sphi 0, %s137
    %s152 = sphi 0, %s138
    %s156 = sphi 0, %s156
    %s158 = sphi 0, %s156
    %s159 = sphi 0, %s158
    %s173 = sphi 0, %s159
    %s177 = sphi 0, %s177
    %s179 = sphi 0, %s177
    %s180 = sphi 0, %s179
    %s194 = sphi 0, %s180
    %s198 = sphi 0, %s198
    %s200 = sphi 0, %s198
    %s201 = sphi 0, %s200
    %s215 = sphi 0, %s201
    %s219 = sphi 0, %s219
    %s221 = sphi 0, %s219
    %s222 = sphi 0, %s221
    %s236 = sphi 0, %s222
    %s240 = sphi 0, %s240
    %s242 = sphi 0, %s240
    %s243 = sphi 0, %s242
    %s257 = sphi 0, %s243
    %s263 = sphi 0, %s265
    %s266 = sphi 0, %s263
    %s267 = sphi 0, %s266
    %s283 = sphi 0, %s267
  $region4: #{_lambda_.1} parent=0 // loop_header_branch
    %20 = sbr.rel (%p18) target = $region8
  $region5: #{_lambda_.1} parent=0 // loop_body
    %s22 = ssub.s32 %s17, 1
    %s23 = ssub.s32 %s17, 2
    %s24 = sadd.s32 %s17, 1
    %s25 = ssub.s32 %s17, %s24
    %p26 = scmp.eq.s32.totalorder %s25, 0
    %s28 = sadd.s32 %s27, 1
    %s29 = scalar_select %p26, %s27, %s28
    %p32 = pneg %p26
    %p33 = scmp.eq.s32.totalorder %s17, 1
    %p34 = por %p32, %p33
    %p35 = scmp.ne.s32.totalorder %s27, %s30
    %p36 = scmp.eq.s32.totalorder %s17, 0
    %p37 = por %p35, %p36
    %p38 = scmp.ne.s32.totalorder %s27, %s30
    %p39 = scmp.eq.s32.totalorder %s22, 1
    %p40 = por %p38, %p39
    %p41 = scmp.ne.s32.totalorder %s30, %s31
    %p42 = scmp.eq.s32.totalorder %s22, 0
    %p43 = por %p41, %p42
    %p44 = scmp.ne.s32.totalorder %s30, %s31
    %p45 = scmp.eq.s32.totalorder %s23, 1
    %p46 = por %p44, %p45
    %p48 = scmp.ne.s32.totalorder %s31, %s47
    %p49 = scmp.eq.s32.totalorder %s23, 0
    %p50 = por %p48, %p49
    %s52 = sadd.s32 %s51, 1
    %p55 = scmp.eq.s32.totalorder %s17, 1
    %p56 = scmp.ne.s32.totalorder %s51, %s53
    %p57 = scmp.eq.s32.totalorder %s17, 0
    %p58 = por %p56, %p57
    %p59 = scmp.ne.s32.totalorder %s51, %s53
    %p60 = scmp.eq.s32.totalorder %s22, 1
    %p61 = por %p59, %p60
    %p62 = scmp.ne.s32.totalorder %s53, %s54
    %p63 = scmp.eq.s32.totalorder %s22, 0
    %p64 = por %p62, %p63
    %p65 = scmp.ne.s32.totalorder %s53, %s54
    %p66 = scmp.eq.s32.totalorder %s23, 1
    %p67 = por %p65, %p66
    %p69 = scmp.ne.s32.totalorder %s54, %s68
    %p70 = scmp.eq.s32.totalorder %s23, 0
    %p71 = por %p69, %p70
    %s73 = sadd.s32 %s72, 1
    %p76 = scmp.eq.s32.totalorder %s17, 1
    %p77 = scmp.ne.s32.totalorder %s72, %s74
    %p78 = scmp.eq.s32.totalorder %s17, 0
    %p79 = por %p77, %p78
    %p80 = scmp.ne.s32.totalorder %s72, %s74
    %p81 = scmp.eq.s32.totalorder %s22, 1
    %p82 = por %p80, %p81
    %p83 = scmp.ne.s32.totalorder %s74, %s75
    %p84 = scmp.eq.s32.totalorder %s22, 0
    %p85 = por %p83, %p84
    %p86 = scmp.ne.s32.totalorder %s74, %s75
    %p87 = scmp.eq.s32.totalorder %s23, 1
    %p88 = por %p86, %p87
    %p90 = scmp.ne.s32.totalorder %s75, %s89
    %p91 = scmp.eq.s32.totalorder %s23, 0
    %p92 = por %p90, %p91
    %s94 = sadd.s32 %s93, 1
    %p97 = scmp.eq.s32.totalorder %s17, 1
    %p98 = scmp.ne.s32.totalorder %s93, %s95
    %p99 = scmp.eq.s32.totalorder %s17, 0
    %p100 = por %p98, %p99
    %p101 = scmp.ne.s32.totalorder %s93, %s95
    %p102 = scmp.eq.s32.totalorder %s22, 1
    %p103 = por %p101, %p102
    %p104 = scmp.ne.s32.totalorder %s95, %s96
    %p105 = scmp.eq.s32.totalorder %s22, 0
    %p106 = por %p104, %p105
    %p107 = scmp.ne.s32.totalorder %s95, %s96
    %p108 = scmp.eq.s32.totalorder %s23, 1
    %p109 = por %p107, %p108
    %p111 = scmp.ne.s32.totalorder %s96, %s110
    %p112 = scmp.eq.s32.totalorder %s23, 0
    %p113 = por %p111, %p112
    %s115 = sadd.s32 %s114, 1
    %p118 = scmp.eq.s32.totalorder %s17, 1
    %p119 = scmp.ne.s32.totalorder %s114, %s116
    %p120 = scmp.eq.s32.totalorder %s17, 0
    %p121 = por %p119, %p120
    %p122 = scmp.ne.s32.totalorder %s114, %s116
    %p123 = scmp.eq.s32.totalorder %s22, 1
    %p124 = por %p122, %p123
    %p125 = scmp.ne.s32.totalorder %s116, %s117
    %p126 = scmp.eq.s32.totalorder %s22, 0
    %p127 = por %p125, %p126
    %p128 = scmp.ne.s32.totalorder %s116, %s117
    %p129 = scmp.eq.s32.totalorder %s23, 1
    %p130 = por %p128, %p129
    %p132 = scmp.ne.s32.totalorder %s117, %s131
    %p133 = scmp.eq.s32.totalorder %s23, 0
    %p134 = por %p132, %p133
    %s136 = sadd.s32 %s135, 1
    %p139 = scmp.eq.s32.totalorder %s17, 1
    %p140 = scmp.ne.s32.totalorder %s135, %s137
    %p141 = scmp.eq.s32.totalorder %s17, 0
    %p142 = por %p140, %p141
    %p143 = scmp.ne.s32.totalorder %s135, %s137
    %p144 = scmp.eq.s32.totalorder %s22, 1
    %p145 = por %p143, %p144
    %p146 = scmp.ne.s32.totalorder %s137, %s138
    %p147 = scmp.eq.s32.totalorder %s22, 0
    %p148 = por %p146, %p147
    %p149 = scmp.ne.s32.totalorder %s137, %s138
    %p150 = scmp.eq.s32.totalorder %s23, 1
    %p151 = por %p149, %p150
    %p153 = scmp.ne.s32.totalorder %s138, %s152
    %p154 = scmp.eq.s32.totalorder %s23, 0
    %p155 = por %p153, %p154
    %s157 = sadd.s32 %s156, 1
    %p160 = scmp.eq.s32.totalorder %s17, 1
    %p161 = scmp.ne.s32.totalorder %s156, %s158
    %p162 = scmp.eq.s32.totalorder %s17, 0
    %p163 = por %p161, %p162
    %p164 = scmp.ne.s32.totalorder %s156, %s158
    %p165 = scmp.eq.s32.totalorder %s22, 1
    %p166 = por %p164, %p165
    %p167 = scmp.ne.s32.totalorder %s158, %s159
    %p168 = scmp.eq.s32.totalorder %s22, 0
    %p169 = por %p167, %p168
    %p170 = scmp.ne.s32.totalorder %s158, %s159
    %p171 = scmp.eq.s32.totalorder %s23, 1
    %p172 = por %p170, %p171
    %p174 = scmp.ne.s32.totalorder %s159, %s173
    %p175 = scmp.eq.s32.totalorder %s23, 0
    %p176 = por %p174, %p175
    %s178 = sadd.s32 %s177, 1
    %p181 = scmp.eq.s32.totalorder %s17, 1
    %p182 = scmp.ne.s32.totalorder %s177, %s179
    %p183 = scmp.eq.s32.totalorder %s17, 0
    %p184 = por %p182, %p183
    %p185 = scmp.ne.s32.totalorder %s177, %s179
    %p186 = scmp.eq.s32.totalorder %s22, 1
    %p187 = por %p185, %p186
    %p188 = scmp.ne.s32.totalorder %s179, %s180
    %p189 = scmp.eq.s32.totalorder %s22, 0
    %p190 = por %p188, %p189
    %p191 = scmp.ne.s32.totalorder %s179, %s180
    %p192 = scmp.eq.s32.totalorder %s23, 1
    %p193 = por %p191, %p192
    %p195 = scmp.ne.s32.totalorder %s180, %s194
    %p196 = scmp.eq.s32.totalorder %s23, 0
    %p197 = por %p195, %p196
    %s199 = sadd.s32 %s198, 1
    %p202 = scmp.eq.s32.totalorder %s17, 1
    %p203 = scmp.ne.s32.totalorder %s198, %s200
    %p204 = scmp.eq.s32.totalorder %s17, 0
    %p205 = por %p203, %p204
    %p206 = scmp.ne.s32.totalorder %s198, %s200
    %p207 = scmp.eq.s32.totalorder %s22, 1
    %p208 = por %p206, %p207
    %p209 = scmp.ne.s32.totalorder %s200, %s201
    %p210 = scmp.eq.s32.totalorder %s22, 0
    %p211 = por %p209, %p210
    %p212 = scmp.ne.s32.totalorder %s200, %s201
    %p213 = scmp.eq.s32.totalorder %s23, 1
    %p214 = por %p212, %p213
    %p216 = scmp.ne.s32.totalorder %s201, %s215
    %p217 = scmp.eq.s32.totalorder %s23, 0
    %p218 = por %p216, %p217
    %s220 = sadd.s32 %s219, 1
    %p223 = scmp.eq.s32.totalorder %s17, 1
    %p224 = scmp.ne.s32.totalorder %s219, %s221
    %p225 = scmp.eq.s32.totalorder %s17, 0
    %p226 = por %p224, %p225
    %p227 = scmp.ne.s32.totalorder %s219, %s221
    %p228 = scmp.eq.s32.totalorder %s22, 1
    %p229 = por %p227, %p228
    %p230 = scmp.ne.s32.totalorder %s221, %s222
    %p231 = scmp.eq.s32.totalorder %s22, 0
    %p232 = por %p230, %p231
    %p233 = scmp.ne.s32.totalorder %s221, %s222
    %p234 = scmp.eq.s32.totalorder %s23, 1
    %p235 = por %p233, %p234
    %p237 = scmp.ne.s32.totalorder %s222, %s236
    %p238 = scmp.eq.s32.totalorder %s23, 0
    %p239 = por %p237, %p238
    %s241 = sadd.s32 %s240, 1
    %p244 = scmp.eq.s32.totalorder %s17, 1
    %p245 = scmp.ne.s32.totalorder %s240, %s242
    %p246 = scmp.eq.s32.totalorder %s17, 0
    %p247 = por %p245, %p246
    %p248 = scmp.ne.s32.totalorder %s240, %s242
    %p249 = scmp.eq.s32.totalorder %s22, 1
    %p250 = por %p248, %p249
    %p251 = scmp.ne.s32.totalorder %s242, %s243
    %p252 = scmp.eq.s32.totalorder %s22, 0
    %p253 = por %p251, %p252
    %p254 = scmp.ne.s32.totalorder %s242, %s243
    %p255 = scmp.eq.s32.totalorder %s23, 1
    %p256 = por %p254, %p255
    %p258 = scmp.ne.s32.totalorder %s243, %s257
    %p259 = scmp.eq.s32.totalorder %s23, 0
    %p260 = por %p258, %p259
    %s261 = ssub.s32 %s17, %s24
    %p262 = scmp.eq.s32.totalorder %s261, 0
    %s264 = sadd.s32 %s263, 1
    %s265 = scalar_select %p262, %s263, %s264
    %p268 = pneg %p262
    %p269 = scmp.eq.s32.totalorder %s17, 1
    %p270 = por %p268, %p269
    %p271 = scmp.ne.s32.totalorder %s263, %s266
    %p272 = scmp.eq.s32.totalorder %s17, 0
    %p273 = por %p271, %p272
    %p274 = scmp.ne.s32.totalorder %s263, %s266
    %p275 = scmp.eq.s32.totalorder %s22, 1
    %p276 = por %p274, %p275
    %p277 = scmp.ne.s32.totalorder %s266, %s267
    %p278 = scmp.eq.s32.totalorder %s22, 0
    %p279 = por %p277, %p278
    %p280 = scmp.ne.s32.totalorder %s266, %s267
    %p281 = scmp.eq.s32.totalorder %s23, 1
    %p282 = por %p280, %p281
    %p284 = scmp.ne.s32.totalorder %s267, %s283
    %p285 = scmp.eq.s32.totalorder %s23, 0
    %p286 = por %p284, %p285
    %p287 = scmp.le.s32.totalorder 1, %s17
    %p288 = scmp.lt.s32.totalorder %s17, 3
    %p289 = pnand %p287, %p288
    %p290 = pneg %p289
    // Predicated region
    $region9: #{_lambda_.1} parent=5 // pred_check
      _
    $region10: #{_lambda_.1} parent=5 // pred_check_branch
      %292 = sbr.rel (%p289) target = $region12
    $region11: #{_lambda_.1} parent=5 // pred_region
      %s293 = ssub.s32 %s17, 1
      // Predicated region
      $region13: #{_lambda_.1} parent=11 // pred_check
        %p294 = pneg %p64
      $region14: #{_lambda_.1} parent=11 // pred_check_branch
        %296 = sbr.rel (%p294) target = $region16
      $region15: #{_lambda_.1} parent=11 // pred_region
        _
      $region16: #{_lambda_.1} parent=11 // pred_fallthru
        _
      // Predicated region
      $region17: #{_lambda_.1} parent=11 // pred_check
        %p297 = pneg %p85
      $region18: #{_lambda_.1} parent=11 // pred_check_branch
        %299 = sbr.rel (%p297) target = $region20
      $region19: #{_lambda_.1} parent=11 // pred_region
        _
      $region20: #{_lambda_.1} parent=11 // pred_fallthru
        _
      // Predicated region
      $region21: #{_lambda_.1} parent=11 // pred_check
        %p300 = pneg %p106
      $region22: #{_lambda_.1} parent=11 // pred_check_branch
        %302 = sbr.rel (%p300) target = $region24
      $region23: #{_lambda_.1} parent=11 // pred_region
        _
      $region24: #{_lambda_.1} parent=11 // pred_fallthru
        _
      // Predicated region
      $region25: #{_lambda_.1} parent=11 // pred_check
        %p303 = pneg %p127
      $region26: #{_lambda_.1} parent=11 // pred_check_branch
        %305 = sbr.rel (%p303) target = $region28
      $region27: #{_lambda_.1} parent=11 // pred_region
        _
      $region28: #{_lambda_.1} parent=11 // pred_fallthru
        _
      // Predicated region
      $region29: #{_lambda_.1} parent=11 // pred_check
        %p306 = pneg %p148
      $region30: #{_lambda_.1} parent=11 // pred_check_branch
        %308 = sbr.rel (%p306) target = $region32
      $region31: #{_lambda_.1} parent=11 // pred_region
        _
      $region32: #{_lambda_.1} parent=11 // pred_fallthru
        _
      // Predicated region
      $region33: #{_lambda_.1} parent=11 // pred_check
        %p309 = pneg %p169
      $region34: #{_lambda_.1} parent=11 // pred_check_branch
        %311 = sbr.rel (%p309) target = $region36
      $region35: #{_lambda_.1} parent=11 // pred_region
        _
      $region36: #{_lambda_.1} parent=11 // pred_fallthru
        _
      // Predicated region
      $region37: #{_lambda_.1} parent=11 // pred_check
        %p312 = pneg %p190
      $region38: #{_lambda_.1} parent=11 // pred_check_branch
        %314 = sbr.rel (%p312) target = $region40
      $region39: #{_lambda_.1} parent=11 // pred_region
        _
      $region40: #{_lambda_.1} parent=11 // pred_fallthru
        _
      // Predicated region
      $region41: #{_lambda_.1} parent=11 // pred_check
        %p315 = pneg %p211
      $region42: #{_lambda_.1} parent=11 // pred_check_branch
        %317 = sbr.rel (%p315) target = $region44
      $region43: #{_lambda_.1} parent=11 // pred_region
        _
      $region44: #{_lambda_.1} parent=11 // pred_fallthru
        _
      // Predicated region
      $region45: #{_lambda_.1} parent=11 // pred_check
        %p318 = pneg %p232
      $region46: #{_lambda_.1} parent=11 // pred_check_branch
        %320 = sbr.rel (%p318) target = $region48
      $region47: #{_lambda_.1} parent=11 // pred_region
        _
      $region48: #{_lambda_.1} parent=11 // pred_fallthru
        _
      // Predicated region
      $region49: #{_lambda_.1} parent=11 // pred_check
        %p321 = pneg %p253
      $region50: #{_lambda_.1} parent=11 // pred_check_branch
        %323 = sbr.rel (%p321) target = $region52
      $region51: #{_lambda_.1} parent=11 // pred_region
        _
      $region52: #{_lambda_.1} parent=11 // pred_fallthru
        _
    $region12: #{_lambda_.1} parent=5 // pred_fallthru
      _
    %p324 = scmp.lt.s32.totalorder %s17, 2
    // Predicated region
    $region53: #{_lambda_.1} parent=5 // pred_check
      %p325 = pneg %p324
    $region54: #{_lambda_.1} parent=5 // pred_check_branch
      %327 = sbr.rel (%p325) target = $region56
    $region55: #{_lambda_.1} parent=5 // pred_region
      // Predicated region
      $region57: #{_lambda_.1} parent=55 // pred_check
        %p328 = pneg %p37
      $region58: #{_lambda_.1} parent=55 // pred_check_branch
        %330 = sbr.rel (%p328) target = $region60
      $region59: #{_lambda_.1} parent=55 // pred_region
        %s331 = smul.u32 64, %s17
        %p332 = scmp.lt.s32.totalorder %s331, 127
        %s333 = scalar_select %p332, %s331, 127
        %s334 = smul.addr %s333, 3
        %s335 = smul.addr %s334, 8
        %s336 = scalar_lea.vmem %s0, %s335
        %s337 = smul.u32 64, %s17
      $region60: #{_lambda_.1} parent=55 // pred_fallthru
        _
    $region56: #{_lambda_.1} parent=5 // pred_fallthru
      _
    %p338 = scmp.le.s32.totalorder 1, %s17
    %p339 = scmp.lt.s32.totalorder %s17, 3
    %p340 = pnand %p338, %p339
    %p341 = pneg %p340
    // Predicated region
    $region61: #{_lambda_.1} parent=5 // pred_check
      _
    $region62: #{_lambda_.1} parent=5 // pred_check_branch
      %343 = sbr.rel (%p340) target = $region64
    $region63: #{_lambda_.1} parent=5 // pred_region
      %s344 = ssub.s32 %s17, 1
      %s345 = smul.u32 64, %s22
      %p346 = scmp.lt.s32.totalorder %s345, 127
      %s347 = scalar_select %p346, %s345, 127
      %s348 = smul.addr %s347, 3
      %s349 = smul.addr %s348, 8
      %s350 = scalar_lea.vmem %s0, %s349
      %p351 = pneg %p43
      %p352 = pneg %p40
      %p353 = pneg %p64
      %p354 = pneg %p61
      %p355 = pneg %p85
      %p356 = pneg %p82
      %p357 = pneg %p106
      %p358 = pneg %p103
      %p359 = pneg %p127
      %p360 = pneg %p124
      %p361 = pneg %p148
      %p362 = pneg %p145
      %p363 = pneg %p169
      %p364 = pneg %p166
      %p365 = pneg %p190
      %p366 = pneg %p187
      %p367 = pneg %p211
      %p368 = pneg %p208
      %p369 = pneg %p232
      %p370 = pneg %p229
      %p371 = pneg %p253
      %p372 = pneg %p250
      %p373 = pneg %p279
      %p374 = pneg %p276
      %s375 = smul.u32 8, %s22
      %p376 = scmp.lt.s32.totalorder %s375, 15
      %s377 = scalar_select %p376, %s375, 15
      %s378 = smul.addr %s377, 8
      %s379 = scalar_lea.vmem %s11, %s378
      %s380 = smul.u32 64, %s22
      %p381 = scmp.lt.s32.totalorder %s380, 127
      %s382 = scalar_select %p381, %s380, 127
      %s383 = smul.addr %s382, 3
      %s384 = smul.addr %s383, 8
      %s385 = scalar_lea.vmem %s0, %s384
      %s386 = smul.u32 64, %s22
      %s387 = smul.u32 8, %s22
      %p388 = scmp.lt.s32.totalorder %s387, 15
      %s389 = scalar_select %p388, %s387, 15
      %s390 = smul.addr %s389, 8
      %s391 = scalar_lea.vmem %s11, %s390
      %s392 = smul.u32 8, %s22
      %v394 = vld [vmem:[%s385] ss:$2 sm:$0xff]
      %s395 = scalar_lea.vmem %s385, 24
      %v396 = vld [vmem:[%s395] ss:$2 sm:$0xff]
      %s397 = scalar_lea.vmem %s385, 48
      %v398 = vld [vmem:[%s397] ss:$2 sm:$0xff]
      %s399 = scalar_lea.vmem %s385, 72
      %v400 = vld [vmem:[%s399] ss:$2 sm:$0xff]
      %s401 = scalar_lea.vmem %s385, 96
      %v402 = vld [vmem:[%s401] ss:$2 sm:$0xff]
      %s403 = scalar_lea.vmem %s385, 120
      %v404 = vld [vmem:[%s403] ss:$2 sm:$0xff]
      %s405 = scalar_lea.vmem %s385, 144
      %v406 = vld [vmem:[%s405] ss:$2 sm:$0xff]
      %s407 = scalar_lea.vmem %s385, 168
      %v408 = vld [vmem:[%s407] ss:$2 sm:$0xff]
      %s409 = scalar_lea.vmem %s385, 192
      %v410 = vld [vmem:[%s409] ss:$2 sm:$0xff]
      %s411 = scalar_lea.vmem %s385, 216
      %v412 = vld [vmem:[%s411] ss:$2 sm:$0xff]
      %s413 = scalar_lea.vmem %s385, 240
      %v414 = vld [vmem:[%s413] ss:$2 sm:$0xff]
      %s415 = scalar_lea.vmem %s385, 264
      %v416 = vld [vmem:[%s415] ss:$2 sm:$0xff]
      %s417 = scalar_lea.vmem %s385, 288
      %v418 = vld [vmem:[%s417] ss:$2 sm:$0xff]
      %s419 = scalar_lea.vmem %s385, 312
      %v420 = vld [vmem:[%s419] ss:$2 sm:$0xff]
      %s421 = scalar_lea.vmem %s385, 336
      %v422 = vld [vmem:[%s421] ss:$2 sm:$0xff]
      %s423 = scalar_lea.vmem %s385, 360
      %v424 = vld [vmem:[%s423] ss:$2 sm:$0xff]
      %s425 = scalar_lea.vmem %s385, 384
      %v426 = vld [vmem:[%s425] ss:$2 sm:$0xff]
      %s427 = scalar_lea.vmem %s385, 408
      %v428 = vld [vmem:[%s427] ss:$2 sm:$0xff]
      %s429 = scalar_lea.vmem %s385, 432
      %v430 = vld [vmem:[%s429] ss:$2 sm:$0xff]
      %s431 = scalar_lea.vmem %s385, 456
      %v432 = vld [vmem:[%s431] ss:$2 sm:$0xff]
      %s433 = scalar_lea.vmem %s385, 480
      %v434 = vld [vmem:[%s433] ss:$2 sm:$0xff]
      %s435 = scalar_lea.vmem %s385, 504
      %v436 = vld [vmem:[%s435] ss:$2 sm:$0xff]
      %s437 = scalar_lea.vmem %s385, 528
      %v438 = vld [vmem:[%s437] ss:$2 sm:$0xff]
      %s439 = scalar_lea.vmem %s385, 552
      %v440 = vld [vmem:[%s439] ss:$2 sm:$0xff]
      %s441 = scalar_lea.vmem %s385, 576
      %v442 = vld [vmem:[%s441] ss:$2 sm:$0xff]
      %s443 = scalar_lea.vmem %s385, 600
      %v444 = vld [vmem:[%s443] ss:$2 sm:$0xff]
      %s445 = scalar_lea.vmem %s385, 624
      %v446 = vld [vmem:[%s445] ss:$2 sm:$0xff]
      %s447 = scalar_lea.vmem %s385, 648
      %v448 = vld [vmem:[%s447] ss:$2 sm:$0xff]
      %s449 = scalar_lea.vmem %s385, 672
      %v450 = vld [vmem:[%s449] ss:$2 sm:$0xff]
      %s451 = scalar_lea.vmem %s385, 696
      %v452 = vld [vmem:[%s451] ss:$2 sm:$0xff]
      %s453 = scalar_lea.vmem %s385, 720
      %v454 = vld [vmem:[%s453] ss:$2 sm:$0xff]
      %s455 = scalar_lea.vmem %s385, 744
      %v456 = vld [vmem:[%s455] ss:$2 sm:$0xff]
      %s457 = scalar_lea.vmem %s385, 768
      %v458 = vld [vmem:[%s457] ss:$2 sm:$0xff]
      %s459 = scalar_lea.vmem %s385, 792
      %v460 = vld [vmem:[%s459] ss:$2 sm:$0xff]
      %s461 = scalar_lea.vmem %s385, 816
      %v462 = vld [vmem:[%s461] ss:$2 sm:$0xff]
      %s463 = scalar_lea.vmem %s385, 840
      %v464 = vld [vmem:[%s463] ss:$2 sm:$0xff]
      %s465 = scalar_lea.vmem %s385, 864
      %v466 = vld [vmem:[%s465] ss:$2 sm:$0xff]
      %s467 = scalar_lea.vmem %s385, 888
      %v468 = vld [vmem:[%s467] ss:$2 sm:$0xff]
      %s469 = scalar_lea.vmem %s385, 912
      %v470 = vld [vmem:[%s469] ss:$2 sm:$0xff]
      %s471 = scalar_lea.vmem %s385, 936
      %v472 = vld [vmem:[%s471] ss:$2 sm:$0xff]
      %s473 = scalar_lea.vmem %s385, 960
      %v474 = vld [vmem:[%s473] ss:$2 sm:$0xff]
      %s475 = scalar_lea.vmem %s385, 984
      %v476 = vld [vmem:[%s475] ss:$2 sm:$0xff]
      %s477 = scalar_lea.vmem %s385, 1008
      %v478 = vld [vmem:[%s477] ss:$2 sm:$0xff]
      %s479 = scalar_lea.vmem %s385, 1032
      %v480 = vld [vmem:[%s479] ss:$2 sm:$0xff]
      %s481 = scalar_lea.vmem %s385, 1056
      %v482 = vld [vmem:[%s481] ss:$2 sm:$0xff]
      %s483 = scalar_lea.vmem %s385, 1080
      %v484 = vld [vmem:[%s483] ss:$2 sm:$0xff]
      %s485 = scalar_lea.vmem %s385, 1104
      %v486 = vld [vmem:[%s485] ss:$2 sm:$0xff]
      %s487 = scalar_lea.vmem %s385, 1128
      %v488 = vld [vmem:[%s487] ss:$2 sm:$0xff]
      %s489 = scalar_lea.vmem %s385, 1152
      %v490 = vld [vmem:[%s489] ss:$2 sm:$0xff]
      %s491 = scalar_lea.vmem %s385, 1176
      %v492 = vld [vmem:[%s491] ss:$2 sm:$0xff]
      %s493 = scalar_lea.vmem %s385, 1200
      %v494 = vld [vmem:[%s493] ss:$2 sm:$0xff]
      %s495 = scalar_lea.vmem %s385, 1224
      %v496 = vld [vmem:[%s495] ss:$2 sm:$0xff]
      %s497 = scalar_lea.vmem %s385, 1248
      %v498 = vld [vmem:[%s497] ss:$2 sm:$0xff]
      %s499 = scalar_lea.vmem %s385, 1272
      %v500 = vld [vmem:[%s499] ss:$2 sm:$0xff]
      %s501 = scalar_lea.vmem %s385, 1296
      %v502 = vld [vmem:[%s501] ss:$2 sm:$0xff]
      %s503 = scalar_lea.vmem %s385, 1320
      %v504 = vld [vmem:[%s503] ss:$2 sm:$0xff]
      %s505 = scalar_lea.vmem %s385, 1344
      %v506 = vld [vmem:[%s505] ss:$2 sm:$0xff]
      %s507 = scalar_lea.vmem %s385, 1368
      %v508 = vld [vmem:[%s507] ss:$2 sm:$0xff]
      %s509 = scalar_lea.vmem %s385, 1392
      %v510 = vld [vmem:[%s509] ss:$2 sm:$0xff]
      %s511 = scalar_lea.vmem %s385, 1416
      %v512 = vld [vmem:[%s511] ss:$2 sm:$0xff]
      %s513 = scalar_lea.vmem %s385, 1440
      %v514 = vld [vmem:[%s513] ss:$2 sm:$0xff]
      %s515 = scalar_lea.vmem %s385, 1464
      %v516 = vld [vmem:[%s515] ss:$2 sm:$0xff]
      %s517 = scalar_lea.vmem %s385, 1488
      %v518 = vld [vmem:[%s517] ss:$2 sm:$0xff]
      %s519 = scalar_lea.vmem %s385, 1512
      %v520 = vld [vmem:[%s519] ss:$2 sm:$0xff]
      %s521 = scalar_lea.vmem %s385, 1
      %v522 = vld [vmem:[%s521] ss:$2 sm:$0xff]
      %s523 = scalar_lea.vmem %s385, 25
      %v524 = vld [vmem:[%s523] ss:$2 sm:$0xff]
      %s525 = scalar_lea.vmem %s385, 49
      %v526 = vld [vmem:[%s525] ss:$2 sm:$0xff]
      %s527 = scalar_lea.vmem %s385, 73
      %v528 = vld [vmem:[%s527] ss:$2 sm:$0xff]
      %s529 = scalar_lea.vmem %s385, 97
      %v530 = vld [vmem:[%s529] ss:$2 sm:$0xff]
      %s531 = scalar_lea.vmem %s385, 121
      %v532 = vld [vmem:[%s531] ss:$2 sm:$0xff]
      %s533 = scalar_lea.vmem %s385, 145
      %v534 = vld [vmem:[%s533] ss:$2 sm:$0xff]
      %s535 = scalar_lea.vmem %s385, 169
      %v536 = vld [vmem:[%s535] ss:$2 sm:$0xff]
      %s537 = scalar_lea.vmem %s385, 193
      %v538 = vld [vmem:[%s537] ss:$2 sm:$0xff]
      %s539 = scalar_lea.vmem %s385, 217
      %v540 = vld [vmem:[%s539] ss:$2 sm:$0xff]
      %s541 = scalar_lea.vmem %s385, 241
      %v542 = vld [vmem:[%s541] ss:$2 sm:$0xff]
      %s543 = scalar_lea.vmem %s385, 265
      %v544 = vld [vmem:[%s543] ss:$2 sm:$0xff]
      %s545 = scalar_lea.vmem %s385, 289
      %v546 = vld [vmem:[%s545] ss:$2 sm:$0xff]
      %s547 = scalar_lea.vmem %s385, 313
      %v548 = vld [vmem:[%s547] ss:$2 sm:$0xff]
      %s549 = scalar_lea.vmem %s385, 337
      %v550 = vld [vmem:[%s549] ss:$2 sm:$0xff]
      %s551 = scalar_lea.vmem %s385, 361
      %v552 = vld [vmem:[%s551] ss:$2 sm:$0xff]
      %s553 = scalar_lea.vmem %s385, 385
      %v554 = vld [vmem:[%s553] ss:$2 sm:$0xff]
      %s555 = scalar_lea.vmem %s385, 409
      %v556 = vld [vmem:[%s555] ss:$2 sm:$0xff]
      %s557 = scalar_lea.vmem %s385, 433
      %v558 = vld [vmem:[%s557] ss:$2 sm:$0xff]
      %s559 = scalar_lea.vmem %s385, 457
      %v560 = vld [vmem:[%s559] ss:$2 sm:$0xff]
      %s561 = scalar_lea.vmem %s385, 481
      %v562 = vld [vmem:[%s561] ss:$2 sm:$0xff]
      %s563 = scalar_lea.vmem %s385, 505
      %v564 = vld [vmem:[%s563] ss:$2 sm:$0xff]
      %s565 = scalar_lea.vmem %s385, 529
      %v566 = vld [vmem:[%s565] ss:$2 sm:$0xff]
      %s567 = scalar_lea.vmem %s385, 553
      %v568 = vld [vmem:[%s567] ss:$2 sm:$0xff]
      %s569 = scalar_lea.vmem %s385, 577
      %v570 = vld [vmem:[%s569] ss:$2 sm:$0xff]
      %s571 = scalar_lea.vmem %s385, 601
      %v572 = vld [vmem:[%s571] ss:$2 sm:$0xff]
      %s573 = scalar_lea.vmem %s385, 625
      %v574 = vld [vmem:[%s573] ss:$2 sm:$0xff]
      %s575 = scalar_lea.vmem %s385, 649
      %v576 = vld [vmem:[%s575] ss:$2 sm:$0xff]
      %s577 = scalar_lea.vmem %s385, 673
      %v578 = vld [vmem:[%s577] ss:$2 sm:$0xff]
      %s579 = scalar_lea.vmem %s385, 697
      %v580 = vld [vmem:[%s579] ss:$2 sm:$0xff]
      %s581 = scalar_lea.vmem %s385, 721
      %v582 = vld [vmem:[%s581] ss:$2 sm:$0xff]
      %s583 = scalar_lea.vmem %s385, 745
      %v584 = vld [vmem:[%s583] ss:$2 sm:$0xff]
      %s585 = scalar_lea.vmem %s385, 769
      %v586 = vld [vmem:[%s585] ss:$2 sm:$0xff]
      %s587 = scalar_lea.vmem %s385, 793
      %v588 = vld [vmem:[%s587] ss:$2 sm:$0xff]
      %s589 = scalar_lea.vmem %s385, 817
      %v590 = vld [vmem:[%s589] ss:$2 sm:$0xff]
      %s591 = scalar_lea.vmem %s385, 841
      %v592 = vld [vmem:[%s591] ss:$2 sm:$0xff]
      %s593 = scalar_lea.vmem %s385, 865
      %v594 = vld [vmem:[%s593] ss:$2 sm:$0xff]
      %s595 = scalar_lea.vmem %s385, 889
      %v596 = vld [vmem:[%s595] ss:$2 sm:$0xff]
      %s597 = scalar_lea.vmem %s385, 913
      %v598 = vld [vmem:[%s597] ss:$2 sm:$0xff]
      %s599 = scalar_lea.vmem %s385, 937
      %v600 = vld [vmem:[%s599] ss:$2 sm:$0xff]
      %s601 = scalar_lea.vmem %s385, 961
      %v602 = vld [vmem:[%s601] ss:$2 sm:$0xff]
      %s603 = scalar_lea.vmem %s385, 985
      %v604 = vld [vmem:[%s603] ss:$2 sm:$0xff]
      %s605 = scalar_lea.vmem %s385, 1009
      %v606 = vld [vmem:[%s605] ss:$2 sm:$0xff]
      %s607 = scalar_lea.vmem %s385, 1033
      %v608 = vld [vmem:[%s607] ss:$2 sm:$0xff]
      %s609 = scalar_lea.vmem %s385, 1057
      %v610 = vld [vmem:[%s609] ss:$2 sm:$0xff]
      %s611 = scalar_lea.vmem %s385, 1081
      %v612 = vld [vmem:[%s611] ss:$2 sm:$0xff]
      %s613 = scalar_lea.vmem %s385, 1105
      %v614 = vld [vmem:[%s613] ss:$2 sm:$0xff]
      %s615 = scalar_lea.vmem %s385, 1129
      %v616 = vld [vmem:[%s615] ss:$2 sm:$0xff]
      %s617 = scalar_lea.vmem %s385, 1153
      %v618 = vld [vmem:[%s617] ss:$2 sm:$0xff]
      %s619 = scalar_lea.vmem %s385, 1177
      %v620 = vld [vmem:[%s619] ss:$2 sm:$0xff]
      %s621 = scalar_lea.vmem %s385, 1201
      %v622 = vld [vmem:[%s621] ss:$2 sm:$0xff]
      %s623 = scalar_lea.vmem %s385, 1225
      %v624 = vld [vmem:[%s623] ss:$2 sm:$0xff]
      %s625 = scalar_lea.vmem %s385, 1249
      %v626 = vld [vmem:[%s625] ss:$2 sm:$0xff]
      %s627 = scalar_lea.vmem %s385, 1273
      %v628 = vld [vmem:[%s627] ss:$2 sm:$0xff]
      %s629 = scalar_lea.vmem %s385, 1297
      %v630 = vld [vmem:[%s629] ss:$2 sm:$0xff]
      %s631 = scalar_lea.vmem %s385, 1321
      %v632 = vld [vmem:[%s631] ss:$2 sm:$0xff]
      %s633 = scalar_lea.vmem %s385, 1345
      %v634 = vld [vmem:[%s633] ss:$2 sm:$0xff]
      %s635 = scalar_lea.vmem %s385, 1369
      %v636 = vld [vmem:[%s635] ss:$2 sm:$0xff]
      %s637 = scalar_lea.vmem %s385, 1393
      %v638 = vld [vmem:[%s637] ss:$2 sm:$0xff]
      %s639 = scalar_lea.vmem %s385, 1417
      %v640 = vld [vmem:[%s639] ss:$2 sm:$0xff]
      %s641 = scalar_lea.vmem %s385, 1441
      %v642 = vld [vmem:[%s641] ss:$2 sm:$0xff]
      %s643 = scalar_lea.vmem %s385, 1465
      %v644 = vld [vmem:[%s643] ss:$2 sm:$0xff]
      %s645 = scalar_lea.vmem %s385, 1489
      %v646 = vld [vmem:[%s645] ss:$2 sm:$0xff]
      %s647 = scalar_lea.vmem %s385, 1513
      %v648 = vld [vmem:[%s647] ss:$2 sm:$0xff]
      %s649 = scalar_lea.vmem %s385, 2
      %v650 = vld [vmem:[%s649] ss:$2 sm:$0xff]
      %s651 = scalar_lea.vmem %s385, 26
      %v652 = vld [vmem:[%s651] ss:$2 sm:$0xff]
      %s653 = scalar_lea.vmem %s385, 50
      %v654 = vld [vmem:[%s653] ss:$2 sm:$0xff]
      %s655 = scalar_lea.vmem %s385, 74
      %v656 = vld [vmem:[%s655] ss:$2 sm:$0xff]
      %s657 = scalar_lea.vmem %s385, 98
      %v658 = vld [vmem:[%s657] ss:$2 sm:$0xff]
      %s659 = scalar_lea.vmem %s385, 122
      %v660 = vld [vmem:[%s659] ss:$2 sm:$0xff]
      %s661 = scalar_lea.vmem %s385, 146
      %v662 = vld [vmem:[%s661] ss:$2 sm:$0xff]
      %s663 = scalar_lea.vmem %s385, 170
      %v664 = vld [vmem:[%s663] ss:$2 sm:$0xff]
      %s665 = scalar_lea.vmem %s385, 194
      %v666 = vld [vmem:[%s665] ss:$2 sm:$0xff]
      %s667 = scalar_lea.vmem %s385, 218
      %v668 = vld [vmem:[%s667] ss:$2 sm:$0xff]
      %s669 = scalar_lea.vmem %s385, 242
      %v670 = vld [vmem:[%s669] ss:$2 sm:$0xff]
      %s671 = scalar_lea.vmem %s385, 266
      %v672 = vld [vmem:[%s671] ss:$2 sm:$0xff]
      %s673 = scalar_lea.vmem %s385, 290
      %v674 = vld [vmem:[%s673] ss:$2 sm:$0xff]
      %s675 = scalar_lea.vmem %s385, 314
      %v676 = vld [vmem:[%s675] ss:$2 sm:$0xff]
      %s677 = scalar_lea.vmem %s385, 338
      %v678 = vld [vmem:[%s677] ss:$2 sm:$0xff]
      %s679 = scalar_lea.vmem %s385, 362
      %v680 = vld [vmem:[%s679] ss:$2 sm:$0xff]
      %s681 = scalar_lea.vmem %s385, 386
      %v682 = vld [vmem:[%s681] ss:$2 sm:$0xff]
      %s683 = scalar_lea.vmem %s385, 410
      %v684 = vld [vmem:[%s683] ss:$2 sm:$0xff]
      %s685 = scalar_lea.vmem %s385, 434
      %v686 = vld [vmem:[%s685] ss:$2 sm:$0xff]
      %s687 = scalar_lea.vmem %s385, 458
      %v688 = vld [vmem:[%s687] ss:$2 sm:$0xff]
      %s689 = scalar_lea.vmem %s385, 482
      %v690 = vld [vmem:[%s689] ss:$2 sm:$0xff]
      %s691 = scalar_lea.vmem %s385, 506
      %v692 = vld [vmem:[%s691] ss:$2 sm:$0xff]
      %s693 = scalar_lea.vmem %s385, 530
      %v694 = vld [vmem:[%s693] ss:$2 sm:$0xff]
      %s695 = scalar_lea.vmem %s385, 554
      %v696 = vld [vmem:[%s695] ss:$2 sm:$0xff]
      %s697 = scalar_lea.vmem %s385, 578
      %v698 = vld [vmem:[%s697] ss:$2 sm:$0xff]
      %s699 = scalar_lea.vmem %s385, 602
      %v700 = vld [vmem:[%s699] ss:$2 sm:$0xff]
      %s701 = scalar_lea.vmem %s385, 626
      %v702 = vld [vmem:[%s701] ss:$2 sm:$0xff]
      %s703 = scalar_lea.vmem %s385, 650
      %v704 = vld [vmem:[%s703] ss:$2 sm:$0xff]
      %s705 = scalar_lea.vmem %s385, 674
      %v706 = vld [vmem:[%s705] ss:$2 sm:$0xff]
      %s707 = scalar_lea.vmem %s385, 698
      %v708 = vld [vmem:[%s707] ss:$2 sm:$0xff]
      %s709 = scalar_lea.vmem %s385, 722
      %v710 = vld [vmem:[%s709] ss:$2 sm:$0xff]
      %s711 = scalar_lea.vmem %s385, 746
      %v712 = vld [vmem:[%s711] ss:$2 sm:$0xff]
      %s713 = scalar_lea.vmem %s385, 770
      %v714 = vld [vmem:[%s713] ss:$2 sm:$0xff]
      %s715 = scalar_lea.vmem %s385, 794
      %v716 = vld [vmem:[%s715] ss:$2 sm:$0xff]
      %s717 = scalar_lea.vmem %s385, 818
      %v718 = vld [vmem:[%s717] ss:$2 sm:$0xff]
      %s719 = scalar_lea.vmem %s385, 842
      %v720 = vld [vmem:[%s719] ss:$2 sm:$0xff]
      %s721 = scalar_lea.vmem %s385, 866
      %v722 = vld [vmem:[%s721] ss:$2 sm:$0xff]
      %s723 = scalar_lea.vmem %s385, 890
      %v724 = vld [vmem:[%s723] ss:$2 sm:$0xff]
      %s725 = scalar_lea.vmem %s385, 914
      %v726 = vld [vmem:[%s725] ss:$2 sm:$0xff]
      %s727 = scalar_lea.vmem %s385, 938
      %v728 = vld [vmem:[%s727] ss:$2 sm:$0xff]
      %s729 = scalar_lea.vmem %s385, 962
      %v730 = vld [vmem:[%s729] ss:$2 sm:$0xff]
      %s731 = scalar_lea.vmem %s385, 986
      %v732 = vld [vmem:[%s731] ss:$2 sm:$0xff]
      %s733 = scalar_lea.vmem %s385, 1010
      %v734 = vld [vmem:[%s733] ss:$2 sm:$0xff]
      %s735 = scalar_lea.vmem %s385, 1034
      %v736 = vld [vmem:[%s735] ss:$2 sm:$0xff]
      %s737 = scalar_lea.vmem %s385, 1058
      %v738 = vld [vmem:[%s737] ss:$2 sm:$0xff]
      %s739 = scalar_lea.vmem %s385, 1082
      %v740 = vld [vmem:[%s739] ss:$2 sm:$0xff]
      %s741 = scalar_lea.vmem %s385, 1106
      %v742 = vld [vmem:[%s741] ss:$2 sm:$0xff]
      %s743 = scalar_lea.vmem %s385, 1130
      %v744 = vld [vmem:[%s743] ss:$2 sm:$0xff]
      %s745 = scalar_lea.vmem %s385, 1154
      %v746 = vld [vmem:[%s745] ss:$2 sm:$0xff]
      %s747 = scalar_lea.vmem %s385, 1178
      %v748 = vld [vmem:[%s747] ss:$2 sm:$0xff]
      %s749 = scalar_lea.vmem %s385, 1202
      %v750 = vld [vmem:[%s749] ss:$2 sm:$0xff]
      %s751 = scalar_lea.vmem %s385, 1226
      %v752 = vld [vmem:[%s751] ss:$2 sm:$0xff]
      %s753 = scalar_lea.vmem %s385, 1250
      %v754 = vld [vmem:[%s753] ss:$2 sm:$0xff]
      %s755 = scalar_lea.vmem %s385, 1274
      %v756 = vld [vmem:[%s755] ss:$2 sm:$0xff]
      %s757 = scalar_lea.vmem %s385, 1298
      %v758 = vld [vmem:[%s757] ss:$2 sm:$0xff]
      %s759 = scalar_lea.vmem %s385, 1322
      %v760 = vld [vmem:[%s759] ss:$2 sm:$0xff]
      %s761 = scalar_lea.vmem %s385, 1346
      %v762 = vld [vmem:[%s761] ss:$2 sm:$0xff]
      %s763 = scalar_lea.vmem %s385, 1370
      %v764 = vld [vmem:[%s763] ss:$2 sm:$0xff]
      %s765 = scalar_lea.vmem %s385, 1394
      %v766 = vld [vmem:[%s765] ss:$2 sm:$0xff]
      %s767 = scalar_lea.vmem %s385, 1418
      %v768 = vld [vmem:[%s767] ss:$2 sm:$0xff]
      %s769 = scalar_lea.vmem %s385, 1442
      %v770 = vld [vmem:[%s769] ss:$2 sm:$0xff]
      %s771 = scalar_lea.vmem %s385, 1466
      %v772 = vld [vmem:[%s771] ss:$2 sm:$0xff]
      %s773 = scalar_lea.vmem %s385, 1490
      %v774 = vld [vmem:[%s773] ss:$2 sm:$0xff]
      %s775 = scalar_lea.vmem %s385, 1514
      %v776 = vld [vmem:[%s775] ss:$2 sm:$0xff]
      %841 = vrot.lane.b32.xlu0 %v522, 4
      %v842 = vpop.permute.xlu0 %841
      %843 = vrot.lane.b32.xlu0 %v524, 4
      %v844 = vpop.permute.xlu0 %843
      %845 = vrot.lane.b32.xlu0 %v526, 4
      %v846 = vpop.permute.xlu0 %845
      %847 = vrot.lane.b32.xlu0 %v528, 4
      %v848 = vpop.permute.xlu0 %847
      %849 = vrot.lane.b32.xlu0 %v530, 4
      %v850 = vpop.permute.xlu0 %849
      %851 = vrot.lane.b32.xlu0 %v532, 4
      %v852 = vpop.permute.xlu0 %851
      %853 = vrot.lane.b32.xlu0 %v534, 4
      %v854 = vpop.permute.xlu0 %853
      %855 = vrot.lane.b32.xlu0 %v536, 4
      %v856 = vpop.permute.xlu0 %855
      %857 = vrot.lane.b32.xlu0 %v538, 4
      %v858 = vpop.permute.xlu0 %857
      %859 = vrot.lane.b32.xlu0 %v540, 4
      %v860 = vpop.permute.xlu0 %859
      %861 = vrot.lane.b32.xlu0 %v542, 4
      %v862 = vpop.permute.xlu0 %861
      %863 = vrot.lane.b32.xlu0 %v544, 4
      %v864 = vpop.permute.xlu0 %863
      %865 = vrot.lane.b32.xlu0 %v546, 4
      %v866 = vpop.permute.xlu0 %865
      %867 = vrot.lane.b32.xlu0 %v548, 4
      %v868 = vpop.permute.xlu0 %867
      %869 = vrot.lane.b32.xlu0 %v550, 4
      %v870 = vpop.permute.xlu0 %869
      %871 = vrot.lane.b32.xlu0 %v552, 4
      %v872 = vpop.permute.xlu0 %871
      %873 = vrot.lane.b32.xlu0 %v554, 4
      %v874 = vpop.permute.xlu0 %873
      %875 = vrot.lane.b32.xlu0 %v556, 4
      %v876 = vpop.permute.xlu0 %875
      %877 = vrot.lane.b32.xlu0 %v558, 4
      %v878 = vpop.permute.xlu0 %877
      %879 = vrot.lane.b32.xlu0 %v560, 4
      %v880 = vpop.permute.xlu0 %879
      %881 = vrot.lane.b32.xlu0 %v562, 4
      %v882 = vpop.permute.xlu0 %881
      %883 = vrot.lane.b32.xlu0 %v564, 4
      %v884 = vpop.permute.xlu0 %883
      %885 = vrot.lane.b32.xlu0 %v566, 4
      %v886 = vpop.permute.xlu0 %885
      %887 = vrot.lane.b32.xlu0 %v568, 4
      %v888 = vpop.permute.xlu0 %887
      %889 = vrot.lane.b32.xlu0 %v570, 4
      %v890 = vpop.permute.xlu0 %889
      %891 = vrot.lane.b32.xlu0 %v572, 4
      %v892 = vpop.permute.xlu0 %891
      %893 = vrot.lane.b32.xlu0 %v574, 4
      %v894 = vpop.permute.xlu0 %893
      %895 = vrot.lane.b32.xlu0 %v576, 4
      %v896 = vpop.permute.xlu0 %895
      %897 = vrot.lane.b32.xlu0 %v578, 4
      %v898 = vpop.permute.xlu0 %897
      %899 = vrot.lane.b32.xlu0 %v580, 4
      %v900 = vpop.permute.xlu0 %899
      %901 = vrot.lane.b32.xlu0 %v582, 4
      %v902 = vpop.permute.xlu0 %901
      %903 = vrot.lane.b32.xlu0 %v584, 4
      %v904 = vpop.permute.xlu0 %903
      %905 = vrot.lane.b32.xlu0 %v586, 4
      %v906 = vpop.permute.xlu0 %905
      %907 = vrot.lane.b32.xlu0 %v588, 4
      %v908 = vpop.permute.xlu0 %907
      %909 = vrot.lane.b32.xlu0 %v590, 4
      %v910 = vpop.permute.xlu0 %909
      %911 = vrot.lane.b32.xlu0 %v592, 4
      %v912 = vpop.permute.xlu0 %911
      %913 = vrot.lane.b32.xlu0 %v594, 4
      %v914 = vpop.permute.xlu0 %913
      %915 = vrot.lane.b32.xlu0 %v596, 4
      %v916 = vpop.permute.xlu0 %915
      %917 = vrot.lane.b32.xlu0 %v598, 4
      %v918 = vpop.permute.xlu0 %917
      %919 = vrot.lane.b32.xlu0 %v600, 4
      %v920 = vpop.permute.xlu0 %919
      %921 = vrot.lane.b32.xlu0 %v602, 4
      %v922 = vpop.permute.xlu0 %921
      %923 = vrot.lane.b32.xlu0 %v604, 4
      %v924 = vpop.permute.xlu0 %923
      %925 = vrot.lane.b32.xlu0 %v606, 4
      %v926 = vpop.permute.xlu0 %925
      %927 = vrot.lane.b32.xlu0 %v608, 4
      %v928 = vpop.permute.xlu0 %927
      %929 = vrot.lane.b32.xlu0 %v610, 4
      %v930 = vpop.permute.xlu0 %929
      %931 = vrot.lane.b32.xlu0 %v612, 4
      %v932 = vpop.permute.xlu0 %931
      %933 = vrot.lane.b32.xlu0 %v614, 4
      %v934 = vpop.permute.xlu0 %933
      %935 = vrot.lane.b32.xlu0 %v616, 4
      %v936 = vpop.permute.xlu0 %935
      %937 = vrot.lane.b32.xlu0 %v618, 4
      %v938 = vpop.permute.xlu0 %937
      %939 = vrot.lane.b32.xlu0 %v620, 4
      %v940 = vpop.permute.xlu0 %939
      %941 = vrot.lane.b32.xlu0 %v622, 4
      %v942 = vpop.permute.xlu0 %941
      %943 = vrot.lane.b32.xlu0 %v624, 4
      %v944 = vpop.permute.xlu0 %943
      %945 = vrot.lane.b32.xlu0 %v626, 4
      %v946 = vpop.permute.xlu0 %945
      %947 = vrot.lane.b32.xlu0 %v628, 4
      %v948 = vpop.permute.xlu0 %947
      %949 = vrot.lane.b32.xlu0 %v630, 4
      %v950 = vpop.permute.xlu0 %949
      %951 = vrot.lane.b32.xlu0 %v632, 4
      %v952 = vpop.permute.xlu0 %951
      %953 = vrot.lane.b32.xlu0 %v634, 4
      %v954 = vpop.permute.xlu0 %953
      %955 = vrot.lane.b32.xlu0 %v636, 4
      %v956 = vpop.permute.xlu0 %955
      %957 = vrot.lane.b32.xlu0 %v638, 4
      %v958 = vpop.permute.xlu0 %957
      %959 = vrot.lane.b32.xlu0 %v640, 4
      %v960 = vpop.permute.xlu0 %959
      %961 = vrot.lane.b32.xlu0 %v642, 4
      %v962 = vpop.permute.xlu0 %961
      %963 = vrot.lane.b32.xlu0 %v644, 4
      %v964 = vpop.permute.xlu0 %963
      %965 = vrot.lane.b32.xlu0 %v646, 4
      %v966 = vpop.permute.xlu0 %965
      %967 = vrot.lane.b32.xlu0 %v648, 4
      %v968 = vpop.permute.xlu0 %967
      %1097 = vrot.lane.b32.xlu0 %v650, 8
      %v1098 = vpop.permute.xlu0 %1097
      %1099 = vrot.lane.b32.xlu0 %v652, 8
      %v1100 = vpop.permute.xlu0 %1099
      %1101 = vrot.lane.b32.xlu0 %v654, 8
      %v1102 = vpop.permute.xlu0 %1101
      %1103 = vrot.lane.b32.xlu0 %v656, 8
      %v1104 = vpop.permute.xlu0 %1103
      %1105 = vrot.lane.b32.xlu0 %v658, 8
      %v1106 = vpop.permute.xlu0 %1105
      %1107 = vrot.lane.b32.xlu0 %v660, 8
      %v1108 = vpop.permute.xlu0 %1107
      %1109 = vrot.lane.b32.xlu0 %v662, 8
      %v1110 = vpop.permute.xlu0 %1109
      %1111 = vrot.lane.b32.xlu0 %v664, 8
      %v1112 = vpop.permute.xlu0 %1111
      %1113 = vrot.lane.b32.xlu0 %v666, 8
      %v1114 = vpop.permute.xlu0 %1113
      %1115 = vrot.lane.b32.xlu0 %v668, 8
      %v1116 = vpop.permute.xlu0 %1115
      %1117 = vrot.lane.b32.xlu0 %v670, 8
      %v1118 = vpop.permute.xlu0 %1117
      %1119 = vrot.lane.b32.xlu0 %v672, 8
      %v1120 = vpop.permute.xlu0 %1119
      %1121 = vrot.lane.b32.xlu0 %v674, 8
      %v1122 = vpop.permute.xlu0 %1121
      %1123 = vrot.lane.b32.xlu0 %v676, 8
      %v1124 = vpop.permute.xlu0 %1123
      %1125 = vrot.lane.b32.xlu0 %v678, 8
      %v1126 = vpop.permute.xlu0 %1125
      %1127 = vrot.lane.b32.xlu0 %v680, 8
      %v1128 = vpop.permute.xlu0 %1127
      %1129 = vrot.lane.b32.xlu0 %v682, 8
      %v1130 = vpop.permute.xlu0 %1129
      %1131 = vrot.lane.b32.xlu0 %v684, 8
      %v1132 = vpop.permute.xlu0 %1131
      %1133 = vrot.lane.b32.xlu0 %v686, 8
      %v1134 = vpop.permute.xlu0 %1133
      %1135 = vrot.lane.b32.xlu0 %v688, 8
      %v1136 = vpop.permute.xlu0 %1135
      %1137 = vrot.lane.b32.xlu0 %v690, 8
      %v1138 = vpop.permute.xlu0 %1137
      %1139 = vrot.lane.b32.xlu0 %v692, 8
      %v1140 = vpop.permute.xlu0 %1139
      %1141 = vrot.lane.b32.xlu0 %v694, 8
      %v1142 = vpop.permute.xlu0 %1141
      %1143 = vrot.lane.b32.xlu0 %v696, 8
      %v1144 = vpop.permute.xlu0 %1143
      %1145 = vrot.lane.b32.xlu0 %v698, 8
      %v1146 = vpop.permute.xlu0 %1145
      %1147 = vrot.lane.b32.xlu0 %v700, 8
      %v1148 = vpop.permute.xlu0 %1147
      %1149 = vrot.lane.b32.xlu0 %v702, 8
      %v1150 = vpop.permute.xlu0 %1149
      %1151 = vrot.lane.b32.xlu0 %v704, 8
      %v1152 = vpop.permute.xlu0 %1151
      %1153 = vrot.lane.b32.xlu0 %v706, 8
      %v1154 = vpop.permute.xlu0 %1153
      %1155 = vrot.lane.b32.xlu0 %v708, 8
      %v1156 = vpop.permute.xlu0 %1155
      %1157 = vrot.lane.b32.xlu0 %v710, 8
      %v1158 = vpop.permute.xlu0 %1157
      %1159 = vrot.lane.b32.xlu0 %v712, 8
      %v1160 = vpop.permute.xlu0 %1159
      %1161 = vrot.lane.b32.xlu0 %v714, 8
      %v1162 = vpop.permute.xlu0 %1161
      %1163 = vrot.lane.b32.xlu0 %v716, 8
      %v1164 = vpop.permute.xlu0 %1163
      %1165 = vrot.lane.b32.xlu0 %v718, 8
      %v1166 = vpop.permute.xlu0 %1165
      %1167 = vrot.lane.b32.xlu0 %v720, 8
      %v1168 = vpop.permute.xlu0 %1167
      %1169 = vrot.lane.b32.xlu0 %v722, 8
      %v1170 = vpop.permute.xlu0 %1169
      %1171 = vrot.lane.b32.xlu0 %v724, 8
      %v1172 = vpop.permute.xlu0 %1171
      %1173 = vrot.lane.b32.xlu0 %v726, 8
      %v1174 = vpop.permute.xlu0 %1173
      %1175 = vrot.lane.b32.xlu0 %v728, 8
      %v1176 = vpop.permute.xlu0 %1175
      %1177 = vrot.lane.b32.xlu0 %v730, 8
      %v1178 = vpop.permute.xlu0 %1177
      %1179 = vrot.lane.b32.xlu0 %v732, 8
      %v1180 = vpop.permute.xlu0 %1179
      %1181 = vrot.lane.b32.xlu0 %v734, 8
      %v1182 = vpop.permute.xlu0 %1181
      %1183 = vrot.lane.b32.xlu0 %v736, 8
      %v1184 = vpop.permute.xlu0 %1183
      %1185 = vrot.lane.b32.xlu0 %v738, 8
      %v1186 = vpop.permute.xlu0 %1185
      %1187 = vrot.lane.b32.xlu0 %v740, 8
      %v1188 = vpop.permute.xlu0 %1187
      %1189 = vrot.lane.b32.xlu0 %v742, 8
      %v1190 = vpop.permute.xlu0 %1189
      %1191 = vrot.lane.b32.xlu0 %v744, 8
      %v1192 = vpop.permute.xlu0 %1191
      %1193 = vrot.lane.b32.xlu0 %v746, 8
      %v1194 = vpop.permute.xlu0 %1193
      %1195 = vrot.lane.b32.xlu0 %v748, 8
      %v1196 = vpop.permute.xlu0 %1195
      %1197 = vrot.lane.b32.xlu0 %v750, 8
      %v1198 = vpop.permute.xlu0 %1197
      %1199 = vrot.lane.b32.xlu0 %v752, 8
      %v1200 = vpop.permute.xlu0 %1199
      %1201 = vrot.lane.b32.xlu0 %v754, 8
      %v1202 = vpop.permute.xlu0 %1201
      %1203 = vrot.lane.b32.xlu0 %v756, 8
      %v1204 = vpop.permute.xlu0 %1203
      %1205 = vrot.lane.b32.xlu0 %v758, 8
      %v1206 = vpop.permute.xlu0 %1205
      %1207 = vrot.lane.b32.xlu0 %v760, 8
      %v1208 = vpop.permute.xlu0 %1207
      %1209 = vrot.lane.b32.xlu0 %v762, 8
      %v1210 = vpop.permute.xlu0 %1209
      %1211 = vrot.lane.b32.xlu0 %v764, 8
      %v1212 = vpop.permute.xlu0 %1211
      %1213 = vrot.lane.b32.xlu0 %v766, 8
      %v1214 = vpop.permute.xlu0 %1213
      %1215 = vrot.lane.b32.xlu0 %v768, 8
      %v1216 = vpop.permute.xlu0 %1215
      %1217 = vrot.lane.b32.xlu0 %v770, 8
      %v1218 = vpop.permute.xlu0 %1217
      %1219 = vrot.lane.b32.xlu0 %v772, 8
      %v1220 = vpop.permute.xlu0 %1219
      %1221 = vrot.lane.b32.xlu0 %v774, 8
      %v1222 = vpop.permute.xlu0 %1221
      %1223 = vrot.lane.b32.xlu0 %v776, 8
      %v1224 = vpop.permute.xlu0 %1223
      %vm1289 = vcmask 31744
      %v1290 = vsel %vm1289, %v394, %v842
      %v1291 = vsel %vm1289, %v396, %v844
      %v1292 = vsel %vm1289, %v398, %v846
      %v1293 = vsel %vm1289, %v400, %v848
      %v1294 = vsel %vm1289, %v402, %v850
      %v1295 = vsel %vm1289, %v404, %v852
      %v1296 = vsel %vm1289, %v406, %v854
      %v1297 = vsel %vm1289, %v408, %v856
      %v1298 = vsel %vm1289, %v410, %v858
      %v1299 = vsel %vm1289, %v412, %v860
      %v1300 = vsel %vm1289, %v414, %v862
      %v1301 = vsel %vm1289, %v416, %v864
      %v1302 = vsel %vm1289, %v418, %v866
      %v1303 = vsel %vm1289, %v420, %v868
      %v1304 = vsel %vm1289, %v422, %v870
      %v1305 = vsel %vm1289, %v424, %v872
      %v1306 = vsel %vm1289, %v426, %v874
      %v1307 = vsel %vm1289, %v428, %v876
      %v1308 = vsel %vm1289, %v430, %v878
      %v1309 = vsel %vm1289, %v432, %v880
      %v1310 = vsel %vm1289, %v434, %v882
      %v1311 = vsel %vm1289, %v436, %v884
      %v1312 = vsel %vm1289, %v438, %v886
      %v1313 = vsel %vm1289, %v440, %v888
      %v1314 = vsel %vm1289, %v442, %v890
      %v1315 = vsel %vm1289, %v444, %v892
      %v1316 = vsel %vm1289, %v446, %v894
      %v1317 = vsel %vm1289, %v448, %v896
      %v1318 = vsel %vm1289, %v450, %v898
      %v1319 = vsel %vm1289, %v452, %v900
      %v1320 = vsel %vm1289, %v454, %v902
      %v1321 = vsel %vm1289, %v456, %v904
      %v1322 = vsel %vm1289, %v458, %v906
      %v1323 = vsel %vm1289, %v460, %v908
      %v1324 = vsel %vm1289, %v462, %v910
      %v1325 = vsel %vm1289, %v464, %v912
      %v1326 = vsel %vm1289, %v466, %v914
      %v1327 = vsel %vm1289, %v468, %v916
      %v1328 = vsel %vm1289, %v470, %v918
      %v1329 = vsel %vm1289, %v472, %v920
      %v1330 = vsel %vm1289, %v474, %v922
      %v1331 = vsel %vm1289, %v476, %v924
      %v1332 = vsel %vm1289, %v478, %v926
      %v1333 = vsel %vm1289, %v480, %v928
      %v1334 = vsel %vm1289, %v482, %v930
      %v1335 = vsel %vm1289, %v484, %v932
      %v1336 = vsel %vm1289, %v486, %v934
      %v1337 = vsel %vm1289, %v488, %v936
      %v1338 = vsel %vm1289, %v490, %v938
      %v1339 = vsel %vm1289, %v492, %v940
      %v1340 = vsel %vm1289, %v494, %v942
      %v1341 = vsel %vm1289, %v496, %v944
      %v1342 = vsel %vm1289, %v498, %v946
      %v1343 = vsel %vm1289, %v500, %v948
      %v1344 = vsel %vm1289, %v502, %v950
      %v1345 = vsel %vm1289, %v504, %v952
      %v1346 = vsel %vm1289, %v506, %v954
      %v1347 = vsel %vm1289, %v508, %v956
      %v1348 = vsel %vm1289, %v510, %v958
      %v1349 = vsel %vm1289, %v512, %v960
      %v1350 = vsel %vm1289, %v514, %v962
      %v1351 = vsel %vm1289, %v516, %v964
      %v1352 = vsel %vm1289, %v518, %v966
      %v1353 = vsel %vm1289, %v520, %v968
      %vm1354 = vcmask 64512
      %v1355 = vsel %vm1354, %v1290, %v1098
      %v1356 = vsel %vm1354, %v1291, %v1100
      %v1357 = vsel %vm1354, %v1292, %v1102
      %v1358 = vsel %vm1354, %v1293, %v1104
      %v1359 = vsel %vm1354, %v1294, %v1106
      %v1360 = vsel %vm1354, %v1295, %v1108
      %v1361 = vsel %vm1354, %v1296, %v1110
      %v1362 = vsel %vm1354, %v1297, %v1112
      %v1363 = vsel %vm1354, %v1298, %v1114
      %v1364 = vsel %vm1354, %v1299, %v1116
      %v1365 = vsel %vm1354, %v1300, %v1118
      %v1366 = vsel %vm1354, %v1301, %v1120
      %v1367 = vsel %vm1354, %v1302, %v1122
      %v1368 = vsel %vm1354, %v1303, %v1124
      %v1369 = vsel %vm1354, %v1304, %v1126
      %v1370 = vsel %vm1354, %v1305, %v1128
      %v1371 = vsel %vm1354, %v1306, %v1130
      %v1372 = vsel %vm1354, %v1307, %v1132
      %v1373 = vsel %vm1354, %v1308, %v1134
      %v1374 = vsel %vm1354, %v1309, %v1136
      %v1375 = vsel %vm1354, %v1310, %v1138
      %v1376 = vsel %vm1354, %v1311, %v1140
      %v1377 = vsel %vm1354, %v1312, %v1142
      %v1378 = vsel %vm1354, %v1313, %v1144
      %v1379 = vsel %vm1354, %v1314, %v1146
      %v1380 = vsel %vm1354, %v1315, %v1148
      %v1381 = vsel %vm1354, %v1316, %v1150
      %v1382 = vsel %vm1354, %v1317, %v1152
      %v1383 = vsel %vm1354, %v1318, %v1154
      %v1384 = vsel %vm1354, %v1319, %v1156
      %v1385 = vsel %vm1354, %v1320, %v1158
      %v1386 = vsel %vm1354, %v1321, %v1160
      %v1387 = vsel %vm1354, %v1322, %v1162
      %v1388 = vsel %vm1354, %v1323, %v1164
      %v1389 = vsel %vm1354, %v1324, %v1166
      %v1390 = vsel %vm1354, %v1325, %v1168
      %v1391 = vsel %vm1354, %v1326, %v1170
      %v1392 = vsel %vm1354, %v1327, %v1172
      %v1393 = vsel %vm1354, %v1328, %v1174
      %v1394 = vsel %vm1354, %v1329, %v1176
      %v1395 = vsel %vm1354, %v1330, %v1178
      %v1396 = vsel %vm1354, %v1331, %v1180
      %v1397 = vsel %vm1354, %v1332, %v1182
      %v1398 = vsel %vm1354, %v1333, %v1184
      %v1399 = vsel %vm1354, %v1334, %v1186
      %v1400 = vsel %vm1354, %v1335, %v1188
      %v1401 = vsel %vm1354, %v1336, %v1190
      %v1402 = vsel %vm1354, %v1337, %v1192
      %v1403 = vsel %vm1354, %v1338, %v1194
      %v1404 = vsel %vm1354, %v1339, %v1196
      %v1405 = vsel %vm1354, %v1340, %v1198
      %v1406 = vsel %vm1354, %v1341, %v1200
      %v1407 = vsel %vm1354, %v1342, %v1202
      %v1408 = vsel %vm1354, %v1343, %v1204
      %v1409 = vsel %vm1354, %v1344, %v1206
      %v1410 = vsel %vm1354, %v1345, %v1208
      %v1411 = vsel %vm1354, %v1346, %v1210
      %v1412 = vsel %vm1354, %v1347, %v1212
      %v1413 = vsel %vm1354, %v1348, %v1214
      %v1414 = vsel %vm1354, %v1349, %v1216
      %v1415 = vsel %vm1354, %v1350, %v1218
      %v1416 = vsel %vm1354, %v1351, %v1220
      %v1417 = vsel %vm1354, %v1352, %v1222
      %v1418 = vsel %vm1354, %v1353, %v1224
      %v1419 = vpack.c.bf16 %v1356, %v1355
      %v1420 = vpack.c.bf16 %v1358, %v1357
      %v1421 = vpack.c.bf16 %v1360, %v1359
      %v1422 = vpack.c.bf16 %v1362, %v1361
      %v1423 = vpack.c.bf16 %v1364, %v1363
      %v1424 = vpack.c.bf16 %v1366, %v1365
      %v1425 = vpack.c.bf16 %v1368, %v1367
      %v1426 = vpack.c.bf16 %v1370, %v1369
      %v1427 = vpack.c.bf16 %v1372, %v1371
      %v1428 = vpack.c.bf16 %v1374, %v1373
      %v1429 = vpack.c.bf16 %v1376, %v1375
      %v1430 = vpack.c.bf16 %v1378, %v1377
      %v1431 = vpack.c.bf16 %v1380, %v1379
      %v1432 = vpack.c.bf16 %v1382, %v1381
      %v1433 = vpack.c.bf16 %v1384, %v1383
      %v1434 = vpack.c.bf16 %v1386, %v1385
      %v1435 = vpack.c.bf16 %v1388, %v1387
      %v1436 = vpack.c.bf16 %v1390, %v1389
      %v1437 = vpack.c.bf16 %v1392, %v1391
      %v1438 = vpack.c.bf16 %v1394, %v1393
      %v1439 = vpack.c.bf16 %v1396, %v1395
      %v1440 = vpack.c.bf16 %v1398, %v1397
      %v1441 = vpack.c.bf16 %v1400, %v1399
      %v1442 = vpack.c.bf16 %v1402, %v1401
      %v1443 = vpack.c.bf16 %v1404, %v1403
      %v1444 = vpack.c.bf16 %v1406, %v1405
      %v1445 = vpack.c.bf16 %v1408, %v1407
      %v1446 = vpack.c.bf16 %v1410, %v1409
      %v1447 = vpack.c.bf16 %v1412, %v1411
      %v1448 = vpack.c.bf16 %v1414, %v1413
      %v1449 = vpack.c.bf16 %v1416, %v1415
      %v1450 = vpack.c.bf16 %v1418, %v1417
      %v1451 = vld [vmem:[%s1] sm:$0xf]
      %v1452 = vld [vmem:[%s1 + $0x4] sm:$0x3]
      %v1453 = vld [vmem:[%s2] sm:$0x1]
      %v1455 = vperm.slane %v1453, 0
      %v1459 = vunpack.c.l.b16 %v1451
      %v1460 = vunpack.c.l.b16 %v1452
      %v1461 = vpack.c.b16 %v1460, %v1459
      %vm1462 = vcmask 97280
      %v1464 = vsel %vm1462, %v1419, 0
      %v1467 = vsel %vm1462, %v1420, 0
      %v1470 = vsel %vm1462, %v1421, 0
      %v1473 = vsel %vm1462, %v1422, 0
      %v1476 = vsel %vm1462, %v1423, 0
      %v1479 = vsel %vm1462, %v1424, 0
      %v1482 = vsel %vm1462, %v1425, 0
      %v1485 = vsel %vm1462, %v1426, 0
      %v1488 = vsel %vm1462, %v1427, 0
      %v1491 = vsel %vm1462, %v1428, 0
      %v1494 = vsel %vm1462, %v1429, 0
      %v1497 = vsel %vm1462, %v1430, 0
      %v1500 = vsel %vm1462, %v1431, 0
      %v1503 = vsel %vm1462, %v1432, 0
      %v1506 = vsel %vm1462, %v1433, 0
      %v1509 = vsel %vm1462, %v1434, 0
      %v1512 = vsel %vm1462, %v1435, 0
      %v1515 = vsel %vm1462, %v1436, 0
      %v1518 = vsel %vm1462, %v1437, 0
      %v1521 = vsel %vm1462, %v1438, 0
      %v1524 = vsel %vm1462, %v1439, 0
      %v1527 = vsel %vm1462, %v1440, 0
      %v1530 = vsel %vm1462, %v1441, 0
      %v1533 = vsel %vm1462, %v1442, 0
      %v1536 = vsel %vm1462, %v1443, 0
      %v1539 = vsel %vm1462, %v1444, 0
      %v1542 = vsel %vm1462, %v1445, 0
      %v1545 = vsel %vm1462, %v1446, 0
      %v1548 = vsel %vm1462, %v1447, 0
      %v1551 = vsel %vm1462, %v1448, 0
      %v1554 = vsel %vm1462, %v1449, 0
      %v1557 = vsel %vm1462, %v1450, 0
      %vm1559 = vcmask 1045504
      %v1561 = vsel %vm1559, %v1461, 0
      %1563 = vmatpush.bf16.msra.mxu0 0
      %1564 = vmatpush.bf16.msra.mxu0 0
      %1565 = vmatpush.bf16.msra.mxu0 0
      %1566 = vmatpush.bf16.msra.mxu0 0
      %1567 = vmatpush.bf16.msra.mxu0 0
      %1568 = vmatpush.bf16.msra.mxu0 0
      %1569 = vmatpush.bf16.msra.mxu0 0
      %1570 = vmatpush.bf16.msra.mxu0 %v1561
      %1571 = vmatmul.bf16.gmra.mxu0 %v1464
      %v1572 = vpop.f32.mrf.mxu0
      %v1573 = vadd.f32 %v1455, %v1572
      %v1574 = vpop.f32.mrf.mxu0
      %v1575 = vadd.f32 %v1455, %v1574
      %1576 = vmatmul.bf16.gmra.mxu0 %v1467
      %v1577 = vpop.f32.mrf.mxu0
      %v1578 = vadd.f32 %v1455, %v1577
      %v1579 = vpop.f32.mrf.mxu0
      %v1580 = vadd.f32 %v1455, %v1579
      %1581 = vmatmul.bf16.gmra.mxu0 %v1470
      %v1582 = vpop.f32.mrf.mxu0
      %v1583 = vadd.f32 %v1455, %v1582
      %v1584 = vpop.f32.mrf.mxu0
      %v1585 = vadd.f32 %v1455, %v1584
      %1586 = vmatmul.bf16.gmra.mxu0 %v1473
      %v1587 = vpop.f32.mrf.mxu0
      %v1588 = vadd.f32 %v1455, %v1587
      %v1589 = vpop.f32.mrf.mxu0
      %v1590 = vadd.f32 %v1455, %v1589
      %1591 = vmatmul.bf16.gmra.mxu0 %v1476
      %v1592 = vpop.f32.mrf.mxu0
      %v1593 = vadd.f32 %v1455, %v1592
      %v1594 = vpop.f32.mrf.mxu0
      %v1595 = vadd.f32 %v1455, %v1594
      %1596 = vmatmul.bf16.gmra.mxu0 %v1479
      %v1597 = vpop.f32.mrf.mxu0
      %v1598 = vadd.f32 %v1455, %v1597
      %v1599 = vpop.f32.mrf.mxu0
      %v1600 = vadd.f32 %v1455, %v1599
      %1601 = vmatmul.bf16.gmra.mxu0 %v1482
      %v1602 = vpop.f32.mrf.mxu0
      %v1603 = vadd.f32 %v1455, %v1602
      %v1604 = vpop.f32.mrf.mxu0
      %v1605 = vadd.f32 %v1455, %v1604
      %1606 = vmatmul.bf16.gmra.mxu0 %v1485
      %v1607 = vpop.f32.mrf.mxu0
      %v1608 = vadd.f32 %v1455, %v1607
      %v1609 = vpop.f32.mrf.mxu0
      %v1610 = vadd.f32 %v1455, %v1609
      %1611 = vmatmul.bf16.gmra.mxu0 %v1488
      %v1612 = vpop.f32.mrf.mxu0
      %v1613 = vadd.f32 %v1455, %v1612
      %v1614 = vpop.f32.mrf.mxu0
      %v1615 = vadd.f32 %v1455, %v1614
      %1616 = vmatmul.bf16.gmra.mxu0 %v1491
      %v1617 = vpop.f32.mrf.mxu0
      %v1618 = vadd.f32 %v1455, %v1617
      %v1619 = vpop.f32.mrf.mxu0
      %v1620 = vadd.f32 %v1455, %v1619
      %1621 = vmatmul.bf16.gmra.mxu0 %v1494
      %v1622 = vpop.f32.mrf.mxu0
      %v1623 = vadd.f32 %v1455, %v1622
      %v1624 = vpop.f32.mrf.mxu0
      %v1625 = vadd.f32 %v1455, %v1624
      %1626 = vmatmul.bf16.gmra.mxu0 %v1497
      %v1627 = vpop.f32.mrf.mxu0
      %v1628 = vadd.f32 %v1455, %v1627
      %v1629 = vpop.f32.mrf.mxu0
      %v1630 = vadd.f32 %v1455, %v1629
      %1631 = vmatmul.bf16.gmra.mxu0 %v1500
      %v1632 = vpop.f32.mrf.mxu0
      %v1633 = vadd.f32 %v1455, %v1632
      %v1634 = vpop.f32.mrf.mxu0
      %v1635 = vadd.f32 %v1455, %v1634
      %1636 = vmatmul.bf16.gmra.mxu0 %v1503
      %v1637 = vpop.f32.mrf.mxu0
      %v1638 = vadd.f32 %v1455, %v1637
      %v1639 = vpop.f32.mrf.mxu0
      %v1640 = vadd.f32 %v1455, %v1639
      %1641 = vmatmul.bf16.gmra.mxu0 %v1506
      %v1642 = vpop.f32.mrf.mxu0
      %v1643 = vadd.f32 %v1455, %v1642
      %v1644 = vpop.f32.mrf.mxu0
      %v1645 = vadd.f32 %v1455, %v1644
      %1646 = vmatmul.bf16.gmra.mxu0 %v1509
      %v1647 = vpop.f32.mrf.mxu0
      %v1648 = vadd.f32 %v1455, %v1647
      %v1649 = vpop.f32.mrf.mxu0
      %v1650 = vadd.f32 %v1455, %v1649
      %1651 = vmatmul.bf16.gmra.mxu0 %v1512
      %v1652 = vpop.f32.mrf.mxu0
      %v1653 = vadd.f32 %v1455, %v1652
      %v1654 = vpop.f32.mrf.mxu0
      %v1655 = vadd.f32 %v1455, %v1654
      %1656 = vmatmul.bf16.gmra.mxu0 %v1515
      %v1657 = vpop.f32.mrf.mxu0
      %v1658 = vadd.f32 %v1455, %v1657
      %v1659 = vpop.f32.mrf.mxu0
      %v1660 = vadd.f32 %v1455, %v1659
      %1661 = vmatmul.bf16.gmra.mxu0 %v1518
      %v1662 = vpop.f32.mrf.mxu0
      %v1663 = vadd.f32 %v1455, %v1662
      %v1664 = vpop.f32.mrf.mxu0
      %v1665 = vadd.f32 %v1455, %v1664
      %1666 = vmatmul.bf16.gmra.mxu0 %v1521
      %v1667 = vpop.f32.mrf.mxu0
      %v1668 = vadd.f32 %v1455, %v1667
      %v1669 = vpop.f32.mrf.mxu0
      %v1670 = vadd.f32 %v1455, %v1669
      %1671 = vmatmul.bf16.gmra.mxu0 %v1524
      %v1672 = vpop.f32.mrf.mxu0
      %v1673 = vadd.f32 %v1455, %v1672
      %v1674 = vpop.f32.mrf.mxu0
      %v1675 = vadd.f32 %v1455, %v1674
      %1676 = vmatmul.bf16.gmra.mxu0 %v1527
      %v1677 = vpop.f32.mrf.mxu0
      %v1678 = vadd.f32 %v1455, %v1677
      %v1679 = vpop.f32.mrf.mxu0
      %v1680 = vadd.f32 %v1455, %v1679
      %1681 = vmatmul.bf16.gmra.mxu0 %v1530
      %v1682 = vpop.f32.mrf.mxu0
      %v1683 = vadd.f32 %v1455, %v1682
      %v1684 = vpop.f32.mrf.mxu0
      %v1685 = vadd.f32 %v1455, %v1684
      %1686 = vmatmul.bf16.gmra.mxu0 %v1533
      %v1687 = vpop.f32.mrf.mxu0
      %v1688 = vadd.f32 %v1455, %v1687
      %v1689 = vpop.f32.mrf.mxu0
      %v1690 = vadd.f32 %v1455, %v1689
      %1691 = vmatmul.bf16.gmra.mxu0 %v1536
      %v1692 = vpop.f32.mrf.mxu0
      %v1693 = vadd.f32 %v1455, %v1692
      %v1694 = vpop.f32.mrf.mxu0
      %v1695 = vadd.f32 %v1455, %v1694
      %1696 = vmatmul.bf16.gmra.mxu0 %v1539
      %v1697 = vpop.f32.mrf.mxu0
      %v1698 = vadd.f32 %v1455, %v1697
      %v1699 = vpop.f32.mrf.mxu0
      %v1700 = vadd.f32 %v1455, %v1699
      %1701 = vmatmul.bf16.gmra.mxu0 %v1542
      %v1702 = vpop.f32.mrf.mxu0
      %v1703 = vadd.f32 %v1455, %v1702
      %v1704 = vpop.f32.mrf.mxu0
      %v1705 = vadd.f32 %v1455, %v1704
      %1706 = vmatmul.bf16.gmra.mxu0 %v1545
      %v1707 = vpop.f32.mrf.mxu0
      %v1708 = vadd.f32 %v1455, %v1707
      %v1709 = vpop.f32.mrf.mxu0
      %v1710 = vadd.f32 %v1455, %v1709
      %1711 = vmatmul.bf16.gmra.mxu0 %v1548
      %v1712 = vpop.f32.mrf.mxu0
      %v1713 = vadd.f32 %v1455, %v1712
      %v1714 = vpop.f32.mrf.mxu0
      %v1715 = vadd.f32 %v1455, %v1714
      %1716 = vmatmul.bf16.gmra.mxu0 %v1551
      %v1717 = vpop.f32.mrf.mxu0
      %v1718 = vadd.f32 %v1455, %v1717
      %v1719 = vpop.f32.mrf.mxu0
      %v1720 = vadd.f32 %v1455, %v1719
      %1721 = vmatmul.bf16.gmra.mxu0 %v1554
      %v1722 = vpop.f32.mrf.mxu0
      %v1723 = vadd.f32 %v1455, %v1722
      %v1724 = vpop.f32.mrf.mxu0
      %v1725 = vadd.f32 %v1455, %v1724
      %1726 = vmatmul.bf16.gmra.mxu0 %v1557
      %v1727 = vpop.f32.mrf.mxu0
      %v1728 = vadd.f32 %v1455, %v1727
      %v1729 = vpop.f32.mrf.mxu0
      %v1730 = vadd.f32 %v1455, %v1729
      %1731 = vdwg.mxu0
      %v1732 = vsel %vm1354, %v1573, 0.0
      %v1733 = vrot.slane %v1732, 4
      %v1734 = vadd.f32 %v1732, %v1733
      %v1735 = vrot.slane %v1734, 2
      %v1736 = vadd.f32 %v1734, %v1735
      %v1737 = vrot.slane %v1736, 1
      %v1738 = vadd.f32 %v1736, %v1737
      %v1739 = vsel %vm1354, %v1575, 0.0
      %v1740 = vrot.slane %v1739, 4
      %v1741 = vadd.f32 %v1739, %v1740
      %v1742 = vrot.slane %v1741, 2
      %v1743 = vadd.f32 %v1741, %v1742
      %v1744 = vrot.slane %v1743, 1
      %v1745 = vadd.f32 %v1743, %v1744
      %v1746 = vsel %vm1354, %v1578, 0.0
      %v1747 = vrot.slane %v1746, 4
      %v1748 = vadd.f32 %v1746, %v1747
      %v1749 = vrot.slane %v1748, 2
      %v1750 = vadd.f32 %v1748, %v1749
      %v1751 = vrot.slane %v1750, 1
      %v1752 = vadd.f32 %v1750, %v1751
      %v1753 = vsel %vm1354, %v1580, 0.0
      %v1754 = vrot.slane %v1753, 4
      %v1755 = vadd.f32 %v1753, %v1754
      %v1756 = vrot.slane %v1755, 2
      %v1757 = vadd.f32 %v1755, %v1756
      %v1758 = vrot.slane %v1757, 1
      %v1759 = vadd.f32 %v1757, %v1758
      %v1760 = vsel %vm1354, %v1583, 0.0
      %v1761 = vrot.slane %v1760, 4
      %v1762 = vadd.f32 %v1760, %v1761
      %v1763 = vrot.slane %v1762, 2
      %v1764 = vadd.f32 %v1762, %v1763
      %v1765 = vrot.slane %v1764, 1
      %v1766 = vadd.f32 %v1764, %v1765
      %v1767 = vsel %vm1354, %v1585, 0.0
      %v1768 = vrot.slane %v1767, 4
      %v1769 = vadd.f32 %v1767, %v1768
      %v1770 = vrot.slane %v1769, 2
      %v1771 = vadd.f32 %v1769, %v1770
      %v1772 = vrot.slane %v1771, 1
      %v1773 = vadd.f32 %v1771, %v1772
      %v1774 = vsel %vm1354, %v1588, 0.0
      %v1775 = vrot.slane %v1774, 4
      %v1776 = vadd.f32 %v1774, %v1775
      %v1777 = vrot.slane %v1776, 2
      %v1778 = vadd.f32 %v1776, %v1777
      %v1779 = vrot.slane %v1778, 1
      %v1780 = vadd.f32 %v1778, %v1779
      %v1781 = vsel %vm1354, %v1590, 0.0
      %v1782 = vrot.slane %v1781, 4
      %v1783 = vadd.f32 %v1781, %v1782
      %v1784 = vrot.slane %v1783, 2
      %v1785 = vadd.f32 %v1783, %v1784
      %v1786 = vrot.slane %v1785, 1
      %v1787 = vadd.f32 %v1785, %v1786
      %v1788 = vsel %vm1354, %v1593, 0.0
      %v1789 = vrot.slane %v1788, 4
      %v1790 = vadd.f32 %v1788, %v1789
      %v1791 = vrot.slane %v1790, 2
      %v1792 = vadd.f32 %v1790, %v1791
      %v1793 = vrot.slane %v1792, 1
      %v1794 = vadd.f32 %v1792, %v1793
      %v1795 = vsel %vm1354, %v1595, 0.0
      %v1796 = vrot.slane %v1795, 4
      %v1797 = vadd.f32 %v1795, %v1796
      %v1798 = vrot.slane %v1797, 2
      %v1799 = vadd.f32 %v1797, %v1798
      %v1800 = vrot.slane %v1799, 1
      %v1801 = vadd.f32 %v1799, %v1800
      %v1802 = vsel %vm1354, %v1598, 0.0
      %v1803 = vrot.slane %v1802, 4
      %v1804 = vadd.f32 %v1802, %v1803
      %v1805 = vrot.slane %v1804, 2
      %v1806 = vadd.f32 %v1804, %v1805
      %v1807 = vrot.slane %v1806, 1
      %v1808 = vadd.f32 %v1806, %v1807
      %v1809 = vsel %vm1354, %v1600, 0.0
      %v1810 = vrot.slane %v1809, 4
      %v1811 = vadd.f32 %v1809, %v1810
      %v1812 = vrot.slane %v1811, 2
      %v1813 = vadd.f32 %v1811, %v1812
      %v1814 = vrot.slane %v1813, 1
      %v1815 = vadd.f32 %v1813, %v1814
      %v1816 = vsel %vm1354, %v1603, 0.0
      %v1817 = vrot.slane %v1816, 4
      %v1818 = vadd.f32 %v1816, %v1817
      %v1819 = vrot.slane %v1818, 2
      %v1820 = vadd.f32 %v1818, %v1819
      %v1821 = vrot.slane %v1820, 1
      %v1822 = vadd.f32 %v1820, %v1821
      %v1823 = vsel %vm1354, %v1605, 0.0
      %v1824 = vrot.slane %v1823, 4
      %v1825 = vadd.f32 %v1823, %v1824
      %v1826 = vrot.slane %v1825, 2
      %v1827 = vadd.f32 %v1825, %v1826
      %v1828 = vrot.slane %v1827, 1
      %v1829 = vadd.f32 %v1827, %v1828
      %v1830 = vsel %vm1354, %v1608, 0.0
      %v1831 = vrot.slane %v1830, 4
      %v1832 = vadd.f32 %v1830, %v1831
      %v1833 = vrot.slane %v1832, 2
      %v1834 = vadd.f32 %v1832, %v1833
      %v1835 = vrot.slane %v1834, 1
      %v1836 = vadd.f32 %v1834, %v1835
      %v1837 = vsel %vm1354, %v1610, 0.0
      %v1838 = vrot.slane %v1837, 4
      %v1839 = vadd.f32 %v1837, %v1838
      %v1840 = vrot.slane %v1839, 2
      %v1841 = vadd.f32 %v1839, %v1840
      %v1842 = vrot.slane %v1841, 1
      %v1843 = vadd.f32 %v1841, %v1842
      %v1844 = vsel %vm1354, %v1613, 0.0
      %v1845 = vrot.slane %v1844, 4
      %v1846 = vadd.f32 %v1844, %v1845
      %v1847 = vrot.slane %v1846, 2
      %v1848 = vadd.f32 %v1846, %v1847
      %v1849 = vrot.slane %v1848, 1
      %v1850 = vadd.f32 %v1848, %v1849
      %v1851 = vsel %vm1354, %v1615, 0.0
      %v1852 = vrot.slane %v1851, 4
      %v1853 = vadd.f32 %v1851, %v1852
      %v1854 = vrot.slane %v1853, 2
      %v1855 = vadd.f32 %v1853, %v1854
      %v1856 = vrot.slane %v1855, 1
      %v1857 = vadd.f32 %v1855, %v1856
      %v1858 = vsel %vm1354, %v1618, 0.0
      %v1859 = vrot.slane %v1858, 4
      %v1860 = vadd.f32 %v1858, %v1859
      %v1861 = vrot.slane %v1860, 2
      %v1862 = vadd.f32 %v1860, %v1861
      %v1863 = vrot.slane %v1862, 1
      %v1864 = vadd.f32 %v1862, %v1863
      %v1865 = vsel %vm1354, %v1620, 0.0
      %v1866 = vrot.slane %v1865, 4
      %v1867 = vadd.f32 %v1865, %v1866
      %v1868 = vrot.slane %v1867, 2
      %v1869 = vadd.f32 %v1867, %v1868
      %v1870 = vrot.slane %v1869, 1
      %v1871 = vadd.f32 %v1869, %v1870
      %v1872 = vsel %vm1354, %v1623, 0.0
      %v1873 = vrot.slane %v1872, 4
      %v1874 = vadd.f32 %v1872, %v1873
      %v1875 = vrot.slane %v1874, 2
      %v1876 = vadd.f32 %v1874, %v1875
      %v1877 = vrot.slane %v1876, 1
      %v1878 = vadd.f32 %v1876, %v1877
      %v1879 = vsel %vm1354, %v1625, 0.0
      %v1880 = vrot.slane %v1879, 4
      %v1881 = vadd.f32 %v1879, %v1880
      %v1882 = vrot.slane %v1881, 2
      %v1883 = vadd.f32 %v1881, %v1882
      %v1884 = vrot.slane %v1883, 1
      %v1885 = vadd.f32 %v1883, %v1884
      %v1886 = vsel %vm1354, %v1628, 0.0
      %v1887 = vrot.slane %v1886, 4
      %v1888 = vadd.f32 %v1886, %v1887
      %v1889 = vrot.slane %v1888, 2
      %v1890 = vadd.f32 %v1888, %v1889
      %v1891 = vrot.slane %v1890, 1
      %v1892 = vadd.f32 %v1890, %v1891
      %v1893 = vsel %vm1354, %v1630, 0.0
      %v1894 = vrot.slane %v1893, 4
      %v1895 = vadd.f32 %v1893, %v1894
      %v1896 = vrot.slane %v1895, 2
      %v1897 = vadd.f32 %v1895, %v1896
      %v1898 = vrot.slane %v1897, 1
      %v1899 = vadd.f32 %v1897, %v1898
      %v1900 = vsel %vm1354, %v1633, 0.0
      %v1901 = vrot.slane %v1900, 4
      %v1902 = vadd.f32 %v1900, %v1901
      %v1903 = vrot.slane %v1902, 2
      %v1904 = vadd.f32 %v1902, %v1903
      %v1905 = vrot.slane %v1904, 1
      %v1906 = vadd.f32 %v1904, %v1905
      %v1907 = vsel %vm1354, %v1635, 0.0
      %v1908 = vrot.slane %v1907, 4
      %v1909 = vadd.f32 %v1907, %v1908
      %v1910 = vrot.slane %v1909, 2
      %v1911 = vadd.f32 %v1909, %v1910
      %v1912 = vrot.slane %v1911, 1
      %v1913 = vadd.f32 %v1911, %v1912
      %v1914 = vsel %vm1354, %v1638, 0.0
      %v1915 = vrot.slane %v1914, 4
      %v1916 = vadd.f32 %v1914, %v1915
      %v1917 = vrot.slane %v1916, 2
      %v1918 = vadd.f32 %v1916, %v1917
      %v1919 = vrot.slane %v1918, 1
      %v1920 = vadd.f32 %v1918, %v1919
      %v1921 = vsel %vm1354, %v1640, 0.0
      %v1922 = vrot.slane %v1921, 4
      %v1923 = vadd.f32 %v1921, %v1922
      %v1924 = vrot.slane %v1923, 2
      %v1925 = vadd.f32 %v1923, %v1924
      %v1926 = vrot.slane %v1925, 1
      %v1927 = vadd.f32 %v1925, %v1926
      %v1928 = vsel %vm1354, %v1643, 0.0
      %v1929 = vrot.slane %v1928, 4
      %v1930 = vadd.f32 %v1928, %v1929
      %v1931 = vrot.slane %v1930, 2
      %v1932 = vadd.f32 %v1930, %v1931
      %v1933 = vrot.slane %v1932, 1
      %v1934 = vadd.f32 %v1932, %v1933
      %v1935 = vsel %vm1354, %v1645, 0.0
      %v1936 = vrot.slane %v1935, 4
      %v1937 = vadd.f32 %v1935, %v1936
      %v1938 = vrot.slane %v1937, 2
      %v1939 = vadd.f32 %v1937, %v1938
      %v1940 = vrot.slane %v1939, 1
      %v1941 = vadd.f32 %v1939, %v1940
      %v1942 = vsel %vm1354, %v1648, 0.0
      %v1943 = vrot.slane %v1942, 4
      %v1944 = vadd.f32 %v1942, %v1943
      %v1945 = vrot.slane %v1944, 2
      %v1946 = vadd.f32 %v1944, %v1945
      %v1947 = vrot.slane %v1946, 1
      %v1948 = vadd.f32 %v1946, %v1947
      %v1949 = vsel %vm1354, %v1650, 0.0
      %v1950 = vrot.slane %v1949, 4
      %v1951 = vadd.f32 %v1949, %v1950
      %v1952 = vrot.slane %v1951, 2
      %v1953 = vadd.f32 %v1951, %v1952
      %v1954 = vrot.slane %v1953, 1
      %v1955 = vadd.f32 %v1953, %v1954
      %v1956 = vsel %vm1354, %v1653, 0.0
      %v1957 = vrot.slane %v1956, 4
      %v1958 = vadd.f32 %v1956, %v1957
      %v1959 = vrot.slane %v1958, 2
      %v1960 = vadd.f32 %v1958, %v1959
      %v1961 = vrot.slane %v1960, 1
      %v1962 = vadd.f32 %v1960, %v1961
      %v1963 = vsel %vm1354, %v1655, 0.0
      %v1964 = vrot.slane %v1963, 4
      %v1965 = vadd.f32 %v1963, %v1964
      %v1966 = vrot.slane %v1965, 2
      %v1967 = vadd.f32 %v1965, %v1966
      %v1968 = vrot.slane %v1967, 1
      %v1969 = vadd.f32 %v1967, %v1968
      %v1970 = vsel %vm1354, %v1658, 0.0
      %v1971 = vrot.slane %v1970, 4
      %v1972 = vadd.f32 %v1970, %v1971
      %v1973 = vrot.slane %v1972, 2
      %v1974 = vadd.f32 %v1972, %v1973
      %v1975 = vrot.slane %v1974, 1
      %v1976 = vadd.f32 %v1974, %v1975
      %v1977 = vsel %vm1354, %v1660, 0.0
      %v1978 = vrot.slane %v1977, 4
      %v1979 = vadd.f32 %v1977, %v1978
      %v1980 = vrot.slane %v1979, 2
      %v1981 = vadd.f32 %v1979, %v1980
      %v1982 = vrot.slane %v1981, 1
      %v1983 = vadd.f32 %v1981, %v1982
      %v1984 = vsel %vm1354, %v1663, 0.0
      %v1985 = vrot.slane %v1984, 4
      %v1986 = vadd.f32 %v1984, %v1985
      %v1987 = vrot.slane %v1986, 2
      %v1988 = vadd.f32 %v1986, %v1987
      %v1989 = vrot.slane %v1988, 1
      %v1990 = vadd.f32 %v1988, %v1989
      %v1991 = vsel %vm1354, %v1665, 0.0
      %v1992 = vrot.slane %v1991, 4
      %v1993 = vadd.f32 %v1991, %v1992
      %v1994 = vrot.slane %v1993, 2
      %v1995 = vadd.f32 %v1993, %v1994
      %v1996 = vrot.slane %v1995, 1
      %v1997 = vadd.f32 %v1995, %v1996
      %v1998 = vsel %vm1354, %v1668, 0.0
      %v1999 = vrot.slane %v1998, 4
      %v2000 = vadd.f32 %v1998, %v1999
      %v2001 = vrot.slane %v2000, 2
      %v2002 = vadd.f32 %v2000, %v2001
      %v2003 = vrot.slane %v2002, 1
      %v2004 = vadd.f32 %v2002, %v2003
      %v2005 = vsel %vm1354, %v1670, 0.0
      %v2006 = vrot.slane %v2005, 4
      %v2007 = vadd.f32 %v2005, %v2006
      %v2008 = vrot.slane %v2007, 2
      %v2009 = vadd.f32 %v2007, %v2008
      %v2010 = vrot.slane %v2009, 1
      %v2011 = vadd.f32 %v2009, %v2010
      %v2012 = vsel %vm1354, %v1673, 0.0
      %v2013 = vrot.slane %v2012, 4
      %v2014 = vadd.f32 %v2012, %v2013
      %v2015 = vrot.slane %v2014, 2
      %v2016 = vadd.f32 %v2014, %v2015
      %v2017 = vrot.slane %v2016, 1
      %v2018 = vadd.f32 %v2016, %v2017
      %v2019 = vsel %vm1354, %v1675, 0.0
      %v2020 = vrot.slane %v2019, 4
      %v2021 = vadd.f32 %v2019, %v2020
      %v2022 = vrot.slane %v2021, 2
      %v2023 = vadd.f32 %v2021, %v2022
      %v2024 = vrot.slane %v2023, 1
      %v2025 = vadd.f32 %v2023, %v2024
      %v2026 = vsel %vm1354, %v1678, 0.0
      %v2027 = vrot.slane %v2026, 4
      %v2028 = vadd.f32 %v2026, %v2027
      %v2029 = vrot.slane %v2028, 2
      %v2030 = vadd.f32 %v2028, %v2029
      %v2031 = vrot.slane %v2030, 1
      %v2032 = vadd.f32 %v2030, %v2031
      %v2033 = vsel %vm1354, %v1680, 0.0
      %v2034 = vrot.slane %v2033, 4
      %v2035 = vadd.f32 %v2033, %v2034
      %v2036 = vrot.slane %v2035, 2
      %v2037 = vadd.f32 %v2035, %v2036
      %v2038 = vrot.slane %v2037, 1
      %v2039 = vadd.f32 %v2037, %v2038
      %v2040 = vsel %vm1354, %v1683, 0.0
      %v2041 = vrot.slane %v2040, 4
      %v2042 = vadd.f32 %v2040, %v2041
      %v2043 = vrot.slane %v2042, 2
      %v2044 = vadd.f32 %v2042, %v2043
      %v2045 = vrot.slane %v2044, 1
      %v2046 = vadd.f32 %v2044, %v2045
      %v2047 = vsel %vm1354, %v1685, 0.0
      %v2048 = vrot.slane %v2047, 4
      %v2049 = vadd.f32 %v2047, %v2048
      %v2050 = vrot.slane %v2049, 2
      %v2051 = vadd.f32 %v2049, %v2050
      %v2052 = vrot.slane %v2051, 1
      %v2053 = vadd.f32 %v2051, %v2052
      %v2054 = vsel %vm1354, %v1688, 0.0
      %v2055 = vrot.slane %v2054, 4
      %v2056 = vadd.f32 %v2054, %v2055
      %v2057 = vrot.slane %v2056, 2
      %v2058 = vadd.f32 %v2056, %v2057
      %v2059 = vrot.slane %v2058, 1
      %v2060 = vadd.f32 %v2058, %v2059
      %v2061 = vsel %vm1354, %v1690, 0.0
      %v2062 = vrot.slane %v2061, 4
      %v2063 = vadd.f32 %v2061, %v2062
      %v2064 = vrot.slane %v2063, 2
      %v2065 = vadd.f32 %v2063, %v2064
      %v2066 = vrot.slane %v2065, 1
      %v2067 = vadd.f32 %v2065, %v2066
      %v2068 = vsel %vm1354, %v1693, 0.0
      %v2069 = vrot.slane %v2068, 4
      %v2070 = vadd.f32 %v2068, %v2069
      %v2071 = vrot.slane %v2070, 2
      %v2072 = vadd.f32 %v2070, %v2071
      %v2073 = vrot.slane %v2072, 1
      %v2074 = vadd.f32 %v2072, %v2073
      %v2075 = vsel %vm1354, %v1695, 0.0
      %v2076 = vrot.slane %v2075, 4
      %v2077 = vadd.f32 %v2075, %v2076
      %v2078 = vrot.slane %v2077, 2
      %v2079 = vadd.f32 %v2077, %v2078
      %v2080 = vrot.slane %v2079, 1
      %v2081 = vadd.f32 %v2079, %v2080
      %v2082 = vsel %vm1354, %v1698, 0.0
      %v2083 = vrot.slane %v2082, 4
      %v2084 = vadd.f32 %v2082, %v2083
      %v2085 = vrot.slane %v2084, 2
      %v2086 = vadd.f32 %v2084, %v2085
      %v2087 = vrot.slane %v2086, 1
      %v2088 = vadd.f32 %v2086, %v2087
      %v2089 = vsel %vm1354, %v1700, 0.0
      %v2090 = vrot.slane %v2089, 4
      %v2091 = vadd.f32 %v2089, %v2090
      %v2092 = vrot.slane %v2091, 2
      %v2093 = vadd.f32 %v2091, %v2092
      %v2094 = vrot.slane %v2093, 1
      %v2095 = vadd.f32 %v2093, %v2094
      %v2096 = vsel %vm1354, %v1703, 0.0
      %v2097 = vrot.slane %v2096, 4
      %v2098 = vadd.f32 %v2096, %v2097
      %v2099 = vrot.slane %v2098, 2
      %v2100 = vadd.f32 %v2098, %v2099
      %v2101 = vrot.slane %v2100, 1
      %v2102 = vadd.f32 %v2100, %v2101
      %v2103 = vsel %vm1354, %v1705, 0.0
      %v2104 = vrot.slane %v2103, 4
      %v2105 = vadd.f32 %v2103, %v2104
      %v2106 = vrot.slane %v2105, 2
      %v2107 = vadd.f32 %v2105, %v2106
      %v2108 = vrot.slane %v2107, 1
      %v2109 = vadd.f32 %v2107, %v2108
      %v2110 = vsel %vm1354, %v1708, 0.0
      %v2111 = vrot.slane %v2110, 4
      %v2112 = vadd.f32 %v2110, %v2111
      %v2113 = vrot.slane %v2112, 2
      %v2114 = vadd.f32 %v2112, %v2113
      %v2115 = vrot.slane %v2114, 1
      %v2116 = vadd.f32 %v2114, %v2115
      %v2117 = vsel %vm1354, %v1710, 0.0
      %v2118 = vrot.slane %v2117, 4
      %v2119 = vadd.f32 %v2117, %v2118
      %v2120 = vrot.slane %v2119, 2
      %v2121 = vadd.f32 %v2119, %v2120
      %v2122 = vrot.slane %v2121, 1
      %v2123 = vadd.f32 %v2121, %v2122
      %v2124 = vsel %vm1354, %v1713, 0.0
      %v2125 = vrot.slane %v2124, 4
      %v2126 = vadd.f32 %v2124, %v2125
      %v2127 = vrot.slane %v2126, 2
      %v2128 = vadd.f32 %v2126, %v2127
      %v2129 = vrot.slane %v2128, 1
      %v2130 = vadd.f32 %v2128, %v2129
      %v2131 = vsel %vm1354, %v1715, 0.0
      %v2132 = vrot.slane %v2131, 4
      %v2133 = vadd.f32 %v2131, %v2132
      %v2134 = vrot.slane %v2133, 2
      %v2135 = vadd.f32 %v2133, %v2134
      %v2136 = vrot.slane %v2135, 1
      %v2137 = vadd.f32 %v2135, %v2136
      %v2138 = vsel %vm1354, %v1718, 0.0
      %v2139 = vrot.slane %v2138, 4
      %v2140 = vadd.f32 %v2138, %v2139
      %v2141 = vrot.slane %v2140, 2
      %v2142 = vadd.f32 %v2140, %v2141
      %v2143 = vrot.slane %v2142, 1
      %v2144 = vadd.f32 %v2142, %v2143
      %v2145 = vsel %vm1354, %v1720, 0.0
      %v2146 = vrot.slane %v2145, 4
      %v2147 = vadd.f32 %v2145, %v2146
      %v2148 = vrot.slane %v2147, 2
      %v2149 = vadd.f32 %v2147, %v2148
      %v2150 = vrot.slane %v2149, 1
      %v2151 = vadd.f32 %v2149, %v2150
      %v2152 = vsel %vm1354, %v1723, 0.0
      %v2153 = vrot.slane %v2152, 4
      %v2154 = vadd.f32 %v2152, %v2153
      %v2155 = vrot.slane %v2154, 2
      %v2156 = vadd.f32 %v2154, %v2155
      %v2157 = vrot.slane %v2156, 1
      %v2158 = vadd.f32 %v2156, %v2157
      %v2159 = vsel %vm1354, %v1725, 0.0
      %v2160 = vrot.slane %v2159, 4
      %v2161 = vadd.f32 %v2159, %v2160
      %v2162 = vrot.slane %v2161, 2
      %v2163 = vadd.f32 %v2161, %v2162
      %v2164 = vrot.slane %v2163, 1
      %v2165 = vadd.f32 %v2163, %v2164
      %v2166 = vsel %vm1354, %v1728, 0.0
      %v2167 = vrot.slane %v2166, 4
      %v2168 = vadd.f32 %v2166, %v2167
      %v2169 = vrot.slane %v2168, 2
      %v2170 = vadd.f32 %v2168, %v2169
      %v2171 = vrot.slane %v2170, 1
      %v2172 = vadd.f32 %v2170, %v2171
      %v2173 = vsel %vm1354, %v1730, 0.0
      %v2174 = vrot.slane %v2173, 4
      %v2175 = vadd.f32 %v2173, %v2174
      %v2176 = vrot.slane %v2175, 2
      %v2177 = vadd.f32 %v2175, %v2176
      %v2178 = vrot.slane %v2177, 1
      %v2179 = vadd.f32 %v2177, %v2178
      %v2180 = vrcp.pop 8.0
      %v2181 = vmul.f32 8.0, %v2180
      %v2182 = vsub.f32 1.0, %v2181
      %v2183 = vmul.f32 %v2180, %v2182
      %v2184 = vadd.f32 %v2180, %v2183
      %vm2185 = vweird.f32 %v2180
      %v2186 = vsel %vm2185, %v2180, %v2184
      %v2187 = vmul.f32 %v1738, %v2186
      %v2188 = vmul.f32 %v1745, %v2186
      %v2189 = vmul.f32 %v1752, %v2186
      %v2190 = vmul.f32 %v1759, %v2186
      %v2191 = vmul.f32 %v1766, %v2186
      %v2192 = vmul.f32 %v1773, %v2186
      %v2193 = vmul.f32 %v1780, %v2186
      %v2194 = vmul.f32 %v1787, %v2186
      %v2195 = vmul.f32 %v1794, %v2186
      %v2196 = vmul.f32 %v1801, %v2186
      %v2197 = vmul.f32 %v1808, %v2186
      %v2198 = vmul.f32 %v1815, %v2186
      %v2199 = vmul.f32 %v1822, %v2186
      %v2200 = vmul.f32 %v1829, %v2186
      %v2201 = vmul.f32 %v1836, %v2186
      %v2202 = vmul.f32 %v1843, %v2186
      %v2203 = vmul.f32 %v1850, %v2186
      %v2204 = vmul.f32 %v1857, %v2186
      %v2205 = vmul.f32 %v1864, %v2186
      %v2206 = vmul.f32 %v1871, %v2186
      %v2207 = vmul.f32 %v1878, %v2186
      %v2208 = vmul.f32 %v1885, %v2186
      %v2209 = vmul.f32 %v1892, %v2186
      %v2210 = vmul.f32 %v1899, %v2186
      %v2211 = vmul.f32 %v1906, %v2186
      %v2212 = vmul.f32 %v1913, %v2186
      %v2213 = vmul.f32 %v1920, %v2186
      %v2214 = vmul.f32 %v1927, %v2186
      %v2215 = vmul.f32 %v1934, %v2186
      %v2216 = vmul.f32 %v1941, %v2186
      %v2217 = vmul.f32 %v1948, %v2186
      %v2218 = vmul.f32 %v1955, %v2186
      %v2219 = vmul.f32 %v1962, %v2186
      %v2220 = vmul.f32 %v1969, %v2186
      %v2221 = vmul.f32 %v1976, %v2186
      %v2222 = vmul.f32 %v1983, %v2186
      %v2223 = vmul.f32 %v1990, %v2186
      %v2224 = vmul.f32 %v1997, %v2186
      %v2225 = vmul.f32 %v2004, %v2186
      %v2226 = vmul.f32 %v2011, %v2186
      %v2227 = vmul.f32 %v2018, %v2186
      %v2228 = vmul.f32 %v2025, %v2186
      %v2229 = vmul.f32 %v2032, %v2186
      %v2230 = vmul.f32 %v2039, %v2186
      %v2231 = vmul.f32 %v2046, %v2186
      %v2232 = vmul.f32 %v2053, %v2186
      %v2233 = vmul.f32 %v2060, %v2186
      %v2234 = vmul.f32 %v2067, %v2186
      %v2235 = vmul.f32 %v2074, %v2186
      %v2236 = vmul.f32 %v2081, %v2186
      %v2237 = vmul.f32 %v2088, %v2186
      %v2238 = vmul.f32 %v2095, %v2186
      %v2239 = vmul.f32 %v2102, %v2186
      %v2240 = vmul.f32 %v2109, %v2186
      %v2241 = vmul.f32 %v2116, %v2186
      %v2242 = vmul.f32 %v2123, %v2186
      %v2243 = vmul.f32 %v2130, %v2186
      %v2244 = vmul.f32 %v2137, %v2186
      %v2245 = vmul.f32 %v2144, %v2186
      %v2246 = vmul.f32 %v2151, %v2186
      %v2247 = vmul.f32 %v2158, %v2186
      %v2248 = vmul.f32 %v2165, %v2186
      %v2249 = vmul.f32 %v2172, %v2186
      %v2250 = vmul.f32 %v2179, %v2186
      %v2251 = vmul.f32 %v1573, %v1573
      %v2252 = vmul.f32 %v1575, %v1575
      %v2253 = vmul.f32 %v1578, %v1578
      %v2254 = vmul.f32 %v1580, %v1580
      %v2255 = vmul.f32 %v1583, %v1583
      %v2256 = vmul.f32 %v1585, %v1585
      %v2257 = vmul.f32 %v1588, %v1588
      %v2258 = vmul.f32 %v1590, %v1590
      %v2259 = vmul.f32 %v1593, %v1593
      %v2260 = vmul.f32 %v1595, %v1595
      %v2261 = vmul.f32 %v1598, %v1598
      %v2262 = vmul.f32 %v1600, %v1600
      %v2263 = vmul.f32 %v1603, %v1603
      %v2264 = vmul.f32 %v1605, %v1605
      %v2265 = vmul.f32 %v1608, %v1608
      %v2266 = vmul.f32 %v1610, %v1610
      %v2267 = vmul.f32 %v1613, %v1613
      %v2268 = vmul.f32 %v1615, %v1615
      %v2269 = vmul.f32 %v1618, %v1618
      %v2270 = vmul.f32 %v1620, %v1620
      %v2271 = vmul.f32 %v1623, %v1623
      %v2272 = vmul.f32 %v1625, %v1625
      %v2273 = vmul.f32 %v1628, %v1628
      %v2274 = vmul.f32 %v1630, %v1630
      %v2275 = vmul.f32 %v1633, %v1633
      %v2276 = vmul.f32 %v1635, %v1635
      %v2277 = vmul.f32 %v1638, %v1638
      %v2278 = vmul.f32 %v1640, %v1640
      %v2279 = vmul.f32 %v1643, %v1643
      %v2280 = vmul.f32 %v1645, %v1645
      %v2281 = vmul.f32 %v1648, %v1648
      %v2282 = vmul.f32 %v1650, %v1650
      %v2283 = vmul.f32 %v1653, %v1653
      %v2284 = vmul.f32 %v1655, %v1655
      %v2285 = vmul.f32 %v1658, %v1658
      %v2286 = vmul.f32 %v1660, %v1660
      %v2287 = vmul.f32 %v1663, %v1663
      %v2288 = vmul.f32 %v1665, %v1665
      %v2289 = vmul.f32 %v1668, %v1668
      %v2290 = vmul.f32 %v1670, %v1670
      %v2291 = vmul.f32 %v1673, %v1673
      %v2292 = vmul.f32 %v1675, %v1675
      %v2293 = vmul.f32 %v1678, %v1678
      %v2294 = vmul.f32 %v1680, %v1680
      %v2295 = vmul.f32 %v1683, %v1683
      %v2296 = vmul.f32 %v1685, %v1685
      %v2297 = vmul.f32 %v1688, %v1688
      %v2298 = vmul.f32 %v1690, %v1690
      %v2299 = vmul.f32 %v1693, %v1693
      %v2300 = vmul.f32 %v1695, %v1695
      %v2301 = vmul.f32 %v1698, %v1698
      %v2302 = vmul.f32 %v1700, %v1700
      %v2303 = vmul.f32 %v1703, %v1703
      %v2304 = vmul.f32 %v1705, %v1705
      %v2305 = vmul.f32 %v1708, %v1708
      %v2306 = vmul.f32 %v1710, %v1710
      %v2307 = vmul.f32 %v1713, %v1713
      %v2308 = vmul.f32 %v1715, %v1715
      %v2309 = vmul.f32 %v1718, %v1718
      %v2310 = vmul.f32 %v1720, %v1720
      %v2311 = vmul.f32 %v1723, %v1723
      %v2312 = vmul.f32 %v1725, %v1725
      %v2313 = vmul.f32 %v1728, %v1728
      %v2314 = vmul.f32 %v1730, %v1730
      %v2315 = vsel %vm1354, %v2251, 0.0
      %v2316 = vrot.slane %v2315, 4
      %v2317 = vadd.f32 %v2315, %v2316
      %v2318 = vrot.slane %v2317, 2
      %v2319 = vadd.f32 %v2317, %v2318
      %v2320 = vrot.slane %v2319, 1
      %v2321 = vadd.f32 %v2319, %v2320
      %v2322 = vsel %vm1354, %v2252, 0.0
      %v2323 = vrot.slane %v2322, 4
      %v2324 = vadd.f32 %v2322, %v2323
      %v2325 = vrot.slane %v2324, 2
      %v2326 = vadd.f32 %v2324, %v2325
      %v2327 = vrot.slane %v2326, 1
      %v2328 = vadd.f32 %v2326, %v2327
      %v2329 = vsel %vm1354, %v2253, 0.0
      %v2330 = vrot.slane %v2329, 4
      %v2331 = vadd.f32 %v2329, %v2330
      %v2332 = vrot.slane %v2331, 2
      %v2333 = vadd.f32 %v2331, %v2332
      %v2334 = vrot.slane %v2333, 1
      %v2335 = vadd.f32 %v2333, %v2334
      %v2336 = vsel %vm1354, %v2254, 0.0
      %v2337 = vrot.slane %v2336, 4
      %v2338 = vadd.f32 %v2336, %v2337
      %v2339 = vrot.slane %v2338, 2
      %v2340 = vadd.f32 %v2338, %v2339
      %v2341 = vrot.slane %v2340, 1
      %v2342 = vadd.f32 %v2340, %v2341
      %v2343 = vsel %vm1354, %v2255, 0.0
      %v2344 = vrot.slane %v2343, 4
      %v2345 = vadd.f32 %v2343, %v2344
      %v2346 = vrot.slane %v2345, 2
      %v2347 = vadd.f32 %v2345, %v2346
      %v2348 = vrot.slane %v2347, 1
      %v2349 = vadd.f32 %v2347, %v2348
      %v2350 = vsel %vm1354, %v2256, 0.0
      %v2351 = vrot.slane %v2350, 4
      %v2352 = vadd.f32 %v2350, %v2351
      %v2353 = vrot.slane %v2352, 2
      %v2354 = vadd.f32 %v2352, %v2353
      %v2355 = vrot.slane %v2354, 1
      %v2356 = vadd.f32 %v2354, %v2355
      %v2357 = vsel %vm1354, %v2257, 0.0
      %v2358 = vrot.slane %v2357, 4
      %v2359 = vadd.f32 %v2357, %v2358
      %v2360 = vrot.slane %v2359, 2
      %v2361 = vadd.f32 %v2359, %v2360
      %v2362 = vrot.slane %v2361, 1
      %v2363 = vadd.f32 %v2361, %v2362
      %v2364 = vsel %vm1354, %v2258, 0.0
      %v2365 = vrot.slane %v2364, 4
      %v2366 = vadd.f32 %v2364, %v2365
      %v2367 = vrot.slane %v2366, 2
      %v2368 = vadd.f32 %v2366, %v2367
      %v2369 = vrot.slane %v2368, 1
      %v2370 = vadd.f32 %v2368, %v2369
      %v2371 = vsel %vm1354, %v2259, 0.0
      %v2372 = vrot.slane %v2371, 4
      %v2373 = vadd.f32 %v2371, %v2372
      %v2374 = vrot.slane %v2373, 2
      %v2375 = vadd.f32 %v2373, %v2374
      %v2376 = vrot.slane %v2375, 1
      %v2377 = vadd.f32 %v2375, %v2376
      %v2378 = vsel %vm1354, %v2260, 0.0
      %v2379 = vrot.slane %v2378, 4
      %v2380 = vadd.f32 %v2378, %v2379
      %v2381 = vrot.slane %v2380, 2
      %v2382 = vadd.f32 %v2380, %v2381
      %v2383 = vrot.slane %v2382, 1
      %v2384 = vadd.f32 %v2382, %v2383
      %v2385 = vsel %vm1354, %v2261, 0.0
      %v2386 = vrot.slane %v2385, 4
      %v2387 = vadd.f32 %v2385, %v2386
      %v2388 = vrot.slane %v2387, 2
      %v2389 = vadd.f32 %v2387, %v2388
      %v2390 = vrot.slane %v2389, 1
      %v2391 = vadd.f32 %v2389, %v2390
      %v2392 = vsel %vm1354, %v2262, 0.0
      %v2393 = vrot.slane %v2392, 4
      %v2394 = vadd.f32 %v2392, %v2393
      %v2395 = vrot.slane %v2394, 2
      %v2396 = vadd.f32 %v2394, %v2395
      %v2397 = vrot.slane %v2396, 1
      %v2398 = vadd.f32 %v2396, %v2397
      %v2399 = vsel %vm1354, %v2263, 0.0
      %v2400 = vrot.slane %v2399, 4
      %v2401 = vadd.f32 %v2399, %v2400
      %v2402 = vrot.slane %v2401, 2
      %v2403 = vadd.f32 %v2401, %v2402
      %v2404 = vrot.slane %v2403, 1
      %v2405 = vadd.f32 %v2403, %v2404
      %v2406 = vsel %vm1354, %v2264, 0.0
      %v2407 = vrot.slane %v2406, 4
      %v2408 = vadd.f32 %v2406, %v2407
      %v2409 = vrot.slane %v2408, 2
      %v2410 = vadd.f32 %v2408, %v2409
      %v2411 = vrot.slane %v2410, 1
      %v2412 = vadd.f32 %v2410, %v2411
      %v2413 = vsel %vm1354, %v2265, 0.0
      %v2414 = vrot.slane %v2413, 4
      %v2415 = vadd.f32 %v2413, %v2414
      %v2416 = vrot.slane %v2415, 2
      %v2417 = vadd.f32 %v2415, %v2416
      %v2418 = vrot.slane %v2417, 1
      %v2419 = vadd.f32 %v2417, %v2418
      %v2420 = vsel %vm1354, %v2266, 0.0
      %v2421 = vrot.slane %v2420, 4
      %v2422 = vadd.f32 %v2420, %v2421
      %v2423 = vrot.slane %v2422, 2
      %v2424 = vadd.f32 %v2422, %v2423
      %v2425 = vrot.slane %v2424, 1
      %v2426 = vadd.f32 %v2424, %v2425
      %v2427 = vsel %vm1354, %v2267, 0.0
      %v2428 = vrot.slane %v2427, 4
      %v2429 = vadd.f32 %v2427, %v2428
      %v2430 = vrot.slane %v2429, 2
      %v2431 = vadd.f32 %v2429, %v2430
      %v2432 = vrot.slane %v2431, 1
      %v2433 = vadd.f32 %v2431, %v2432
      %v2434 = vsel %vm1354, %v2268, 0.0
      %v2435 = vrot.slane %v2434, 4
      %v2436 = vadd.f32 %v2434, %v2435
      %v2437 = vrot.slane %v2436, 2
      %v2438 = vadd.f32 %v2436, %v2437
      %v2439 = vrot.slane %v2438, 1
      %v2440 = vadd.f32 %v2438, %v2439
      %v2441 = vsel %vm1354, %v2269, 0.0
      %v2442 = vrot.slane %v2441, 4
      %v2443 = vadd.f32 %v2441, %v2442
      %v2444 = vrot.slane %v2443, 2
      %v2445 = vadd.f32 %v2443, %v2444
      %v2446 = vrot.slane %v2445, 1
      %v2447 = vadd.f32 %v2445, %v2446
      %v2448 = vsel %vm1354, %v2270, 0.0
      %v2449 = vrot.slane %v2448, 4
      %v2450 = vadd.f32 %v2448, %v2449
      %v2451 = vrot.slane %v2450, 2
      %v2452 = vadd.f32 %v2450, %v2451
      %v2453 = vrot.slane %v2452, 1
      %v2454 = vadd.f32 %v2452, %v2453
      %v2455 = vsel %vm1354, %v2271, 0.0
      %v2456 = vrot.slane %v2455, 4
      %v2457 = vadd.f32 %v2455, %v2456
      %v2458 = vrot.slane %v2457, 2
      %v2459 = vadd.f32 %v2457, %v2458
      %v2460 = vrot.slane %v2459, 1
      %v2461 = vadd.f32 %v2459, %v2460
      %v2462 = vsel %vm1354, %v2272, 0.0
      %v2463 = vrot.slane %v2462, 4
      %v2464 = vadd.f32 %v2462, %v2463
      %v2465 = vrot.slane %v2464, 2
      %v2466 = vadd.f32 %v2464, %v2465
      %v2467 = vrot.slane %v2466, 1
      %v2468 = vadd.f32 %v2466, %v2467
      %v2469 = vsel %vm1354, %v2273, 0.0
      %v2470 = vrot.slane %v2469, 4
      %v2471 = vadd.f32 %v2469, %v2470
      %v2472 = vrot.slane %v2471, 2
      %v2473 = vadd.f32 %v2471, %v2472
      %v2474 = vrot.slane %v2473, 1
      %v2475 = vadd.f32 %v2473, %v2474
      %v2476 = vsel %vm1354, %v2274, 0.0
      %v2477 = vrot.slane %v2476, 4
      %v2478 = vadd.f32 %v2476, %v2477
      %v2479 = vrot.slane %v2478, 2
      %v2480 = vadd.f32 %v2478, %v2479
      %v2481 = vrot.slane %v2480, 1
      %v2482 = vadd.f32 %v2480, %v2481
      %v2483 = vsel %vm1354, %v2275, 0.0
      %v2484 = vrot.slane %v2483, 4
      %v2485 = vadd.f32 %v2483, %v2484
      %v2486 = vrot.slane %v2485, 2
      %v2487 = vadd.f32 %v2485, %v2486
      %v2488 = vrot.slane %v2487, 1
      %v2489 = vadd.f32 %v2487, %v2488
      %v2490 = vsel %vm1354, %v2276, 0.0
      %v2491 = vrot.slane %v2490, 4
      %v2492 = vadd.f32 %v2490, %v2491
      %v2493 = vrot.slane %v2492, 2
      %v2494 = vadd.f32 %v2492, %v2493
      %v2495 = vrot.slane %v2494, 1
      %v2496 = vadd.f32 %v2494, %v2495
      %v2497 = vsel %vm1354, %v2277, 0.0
      %v2498 = vrot.slane %v2497, 4
      %v2499 = vadd.f32 %v2497, %v2498
      %v2500 = vrot.slane %v2499, 2
      %v2501 = vadd.f32 %v2499, %v2500
      %v2502 = vrot.slane %v2501, 1
      %v2503 = vadd.f32 %v2501, %v2502
      %v2504 = vsel %vm1354, %v2278, 0.0
      %v2505 = vrot.slane %v2504, 4
      %v2506 = vadd.f32 %v2504, %v2505
      %v2507 = vrot.slane %v2506, 2
      %v2508 = vadd.f32 %v2506, %v2507
      %v2509 = vrot.slane %v2508, 1
      %v2510 = vadd.f32 %v2508, %v2509
      %v2511 = vsel %vm1354, %v2279, 0.0
      %v2512 = vrot.slane %v2511, 4
      %v2513 = vadd.f32 %v2511, %v2512
      %v2514 = vrot.slane %v2513, 2
      %v2515 = vadd.f32 %v2513, %v2514
      %v2516 = vrot.slane %v2515, 1
      %v2517 = vadd.f32 %v2515, %v2516
      %v2518 = vsel %vm1354, %v2280, 0.0
      %v2519 = vrot.slane %v2518, 4
      %v2520 = vadd.f32 %v2518, %v2519
      %v2521 = vrot.slane %v2520, 2
      %v2522 = vadd.f32 %v2520, %v2521
      %v2523 = vrot.slane %v2522, 1
      %v2524 = vadd.f32 %v2522, %v2523
      %v2525 = vsel %vm1354, %v2281, 0.0
      %v2526 = vrot.slane %v2525, 4
      %v2527 = vadd.f32 %v2525, %v2526
      %v2528 = vrot.slane %v2527, 2
      %v2529 = vadd.f32 %v2527, %v2528
      %v2530 = vrot.slane %v2529, 1
      %v2531 = vadd.f32 %v2529, %v2530
      %v2532 = vsel %vm1354, %v2282, 0.0
      %v2533 = vrot.slane %v2532, 4
      %v2534 = vadd.f32 %v2532, %v2533
      %v2535 = vrot.slane %v2534, 2
      %v2536 = vadd.f32 %v2534, %v2535
      %v2537 = vrot.slane %v2536, 1
      %v2538 = vadd.f32 %v2536, %v2537
      %v2539 = vsel %vm1354, %v2283, 0.0
      %v2540 = vrot.slane %v2539, 4
      %v2541 = vadd.f32 %v2539, %v2540
      %v2542 = vrot.slane %v2541, 2
      %v2543 = vadd.f32 %v2541, %v2542
      %v2544 = vrot.slane %v2543, 1
      %v2545 = vadd.f32 %v2543, %v2544
      %v2546 = vsel %vm1354, %v2284, 0.0
      %v2547 = vrot.slane %v2546, 4
      %v2548 = vadd.f32 %v2546, %v2547
      %v2549 = vrot.slane %v2548, 2
      %v2550 = vadd.f32 %v2548, %v2549
      %v2551 = vrot.slane %v2550, 1
      %v2552 = vadd.f32 %v2550, %v2551
      %v2553 = vsel %vm1354, %v2285, 0.0
      %v2554 = vrot.slane %v2553, 4
      %v2555 = vadd.f32 %v2553, %v2554
      %v2556 = vrot.slane %v2555, 2
      %v2557 = vadd.f32 %v2555, %v2556
      %v2558 = vrot.slane %v2557, 1
      %v2559 = vadd.f32 %v2557, %v2558
      %v2560 = vsel %vm1354, %v2286, 0.0
      %v2561 = vrot.slane %v2560, 4
      %v2562 = vadd.f32 %v2560, %v2561
      %v2563 = vrot.slane %v2562, 2
      %v2564 = vadd.f32 %v2562, %v2563
      %v2565 = vrot.slane %v2564, 1
      %v2566 = vadd.f32 %v2564, %v2565
      %v2567 = vsel %vm1354, %v2287, 0.0
      %v2568 = vrot.slane %v2567, 4
      %v2569 = vadd.f32 %v2567, %v2568
      %v2570 = vrot.slane %v2569, 2
      %v2571 = vadd.f32 %v2569, %v2570
      %v2572 = vrot.slane %v2571, 1
      %v2573 = vadd.f32 %v2571, %v2572
      %v2574 = vsel %vm1354, %v2288, 0.0
      %v2575 = vrot.slane %v2574, 4
      %v2576 = vadd.f32 %v2574, %v2575
      %v2577 = vrot.slane %v2576, 2
      %v2578 = vadd.f32 %v2576, %v2577
      %v2579 = vrot.slane %v2578, 1
      %v2580 = vadd.f32 %v2578, %v2579
      %v2581 = vsel %vm1354, %v2289, 0.0
      %v2582 = vrot.slane %v2581, 4
      %v2583 = vadd.f32 %v2581, %v2582
      %v2584 = vrot.slane %v2583, 2
      %v2585 = vadd.f32 %v2583, %v2584
      %v2586 = vrot.slane %v2585, 1
      %v2587 = vadd.f32 %v2585, %v2586
      %v2588 = vsel %vm1354, %v2290, 0.0
      %v2589 = vrot.slane %v2588, 4
      %v2590 = vadd.f32 %v2588, %v2589
      %v2591 = vrot.slane %v2590, 2
      %v2592 = vadd.f32 %v2590, %v2591
      %v2593 = vrot.slane %v2592, 1
      %v2594 = vadd.f32 %v2592, %v2593
      %v2595 = vsel %vm1354, %v2291, 0.0
      %v2596 = vrot.slane %v2595, 4
      %v2597 = vadd.f32 %v2595, %v2596
      %v2598 = vrot.slane %v2597, 2
      %v2599 = vadd.f32 %v2597, %v2598
      %v2600 = vrot.slane %v2599, 1
      %v2601 = vadd.f32 %v2599, %v2600
      %v2602 = vsel %vm1354, %v2292, 0.0
      %v2603 = vrot.slane %v2602, 4
      %v2604 = vadd.f32 %v2602, %v2603
      %v2605 = vrot.slane %v2604, 2
      %v2606 = vadd.f32 %v2604, %v2605
      %v2607 = vrot.slane %v2606, 1
      %v2608 = vadd.f32 %v2606, %v2607
      %v2609 = vsel %vm1354, %v2293, 0.0
      %v2610 = vrot.slane %v2609, 4
      %v2611 = vadd.f32 %v2609, %v2610
      %v2612 = vrot.slane %v2611, 2
      %v2613 = vadd.f32 %v2611, %v2612
      %v2614 = vrot.slane %v2613, 1
      %v2615 = vadd.f32 %v2613, %v2614
      %v2616 = vsel %vm1354, %v2294, 0.0
      %v2617 = vrot.slane %v2616, 4
      %v2618 = vadd.f32 %v2616, %v2617
      %v2619 = vrot.slane %v2618, 2
      %v2620 = vadd.f32 %v2618, %v2619
      %v2621 = vrot.slane %v2620, 1
      %v2622 = vadd.f32 %v2620, %v2621
      %v2623 = vsel %vm1354, %v2295, 0.0
      %v2624 = vrot.slane %v2623, 4
      %v2625 = vadd.f32 %v2623, %v2624
      %v2626 = vrot.slane %v2625, 2
      %v2627 = vadd.f32 %v2625, %v2626
      %v2628 = vrot.slane %v2627, 1
      %v2629 = vadd.f32 %v2627, %v2628
      %v2630 = vsel %vm1354, %v2296, 0.0
      %v2631 = vrot.slane %v2630, 4
      %v2632 = vadd.f32 %v2630, %v2631
      %v2633 = vrot.slane %v2632, 2
      %v2634 = vadd.f32 %v2632, %v2633
      %v2635 = vrot.slane %v2634, 1
      %v2636 = vadd.f32 %v2634, %v2635
      %v2637 = vsel %vm1354, %v2297, 0.0
      %v2638 = vrot.slane %v2637, 4
      %v2639 = vadd.f32 %v2637, %v2638
      %v2640 = vrot.slane %v2639, 2
      %v2641 = vadd.f32 %v2639, %v2640
      %v2642 = vrot.slane %v2641, 1
      %v2643 = vadd.f32 %v2641, %v2642
      %v2644 = vsel %vm1354, %v2298, 0.0
      %v2645 = vrot.slane %v2644, 4
      %v2646 = vadd.f32 %v2644, %v2645
      %v2647 = vrot.slane %v2646, 2
      %v2648 = vadd.f32 %v2646, %v2647
      %v2649 = vrot.slane %v2648, 1
      %v2650 = vadd.f32 %v2648, %v2649
      %v2651 = vsel %vm1354, %v2299, 0.0
      %v2652 = vrot.slane %v2651, 4
      %v2653 = vadd.f32 %v2651, %v2652
      %v2654 = vrot.slane %v2653, 2
      %v2655 = vadd.f32 %v2653, %v2654
      %v2656 = vrot.slane %v2655, 1
      %v2657 = vadd.f32 %v2655, %v2656
      %v2658 = vsel %vm1354, %v2300, 0.0
      %v2659 = vrot.slane %v2658, 4
      %v2660 = vadd.f32 %v2658, %v2659
      %v2661 = vrot.slane %v2660, 2
      %v2662 = vadd.f32 %v2660, %v2661
      %v2663 = vrot.slane %v2662, 1
      %v2664 = vadd.f32 %v2662, %v2663
      %v2665 = vsel %vm1354, %v2301, 0.0
      %v2666 = vrot.slane %v2665, 4
      %v2667 = vadd.f32 %v2665, %v2666
      %v2668 = vrot.slane %v2667, 2
      %v2669 = vadd.f32 %v2667, %v2668
      %v2670 = vrot.slane %v2669, 1
      %v2671 = vadd.f32 %v2669, %v2670
      %v2672 = vsel %vm1354, %v2302, 0.0
      %v2673 = vrot.slane %v2672, 4
      %v2674 = vadd.f32 %v2672, %v2673
      %v2675 = vrot.slane %v2674, 2
      %v2676 = vadd.f32 %v2674, %v2675
      %v2677 = vrot.slane %v2676, 1
      %v2678 = vadd.f32 %v2676, %v2677
      %v2679 = vsel %vm1354, %v2303, 0.0
      %v2680 = vrot.slane %v2679, 4
      %v2681 = vadd.f32 %v2679, %v2680
      %v2682 = vrot.slane %v2681, 2
      %v2683 = vadd.f32 %v2681, %v2682
      %v2684 = vrot.slane %v2683, 1
      %v2685 = vadd.f32 %v2683, %v2684
      %v2686 = vsel %vm1354, %v2304, 0.0
      %v2687 = vrot.slane %v2686, 4
      %v2688 = vadd.f32 %v2686, %v2687
      %v2689 = vrot.slane %v2688, 2
      %v2690 = vadd.f32 %v2688, %v2689
      %v2691 = vrot.slane %v2690, 1
      %v2692 = vadd.f32 %v2690, %v2691
      %v2693 = vsel %vm1354, %v2305, 0.0
      %v2694 = vrot.slane %v2693, 4
      %v2695 = vadd.f32 %v2693, %v2694
      %v2696 = vrot.slane %v2695, 2
      %v2697 = vadd.f32 %v2695, %v2696
      %v2698 = vrot.slane %v2697, 1
      %v2699 = vadd.f32 %v2697, %v2698
      %v2700 = vsel %vm1354, %v2306, 0.0
      %v2701 = vrot.slane %v2700, 4
      %v2702 = vadd.f32 %v2700, %v2701
      %v2703 = vrot.slane %v2702, 2
      %v2704 = vadd.f32 %v2702, %v2703
      %v2705 = vrot.slane %v2704, 1
      %v2706 = vadd.f32 %v2704, %v2705
      %v2707 = vsel %vm1354, %v2307, 0.0
      %v2708 = vrot.slane %v2707, 4
      %v2709 = vadd.f32 %v2707, %v2708
      %v2710 = vrot.slane %v2709, 2
      %v2711 = vadd.f32 %v2709, %v2710
      %v2712 = vrot.slane %v2711, 1
      %v2713 = vadd.f32 %v2711, %v2712
      %v2714 = vsel %vm1354, %v2308, 0.0
      %v2715 = vrot.slane %v2714, 4
      %v2716 = vadd.f32 %v2714, %v2715
      %v2717 = vrot.slane %v2716, 2
      %v2718 = vadd.f32 %v2716, %v2717
      %v2719 = vrot.slane %v2718, 1
      %v2720 = vadd.f32 %v2718, %v2719
      %v2721 = vsel %vm1354, %v2309, 0.0
      %v2722 = vrot.slane %v2721, 4
      %v2723 = vadd.f32 %v2721, %v2722
      %v2724 = vrot.slane %v2723, 2
      %v2725 = vadd.f32 %v2723, %v2724
      %v2726 = vrot.slane %v2725, 1
      %v2727 = vadd.f32 %v2725, %v2726
      %v2728 = vsel %vm1354, %v2310, 0.0
      %v2729 = vrot.slane %v2728, 4
      %v2730 = vadd.f32 %v2728, %v2729
      %v2731 = vrot.slane %v2730, 2
      %v2732 = vadd.f32 %v2730, %v2731
      %v2733 = vrot.slane %v2732, 1
      %v2734 = vadd.f32 %v2732, %v2733
      %v2735 = vsel %vm1354, %v2311, 0.0
      %v2736 = vrot.slane %v2735, 4
      %v2737 = vadd.f32 %v2735, %v2736
      %v2738 = vrot.slane %v2737, 2
      %v2739 = vadd.f32 %v2737, %v2738
      %v2740 = vrot.slane %v2739, 1
      %v2741 = vadd.f32 %v2739, %v2740
      %v2742 = vsel %vm1354, %v2312, 0.0
      %v2743 = vrot.slane %v2742, 4
      %v2744 = vadd.f32 %v2742, %v2743
      %v2745 = vrot.slane %v2744, 2
      %v2746 = vadd.f32 %v2744, %v2745
      %v2747 = vrot.slane %v2746, 1
      %v2748 = vadd.f32 %v2746, %v2747
      %v2749 = vsel %vm1354, %v2313, 0.0
      %v2750 = vrot.slane %v2749, 4
      %v2751 = vadd.f32 %v2749, %v2750
      %v2752 = vrot.slane %v2751, 2
      %v2753 = vadd.f32 %v2751, %v2752
      %v2754 = vrot.slane %v2753, 1
      %v2755 = vadd.f32 %v2753, %v2754
      %v2756 = vsel %vm1354, %v2314, 0.0
      %v2757 = vrot.slane %v2756, 4
      %v2758 = vadd.f32 %v2756, %v2757
      %v2759 = vrot.slane %v2758, 2
      %v2760 = vadd.f32 %v2758, %v2759
      %v2761 = vrot.slane %v2760, 1
      %v2762 = vadd.f32 %v2760, %v2761
      %v2763 = vmul.f32 %v2321, %v2186
      %v2764 = vmul.f32 %v2328, %v2186
      %v2765 = vmul.f32 %v2335, %v2186
      %v2766 = vmul.f32 %v2342, %v2186
      %v2767 = vmul.f32 %v2349, %v2186
      %v2768 = vmul.f32 %v2356, %v2186
      %v2769 = vmul.f32 %v2363, %v2186
      %v2770 = vmul.f32 %v2370, %v2186
      %v2771 = vmul.f32 %v2377, %v2186
      %v2772 = vmul.f32 %v2384, %v2186
      %v2773 = vmul.f32 %v2391, %v2186
      %v2774 = vmul.f32 %v2398, %v2186
      %v2775 = vmul.f32 %v2405, %v2186
      %v2776 = vmul.f32 %v2412, %v2186
      %v2777 = vmul.f32 %v2419, %v2186
      %v2778 = vmul.f32 %v2426, %v2186
      %v2779 = vmul.f32 %v2433, %v2186
      %v2780 = vmul.f32 %v2440, %v2186
      %v2781 = vmul.f32 %v2447, %v2186
      %v2782 = vmul.f32 %v2454, %v2186
      %v2783 = vmul.f32 %v2461, %v2186
      %v2784 = vmul.f32 %v2468, %v2186
      %v2785 = vmul.f32 %v2475, %v2186
      %v2786 = vmul.f32 %v2482, %v2186
      %v2787 = vmul.f32 %v2489, %v2186
      %v2788 = vmul.f32 %v2496, %v2186
      %v2789 = vmul.f32 %v2503, %v2186
      %v2790 = vmul.f32 %v2510, %v2186
      %v2791 = vmul.f32 %v2517, %v2186
      %v2792 = vmul.f32 %v2524, %v2186
      %v2793 = vmul.f32 %v2531, %v2186
      %v2794 = vmul.f32 %v2538, %v2186
      %v2795 = vmul.f32 %v2545, %v2186
      %v2796 = vmul.f32 %v2552, %v2186
      %v2797 = vmul.f32 %v2559, %v2186
      %v2798 = vmul.f32 %v2566, %v2186
      %v2799 = vmul.f32 %v2573, %v2186
      %v2800 = vmul.f32 %v2580, %v2186
      %v2801 = vmul.f32 %v2587, %v2186
      %v2802 = vmul.f32 %v2594, %v2186
      %v2803 = vmul.f32 %v2601, %v2186
      %v2804 = vmul.f32 %v2608, %v2186
      %v2805 = vmul.f32 %v2615, %v2186
      %v2806 = vmul.f32 %v2622, %v2186
      %v2807 = vmul.f32 %v2629, %v2186
      %v2808 = vmul.f32 %v2636, %v2186
      %v2809 = vmul.f32 %v2643, %v2186
      %v2810 = vmul.f32 %v2650, %v2186
      %v2811 = vmul.f32 %v2657, %v2186
      %v2812 = vmul.f32 %v2664, %v2186
      %v2813 = vmul.f32 %v2671, %v2186
      %v2814 = vmul.f32 %v2678, %v2186
      %v2815 = vmul.f32 %v2685, %v2186
      %v2816 = vmul.f32 %v2692, %v2186
      %v2817 = vmul.f32 %v2699, %v2186
      %v2818 = vmul.f32 %v2706, %v2186
      %v2819 = vmul.f32 %v2713, %v2186
      %v2820 = vmul.f32 %v2720, %v2186
      %v2821 = vmul.f32 %v2727, %v2186
      %v2822 = vmul.f32 %v2734, %v2186
      %v2823 = vmul.f32 %v2741, %v2186
      %v2824 = vmul.f32 %v2748, %v2186
      %v2825 = vmul.f32 %v2755, %v2186
      %v2826 = vmul.f32 %v2762, %v2186
      %v2827 = vmul.f32 %v2187, %v2187
      %v2828 = vmul.f32 %v2188, %v2188
      %v2829 = vmul.f32 %v2189, %v2189
      %v2830 = vmul.f32 %v2190, %v2190
      %v2831 = vmul.f32 %v2191, %v2191
      %v2832 = vmul.f32 %v2192, %v2192
      %v2833 = vmul.f32 %v2193, %v2193
      %v2834 = vmul.f32 %v2194, %v2194
      %v2835 = vmul.f32 %v2195, %v2195
      %v2836 = vmul.f32 %v2196, %v2196
      %v2837 = vmul.f32 %v2197, %v2197
      %v2838 = vmul.f32 %v2198, %v2198
      %v2839 = vmul.f32 %v2199, %v2199
      %v2840 = vmul.f32 %v2200, %v2200
      %v2841 = vmul.f32 %v2201, %v2201
      %v2842 = vmul.f32 %v2202, %v2202
      %v2843 = vmul.f32 %v2203, %v2203
      %v2844 = vmul.f32 %v2204, %v2204
      %v2845 = vmul.f32 %v2205, %v2205
      %v2846 = vmul.f32 %v2206, %v2206
      %v2847 = vmul.f32 %v2207, %v2207
      %v2848 = vmul.f32 %v2208, %v2208
      %v2849 = vmul.f32 %v2209, %v2209
      %v2850 = vmul.f32 %v2210, %v2210
      %v2851 = vmul.f32 %v2211, %v2211
      %v2852 = vmul.f32 %v2212, %v2212
      %v2853 = vmul.f32 %v2213, %v2213
      %v2854 = vmul.f32 %v2214, %v2214
      %v2855 = vmul.f32 %v2215, %v2215
      %v2856 = vmul.f32 %v2216, %v2216
      %v2857 = vmul.f32 %v2217, %v2217
      %v2858 = vmul.f32 %v2218, %v2218
      %v2859 = vmul.f32 %v2219, %v2219
      %v2860 = vmul.f32 %v2220, %v2220
      %v2861 = vmul.f32 %v2221, %v2221
      %v2862 = vmul.f32 %v2222, %v2222
      %v2863 = vmul.f32 %v2223, %v2223
      %v2864 = vmul.f32 %v2224, %v2224
      %v2865 = vmul.f32 %v2225, %v2225
      %v2866 = vmul.f32 %v2226, %v2226
      %v2867 = vmul.f32 %v2227, %v2227
      %v2868 = vmul.f32 %v2228, %v2228
      %v2869 = vmul.f32 %v2229, %v2229
      %v2870 = vmul.f32 %v2230, %v2230
      %v2871 = vmul.f32 %v2231, %v2231
      %v2872 = vmul.f32 %v2232, %v2232
      %v2873 = vmul.f32 %v2233, %v2233
      %v2874 = vmul.f32 %v2234, %v2234
      %v2875 = vmul.f32 %v2235, %v2235
      %v2876 = vmul.f32 %v2236, %v2236
      %v2877 = vmul.f32 %v2237, %v2237
      %v2878 = vmul.f32 %v2238, %v2238
      %v2879 = vmul.f32 %v2239, %v2239
      %v2880 = vmul.f32 %v2240, %v2240
      %v2881 = vmul.f32 %v2241, %v2241
      %v2882 = vmul.f32 %v2242, %v2242
      %v2883 = vmul.f32 %v2243, %v2243
      %v2884 = vmul.f32 %v2244, %v2244
      %v2885 = vmul.f32 %v2245, %v2245
      %v2886 = vmul.f32 %v2246, %v2246
      %v2887 = vmul.f32 %v2247, %v2247
      %v2888 = vmul.f32 %v2248, %v2248
      %v2889 = vmul.f32 %v2249, %v2249
      %v2890 = vmul.f32 %v2250, %v2250
      %v2891 = vsub.f32 %v2763, %v2827
      %v2892 = vsub.f32 %v2764, %v2828
      %v2893 = vsub.f32 %v2765, %v2829
      %v2894 = vsub.f32 %v2766, %v2830
      %v2895 = vsub.f32 %v2767, %v2831
      %v2896 = vsub.f32 %v2768, %v2832
      %v2897 = vsub.f32 %v2769, %v2833
      %v2898 = vsub.f32 %v2770, %v2834
      %v2899 = vsub.f32 %v2771, %v2835
      %v2900 = vsub.f32 %v2772, %v2836
      %v2901 = vsub.f32 %v2773, %v2837
      %v2902 = vsub.f32 %v2774, %v2838
      %v2903 = vsub.f32 %v2775, %v2839
      %v2904 = vsub.f32 %v2776, %v2840
      %v2905 = vsub.f32 %v2777, %v2841
      %v2906 = vsub.f32 %v2778, %v2842
      %v2907 = vsub.f32 %v2779, %v2843
      %v2908 = vsub.f32 %v2780, %v2844
      %v2909 = vsub.f32 %v2781, %v2845
      %v2910 = vsub.f32 %v2782, %v2846
      %v2911 = vsub.f32 %v2783, %v2847
      %v2912 = vsub.f32 %v2784, %v2848
      %v2913 = vsub.f32 %v2785, %v2849
      %v2914 = vsub.f32 %v2786, %v2850
      %v2915 = vsub.f32 %v2787, %v2851
      %v2916 = vsub.f32 %v2788, %v2852
      %v2917 = vsub.f32 %v2789, %v2853
      %v2918 = vsub.f32 %v2790, %v2854
      %v2919 = vsub.f32 %v2791, %v2855
      %v2920 = vsub.f32 %v2792, %v2856
      %v2921 = vsub.f32 %v2793, %v2857
      %v2922 = vsub.f32 %v2794, %v2858
      %v2923 = vsub.f32 %v2795, %v2859
      %v2924 = vsub.f32 %v2796, %v2860
      %v2925 = vsub.f32 %v2797, %v2861
      %v2926 = vsub.f32 %v2798, %v2862
      %v2927 = vsub.f32 %v2799, %v2863
      %v2928 = vsub.f32 %v2800, %v2864
      %v2929 = vsub.f32 %v2801, %v2865
      %v2930 = vsub.f32 %v2802, %v2866
      %v2931 = vsub.f32 %v2803, %v2867
      %v2932 = vsub.f32 %v2804, %v2868
      %v2933 = vsub.f32 %v2805, %v2869
      %v2934 = vsub.f32 %v2806, %v2870
      %v2935 = vsub.f32 %v2807, %v2871
      %v2936 = vsub.f32 %v2808, %v2872
      %v2937 = vsub.f32 %v2809, %v2873
      %v2938 = vsub.f32 %v2810, %v2874
      %v2939 = vsub.f32 %v2811, %v2875
      %v2940 = vsub.f32 %v2812, %v2876
      %v2941 = vsub.f32 %v2813, %v2877
      %v2942 = vsub.f32 %v2814, %v2878
      %v2943 = vsub.f32 %v2815, %v2879
      %v2944 = vsub.f32 %v2816, %v2880
      %v2945 = vsub.f32 %v2817, %v2881
      %v2946 = vsub.f32 %v2818, %v2882
      %v2947 = vsub.f32 %v2819, %v2883
      %v2948 = vsub.f32 %v2820, %v2884
      %v2949 = vsub.f32 %v2821, %v2885
      %v2950 = vsub.f32 %v2822, %v2886
      %v2951 = vsub.f32 %v2823, %v2887
      %v2952 = vsub.f32 %v2824, %v2888
      %v2953 = vsub.f32 %v2825, %v2889
      %v2954 = vsub.f32 %v2826, %v2890
      %v2955 = vsub.f32 %v1573, %v2187
      %v2956 = vsub.f32 %v1575, %v2188
      %v2957 = vsub.f32 %v1578, %v2189
      %v2958 = vsub.f32 %v1580, %v2190
      %v2959 = vsub.f32 %v1583, %v2191
      %v2960 = vsub.f32 %v1585, %v2192
      %v2961 = vsub.f32 %v1588, %v2193
      %v2962 = vsub.f32 %v1590, %v2194
      %v2963 = vsub.f32 %v1593, %v2195
      %v2964 = vsub.f32 %v1595, %v2196
      %v2965 = vsub.f32 %v1598, %v2197
      %v2966 = vsub.f32 %v1600, %v2198
      %v2967 = vsub.f32 %v1603, %v2199
      %v2968 = vsub.f32 %v1605, %v2200
      %v2969 = vsub.f32 %v1608, %v2201
      %v2970 = vsub.f32 %v1610, %v2202
      %v2971 = vsub.f32 %v1613, %v2203
      %v2972 = vsub.f32 %v1615, %v2204
      %v2973 = vsub.f32 %v1618, %v2205
      %v2974 = vsub.f32 %v1620, %v2206
      %v2975 = vsub.f32 %v1623, %v2207
      %v2976 = vsub.f32 %v1625, %v2208
      %v2977 = vsub.f32 %v1628, %v2209
      %v2978 = vsub.f32 %v1630, %v2210
      %v2979 = vsub.f32 %v1633, %v2211
      %v2980 = vsub.f32 %v1635, %v2212
      %v2981 = vsub.f32 %v1638, %v2213
      %v2982 = vsub.f32 %v1640, %v2214
      %v2983 = vsub.f32 %v1643, %v2215
      %v2984 = vsub.f32 %v1645, %v2216
      %v2985 = vsub.f32 %v1648, %v2217
      %v2986 = vsub.f32 %v1650, %v2218
      %v2987 = vsub.f32 %v1653, %v2219
      %v2988 = vsub.f32 %v1655, %v2220
      %v2989 = vsub.f32 %v1658, %v2221
      %v2990 = vsub.f32 %v1660, %v2222
      %v2991 = vsub.f32 %v1663, %v2223
      %v2992 = vsub.f32 %v1665, %v2224
      %v2993 = vsub.f32 %v1668, %v2225
      %v2994 = vsub.f32 %v1670, %v2226
      %v2995 = vsub.f32 %v1673, %v2227
      %v2996 = vsub.f32 %v1675, %v2228
      %v2997 = vsub.f32 %v1678, %v2229
      %v2998 = vsub.f32 %v1680, %v2230
      %v2999 = vsub.f32 %v1683, %v2231
      %v3000 = vsub.f32 %v1685, %v2232
      %v3001 = vsub.f32 %v1688, %v2233
      %v3002 = vsub.f32 %v1690, %v2234
      %v3003 = vsub.f32 %v1693, %v2235
      %v3004 = vsub.f32 %v1695, %v2236
      %v3005 = vsub.f32 %v1698, %v2237
      %v3006 = vsub.f32 %v1700, %v2238
      %v3007 = vsub.f32 %v1703, %v2239
      %v3008 = vsub.f32 %v1705, %v2240
      %v3009 = vsub.f32 %v1708, %v2241
      %v3010 = vsub.f32 %v1710, %v2242
      %v3011 = vsub.f32 %v1713, %v2243
      %v3012 = vsub.f32 %v1715, %v2244
      %v3013 = vsub.f32 %v1718, %v2245
      %v3014 = vsub.f32 %v1720, %v2246
      %v3015 = vsub.f32 %v1723, %v2247
      %v3016 = vsub.f32 %v1725, %v2248
      %v3017 = vsub.f32 %v1728, %v2249
      %v3018 = vsub.f32 %v1730, %v2250
      %v3019 = vadd.f32 %v2891, 1e-05
      %v3020 = vadd.f32 %v2892, 1e-05
      %v3021 = vadd.f32 %v2893, 1e-05
      %v3022 = vadd.f32 %v2894, 1e-05
      %v3023 = vadd.f32 %v2895, 1e-05
      %v3024 = vadd.f32 %v2896, 1e-05
      %v3025 = vadd.f32 %v2897, 1e-05
      %v3026 = vadd.f32 %v2898, 1e-05
      %v3027 = vadd.f32 %v2899, 1e-05
      %v3028 = vadd.f32 %v2900, 1e-05
      %v3029 = vadd.f32 %v2901, 1e-05
      %v3030 = vadd.f32 %v2902, 1e-05
      %v3031 = vadd.f32 %v2903, 1e-05
      %v3032 = vadd.f32 %v2904, 1e-05
      %v3033 = vadd.f32 %v2905, 1e-05
      %v3034 = vadd.f32 %v2906, 1e-05
      %v3035 = vadd.f32 %v2907, 1e-05
      %v3036 = vadd.f32 %v2908, 1e-05
      %v3037 = vadd.f32 %v2909, 1e-05
      %v3038 = vadd.f32 %v2910, 1e-05
      %v3039 = vadd.f32 %v2911, 1e-05
      %v3040 = vadd.f32 %v2912, 1e-05
      %v3041 = vadd.f32 %v2913, 1e-05
      %v3042 = vadd.f32 %v2914, 1e-05
      %v3043 = vadd.f32 %v2915, 1e-05
      %v3044 = vadd.f32 %v2916, 1e-05
      %v3045 = vadd.f32 %v2917, 1e-05
      %v3046 = vadd.f32 %v2918, 1e-05
      %v3047 = vadd.f32 %v2919, 1e-05
      %v3048 = vadd.f32 %v2920, 1e-05
      %v3049 = vadd.f32 %v2921, 1e-05
      %v3050 = vadd.f32 %v2922, 1e-05
      %v3051 = vadd.f32 %v2923, 1e-05
      %v3052 = vadd.f32 %v2924, 1e-05
      %v3053 = vadd.f32 %v2925, 1e-05
      %v3054 = vadd.f32 %v2926, 1e-05
      %v3055 = vadd.f32 %v2927, 1e-05
      %v3056 = vadd.f32 %v2928, 1e-05
      %v3057 = vadd.f32 %v2929, 1e-05
      %v3058 = vadd.f32 %v2930, 1e-05
      %v3059 = vadd.f32 %v2931, 1e-05
      %v3060 = vadd.f32 %v2932, 1e-05
      %v3061 = vadd.f32 %v2933, 1e-05
      %v3062 = vadd.f32 %v2934, 1e-05
      %v3063 = vadd.f32 %v2935, 1e-05
      %v3064 = vadd.f32 %v2936, 1e-05
      %v3065 = vadd.f32 %v2937, 1e-05
      %v3066 = vadd.f32 %v2938, 1e-05
      %v3067 = vadd.f32 %v2939, 1e-05
      %v3068 = vadd.f32 %v2940, 1e-05
      %v3069 = vadd.f32 %v2941, 1e-05
      %v3070 = vadd.f32 %v2942, 1e-05
      %v3071 = vadd.f32 %v2943, 1e-05
      %v3072 = vadd.f32 %v2944, 1e-05
      %v3073 = vadd.f32 %v2945, 1e-05
      %v3074 = vadd.f32 %v2946, 1e-05
      %v3075 = vadd.f32 %v2947, 1e-05
      %v3076 = vadd.f32 %v2948, 1e-05
      %v3077 = vadd.f32 %v2949, 1e-05
      %v3078 = vadd.f32 %v2950, 1e-05
      %v3079 = vadd.f32 %v2951, 1e-05
      %v3080 = vadd.f32 %v2952, 1e-05
      %v3081 = vadd.f32 %v2953, 1e-05
      %v3082 = vadd.f32 %v2954, 1e-05
      %v3083 = vrsqrt.pop %v3019
      %v3084 = vmul.f32 %v3083, %v3019
      %v3085 = vmul.f32 %v3084, %v3083
      %v3086 = vmul.f32 0.5, %v3085
      %v3087 = vsub.f32 1.5, %v3086
      %v3088 = vmul.f32 %v3083, %v3087
      %vm3089 = vweird.f32 %v3019
      %vm3090 = vweird.f32 %v3083
      %vm3091 = vmor %vm3089, %vm3090
      %v3092 = vsel %vm3091, %v3083, %v3088
      %v3093 = vrsqrt.pop %v3020
      %v3094 = vmul.f32 %v3093, %v3020
      %v3095 = vmul.f32 %v3094, %v3093
      %v3096 = vmul.f32 0.5, %v3095
      %v3097 = vsub.f32 1.5, %v3096
      %v3098 = vmul.f32 %v3093, %v3097
      %vm3099 = vweird.f32 %v3020
      %vm3100 = vweird.f32 %v3093
      %vm3101 = vmor %vm3099, %vm3100
      %v3102 = vsel %vm3101, %v3093, %v3098
      %v3103 = vrsqrt.pop %v3021
      %v3104 = vmul.f32 %v3103, %v3021
      %v3105 = vmul.f32 %v3104, %v3103
      %v3106 = vmul.f32 0.5, %v3105
      %v3107 = vsub.f32 1.5, %v3106
      %v3108 = vmul.f32 %v3103, %v3107
      %vm3109 = vweird.f32 %v3021
      %vm3110 = vweird.f32 %v3103
      %vm3111 = vmor %vm3109, %vm3110
      %v3112 = vsel %vm3111, %v3103, %v3108
      %v3113 = vrsqrt.pop %v3022
      %v3114 = vmul.f32 %v3113, %v3022
      %v3115 = vmul.f32 %v3114, %v3113
      %v3116 = vmul.f32 0.5, %v3115
      %v3117 = vsub.f32 1.5, %v3116
      %v3118 = vmul.f32 %v3113, %v3117
      %vm3119 = vweird.f32 %v3022
      %vm3120 = vweird.f32 %v3113
      %vm3121 = vmor %vm3119, %vm3120
      %v3122 = vsel %vm3121, %v3113, %v3118
      %v3123 = vrsqrt.pop %v3023
      %v3124 = vmul.f32 %v3123, %v3023
      %v3125 = vmul.f32 %v3124, %v3123
      %v3126 = vmul.f32 0.5, %v3125
      %v3127 = vsub.f32 1.5, %v3126
      %v3128 = vmul.f32 %v3123, %v3127
      %vm3129 = vweird.f32 %v3023
      %vm3130 = vweird.f32 %v3123
      %vm3131 = vmor %vm3129, %vm3130
      %v3132 = vsel %vm3131, %v3123, %v3128
      %v3133 = vrsqrt.pop %v3024
      %v3134 = vmul.f32 %v3133, %v3024
      %v3135 = vmul.f32 %v3134, %v3133
      %v3136 = vmul.f32 0.5, %v3135
      %v3137 = vsub.f32 1.5, %v3136
      %v3138 = vmul.f32 %v3133, %v3137
      %vm3139 = vweird.f32 %v3024
      %vm3140 = vweird.f32 %v3133
      %vm3141 = vmor %vm3139, %vm3140
      %v3142 = vsel %vm3141, %v3133, %v3138
      %v3143 = vrsqrt.pop %v3025
      %v3144 = vmul.f32 %v3143, %v3025
      %v3145 = vmul.f32 %v3144, %v3143
      %v3146 = vmul.f32 0.5, %v3145
      %v3147 = vsub.f32 1.5, %v3146
      %v3148 = vmul.f32 %v3143, %v3147
      %vm3149 = vweird.f32 %v3025
      %vm3150 = vweird.f32 %v3143
      %vm3151 = vmor %vm3149, %vm3150
      %v3152 = vsel %vm3151, %v3143, %v3148
      %v3153 = vrsqrt.pop %v3026
      %v3154 = vmul.f32 %v3153, %v3026
      %v3155 = vmul.f32 %v3154, %v3153
      %v3156 = vmul.f32 0.5, %v3155
      %v3157 = vsub.f32 1.5, %v3156
      %v3158 = vmul.f32 %v3153, %v3157
      %vm3159 = vweird.f32 %v3026
      %vm3160 = vweird.f32 %v3153
      %vm3161 = vmor %vm3159, %vm3160
      %v3162 = vsel %vm3161, %v3153, %v3158
      %v3163 = vrsqrt.pop %v3027
      %v3164 = vmul.f32 %v3163, %v3027
      %v3165 = vmul.f32 %v3164, %v3163
      %v3166 = vmul.f32 0.5, %v3165
      %v3167 = vsub.f32 1.5, %v3166
      %v3168 = vmul.f32 %v3163, %v3167
      %vm3169 = vweird.f32 %v3027
      %vm3170 = vweird.f32 %v3163
      %vm3171 = vmor %vm3169, %vm3170
      %v3172 = vsel %vm3171, %v3163, %v3168
      %v3173 = vrsqrt.pop %v3028
      %v3174 = vmul.f32 %v3173, %v3028
      %v3175 = vmul.f32 %v3174, %v3173
      %v3176 = vmul.f32 0.5, %v3175
      %v3177 = vsub.f32 1.5, %v3176
      %v3178 = vmul.f32 %v3173, %v3177
      %vm3179 = vweird.f32 %v3028
      %vm3180 = vweird.f32 %v3173
      %vm3181 = vmor %vm3179, %vm3180
      %v3182 = vsel %vm3181, %v3173, %v3178
      %v3183 = vrsqrt.pop %v3029
      %v3184 = vmul.f32 %v3183, %v3029
      %v3185 = vmul.f32 %v3184, %v3183
      %v3186 = vmul.f32 0.5, %v3185
      %v3187 = vsub.f32 1.5, %v3186
      %v3188 = vmul.f32 %v3183, %v3187
      %vm3189 = vweird.f32 %v3029
      %vm3190 = vweird.f32 %v3183
      %vm3191 = vmor %vm3189, %vm3190
      %v3192 = vsel %vm3191, %v3183, %v3188
      %v3193 = vrsqrt.pop %v3030
      %v3194 = vmul.f32 %v3193, %v3030
      %v3195 = vmul.f32 %v3194, %v3193
      %v3196 = vmul.f32 0.5, %v3195
      %v3197 = vsub.f32 1.5, %v3196
      %v3198 = vmul.f32 %v3193, %v3197
      %vm3199 = vweird.f32 %v3030
      %vm3200 = vweird.f32 %v3193
      %vm3201 = vmor %vm3199, %vm3200
      %v3202 = vsel %vm3201, %v3193, %v3198
      %v3203 = vrsqrt.pop %v3031
      %v3204 = vmul.f32 %v3203, %v3031
      %v3205 = vmul.f32 %v3204, %v3203
      %v3206 = vmul.f32 0.5, %v3205
      %v3207 = vsub.f32 1.5, %v3206
      %v3208 = vmul.f32 %v3203, %v3207
      %vm3209 = vweird.f32 %v3031
      %vm3210 = vweird.f32 %v3203
      %vm3211 = vmor %vm3209, %vm3210
      %v3212 = vsel %vm3211, %v3203, %v3208
      %v3213 = vrsqrt.pop %v3032
      %v3214 = vmul.f32 %v3213, %v3032
      %v3215 = vmul.f32 %v3214, %v3213
      %v3216 = vmul.f32 0.5, %v3215
      %v3217 = vsub.f32 1.5, %v3216
      %v3218 = vmul.f32 %v3213, %v3217
      %vm3219 = vweird.f32 %v3032
      %vm3220 = vweird.f32 %v3213
      %vm3221 = vmor %vm3219, %vm3220
      %v3222 = vsel %vm3221, %v3213, %v3218
      %v3223 = vrsqrt.pop %v3033
      %v3224 = vmul.f32 %v3223, %v3033
      %v3225 = vmul.f32 %v3224, %v3223
      %v3226 = vmul.f32 0.5, %v3225
      %v3227 = vsub.f32 1.5, %v3226
      %v3228 = vmul.f32 %v3223, %v3227
      %vm3229 = vweird.f32 %v3033
      %vm3230 = vweird.f32 %v3223
      %vm3231 = vmor %vm3229, %vm3230
      %v3232 = vsel %vm3231, %v3223, %v3228
      %v3233 = vrsqrt.pop %v3034
      %v3234 = vmul.f32 %v3233, %v3034
      %v3235 = vmul.f32 %v3234, %v3233
      %v3236 = vmul.f32 0.5, %v3235
      %v3237 = vsub.f32 1.5, %v3236
      %v3238 = vmul.f32 %v3233, %v3237
      %vm3239 = vweird.f32 %v3034
      %vm3240 = vweird.f32 %v3233
      %vm3241 = vmor %vm3239, %vm3240
      %v3242 = vsel %vm3241, %v3233, %v3238
      %v3243 = vrsqrt.pop %v3035
      %v3244 = vmul.f32 %v3243, %v3035
      %v3245 = vmul.f32 %v3244, %v3243
      %v3246 = vmul.f32 0.5, %v3245
      %v3247 = vsub.f32 1.5, %v3246
      %v3248 = vmul.f32 %v3243, %v3247
      %vm3249 = vweird.f32 %v3035
      %vm3250 = vweird.f32 %v3243
      %vm3251 = vmor %vm3249, %vm3250
      %v3252 = vsel %vm3251, %v3243, %v3248
      %v3253 = vrsqrt.pop %v3036
      %v3254 = vmul.f32 %v3253, %v3036
      %v3255 = vmul.f32 %v3254, %v3253
      %v3256 = vmul.f32 0.5, %v3255
      %v3257 = vsub.f32 1.5, %v3256
      %v3258 = vmul.f32 %v3253, %v3257
      %vm3259 = vweird.f32 %v3036
      %vm3260 = vweird.f32 %v3253
      %vm3261 = vmor %vm3259, %vm3260
      %v3262 = vsel %vm3261, %v3253, %v3258
      %v3263 = vrsqrt.pop %v3037
      %v3264 = vmul.f32 %v3263, %v3037
      %v3265 = vmul.f32 %v3264, %v3263
      %v3266 = vmul.f32 0.5, %v3265
      %v3267 = vsub.f32 1.5, %v3266
      %v3268 = vmul.f32 %v3263, %v3267
      %vm3269 = vweird.f32 %v3037
      %vm3270 = vweird.f32 %v3263
      %vm3271 = vmor %vm3269, %vm3270
      %v3272 = vsel %vm3271, %v3263, %v3268
      %v3273 = vrsqrt.pop %v3038
      %v3274 = vmul.f32 %v3273, %v3038
      %v3275 = vmul.f32 %v3274, %v3273
      %v3276 = vmul.f32 0.5, %v3275
      %v3277 = vsub.f32 1.5, %v3276
      %v3278 = vmul.f32 %v3273, %v3277
      %vm3279 = vweird.f32 %v3038
      %vm3280 = vweird.f32 %v3273
      %vm3281 = vmor %vm3279, %vm3280
      %v3282 = vsel %vm3281, %v3273, %v3278
      %v3283 = vrsqrt.pop %v3039
      %v3284 = vmul.f32 %v3283, %v3039
      %v3285 = vmul.f32 %v3284, %v3283
      %v3286 = vmul.f32 0.5, %v3285
      %v3287 = vsub.f32 1.5, %v3286
      %v3288 = vmul.f32 %v3283, %v3287
      %vm3289 = vweird.f32 %v3039
      %vm3290 = vweird.f32 %v3283
      %vm3291 = vmor %vm3289, %vm3290
      %v3292 = vsel %vm3291, %v3283, %v3288
      %v3293 = vrsqrt.pop %v3040
      %v3294 = vmul.f32 %v3293, %v3040
      %v3295 = vmul.f32 %v3294, %v3293
      %v3296 = vmul.f32 0.5, %v3295
      %v3297 = vsub.f32 1.5, %v3296
      %v3298 = vmul.f32 %v3293, %v3297
      %vm3299 = vweird.f32 %v3040
      %vm3300 = vweird.f32 %v3293
      %vm3301 = vmor %vm3299, %vm3300
      %v3302 = vsel %vm3301, %v3293, %v3298
      %v3303 = vrsqrt.pop %v3041
      %v3304 = vmul.f32 %v3303, %v3041
      %v3305 = vmul.f32 %v3304, %v3303
      %v3306 = vmul.f32 0.5, %v3305
      %v3307 = vsub.f32 1.5, %v3306
      %v3308 = vmul.f32 %v3303, %v3307
      %vm3309 = vweird.f32 %v3041
      %vm3310 = vweird.f32 %v3303
      %vm3311 = vmor %vm3309, %vm3310
      %v3312 = vsel %vm3311, %v3303, %v3308
      %v3313 = vrsqrt.pop %v3042
      %v3314 = vmul.f32 %v3313, %v3042
      %v3315 = vmul.f32 %v3314, %v3313
      %v3316 = vmul.f32 0.5, %v3315
      %v3317 = vsub.f32 1.5, %v3316
      %v3318 = vmul.f32 %v3313, %v3317
      %vm3319 = vweird.f32 %v3042
      %vm3320 = vweird.f32 %v3313
      %vm3321 = vmor %vm3319, %vm3320
      %v3322 = vsel %vm3321, %v3313, %v3318
      %v3323 = vrsqrt.pop %v3043
      %v3324 = vmul.f32 %v3323, %v3043
      %v3325 = vmul.f32 %v3324, %v3323
      %v3326 = vmul.f32 0.5, %v3325
      %v3327 = vsub.f32 1.5, %v3326
      %v3328 = vmul.f32 %v3323, %v3327
      %vm3329 = vweird.f32 %v3043
      %vm3330 = vweird.f32 %v3323
      %vm3331 = vmor %vm3329, %vm3330
      %v3332 = vsel %vm3331, %v3323, %v3328
      %v3333 = vrsqrt.pop %v3044
      %v3334 = vmul.f32 %v3333, %v3044
      %v3335 = vmul.f32 %v3334, %v3333
      %v3336 = vmul.f32 0.5, %v3335
      %v3337 = vsub.f32 1.5, %v3336
      %v3338 = vmul.f32 %v3333, %v3337
      %vm3339 = vweird.f32 %v3044
      %vm3340 = vweird.f32 %v3333
      %vm3341 = vmor %vm3339, %vm3340
      %v3342 = vsel %vm3341, %v3333, %v3338
      %v3343 = vrsqrt.pop %v3045
      %v3344 = vmul.f32 %v3343, %v3045
      %v3345 = vmul.f32 %v3344, %v3343
      %v3346 = vmul.f32 0.5, %v3345
      %v3347 = vsub.f32 1.5, %v3346
      %v3348 = vmul.f32 %v3343, %v3347
      %vm3349 = vweird.f32 %v3045
      %vm3350 = vweird.f32 %v3343
      %vm3351 = vmor %vm3349, %vm3350
      %v3352 = vsel %vm3351, %v3343, %v3348
      %v3353 = vrsqrt.pop %v3046
      %v3354 = vmul.f32 %v3353, %v3046
      %v3355 = vmul.f32 %v3354, %v3353
      %v3356 = vmul.f32 0.5, %v3355
      %v3357 = vsub.f32 1.5, %v3356
      %v3358 = vmul.f32 %v3353, %v3357
      %vm3359 = vweird.f32 %v3046
      %vm3360 = vweird.f32 %v3353
      %vm3361 = vmor %vm3359, %vm3360
      %v3362 = vsel %vm3361, %v3353, %v3358
      %v3363 = vrsqrt.pop %v3047
      %v3364 = vmul.f32 %v3363, %v3047
      %v3365 = vmul.f32 %v3364, %v3363
      %v3366 = vmul.f32 0.5, %v3365
      %v3367 = vsub.f32 1.5, %v3366
      %v3368 = vmul.f32 %v3363, %v3367
      %vm3369 = vweird.f32 %v3047
      %vm3370 = vweird.f32 %v3363
      %vm3371 = vmor %vm3369, %vm3370
      %v3372 = vsel %vm3371, %v3363, %v3368
      %v3373 = vrsqrt.pop %v3048
      %v3374 = vmul.f32 %v3373, %v3048
      %v3375 = vmul.f32 %v3374, %v3373
      %v3376 = vmul.f32 0.5, %v3375
      %v3377 = vsub.f32 1.5, %v3376
      %v3378 = vmul.f32 %v3373, %v3377
      %vm3379 = vweird.f32 %v3048
      %vm3380 = vweird.f32 %v3373
      %vm3381 = vmor %vm3379, %vm3380
      %v3382 = vsel %vm3381, %v3373, %v3378
      %v3383 = vrsqrt.pop %v3049
      %v3384 = vmul.f32 %v3383, %v3049
      %v3385 = vmul.f32 %v3384, %v3383
      %v3386 = vmul.f32 0.5, %v3385
      %v3387 = vsub.f32 1.5, %v3386
      %v3388 = vmul.f32 %v3383, %v3387
      %vm3389 = vweird.f32 %v3049
      %vm3390 = vweird.f32 %v3383
      %vm3391 = vmor %vm3389, %vm3390
      %v3392 = vsel %vm3391, %v3383, %v3388
      %v3393 = vrsqrt.pop %v3050
      %v3394 = vmul.f32 %v3393, %v3050
      %v3395 = vmul.f32 %v3394, %v3393
      %v3396 = vmul.f32 0.5, %v3395
      %v3397 = vsub.f32 1.5, %v3396
      %v3398 = vmul.f32 %v3393, %v3397
      %vm3399 = vweird.f32 %v3050
      %vm3400 = vweird.f32 %v3393
      %vm3401 = vmor %vm3399, %vm3400
      %v3402 = vsel %vm3401, %v3393, %v3398
      %v3403 = vrsqrt.pop %v3051
      %v3404 = vmul.f32 %v3403, %v3051
      %v3405 = vmul.f32 %v3404, %v3403
      %v3406 = vmul.f32 0.5, %v3405
      %v3407 = vsub.f32 1.5, %v3406
      %v3408 = vmul.f32 %v3403, %v3407
      %vm3409 = vweird.f32 %v3051
      %vm3410 = vweird.f32 %v3403
      %vm3411 = vmor %vm3409, %vm3410
      %v3412 = vsel %vm3411, %v3403, %v3408
      %v3413 = vrsqrt.pop %v3052
      %v3414 = vmul.f32 %v3413, %v3052
      %v3415 = vmul.f32 %v3414, %v3413
      %v3416 = vmul.f32 0.5, %v3415
      %v3417 = vsub.f32 1.5, %v3416
      %v3418 = vmul.f32 %v3413, %v3417
      %vm3419 = vweird.f32 %v3052
      %vm3420 = vweird.f32 %v3413
      %vm3421 = vmor %vm3419, %vm3420
      %v3422 = vsel %vm3421, %v3413, %v3418
      %v3423 = vrsqrt.pop %v3053
      %v3424 = vmul.f32 %v3423, %v3053
      %v3425 = vmul.f32 %v3424, %v3423
      %v3426 = vmul.f32 0.5, %v3425
      %v3427 = vsub.f32 1.5, %v3426
      %v3428 = vmul.f32 %v3423, %v3427
      %vm3429 = vweird.f32 %v3053
      %vm3430 = vweird.f32 %v3423
      %vm3431 = vmor %vm3429, %vm3430
      %v3432 = vsel %vm3431, %v3423, %v3428
      %v3433 = vrsqrt.pop %v3054
      %v3434 = vmul.f32 %v3433, %v3054
      %v3435 = vmul.f32 %v3434, %v3433
      %v3436 = vmul.f32 0.5, %v3435
      %v3437 = vsub.f32 1.5, %v3436
      %v3438 = vmul.f32 %v3433, %v3437
      %vm3439 = vweird.f32 %v3054
      %vm3440 = vweird.f32 %v3433
      %vm3441 = vmor %vm3439, %vm3440
      %v3442 = vsel %vm3441, %v3433, %v3438
      %v3443 = vrsqrt.pop %v3055
      %v3444 = vmul.f32 %v3443, %v3055
      %v3445 = vmul.f32 %v3444, %v3443
      %v3446 = vmul.f32 0.5, %v3445
      %v3447 = vsub.f32 1.5, %v3446
      %v3448 = vmul.f32 %v3443, %v3447
      %vm3449 = vweird.f32 %v3055
      %vm3450 = vweird.f32 %v3443
      %vm3451 = vmor %vm3449, %vm3450
      %v3452 = vsel %vm3451, %v3443, %v3448
      %v3453 = vrsqrt.pop %v3056
      %v3454 = vmul.f32 %v3453, %v3056
      %v3455 = vmul.f32 %v3454, %v3453
      %v3456 = vmul.f32 0.5, %v3455
      %v3457 = vsub.f32 1.5, %v3456
      %v3458 = vmul.f32 %v3453, %v3457
      %vm3459 = vweird.f32 %v3056
      %vm3460 = vweird.f32 %v3453
      %vm3461 = vmor %vm3459, %vm3460
      %v3462 = vsel %vm3461, %v3453, %v3458
      %v3463 = vrsqrt.pop %v3057
      %v3464 = vmul.f32 %v3463, %v3057
      %v3465 = vmul.f32 %v3464, %v3463
      %v3466 = vmul.f32 0.5, %v3465
      %v3467 = vsub.f32 1.5, %v3466
      %v3468 = vmul.f32 %v3463, %v3467
      %vm3469 = vweird.f32 %v3057
      %vm3470 = vweird.f32 %v3463
      %vm3471 = vmor %vm3469, %vm3470
      %v3472 = vsel %vm3471, %v3463, %v3468
      %v3473 = vrsqrt.pop %v3058
      %v3474 = vmul.f32 %v3473, %v3058
      %v3475 = vmul.f32 %v3474, %v3473
      %v3476 = vmul.f32 0.5, %v3475
      %v3477 = vsub.f32 1.5, %v3476
      %v3478 = vmul.f32 %v3473, %v3477
      %vm3479 = vweird.f32 %v3058
      %vm3480 = vweird.f32 %v3473
      %vm3481 = vmor %vm3479, %vm3480
      %v3482 = vsel %vm3481, %v3473, %v3478
      %v3483 = vrsqrt.pop %v3059
      %v3484 = vmul.f32 %v3483, %v3059
      %v3485 = vmul.f32 %v3484, %v3483
      %v3486 = vmul.f32 0.5, %v3485
      %v3487 = vsub.f32 1.5, %v3486
      %v3488 = vmul.f32 %v3483, %v3487
      %vm3489 = vweird.f32 %v3059
      %vm3490 = vweird.f32 %v3483
      %vm3491 = vmor %vm3489, %vm3490
      %v3492 = vsel %vm3491, %v3483, %v3488
      %v3493 = vrsqrt.pop %v3060
      %v3494 = vmul.f32 %v3493, %v3060
      %v3495 = vmul.f32 %v3494, %v3493
      %v3496 = vmul.f32 0.5, %v3495
      %v3497 = vsub.f32 1.5, %v3496
      %v3498 = vmul.f32 %v3493, %v3497
      %vm3499 = vweird.f32 %v3060
      %vm3500 = vweird.f32 %v3493
      %vm3501 = vmor %vm3499, %vm3500
      %v3502 = vsel %vm3501, %v3493, %v3498
      %v3503 = vrsqrt.pop %v3061
      %v3504 = vmul.f32 %v3503, %v3061
      %v3505 = vmul.f32 %v3504, %v3503
      %v3506 = vmul.f32 0.5, %v3505
      %v3507 = vsub.f32 1.5, %v3506
      %v3508 = vmul.f32 %v3503, %v3507
      %vm3509 = vweird.f32 %v3061
      %vm3510 = vweird.f32 %v3503
      %vm3511 = vmor %vm3509, %vm3510
      %v3512 = vsel %vm3511, %v3503, %v3508
      %v3513 = vrsqrt.pop %v3062
      %v3514 = vmul.f32 %v3513, %v3062
      %v3515 = vmul.f32 %v3514, %v3513
      %v3516 = vmul.f32 0.5, %v3515
      %v3517 = vsub.f32 1.5, %v3516
      %v3518 = vmul.f32 %v3513, %v3517
      %vm3519 = vweird.f32 %v3062
      %vm3520 = vweird.f32 %v3513
      %vm3521 = vmor %vm3519, %vm3520
      %v3522 = vsel %vm3521, %v3513, %v3518
      %v3523 = vrsqrt.pop %v3063
      %v3524 = vmul.f32 %v3523, %v3063
      %v3525 = vmul.f32 %v3524, %v3523
      %v3526 = vmul.f32 0.5, %v3525
      %v3527 = vsub.f32 1.5, %v3526
      %v3528 = vmul.f32 %v3523, %v3527
      %vm3529 = vweird.f32 %v3063
      %vm3530 = vweird.f32 %v3523
      %vm3531 = vmor %vm3529, %vm3530
      %v3532 = vsel %vm3531, %v3523, %v3528
      %v3533 = vrsqrt.pop %v3064
      %v3534 = vmul.f32 %v3533, %v3064
      %v3535 = vmul.f32 %v3534, %v3533
      %v3536 = vmul.f32 0.5, %v3535
      %v3537 = vsub.f32 1.5, %v3536
      %v3538 = vmul.f32 %v3533, %v3537
      %vm3539 = vweird.f32 %v3064
      %vm3540 = vweird.f32 %v3533
      %vm3541 = vmor %vm3539, %vm3540
      %v3542 = vsel %vm3541, %v3533, %v3538
      %v3543 = vrsqrt.pop %v3065
      %v3544 = vmul.f32 %v3543, %v3065
      %v3545 = vmul.f32 %v3544, %v3543
      %v3546 = vmul.f32 0.5, %v3545
      %v3547 = vsub.f32 1.5, %v3546
      %v3548 = vmul.f32 %v3543, %v3547
      %vm3549 = vweird.f32 %v3065
      %vm3550 = vweird.f32 %v3543
      %vm3551 = vmor %vm3549, %vm3550
      %v3552 = vsel %vm3551, %v3543, %v3548
      %v3553 = vrsqrt.pop %v3066
      %v3554 = vmul.f32 %v3553, %v3066
      %v3555 = vmul.f32 %v3554, %v3553
      %v3556 = vmul.f32 0.5, %v3555
      %v3557 = vsub.f32 1.5, %v3556
      %v3558 = vmul.f32 %v3553, %v3557
      %vm3559 = vweird.f32 %v3066
      %vm3560 = vweird.f32 %v3553
      %vm3561 = vmor %vm3559, %vm3560
      %v3562 = vsel %vm3561, %v3553, %v3558
      %v3563 = vrsqrt.pop %v3067
      %v3564 = vmul.f32 %v3563, %v3067
      %v3565 = vmul.f32 %v3564, %v3563
      %v3566 = vmul.f32 0.5, %v3565
      %v3567 = vsub.f32 1.5, %v3566
      %v3568 = vmul.f32 %v3563, %v3567
      %vm3569 = vweird.f32 %v3067
      %vm3570 = vweird.f32 %v3563
      %vm3571 = vmor %vm3569, %vm3570
      %v3572 = vsel %vm3571, %v3563, %v3568
      %v3573 = vrsqrt.pop %v3068
      %v3574 = vmul.f32 %v3573, %v3068
      %v3575 = vmul.f32 %v3574, %v3573
      %v3576 = vmul.f32 0.5, %v3575
      %v3577 = vsub.f32 1.5, %v3576
      %v3578 = vmul.f32 %v3573, %v3577
      %vm3579 = vweird.f32 %v3068
      %vm3580 = vweird.f32 %v3573
      %vm3581 = vmor %vm3579, %vm3580
      %v3582 = vsel %vm3581, %v3573, %v3578
      %v3583 = vrsqrt.pop %v3069
      %v3584 = vmul.f32 %v3583, %v3069
      %v3585 = vmul.f32 %v3584, %v3583
      %v3586 = vmul.f32 0.5, %v3585
      %v3587 = vsub.f32 1.5, %v3586
      %v3588 = vmul.f32 %v3583, %v3587
      %vm3589 = vweird.f32 %v3069
      %vm3590 = vweird.f32 %v3583
      %vm3591 = vmor %vm3589, %vm3590
      %v3592 = vsel %vm3591, %v3583, %v3588
      %v3593 = vrsqrt.pop %v3070
      %v3594 = vmul.f32 %v3593, %v3070
      %v3595 = vmul.f32 %v3594, %v3593
      %v3596 = vmul.f32 0.5, %v3595
      %v3597 = vsub.f32 1.5, %v3596
      %v3598 = vmul.f32 %v3593, %v3597
      %vm3599 = vweird.f32 %v3070
      %vm3600 = vweird.f32 %v3593
      %vm3601 = vmor %vm3599, %vm3600
      %v3602 = vsel %vm3601, %v3593, %v3598
      %v3603 = vrsqrt.pop %v3071
      %v3604 = vmul.f32 %v3603, %v3071
      %v3605 = vmul.f32 %v3604, %v3603
      %v3606 = vmul.f32 0.5, %v3605
      %v3607 = vsub.f32 1.5, %v3606
      %v3608 = vmul.f32 %v3603, %v3607
      %vm3609 = vweird.f32 %v3071
      %vm3610 = vweird.f32 %v3603
      %vm3611 = vmor %vm3609, %vm3610
      %v3612 = vsel %vm3611, %v3603, %v3608
      %v3613 = vrsqrt.pop %v3072
      %v3614 = vmul.f32 %v3613, %v3072
      %v3615 = vmul.f32 %v3614, %v3613
      %v3616 = vmul.f32 0.5, %v3615
      %v3617 = vsub.f32 1.5, %v3616
      %v3618 = vmul.f32 %v3613, %v3617
      %vm3619 = vweird.f32 %v3072
      %vm3620 = vweird.f32 %v3613
      %vm3621 = vmor %vm3619, %vm3620
      %v3622 = vsel %vm3621, %v3613, %v3618
      %v3623 = vrsqrt.pop %v3073
      %v3624 = vmul.f32 %v3623, %v3073
      %v3625 = vmul.f32 %v3624, %v3623
      %v3626 = vmul.f32 0.5, %v3625
      %v3627 = vsub.f32 1.5, %v3626
      %v3628 = vmul.f32 %v3623, %v3627
      %vm3629 = vweird.f32 %v3073
      %vm3630 = vweird.f32 %v3623
      %vm3631 = vmor %vm3629, %vm3630
      %v3632 = vsel %vm3631, %v3623, %v3628
      %v3633 = vrsqrt.pop %v3074
      %v3634 = vmul.f32 %v3633, %v3074
      %v3635 = vmul.f32 %v3634, %v3633
      %v3636 = vmul.f32 0.5, %v3635
      %v3637 = vsub.f32 1.5, %v3636
      %v3638 = vmul.f32 %v3633, %v3637
      %vm3639 = vweird.f32 %v3074
      %vm3640 = vweird.f32 %v3633
      %vm3641 = vmor %vm3639, %vm3640
      %v3642 = vsel %vm3641, %v3633, %v3638
      %v3643 = vrsqrt.pop %v3075
      %v3644 = vmul.f32 %v3643, %v3075
      %v3645 = vmul.f32 %v3644, %v3643
      %v3646 = vmul.f32 0.5, %v3645
      %v3647 = vsub.f32 1.5, %v3646
      %v3648 = vmul.f32 %v3643, %v3647
      %vm3649 = vweird.f32 %v3075
      %vm3650 = vweird.f32 %v3643
      %vm3651 = vmor %vm3649, %vm3650
      %v3652 = vsel %vm3651, %v3643, %v3648
      %v3653 = vrsqrt.pop %v3076
      %v3654 = vmul.f32 %v3653, %v3076
      %v3655 = vmul.f32 %v3654, %v3653
      %v3656 = vmul.f32 0.5, %v3655
      %v3657 = vsub.f32 1.5, %v3656
      %v3658 = vmul.f32 %v3653, %v3657
      %vm3659 = vweird.f32 %v3076
      %vm3660 = vweird.f32 %v3653
      %vm3661 = vmor %vm3659, %vm3660
      %v3662 = vsel %vm3661, %v3653, %v3658
      %v3663 = vrsqrt.pop %v3077
      %v3664 = vmul.f32 %v3663, %v3077
      %v3665 = vmul.f32 %v3664, %v3663
      %v3666 = vmul.f32 0.5, %v3665
      %v3667 = vsub.f32 1.5, %v3666
      %v3668 = vmul.f32 %v3663, %v3667
      %vm3669 = vweird.f32 %v3077
      %vm3670 = vweird.f32 %v3663
      %vm3671 = vmor %vm3669, %vm3670
      %v3672 = vsel %vm3671, %v3663, %v3668
      %v3673 = vrsqrt.pop %v3078
      %v3674 = vmul.f32 %v3673, %v3078
      %v3675 = vmul.f32 %v3674, %v3673
      %v3676 = vmul.f32 0.5, %v3675
      %v3677 = vsub.f32 1.5, %v3676
      %v3678 = vmul.f32 %v3673, %v3677
      %vm3679 = vweird.f32 %v3078
      %vm3680 = vweird.f32 %v3673
      %vm3681 = vmor %vm3679, %vm3680
      %v3682 = vsel %vm3681, %v3673, %v3678
      %v3683 = vrsqrt.pop %v3079
      %v3684 = vmul.f32 %v3683, %v3079
      %v3685 = vmul.f32 %v3684, %v3683
      %v3686 = vmul.f32 0.5, %v3685
      %v3687 = vsub.f32 1.5, %v3686
      %v3688 = vmul.f32 %v3683, %v3687
      %vm3689 = vweird.f32 %v3079
      %vm3690 = vweird.f32 %v3683
      %vm3691 = vmor %vm3689, %vm3690
      %v3692 = vsel %vm3691, %v3683, %v3688
      %v3693 = vrsqrt.pop %v3080
      %v3694 = vmul.f32 %v3693, %v3080
      %v3695 = vmul.f32 %v3694, %v3693
      %v3696 = vmul.f32 0.5, %v3695
      %v3697 = vsub.f32 1.5, %v3696
      %v3698 = vmul.f32 %v3693, %v3697
      %vm3699 = vweird.f32 %v3080
      %vm3700 = vweird.f32 %v3693
      %vm3701 = vmor %vm3699, %vm3700
      %v3702 = vsel %vm3701, %v3693, %v3698
      %v3703 = vrsqrt.pop %v3081
      %v3704 = vmul.f32 %v3703, %v3081
      %v3705 = vmul.f32 %v3704, %v3703
      %v3706 = vmul.f32 0.5, %v3705
      %v3707 = vsub.f32 1.5, %v3706
      %v3708 = vmul.f32 %v3703, %v3707
      %vm3709 = vweird.f32 %v3081
      %vm3710 = vweird.f32 %v3703
      %vm3711 = vmor %vm3709, %vm3710
      %v3712 = vsel %vm3711, %v3703, %v3708
      %v3713 = vrsqrt.pop %v3082
      %v3714 = vmul.f32 %v3713, %v3082
      %v3715 = vmul.f32 %v3714, %v3713
      %v3716 = vmul.f32 0.5, %v3715
      %v3717 = vsub.f32 1.5, %v3716
      %v3718 = vmul.f32 %v3713, %v3717
      %vm3719 = vweird.f32 %v3082
      %vm3720 = vweird.f32 %v3713
      %vm3721 = vmor %vm3719, %vm3720
      %v3722 = vsel %vm3721, %v3713, %v3718
      %v3723 = vmul.f32 %v2955, %v3092
      %v3724 = vmul.f32 %v2956, %v3102
      %v3725 = vmul.f32 %v2957, %v3112
      %v3726 = vmul.f32 %v2958, %v3122
      %v3727 = vmul.f32 %v2959, %v3132
      %v3728 = vmul.f32 %v2960, %v3142
      %v3729 = vmul.f32 %v2961, %v3152
      %v3730 = vmul.f32 %v2962, %v3162
      %v3731 = vmul.f32 %v2963, %v3172
      %v3732 = vmul.f32 %v2964, %v3182
      %v3733 = vmul.f32 %v2965, %v3192
      %v3734 = vmul.f32 %v2966, %v3202
      %v3735 = vmul.f32 %v2967, %v3212
      %v3736 = vmul.f32 %v2968, %v3222
      %v3737 = vmul.f32 %v2969, %v3232
      %v3738 = vmul.f32 %v2970, %v3242
      %v3739 = vmul.f32 %v2971, %v3252
      %v3740 = vmul.f32 %v2972, %v3262
      %v3741 = vmul.f32 %v2973, %v3272
      %v3742 = vmul.f32 %v2974, %v3282
      %v3743 = vmul.f32 %v2975, %v3292
      %v3744 = vmul.f32 %v2976, %v3302
      %v3745 = vmul.f32 %v2977, %v3312
      %v3746 = vmul.f32 %v2978, %v3322
      %v3747 = vmul.f32 %v2979, %v3332
      %v3748 = vmul.f32 %v2980, %v3342
      %v3749 = vmul.f32 %v2981, %v3352
      %v3750 = vmul.f32 %v2982, %v3362
      %v3751 = vmul.f32 %v2983, %v3372
      %v3752 = vmul.f32 %v2984, %v3382
      %v3753 = vmul.f32 %v2985, %v3392
      %v3754 = vmul.f32 %v2986, %v3402
      %v3755 = vmul.f32 %v2987, %v3412
      %v3756 = vmul.f32 %v2988, %v3422
      %v3757 = vmul.f32 %v2989, %v3432
      %v3758 = vmul.f32 %v2990, %v3442
      %v3759 = vmul.f32 %v2991, %v3452
      %v3760 = vmul.f32 %v2992, %v3462
      %v3761 = vmul.f32 %v2993, %v3472
      %v3762 = vmul.f32 %v2994, %v3482
      %v3763 = vmul.f32 %v2995, %v3492
      %v3764 = vmul.f32 %v2996, %v3502
      %v3765 = vmul.f32 %v2997, %v3512
      %v3766 = vmul.f32 %v2998, %v3522
      %v3767 = vmul.f32 %v2999, %v3532
      %v3768 = vmul.f32 %v3000, %v3542
      %v3769 = vmul.f32 %v3001, %v3552
      %v3770 = vmul.f32 %v3002, %v3562
      %v3771 = vmul.f32 %v3003, %v3572
      %v3772 = vmul.f32 %v3004, %v3582
      %v3773 = vmul.f32 %v3005, %v3592
      %v3774 = vmul.f32 %v3006, %v3602
      %v3775 = vmul.f32 %v3007, %v3612
      %v3776 = vmul.f32 %v3008, %v3622
      %v3777 = vmul.f32 %v3009, %v3632
      %v3778 = vmul.f32 %v3010, %v3642
      %v3779 = vmul.f32 %v3011, %v3652
      %v3780 = vmul.f32 %v3012, %v3662
      %v3781 = vmul.f32 %v3013, %v3672
      %v3782 = vmul.f32 %v3014, %v3682
      %v3783 = vmul.f32 %v3015, %v3692
      %v3784 = vmul.f32 %v3016, %v3702
      %v3785 = vmul.f32 %v3017, %v3712
      %v3786 = vmul.f32 %v3018, %v3722
      %v3787 = vld [vmem:[%s3] sm:$0xff]
      %3789 = vset.pattern.permute.xlu0 0
      %3790 = vperm.xlu0 %3789, %v3787
      %v3791 = vpop.permute.xlu0 %3790
      %v3793 = vmul.f32 %v3723, %v3791
      %v3794 = vmul.f32 %v3724, %v3791
      %v3795 = vmul.f32 %v3725, %v3791
      %v3796 = vmul.f32 %v3726, %v3791
      %v3797 = vmul.f32 %v3727, %v3791
      %v3798 = vmul.f32 %v3728, %v3791
      %v3799 = vmul.f32 %v3729, %v3791
      %v3800 = vmul.f32 %v3730, %v3791
      %v3801 = vmul.f32 %v3731, %v3791
      %v3802 = vmul.f32 %v3732, %v3791
      %v3803 = vmul.f32 %v3733, %v3791
      %v3804 = vmul.f32 %v3734, %v3791
      %v3805 = vmul.f32 %v3735, %v3791
      %v3806 = vmul.f32 %v3736, %v3791
      %v3807 = vmul.f32 %v3737, %v3791
      %v3808 = vmul.f32 %v3738, %v3791
      %v3809 = vmul.f32 %v3739, %v3791
      %v3810 = vmul.f32 %v3740, %v3791
      %v3811 = vmul.f32 %v3741, %v3791
      %v3812 = vmul.f32 %v3742, %v3791
      %v3813 = vmul.f32 %v3743, %v3791
      %v3814 = vmul.f32 %v3744, %v3791
      %v3815 = vmul.f32 %v3745, %v3791
      %v3816 = vmul.f32 %v3746, %v3791
      %v3817 = vmul.f32 %v3747, %v3791
      %v3818 = vmul.f32 %v3748, %v3791
      %v3819 = vmul.f32 %v3749, %v3791
      %v3820 = vmul.f32 %v3750, %v3791
      %v3821 = vmul.f32 %v3751, %v3791
      %v3822 = vmul.f32 %v3752, %v3791
      %v3823 = vmul.f32 %v3753, %v3791
      %v3824 = vmul.f32 %v3754, %v3791
      %v3825 = vmul.f32 %v3755, %v3791
      %v3826 = vmul.f32 %v3756, %v3791
      %v3827 = vmul.f32 %v3757, %v3791
      %v3828 = vmul.f32 %v3758, %v3791
      %v3829 = vmul.f32 %v3759, %v3791
      %v3830 = vmul.f32 %v3760, %v3791
      %v3831 = vmul.f32 %v3761, %v3791
      %v3832 = vmul.f32 %v3762, %v3791
      %v3833 = vmul.f32 %v3763, %v3791
      %v3834 = vmul.f32 %v3764, %v3791
      %v3835 = vmul.f32 %v3765, %v3791
      %v3836 = vmul.f32 %v3766, %v3791
      %v3837 = vmul.f32 %v3767, %v3791
      %v3838 = vmul.f32 %v3768, %v3791
      %v3839 = vmul.f32 %v3769, %v3791
      %v3840 = vmul.f32 %v3770, %v3791
      %v3841 = vmul.f32 %v3771, %v3791
      %v3842 = vmul.f32 %v3772, %v3791
      %v3843 = vmul.f32 %v3773, %v3791
      %v3844 = vmul.f32 %v3774, %v3791
      %v3845 = vmul.f32 %v3775, %v3791
      %v3846 = vmul.f32 %v3776, %v3791
      %v3847 = vmul.f32 %v3777, %v3791
      %v3848 = vmul.f32 %v3778, %v3791
      %v3849 = vmul.f32 %v3779, %v3791
      %v3850 = vmul.f32 %v3780, %v3791
      %v3851 = vmul.f32 %v3781, %v3791
      %v3852 = vmul.f32 %v3782, %v3791
      %v3853 = vmul.f32 %v3783, %v3791
      %v3854 = vmul.f32 %v3784, %v3791
      %v3855 = vmul.f32 %v3785, %v3791
      %v3856 = vmul.f32 %v3786, %v3791
      %v3857 = vld [vmem:[%s4] sm:$0xff]
      %3859 = vset.pattern.permute.xlu0 0
      %3860 = vperm.xlu0 %3859, %v3857
      %v3861 = vpop.permute.xlu0 %3860
      %v3863 = vadd.f32 %v3793, %v3861
      %v3864 = vadd.f32 %v3794, %v3861
      %v3865 = vadd.f32 %v3795, %v3861
      %v3866 = vadd.f32 %v3796, %v3861
      %v3867 = vadd.f32 %v3797, %v3861
      %v3868 = vadd.f32 %v3798, %v3861
      %v3869 = vadd.f32 %v3799, %v3861
      %v3870 = vadd.f32 %v3800, %v3861
      %v3871 = vadd.f32 %v3801, %v3861
      %v3872 = vadd.f32 %v3802, %v3861
      %v3873 = vadd.f32 %v3803, %v3861
      %v3874 = vadd.f32 %v3804, %v3861
      %v3875 = vadd.f32 %v3805, %v3861
      %v3876 = vadd.f32 %v3806, %v3861
      %v3877 = vadd.f32 %v3807, %v3861
      %v3878 = vadd.f32 %v3808, %v3861
      %v3879 = vadd.f32 %v3809, %v3861
      %v3880 = vadd.f32 %v3810, %v3861
      %v3881 = vadd.f32 %v3811, %v3861
      %v3882 = vadd.f32 %v3812, %v3861
      %v3883 = vadd.f32 %v3813, %v3861
      %v3884 = vadd.f32 %v3814, %v3861
      %v3885 = vadd.f32 %v3815, %v3861
      %v3886 = vadd.f32 %v3816, %v3861
      %v3887 = vadd.f32 %v3817, %v3861
      %v3888 = vadd.f32 %v3818, %v3861
      %v3889 = vadd.f32 %v3819, %v3861
      %v3890 = vadd.f32 %v3820, %v3861
      %v3891 = vadd.f32 %v3821, %v3861
      %v3892 = vadd.f32 %v3822, %v3861
      %v3893 = vadd.f32 %v3823, %v3861
      %v3894 = vadd.f32 %v3824, %v3861
      %v3895 = vadd.f32 %v3825, %v3861
      %v3896 = vadd.f32 %v3826, %v3861
      %v3897 = vadd.f32 %v3827, %v3861
      %v3898 = vadd.f32 %v3828, %v3861
      %v3899 = vadd.f32 %v3829, %v3861
      %v3900 = vadd.f32 %v3830, %v3861
      %v3901 = vadd.f32 %v3831, %v3861
      %v3902 = vadd.f32 %v3832, %v3861
      %v3903 = vadd.f32 %v3833, %v3861
      %v3904 = vadd.f32 %v3834, %v3861
      %v3905 = vadd.f32 %v3835, %v3861
      %v3906 = vadd.f32 %v3836, %v3861
      %v3907 = vadd.f32 %v3837, %v3861
      %v3908 = vadd.f32 %v3838, %v3861
      %v3909 = vadd.f32 %v3839, %v3861
      %v3910 = vadd.f32 %v3840, %v3861
      %v3911 = vadd.f32 %v3841, %v3861
      %v3912 = vadd.f32 %v3842, %v3861
      %v3913 = vadd.f32 %v3843, %v3861
      %v3914 = vadd.f32 %v3844, %v3861
      %v3915 = vadd.f32 %v3845, %v3861
      %v3916 = vadd.f32 %v3846, %v3861
      %v3917 = vadd.f32 %v3847, %v3861
      %v3918 = vadd.f32 %v3848, %v3861
      %v3919 = vadd.f32 %v3849, %v3861
      %v3920 = vadd.f32 %v3850, %v3861
      %v3921 = vadd.f32 %v3851, %v3861
      %v3922 = vadd.f32 %v3852, %v3861
      %v3923 = vadd.f32 %v3853, %v3861
      %v3924 = vadd.f32 %v3854, %v3861
      %v3925 = vadd.f32 %v3855, %v3861
      %v3926 = vadd.f32 %v3856, %v3861
      %vm3927 = vcmp.ge.f32.partialorder %v3863, 0.0
      %vm3928 = vcmp.ge.f32.partialorder %v3864, 0.0
      %vm3929 = vcmp.ge.f32.partialorder %v3865, 0.0
      %vm3930 = vcmp.ge.f32.partialorder %v3866, 0.0
      %vm3931 = vcmp.ge.f32.partialorder %v3867, 0.0
      %vm3932 = vcmp.ge.f32.partialorder %v3868, 0.0
      %vm3933 = vcmp.ge.f32.partialorder %v3869, 0.0
      %vm3934 = vcmp.ge.f32.partialorder %v3870, 0.0
      %vm3935 = vcmp.ge.f32.partialorder %v3871, 0.0
      %vm3936 = vcmp.ge.f32.partialorder %v3872, 0.0
      %vm3937 = vcmp.ge.f32.partialorder %v3873, 0.0
      %vm3938 = vcmp.ge.f32.partialorder %v3874, 0.0
      %vm3939 = vcmp.ge.f32.partialorder %v3875, 0.0
      %vm3940 = vcmp.ge.f32.partialorder %v3876, 0.0
      %vm3941 = vcmp.ge.f32.partialorder %v3877, 0.0
      %vm3942 = vcmp.ge.f32.partialorder %v3878, 0.0
      %vm3943 = vcmp.ge.f32.partialorder %v3879, 0.0
      %vm3944 = vcmp.ge.f32.partialorder %v3880, 0.0
      %vm3945 = vcmp.ge.f32.partialorder %v3881, 0.0
      %vm3946 = vcmp.ge.f32.partialorder %v3882, 0.0
      %vm3947 = vcmp.ge.f32.partialorder %v3883, 0.0
      %vm3948 = vcmp.ge.f32.partialorder %v3884, 0.0
      %vm3949 = vcmp.ge.f32.partialorder %v3885, 0.0
      %vm3950 = vcmp.ge.f32.partialorder %v3886, 0.0
      %vm3951 = vcmp.ge.f32.partialorder %v3887, 0.0
      %vm3952 = vcmp.ge.f32.partialorder %v3888, 0.0
      %vm3953 = vcmp.ge.f32.partialorder %v3889, 0.0
      %vm3954 = vcmp.ge.f32.partialorder %v3890, 0.0
      %vm3955 = vcmp.ge.f32.partialorder %v3891, 0.0
      %vm3956 = vcmp.ge.f32.partialorder %v3892, 0.0
      %vm3957 = vcmp.ge.f32.partialorder %v3893, 0.0
      %vm3958 = vcmp.ge.f32.partialorder %v3894, 0.0
      %vm3959 = vcmp.ge.f32.partialorder %v3895, 0.0
      %vm3960 = vcmp.ge.f32.partialorder %v3896, 0.0
      %vm3961 = vcmp.ge.f32.partialorder %v3897, 0.0
      %vm3962 = vcmp.ge.f32.partialorder %v3898, 0.0
      %vm3963 = vcmp.ge.f32.partialorder %v3899, 0.0
      %vm3964 = vcmp.ge.f32.partialorder %v3900, 0.0
      %vm3965 = vcmp.ge.f32.partialorder %v3901, 0.0
      %vm3966 = vcmp.ge.f32.partialorder %v3902, 0.0
      %vm3967 = vcmp.ge.f32.partialorder %v3903, 0.0
      %vm3968 = vcmp.ge.f32.partialorder %v3904, 0.0
      %vm3969 = vcmp.ge.f32.partialorder %v3905, 0.0
      %vm3970 = vcmp.ge.f32.partialorder %v3906, 0.0
      %vm3971 = vcmp.ge.f32.partialorder %v3907, 0.0
      %vm3972 = vcmp.ge.f32.partialorder %v3908, 0.0
      %vm3973 = vcmp.ge.f32.partialorder %v3909, 0.0
      %vm3974 = vcmp.ge.f32.partialorder %v3910, 0.0
      %vm3975 = vcmp.ge.f32.partialorder %v3911, 0.0
      %vm3976 = vcmp.ge.f32.partialorder %v3912, 0.0
      %vm3977 = vcmp.ge.f32.partialorder %v3913, 0.0
      %vm3978 = vcmp.ge.f32.partialorder %v3914, 0.0
      %vm3979 = vcmp.ge.f32.partialorder %v3915, 0.0
      %vm3980 = vcmp.ge.f32.partialorder %v3916, 0.0
      %vm3981 = vcmp.ge.f32.partialorder %v3917, 0.0
      %vm3982 = vcmp.ge.f32.partialorder %v3918, 0.0
      %vm3983 = vcmp.ge.f32.partialorder %v3919, 0.0
      %vm3984 = vcmp.ge.f32.partialorder %v3920, 0.0
      %vm3985 = vcmp.ge.f32.partialorder %v3921, 0.0
      %vm3986 = vcmp.ge.f32.partialorder %v3922, 0.0
      %vm3987 = vcmp.ge.f32.partialorder %v3923, 0.0
      %vm3988 = vcmp.ge.f32.partialorder %v3924, 0.0
      %vm3989 = vcmp.ge.f32.partialorder %v3925, 0.0
      %vm3990 = vcmp.ge.f32.partialorder %v3926, 0.0
      %v3991 = vmul.f32 %v3863, 0.01
      %v3992 = vmul.f32 %v3864, 0.01
      %v3993 = vmul.f32 %v3865, 0.01
      %v3994 = vmul.f32 %v3866, 0.01
      %v3995 = vmul.f32 %v3867, 0.01
      %v3996 = vmul.f32 %v3868, 0.01
      %v3997 = vmul.f32 %v3869, 0.01
      %v3998 = vmul.f32 %v3870, 0.01
      %v3999 = vmul.f32 %v3871, 0.01
      %v4000 = vmul.f32 %v3872, 0.01
      %v4001 = vmul.f32 %v3873, 0.01
      %v4002 = vmul.f32 %v3874, 0.01
      %v4003 = vmul.f32 %v3875, 0.01
      %v4004 = vmul.f32 %v3876, 0.01
      %v4005 = vmul.f32 %v3877, 0.01
      %v4006 = vmul.f32 %v3878, 0.01
      %v4007 = vmul.f32 %v3879, 0.01
      %v4008 = vmul.f32 %v3880, 0.01
      %v4009 = vmul.f32 %v3881, 0.01
      %v4010 = vmul.f32 %v3882, 0.01
      %v4011 = vmul.f32 %v3883, 0.01
      %v4012 = vmul.f32 %v3884, 0.01
      %v4013 = vmul.f32 %v3885, 0.01
      %v4014 = vmul.f32 %v3886, 0.01
      %v4015 = vmul.f32 %v3887, 0.01
      %v4016 = vmul.f32 %v3888, 0.01
      %v4017 = vmul.f32 %v3889, 0.01
      %v4018 = vmul.f32 %v3890, 0.01
      %v4019 = vmul.f32 %v3891, 0.01
      %v4020 = vmul.f32 %v3892, 0.01
      %v4021 = vmul.f32 %v3893, 0.01
      %v4022 = vmul.f32 %v3894, 0.01
      %v4023 = vmul.f32 %v3895, 0.01
      %v4024 = vmul.f32 %v3896, 0.01
      %v4025 = vmul.f32 %v3897, 0.01
      %v4026 = vmul.f32 %v3898, 0.01
      %v4027 = vmul.f32 %v3899, 0.01
      %v4028 = vmul.f32 %v3900, 0.01
      %v4029 = vmul.f32 %v3901, 0.01
      %v4030 = vmul.f32 %v3902, 0.01
      %v4031 = vmul.f32 %v3903, 0.01
      %v4032 = vmul.f32 %v3904, 0.01
      %v4033 = vmul.f32 %v3905, 0.01
      %v4034 = vmul.f32 %v3906, 0.01
      %v4035 = vmul.f32 %v3907, 0.01
      %v4036 = vmul.f32 %v3908, 0.01
      %v4037 = vmul.f32 %v3909, 0.01
      %v4038 = vmul.f32 %v3910, 0.01
      %v4039 = vmul.f32 %v3911, 0.01
      %v4040 = vmul.f32 %v3912, 0.01
      %v4041 = vmul.f32 %v3913, 0.01
      %v4042 = vmul.f32 %v3914, 0.01
      %v4043 = vmul.f32 %v3915, 0.01
      %v4044 = vmul.f32 %v3916, 0.01
      %v4045 = vmul.f32 %v3917, 0.01
      %v4046 = vmul.f32 %v3918, 0.01
      %v4047 = vmul.f32 %v3919, 0.01
      %v4048 = vmul.f32 %v3920, 0.01
      %v4049 = vmul.f32 %v3921, 0.01
      %v4050 = vmul.f32 %v3922, 0.01
      %v4051 = vmul.f32 %v3923, 0.01
      %v4052 = vmul.f32 %v3924, 0.01
      %v4053 = vmul.f32 %v3925, 0.01
      %v4054 = vmul.f32 %v3926, 0.01
      %v4055 = vsel %vm3927, %v3863, %v3991
      %v4056 = vsel %vm3928, %v3864, %v3992
      %v4057 = vsel %vm3929, %v3865, %v3993
      %v4058 = vsel %vm3930, %v3866, %v3994
      %v4059 = vsel %vm3931, %v3867, %v3995
      %v4060 = vsel %vm3932, %v3868, %v3996
      %v4061 = vsel %vm3933, %v3869, %v3997
      %v4062 = vsel %vm3934, %v3870, %v3998
      %v4063 = vsel %vm3935, %v3871, %v3999
      %v4064 = vsel %vm3936, %v3872, %v4000
      %v4065 = vsel %vm3937, %v3873, %v4001
      %v4066 = vsel %vm3938, %v3874, %v4002
      %v4067 = vsel %vm3939, %v3875, %v4003
      %v4068 = vsel %vm3940, %v3876, %v4004
      %v4069 = vsel %vm3941, %v3877, %v4005
      %v4070 = vsel %vm3942, %v3878, %v4006
      %v4071 = vsel %vm3943, %v3879, %v4007
      %v4072 = vsel %vm3944, %v3880, %v4008
      %v4073 = vsel %vm3945, %v3881, %v4009
      %v4074 = vsel %vm3946, %v3882, %v4010
      %v4075 = vsel %vm3947, %v3883, %v4011
      %v4076 = vsel %vm3948, %v3884, %v4012
      %v4077 = vsel %vm3949, %v3885, %v4013
      %v4078 = vsel %vm3950, %v3886, %v4014
      %v4079 = vsel %vm3951, %v3887, %v4015
      %v4080 = vsel %vm3952, %v3888, %v4016
      %v4081 = vsel %vm3953, %v3889, %v4017
      %v4082 = vsel %vm3954, %v3890, %v4018
      %v4083 = vsel %vm3955, %v3891, %v4019
      %v4084 = vsel %vm3956, %v3892, %v4020
      %v4085 = vsel %vm3957, %v3893, %v4021
      %v4086 = vsel %vm3958, %v3894, %v4022
      %v4087 = vsel %vm3959, %v3895, %v4023
      %v4088 = vsel %vm3960, %v3896, %v4024
      %v4089 = vsel %vm3961, %v3897, %v4025
      %v4090 = vsel %vm3962, %v3898, %v4026
      %v4091 = vsel %vm3963, %v3899, %v4027
      %v4092 = vsel %vm3964, %v3900, %v4028
      %v4093 = vsel %vm3965, %v3901, %v4029
      %v4094 = vsel %vm3966, %v3902, %v4030
      %v4095 = vsel %vm3967, %v3903, %v4031
      %v4096 = vsel %vm3968, %v3904, %v4032
      %v4097 = vsel %vm3969, %v3905, %v4033
      %v4098 = vsel %vm3970, %v3906, %v4034
      %v4099 = vsel %vm3971, %v3907, %v4035
      %v4100 = vsel %vm3972, %v3908, %v4036
      %v4101 = vsel %vm3973, %v3909, %v4037
      %v4102 = vsel %vm3974, %v3910, %v4038
      %v4103 = vsel %vm3975, %v3911, %v4039
      %v4104 = vsel %vm3976, %v3912, %v4040
      %v4105 = vsel %vm3977, %v3913, %v4041
      %v4106 = vsel %vm3978, %v3914, %v4042
      %v4107 = vsel %vm3979, %v3915, %v4043
      %v4108 = vsel %vm3980, %v3916, %v4044
      %v4109 = vsel %vm3981, %v3917, %v4045
      %v4110 = vsel %vm3982, %v3918, %v4046
      %v4111 = vsel %vm3983, %v3919, %v4047
      %v4112 = vsel %vm3984, %v3920, %v4048
      %v4113 = vsel %vm3985, %v3921, %v4049
      %v4114 = vsel %vm3986, %v3922, %v4050
      %v4115 = vsel %vm3987, %v3923, %v4051
      %v4116 = vsel %vm3988, %v3924, %v4052
      %v4117 = vsel %vm3989, %v3925, %v4053
      %v4118 = vsel %vm3990, %v3926, %v4054
      %vm4119 = vcmask 57344
      %4120 = vst.msk [vmem:[#allocation2] sm:$0x1] %vm4119, 0.0
      %4121 = vst.msk [vmem:[#allocation2 + $0x10] sm:$0x1] %vm4119, 0.0
      %4122 = vst.msk [vmem:[#allocation2 + $0x20] sm:$0x1] %vm4119, 0.0
      %4123 = vst.msk [vmem:[#allocation2 + $0x30] sm:$0x1] %vm4119, 0.0
      %4124 = vst.msk [vmem:[#allocation2 + $0x40] sm:$0x1] %vm4119, 0.0
      %4125 = vst.msk [vmem:[#allocation2 + $0x50] sm:$0x1] %vm4119, 0.0
      %4126 = vst.msk [vmem:[#allocation2 + $0x60] sm:$0x1] %vm4119, 0.0
      %4127 = vst.msk [vmem:[#allocation2 + $0x70] sm:$0x1] %vm4119, 0.0
      %4128 = vst.msk [vmem:[#allocation2 + $0x80] sm:$0x1] %vm4119, 0.0
      %4129 = vst.msk [vmem:[#allocation2 + $0x90] sm:$0x1] %vm4119, 0.0
      %4130 = vst.msk [vmem:[#allocation2 + $0xa0] sm:$0x1] %vm4119, 0.0
      %4131 = vst.msk [vmem:[#allocation2 + $0xb0] sm:$0x1] %vm4119, 0.0
      %4132 = vst.msk [vmem:[#allocation2 + $0xc0] sm:$0x1] %vm4119, 0.0
      %4133 = vst.msk [vmem:[#allocation2 + $0xd0] sm:$0x1] %vm4119, 0.0
      %4134 = vst.msk [vmem:[#allocation2 + $0xe0] sm:$0x1] %vm4119, 0.0
      %4135 = vst.msk [vmem:[#allocation2 + $0xf0] sm:$0x1] %vm4119, 0.0
      %4136 = vst.msk [vmem:[#allocation2 + $0x100] sm:$0x1] %vm4119, 0.0
      %4137 = vst.msk [vmem:[#allocation2 + $0x110] sm:$0x1] %vm4119, 0.0
      %4138 = vst.msk [vmem:[#allocation2 + $0x120] sm:$0x1] %vm4119, 0.0
      %4139 = vst.msk [vmem:[#allocation2 + $0x130] sm:$0x1] %vm4119, 0.0
      %4140 = vst.msk [vmem:[#allocation2 + $0x140] sm:$0x1] %vm4119, 0.0
      %4141 = vst.msk [vmem:[#allocation2 + $0x150] sm:$0x1] %vm4119, 0.0
      %4142 = vst.msk [vmem:[#allocation2 + $0x160] sm:$0x1] %vm4119, 0.0
      %4143 = vst.msk [vmem:[#allocation2 + $0x170] sm:$0x1] %vm4119, 0.0
      %4144 = vst.msk [vmem:[#allocation2 + $0x180] sm:$0x1] %vm4119, 0.0
      %4145 = vst.msk [vmem:[#allocation2 + $0x190] sm:$0x1] %vm4119, 0.0
      %4146 = vst.msk [vmem:[#allocation2 + $0x1a0] sm:$0x1] %vm4119, 0.0
      %4147 = vst.msk [vmem:[#allocation2 + $0x1b0] sm:$0x1] %vm4119, 0.0
      %4148 = vst.msk [vmem:[#allocation2 + $0x1c0] sm:$0x1] %vm4119, 0.0
      %4149 = vst.msk [vmem:[#allocation2 + $0x1d0] sm:$0x1] %vm4119, 0.0
      %4150 = vst.msk [vmem:[#allocation2 + $0x1e0] sm:$0x1] %vm4119, 0.0
      %4151 = vst.msk [vmem:[#allocation2 + $0x1f0] sm:$0x1] %vm4119, 0.0
      %4152 = vst.msk [vmem:[#allocation2 + $0x200] sm:$0x1] %vm4119, 0.0
      %4153 = vst.msk [vmem:[#allocation2 + $0x210] sm:$0x1] %vm4119, 0.0
      %4154 = vst.msk [vmem:[#allocation2 + $0x220] sm:$0x1] %vm4119, 0.0
      %4155 = vst.msk [vmem:[#allocation2 + $0x230] sm:$0x1] %vm4119, 0.0
      %4156 = vst.msk [vmem:[#allocation2 + $0x240] sm:$0x1] %vm4119, 0.0
      %4157 = vst.msk [vmem:[#allocation2 + $0x250] sm:$0x1] %vm4119, 0.0
      %4158 = vst.msk [vmem:[#allocation2 + $0x260] sm:$0x1] %vm4119, 0.0
      %4159 = vst.msk [vmem:[#allocation2 + $0x270] sm:$0x1] %vm4119, 0.0
      %4160 = vst.msk [vmem:[#allocation2 + $0x280] sm:$0x1] %vm4119, 0.0
      %4161 = vst.msk [vmem:[#allocation2 + $0x290] sm:$0x1] %vm4119, 0.0
      %4162 = vst.msk [vmem:[#allocation2 + $0x2a0] sm:$0x1] %vm4119, 0.0
      %4163 = vst.msk [vmem:[#allocation2 + $0x2b0] sm:$0x1] %vm4119, 0.0
      %4164 = vst.msk [vmem:[#allocation2 + $0x2c0] sm:$0x1] %vm4119, 0.0
      %4165 = vst.msk [vmem:[#allocation2 + $0x2d0] sm:$0x1] %vm4119, 0.0
      %4166 = vst.msk [vmem:[#allocation2 + $0x2e0] sm:$0x1] %vm4119, 0.0
      %4167 = vst.msk [vmem:[#allocation2 + $0x2f0] sm:$0x1] %vm4119, 0.0
      %4168 = vst.msk [vmem:[#allocation2 + $0x300] sm:$0x1] %vm4119, 0.0
      %4169 = vst.msk [vmem:[#allocation2 + $0x310] sm:$0x1] %vm4119, 0.0
      %4170 = vst.msk [vmem:[#allocation2 + $0x320] sm:$0x1] %vm4119, 0.0
      %4171 = vst.msk [vmem:[#allocation2 + $0x330] sm:$0x1] %vm4119, 0.0
      %4172 = vst.msk [vmem:[#allocation2 + $0x340] sm:$0x1] %vm4119, 0.0
      %4173 = vst.msk [vmem:[#allocation2 + $0x350] sm:$0x1] %vm4119, 0.0
      %4174 = vst.msk [vmem:[#allocation2 + $0x360] sm:$0x1] %vm4119, 0.0
      %4175 = vst.msk [vmem:[#allocation2 + $0x370] sm:$0x1] %vm4119, 0.0
      %4176 = vst.msk [vmem:[#allocation2 + $0x380] sm:$0x1] %vm4119, 0.0
      %4177 = vst.msk [vmem:[#allocation2 + $0x390] sm:$0x1] %vm4119, 0.0
      %4178 = vst.msk [vmem:[#allocation2 + $0x3a0] sm:$0x1] %vm4119, 0.0
      %4179 = vst.msk [vmem:[#allocation2 + $0x3b0] sm:$0x1] %vm4119, 0.0
      %4180 = vst.msk [vmem:[#allocation2 + $0x3c0] sm:$0x1] %vm4119, 0.0
      %4181 = vst.msk [vmem:[#allocation2 + $0x3d0] sm:$0x1] %vm4119, 0.0
      %4182 = vst.msk [vmem:[#allocation2 + $0x3e0] sm:$0x1] %vm4119, 0.0
      %4183 = vst.msk [vmem:[#allocation2 + $0x3f0] sm:$0x1] %vm4119, 0.0
      %4184 = vst.msk [vmem:[#allocation2 + $0x1] sm:$0xff] %vm1354, %v4055
      %4185 = vst.msk [vmem:[#allocation2 + $0x11] sm:$0xff] %vm1354, %v4056
      %4186 = vst.msk [vmem:[#allocation2 + $0x21] sm:$0xff] %vm1354, %v4057
      %4187 = vst.msk [vmem:[#allocation2 + $0x31] sm:$0xff] %vm1354, %v4058
      %4188 = vst.msk [vmem:[#allocation2 + $0x41] sm:$0xff] %vm1354, %v4059
      %4189 = vst.msk [vmem:[#allocation2 + $0x51] sm:$0xff] %vm1354, %v4060
      %4190 = vst.msk [vmem:[#allocation2 + $0x61] sm:$0xff] %vm1354, %v4061
      %4191 = vst.msk [vmem:[#allocation2 + $0x71] sm:$0xff] %vm1354, %v4062
      %4192 = vst.msk [vmem:[#allocation2 + $0x81] sm:$0xff] %vm1354, %v4063
      %4193 = vst.msk [vmem:[#allocation2 + $0x91] sm:$0xff] %vm1354, %v4064
      %4194 = vst.msk [vmem:[#allocation2 + $0xa1] sm:$0xff] %vm1354, %v4065
      %4195 = vst.msk [vmem:[#allocation2 + $0xb1] sm:$0xff] %vm1354, %v4066
      %4196 = vst.msk [vmem:[#allocation2 + $0xc1] sm:$0xff] %vm1354, %v4067
      %4197 = vst.msk [vmem:[#allocation2 + $0xd1] sm:$0xff] %vm1354, %v4068
      %4198 = vst.msk [vmem:[#allocation2 + $0xe1] sm:$0xff] %vm1354, %v4069
      %4199 = vst.msk [vmem:[#allocation2 + $0xf1] sm:$0xff] %vm1354, %v4070
      %4200 = vst.msk [vmem:[#allocation2 + $0x101] sm:$0xff] %vm1354, %v4071
      %4201 = vst.msk [vmem:[#allocation2 + $0x111] sm:$0xff] %vm1354, %v4072
      %4202 = vst.msk [vmem:[#allocation2 + $0x121] sm:$0xff] %vm1354, %v4073
      %4203 = vst.msk [vmem:[#allocation2 + $0x131] sm:$0xff] %vm1354, %v4074
      %4204 = vst.msk [vmem:[#allocation2 + $0x141] sm:$0xff] %vm1354, %v4075
      %4205 = vst.msk [vmem:[#allocation2 + $0x151] sm:$0xff] %vm1354, %v4076
      %4206 = vst.msk [vmem:[#allocation2 + $0x161] sm:$0xff] %vm1354, %v4077
      %4207 = vst.msk [vmem:[#allocation2 + $0x171] sm:$0xff] %vm1354, %v4078
      %4208 = vst.msk [vmem:[#allocation2 + $0x181] sm:$0xff] %vm1354, %v4079
      %4209 = vst.msk [vmem:[#allocation2 + $0x191] sm:$0xff] %vm1354, %v4080
      %4210 = vst.msk [vmem:[#allocation2 + $0x1a1] sm:$0xff] %vm1354, %v4081
      %4211 = vst.msk [vmem:[#allocation2 + $0x1b1] sm:$0xff] %vm1354, %v4082
      %4212 = vst.msk [vmem:[#allocation2 + $0x1c1] sm:$0xff] %vm1354, %v4083
      %4213 = vst.msk [vmem:[#allocation2 + $0x1d1] sm:$0xff] %vm1354, %v4084
      %4214 = vst.msk [vmem:[#allocation2 + $0x1e1] sm:$0xff] %vm1354, %v4085
      %4215 = vst.msk [vmem:[#allocation2 + $0x1f1] sm:$0xff] %vm1354, %v4086
      %4216 = vst.msk [vmem:[#allocation2 + $0x201] sm:$0xff] %vm1354, %v4087
      %4217 = vst.msk [vmem:[#allocation2 + $0x211] sm:$0xff] %vm1354, %v4088
      %4218 = vst.msk [vmem:[#allocation2 + $0x221] sm:$0xff] %vm1354, %v4089
      %4219 = vst.msk [vmem:[#allocation2 + $0x231] sm:$0xff] %vm1354, %v4090
      %4220 = vst.msk [vmem:[#allocation2 + $0x241] sm:$0xff] %vm1354, %v4091
      %4221 = vst.msk [vmem:[#allocation2 + $0x251] sm:$0xff] %vm1354, %v4092
      %4222 = vst.msk [vmem:[#allocation2 + $0x261] sm:$0xff] %vm1354, %v4093
      %4223 = vst.msk [vmem:[#allocation2 + $0x271] sm:$0xff] %vm1354, %v4094
      %4224 = vst.msk [vmem:[#allocation2 + $0x281] sm:$0xff] %vm1354, %v4095
      %4225 = vst.msk [vmem:[#allocation2 + $0x291] sm:$0xff] %vm1354, %v4096
      %4226 = vst.msk [vmem:[#allocation2 + $0x2a1] sm:$0xff] %vm1354, %v4097
      %4227 = vst.msk [vmem:[#allocation2 + $0x2b1] sm:$0xff] %vm1354, %v4098
      %4228 = vst.msk [vmem:[#allocation2 + $0x2c1] sm:$0xff] %vm1354, %v4099
      %4229 = vst.msk [vmem:[#allocation2 + $0x2d1] sm:$0xff] %vm1354, %v4100
      %4230 = vst.msk [vmem:[#allocation2 + $0x2e1] sm:$0xff] %vm1354, %v4101
      %4231 = vst.msk [vmem:[#allocation2 + $0x2f1] sm:$0xff] %vm1354, %v4102
      %4232 = vst.msk [vmem:[#allocation2 + $0x301] sm:$0xff] %vm1354, %v4103
      %4233 = vst.msk [vmem:[#allocation2 + $0x311] sm:$0xff] %vm1354, %v4104
      %4234 = vst.msk [vmem:[#allocation2 + $0x321] sm:$0xff] %vm1354, %v4105
      %4235 = vst.msk [vmem:[#allocation2 + $0x331] sm:$0xff] %vm1354, %v4106
      %4236 = vst.msk [vmem:[#allocation2 + $0x341] sm:$0xff] %vm1354, %v4107
      %4237 = vst.msk [vmem:[#allocation2 + $0x351] sm:$0xff] %vm1354, %v4108
      %4238 = vst.msk [vmem:[#allocation2 + $0x361] sm:$0xff] %vm1354, %v4109
      %4239 = vst.msk [vmem:[#allocation2 + $0x371] sm:$0xff] %vm1354, %v4110
      %4240 = vst.msk [vmem:[#allocation2 + $0x381] sm:$0xff] %vm1354, %v4111
      %4241 = vst.msk [vmem:[#allocation2 + $0x391] sm:$0xff] %vm1354, %v4112
      %4242 = vst.msk [vmem:[#allocation2 + $0x3a1] sm:$0xff] %vm1354, %v4113
      %4243 = vst.msk [vmem:[#allocation2 + $0x3b1] sm:$0xff] %vm1354, %v4114
      %4244 = vst.msk [vmem:[#allocation2 + $0x3c1] sm:$0xff] %vm1354, %v4115
      %4245 = vst.msk [vmem:[#allocation2 + $0x3d1] sm:$0xff] %vm1354, %v4116
      %4246 = vst.msk [vmem:[#allocation2 + $0x3e1] sm:$0xff] %vm1354, %v4117
      %4247 = vst.msk [vmem:[#allocation2 + $0x3f1] sm:$0xff] %vm1354, %v4118
      %v4248 = vld [vmem:[#allocation2] ss:$2 sm:$0xf]
      %s4249 = scalar_lea.vmem [#allocation2], 16
      %v4250 = vld [vmem:[%s4249] ss:$2 sm:$0xf]
      %s4251 = scalar_lea.vmem [#allocation2], 32
      %v4252 = vld [vmem:[%s4251] ss:$2 sm:$0xf]
      %s4253 = scalar_lea.vmem [#allocation2], 48
      %v4254 = vld [vmem:[%s4253] ss:$2 sm:$0xf]
      %s4255 = scalar_lea.vmem [#allocation2], 64
      %v4256 = vld [vmem:[%s4255] ss:$2 sm:$0xf]
      %s4257 = scalar_lea.vmem [#allocation2], 80
      %v4258 = vld [vmem:[%s4257] ss:$2 sm:$0xf]
      %s4259 = scalar_lea.vmem [#allocation2], 96
      %v4260 = vld [vmem:[%s4259] ss:$2 sm:$0xf]
      %s4261 = scalar_lea.vmem [#allocation2], 112
      %v4262 = vld [vmem:[%s4261] ss:$2 sm:$0xf]
      %s4263 = scalar_lea.vmem [#allocation2], 128
      %v4264 = vld [vmem:[%s4263] ss:$2 sm:$0xf]
      %s4265 = scalar_lea.vmem [#allocation2], 144
      %v4266 = vld [vmem:[%s4265] ss:$2 sm:$0xf]
      %s4267 = scalar_lea.vmem [#allocation2], 160
      %v4268 = vld [vmem:[%s4267] ss:$2 sm:$0xf]
      %s4269 = scalar_lea.vmem [#allocation2], 176
      %v4270 = vld [vmem:[%s4269] ss:$2 sm:$0xf]
      %s4271 = scalar_lea.vmem [#allocation2], 192
      %v4272 = vld [vmem:[%s4271] ss:$2 sm:$0xf]
      %s4273 = scalar_lea.vmem [#allocation2], 208
      %v4274 = vld [vmem:[%s4273] ss:$2 sm:$0xf]
      %s4275 = scalar_lea.vmem [#allocation2], 224
      %v4276 = vld [vmem:[%s4275] ss:$2 sm:$0xf]
      %s4277 = scalar_lea.vmem [#allocation2], 240
      %v4278 = vld [vmem:[%s4277] ss:$2 sm:$0xf]
      %s4279 = scalar_lea.vmem [#allocation2], 256
      %v4280 = vld [vmem:[%s4279] ss:$2 sm:$0xf]
      %s4281 = scalar_lea.vmem [#allocation2], 272
      %v4282 = vld [vmem:[%s4281] ss:$2 sm:$0xf]
      %s4283 = scalar_lea.vmem [#allocation2], 288
      %v4284 = vld [vmem:[%s4283] ss:$2 sm:$0xf]
      %s4285 = scalar_lea.vmem [#allocation2], 304
      %v4286 = vld [vmem:[%s4285] ss:$2 sm:$0xf]
      %s4287 = scalar_lea.vmem [#allocation2], 320
      %v4288 = vld [vmem:[%s4287] ss:$2 sm:$0xf]
      %s4289 = scalar_lea.vmem [#allocation2], 336
      %v4290 = vld [vmem:[%s4289] ss:$2 sm:$0xf]
      %s4291 = scalar_lea.vmem [#allocation2], 352
      %v4292 = vld [vmem:[%s4291] ss:$2 sm:$0xf]
      %s4293 = scalar_lea.vmem [#allocation2], 368
      %v4294 = vld [vmem:[%s4293] ss:$2 sm:$0xf]
      %s4295 = scalar_lea.vmem [#allocation2], 384
      %v4296 = vld [vmem:[%s4295] ss:$2 sm:$0xf]
      %s4297 = scalar_lea.vmem [#allocation2], 400
      %v4298 = vld [vmem:[%s4297] ss:$2 sm:$0xf]
      %s4299 = scalar_lea.vmem [#allocation2], 416
      %v4300 = vld [vmem:[%s4299] ss:$2 sm:$0xf]
      %s4301 = scalar_lea.vmem [#allocation2], 432
      %v4302 = vld [vmem:[%s4301] ss:$2 sm:$0xf]
      %s4303 = scalar_lea.vmem [#allocation2], 448
      %v4304 = vld [vmem:[%s4303] ss:$2 sm:$0xf]
      %s4305 = scalar_lea.vmem [#allocation2], 464
      %v4306 = vld [vmem:[%s4305] ss:$2 sm:$0xf]
      %s4307 = scalar_lea.vmem [#allocation2], 480
      %v4308 = vld [vmem:[%s4307] ss:$2 sm:$0xf]
      %s4309 = scalar_lea.vmem [#allocation2], 496
      %v4310 = vld [vmem:[%s4309] ss:$2 sm:$0xf]
      %s4311 = scalar_lea.vmem [#allocation2], 512
      %v4312 = vld [vmem:[%s4311] ss:$2 sm:$0xf]
      %s4313 = scalar_lea.vmem [#allocation2], 528
      %v4314 = vld [vmem:[%s4313] ss:$2 sm:$0xf]
      %s4315 = scalar_lea.vmem [#allocation2], 544
      %v4316 = vld [vmem:[%s4315] ss:$2 sm:$0xf]
      %s4317 = scalar_lea.vmem [#allocation2], 560
      %v4318 = vld [vmem:[%s4317] ss:$2 sm:$0xf]
      %s4319 = scalar_lea.vmem [#allocation2], 576
      %v4320 = vld [vmem:[%s4319] ss:$2 sm:$0xf]
      %s4321 = scalar_lea.vmem [#allocation2], 592
      %v4322 = vld [vmem:[%s4321] ss:$2 sm:$0xf]
      %s4323 = scalar_lea.vmem [#allocation2], 608
      %v4324 = vld [vmem:[%s4323] ss:$2 sm:$0xf]
      %s4325 = scalar_lea.vmem [#allocation2], 624
      %v4326 = vld [vmem:[%s4325] ss:$2 sm:$0xf]
      %s4327 = scalar_lea.vmem [#allocation2], 640
      %v4328 = vld [vmem:[%s4327] ss:$2 sm:$0xf]
      %s4329 = scalar_lea.vmem [#allocation2], 656
      %v4330 = vld [vmem:[%s4329] ss:$2 sm:$0xf]
      %s4331 = scalar_lea.vmem [#allocation2], 672
      %v4332 = vld [vmem:[%s4331] ss:$2 sm:$0xf]
      %s4333 = scalar_lea.vmem [#allocation2], 688
      %v4334 = vld [vmem:[%s4333] ss:$2 sm:$0xf]
      %s4335 = scalar_lea.vmem [#allocation2], 704
      %v4336 = vld [vmem:[%s4335] ss:$2 sm:$0xf]
      %s4337 = scalar_lea.vmem [#allocation2], 720
      %v4338 = vld [vmem:[%s4337] ss:$2 sm:$0xf]
      %s4339 = scalar_lea.vmem [#allocation2], 736
      %v4340 = vld [vmem:[%s4339] ss:$2 sm:$0xf]
      %s4341 = scalar_lea.vmem [#allocation2], 752
      %v4342 = vld [vmem:[%s4341] ss:$2 sm:$0xf]
      %s4343 = scalar_lea.vmem [#allocation2], 768
      %v4344 = vld [vmem:[%s4343] ss:$2 sm:$0xf]
      %s4345 = scalar_lea.vmem [#allocation2], 784
      %v4346 = vld [vmem:[%s4345] ss:$2 sm:$0xf]
      %s4347 = scalar_lea.vmem [#allocation2], 800
      %v4348 = vld [vmem:[%s4347] ss:$2 sm:$0xf]
      %s4349 = scalar_lea.vmem [#allocation2], 816
      %v4350 = vld [vmem:[%s4349] ss:$2 sm:$0xf]
      %s4351 = scalar_lea.vmem [#allocation2], 832
      %v4352 = vld [vmem:[%s4351] ss:$2 sm:$0xf]
      %s4353 = scalar_lea.vmem [#allocation2], 848
      %v4354 = vld [vmem:[%s4353] ss:$2 sm:$0xf]
      %s4355 = scalar_lea.vmem [#allocation2], 864
      %v4356 = vld [vmem:[%s4355] ss:$2 sm:$0xf]
      %s4357 = scalar_lea.vmem [#allocation2], 880
      %v4358 = vld [vmem:[%s4357] ss:$2 sm:$0xf]
      %s4359 = scalar_lea.vmem [#allocation2], 896
      %v4360 = vld [vmem:[%s4359] ss:$2 sm:$0xf]
      %s4361 = scalar_lea.vmem [#allocation2], 912
      %v4362 = vld [vmem:[%s4361] ss:$2 sm:$0xf]
      %s4363 = scalar_lea.vmem [#allocation2], 928
      %v4364 = vld [vmem:[%s4363] ss:$2 sm:$0xf]
      %s4365 = scalar_lea.vmem [#allocation2], 944
      %v4366 = vld [vmem:[%s4365] ss:$2 sm:$0xf]
      %s4367 = scalar_lea.vmem [#allocation2], 960
      %v4368 = vld [vmem:[%s4367] ss:$2 sm:$0xf]
      %s4369 = scalar_lea.vmem [#allocation2], 976
      %v4370 = vld [vmem:[%s4369] ss:$2 sm:$0xf]
      %s4371 = scalar_lea.vmem [#allocation2], 992
      %v4372 = vld [vmem:[%s4371] ss:$2 sm:$0xf]
      %s4373 = scalar_lea.vmem [#allocation2], 1008
      %v4374 = vld [vmem:[%s4373] ss:$2 sm:$0xf]
      %s4375 = scalar_lea.vmem [#allocation2], 1
      %v4376 = vld [vmem:[%s4375] ss:$2 sm:$0xf]
      %s4377 = scalar_lea.vmem [#allocation2], 17
      %v4378 = vld [vmem:[%s4377] ss:$2 sm:$0xf]
      %s4379 = scalar_lea.vmem [#allocation2], 33
      %v4380 = vld [vmem:[%s4379] ss:$2 sm:$0xf]
      %s4381 = scalar_lea.vmem [#allocation2], 49
      %v4382 = vld [vmem:[%s4381] ss:$2 sm:$0xf]
      %s4383 = scalar_lea.vmem [#allocation2], 65
      %v4384 = vld [vmem:[%s4383] ss:$2 sm:$0xf]
      %s4385 = scalar_lea.vmem [#allocation2], 81
      %v4386 = vld [vmem:[%s4385] ss:$2 sm:$0xf]
      %s4387 = scalar_lea.vmem [#allocation2], 97
      %v4388 = vld [vmem:[%s4387] ss:$2 sm:$0xf]
      %s4389 = scalar_lea.vmem [#allocation2], 113
      %v4390 = vld [vmem:[%s4389] ss:$2 sm:$0xf]
      %s4391 = scalar_lea.vmem [#allocation2], 129
      %v4392 = vld [vmem:[%s4391] ss:$2 sm:$0xf]
      %s4393 = scalar_lea.vmem [#allocation2], 145
      %v4394 = vld [vmem:[%s4393] ss:$2 sm:$0xf]
      %s4395 = scalar_lea.vmem [#allocation2], 161
      %v4396 = vld [vmem:[%s4395] ss:$2 sm:$0xf]
      %s4397 = scalar_lea.vmem [#allocation2], 177
      %v4398 = vld [vmem:[%s4397] ss:$2 sm:$0xf]
      %s4399 = scalar_lea.vmem [#allocation2], 193
      %v4400 = vld [vmem:[%s4399] ss:$2 sm:$0xf]
      %s4401 = scalar_lea.vmem [#allocation2], 209
      %v4402 = vld [vmem:[%s4401] ss:$2 sm:$0xf]
      %s4403 = scalar_lea.vmem [#allocation2], 225
      %v4404 = vld [vmem:[%s4403] ss:$2 sm:$0xf]
      %s4405 = scalar_lea.vmem [#allocation2], 241
      %v4406 = vld [vmem:[%s4405] ss:$2 sm:$0xf]
      %s4407 = scalar_lea.vmem [#allocation2], 257
      %v4408 = vld [vmem:[%s4407] ss:$2 sm:$0xf]
      %s4409 = scalar_lea.vmem [#allocation2], 273
      %v4410 = vld [vmem:[%s4409] ss:$2 sm:$0xf]
      %s4411 = scalar_lea.vmem [#allocation2], 289
      %v4412 = vld [vmem:[%s4411] ss:$2 sm:$0xf]
      %s4413 = scalar_lea.vmem [#allocation2], 305
      %v4414 = vld [vmem:[%s4413] ss:$2 sm:$0xf]
      %s4415 = scalar_lea.vmem [#allocation2], 321
      %v4416 = vld [vmem:[%s4415] ss:$2 sm:$0xf]
      %s4417 = scalar_lea.vmem [#allocation2], 337
      %v4418 = vld [vmem:[%s4417] ss:$2 sm:$0xf]
      %s4419 = scalar_lea.vmem [#allocation2], 353
      %v4420 = vld [vmem:[%s4419] ss:$2 sm:$0xf]
      %s4421 = scalar_lea.vmem [#allocation2], 369
      %v4422 = vld [vmem:[%s4421] ss:$2 sm:$0xf]
      %s4423 = scalar_lea.vmem [#allocation2], 385
      %v4424 = vld [vmem:[%s4423] ss:$2 sm:$0xf]
      %s4425 = scalar_lea.vmem [#allocation2], 401
      %v4426 = vld [vmem:[%s4425] ss:$2 sm:$0xf]
      %s4427 = scalar_lea.vmem [#allocation2], 417
      %v4428 = vld [vmem:[%s4427] ss:$2 sm:$0xf]
      %s4429 = scalar_lea.vmem [#allocation2], 433
      %v4430 = vld [vmem:[%s4429] ss:$2 sm:$0xf]
      %s4431 = scalar_lea.vmem [#allocation2], 449
      %v4432 = vld [vmem:[%s4431] ss:$2 sm:$0xf]
      %s4433 = scalar_lea.vmem [#allocation2], 465
      %v4434 = vld [vmem:[%s4433] ss:$2 sm:$0xf]
      %s4435 = scalar_lea.vmem [#allocation2], 481
      %v4436 = vld [vmem:[%s4435] ss:$2 sm:$0xf]
      %s4437 = scalar_lea.vmem [#allocation2], 497
      %v4438 = vld [vmem:[%s4437] ss:$2 sm:$0xf]
      %s4439 = scalar_lea.vmem [#allocation2], 513
      %v4440 = vld [vmem:[%s4439] ss:$2 sm:$0xf]
      %s4441 = scalar_lea.vmem [#allocation2], 529
      %v4442 = vld [vmem:[%s4441] ss:$2 sm:$0xf]
      %s4443 = scalar_lea.vmem [#allocation2], 545
      %v4444 = vld [vmem:[%s4443] ss:$2 sm:$0xf]
      %s4445 = scalar_lea.vmem [#allocation2], 561
      %v4446 = vld [vmem:[%s4445] ss:$2 sm:$0xf]
      %s4447 = scalar_lea.vmem [#allocation2], 577
      %v4448 = vld [vmem:[%s4447] ss:$2 sm:$0xf]
      %s4449 = scalar_lea.vmem [#allocation2], 593
      %v4450 = vld [vmem:[%s4449] ss:$2 sm:$0xf]
      %s4451 = scalar_lea.vmem [#allocation2], 609
      %v4452 = vld [vmem:[%s4451] ss:$2 sm:$0xf]
      %s4453 = scalar_lea.vmem [#allocation2], 625
      %v4454 = vld [vmem:[%s4453] ss:$2 sm:$0xf]
      %s4455 = scalar_lea.vmem [#allocation2], 641
      %v4456 = vld [vmem:[%s4455] ss:$2 sm:$0xf]
      %s4457 = scalar_lea.vmem [#allocation2], 657
      %v4458 = vld [vmem:[%s4457] ss:$2 sm:$0xf]
      %s4459 = scalar_lea.vmem [#allocation2], 673
      %v4460 = vld [vmem:[%s4459] ss:$2 sm:$0xf]
      %s4461 = scalar_lea.vmem [#allocation2], 689
      %v4462 = vld [vmem:[%s4461] ss:$2 sm:$0xf]
      %s4463 = scalar_lea.vmem [#allocation2], 705
      %v4464 = vld [vmem:[%s4463] ss:$2 sm:$0xf]
      %s4465 = scalar_lea.vmem [#allocation2], 721
      %v4466 = vld [vmem:[%s4465] ss:$2 sm:$0xf]
      %s4467 = scalar_lea.vmem [#allocation2], 737
      %v4468 = vld [vmem:[%s4467] ss:$2 sm:$0xf]
      %s4469 = scalar_lea.vmem [#allocation2], 753
      %v4470 = vld [vmem:[%s4469] ss:$2 sm:$0xf]
      %s4471 = scalar_lea.vmem [#allocation2], 769
      %v4472 = vld [vmem:[%s4471] ss:$2 sm:$0xf]
      %s4473 = scalar_lea.vmem [#allocation2], 785
      %v4474 = vld [vmem:[%s4473] ss:$2 sm:$0xf]
      %s4475 = scalar_lea.vmem [#allocation2], 801
      %v4476 = vld [vmem:[%s4475] ss:$2 sm:$0xf]
      %s4477 = scalar_lea.vmem [#allocation2], 817
      %v4478 = vld [vmem:[%s4477] ss:$2 sm:$0xf]
      %s4479 = scalar_lea.vmem [#allocation2], 833
      %v4480 = vld [vmem:[%s4479] ss:$2 sm:$0xf]
      %s4481 = scalar_lea.vmem [#allocation2], 849
      %v4482 = vld [vmem:[%s4481] ss:$2 sm:$0xf]
      %s4483 = scalar_lea.vmem [#allocation2], 865
      %v4484 = vld [vmem:[%s4483] ss:$2 sm:$0xf]
      %s4485 = scalar_lea.vmem [#allocation2], 881
      %v4486 = vld [vmem:[%s4485] ss:$2 sm:$0xf]
      %s4487 = scalar_lea.vmem [#allocation2], 897
      %v4488 = vld [vmem:[%s4487] ss:$2 sm:$0xf]
      %s4489 = scalar_lea.vmem [#allocation2], 913
      %v4490 = vld [vmem:[%s4489] ss:$2 sm:$0xf]
      %s4491 = scalar_lea.vmem [#allocation2], 929
      %v4492 = vld [vmem:[%s4491] ss:$2 sm:$0xf]
      %s4493 = scalar_lea.vmem [#allocation2], 945
      %v4494 = vld [vmem:[%s4493] ss:$2 sm:$0xf]
      %s4495 = scalar_lea.vmem [#allocation2], 961
      %v4496 = vld [vmem:[%s4495] ss:$2 sm:$0xf]
      %s4497 = scalar_lea.vmem [#allocation2], 977
      %v4498 = vld [vmem:[%s4497] ss:$2 sm:$0xf]
      %s4499 = scalar_lea.vmem [#allocation2], 993
      %v4500 = vld [vmem:[%s4499] ss:$2 sm:$0xf]
      %s4501 = scalar_lea.vmem [#allocation2], 1009
      %v4502 = vld [vmem:[%s4501] ss:$2 sm:$0xf]
      %s4503 = scalar_lea.vmem [#allocation2], 2
      %v4504 = vld [vmem:[%s4503] ss:$2 sm:$0xf]
      %s4505 = scalar_lea.vmem [#allocation2], 18
      %v4506 = vld [vmem:[%s4505] ss:$2 sm:$0xf]
      %s4507 = scalar_lea.vmem [#allocation2], 34
      %v4508 = vld [vmem:[%s4507] ss:$2 sm:$0xf]
      %s4509 = scalar_lea.vmem [#allocation2], 50
      %v4510 = vld [vmem:[%s4509] ss:$2 sm:$0xf]
      %s4511 = scalar_lea.vmem [#allocation2], 66
      %v4512 = vld [vmem:[%s4511] ss:$2 sm:$0xf]
      %s4513 = scalar_lea.vmem [#allocation2], 82
      %v4514 = vld [vmem:[%s4513] ss:$2 sm:$0xf]
      %s4515 = scalar_lea.vmem [#allocation2], 98
      %v4516 = vld [vmem:[%s4515] ss:$2 sm:$0xf]
      %s4517 = scalar_lea.vmem [#allocation2], 114
      %v4518 = vld [vmem:[%s4517] ss:$2 sm:$0xf]
      %s4519 = scalar_lea.vmem [#allocation2], 130
      %v4520 = vld [vmem:[%s4519] ss:$2 sm:$0xf]
      %s4521 = scalar_lea.vmem [#allocation2], 146
      %v4522 = vld [vmem:[%s4521] ss:$2 sm:$0xf]
      %s4523 = scalar_lea.vmem [#allocation2], 162
      %v4524 = vld [vmem:[%s4523] ss:$2 sm:$0xf]
      %s4525 = scalar_lea.vmem [#allocation2], 178
      %v4526 = vld [vmem:[%s4525] ss:$2 sm:$0xf]
      %s4527 = scalar_lea.vmem [#allocation2], 194
      %v4528 = vld [vmem:[%s4527] ss:$2 sm:$0xf]
      %s4529 = scalar_lea.vmem [#allocation2], 210
      %v4530 = vld [vmem:[%s4529] ss:$2 sm:$0xf]
      %s4531 = scalar_lea.vmem [#allocation2], 226
      %v4532 = vld [vmem:[%s4531] ss:$2 sm:$0xf]
      %s4533 = scalar_lea.vmem [#allocation2], 242
      %v4534 = vld [vmem:[%s4533] ss:$2 sm:$0xf]
      %s4535 = scalar_lea.vmem [#allocation2], 258
      %v4536 = vld [vmem:[%s4535] ss:$2 sm:$0xf]
      %s4537 = scalar_lea.vmem [#allocation2], 274
      %v4538 = vld [vmem:[%s4537] ss:$2 sm:$0xf]
      %s4539 = scalar_lea.vmem [#allocation2], 290
      %v4540 = vld [vmem:[%s4539] ss:$2 sm:$0xf]
      %s4541 = scalar_lea.vmem [#allocation2], 306
      %v4542 = vld [vmem:[%s4541] ss:$2 sm:$0xf]
      %s4543 = scalar_lea.vmem [#allocation2], 322
      %v4544 = vld [vmem:[%s4543] ss:$2 sm:$0xf]
      %s4545 = scalar_lea.vmem [#allocation2], 338
      %v4546 = vld [vmem:[%s4545] ss:$2 sm:$0xf]
      %s4547 = scalar_lea.vmem [#allocation2], 354
      %v4548 = vld [vmem:[%s4547] ss:$2 sm:$0xf]
      %s4549 = scalar_lea.vmem [#allocation2], 370
      %v4550 = vld [vmem:[%s4549] ss:$2 sm:$0xf]
      %s4551 = scalar_lea.vmem [#allocation2], 386
      %v4552 = vld [vmem:[%s4551] ss:$2 sm:$0xf]
      %s4553 = scalar_lea.vmem [#allocation2], 402
      %v4554 = vld [vmem:[%s4553] ss:$2 sm:$0xf]
      %s4555 = scalar_lea.vmem [#allocation2], 418
      %v4556 = vld [vmem:[%s4555] ss:$2 sm:$0xf]
      %s4557 = scalar_lea.vmem [#allocation2], 434
      %v4558 = vld [vmem:[%s4557] ss:$2 sm:$0xf]
      %s4559 = scalar_lea.vmem [#allocation2], 450
      %v4560 = vld [vmem:[%s4559] ss:$2 sm:$0xf]
      %s4561 = scalar_lea.vmem [#allocation2], 466
      %v4562 = vld [vmem:[%s4561] ss:$2 sm:$0xf]
      %s4563 = scalar_lea.vmem [#allocation2], 482
      %v4564 = vld [vmem:[%s4563] ss:$2 sm:$0xf]
      %s4565 = scalar_lea.vmem [#allocation2], 498
      %v4566 = vld [vmem:[%s4565] ss:$2 sm:$0xf]
      %s4567 = scalar_lea.vmem [#allocation2], 514
      %v4568 = vld [vmem:[%s4567] ss:$2 sm:$0xf]
      %s4569 = scalar_lea.vmem [#allocation2], 530
      %v4570 = vld [vmem:[%s4569] ss:$2 sm:$0xf]
      %s4571 = scalar_lea.vmem [#allocation2], 546
      %v4572 = vld [vmem:[%s4571] ss:$2 sm:$0xf]
      %s4573 = scalar_lea.vmem [#allocation2], 562
      %v4574 = vld [vmem:[%s4573] ss:$2 sm:$0xf]
      %s4575 = scalar_lea.vmem [#allocation2], 578
      %v4576 = vld [vmem:[%s4575] ss:$2 sm:$0xf]
      %s4577 = scalar_lea.vmem [#allocation2], 594
      %v4578 = vld [vmem:[%s4577] ss:$2 sm:$0xf]
      %s4579 = scalar_lea.vmem [#allocation2], 610
      %v4580 = vld [vmem:[%s4579] ss:$2 sm:$0xf]
      %s4581 = scalar_lea.vmem [#allocation2], 626
      %v4582 = vld [vmem:[%s4581] ss:$2 sm:$0xf]
      %s4583 = scalar_lea.vmem [#allocation2], 642
      %v4584 = vld [vmem:[%s4583] ss:$2 sm:$0xf]
      %s4585 = scalar_lea.vmem [#allocation2], 658
      %v4586 = vld [vmem:[%s4585] ss:$2 sm:$0xf]
      %s4587 = scalar_lea.vmem [#allocation2], 674
      %v4588 = vld [vmem:[%s4587] ss:$2 sm:$0xf]
      %s4589 = scalar_lea.vmem [#allocation2], 690
      %v4590 = vld [vmem:[%s4589] ss:$2 sm:$0xf]
      %s4591 = scalar_lea.vmem [#allocation2], 706
      %v4592 = vld [vmem:[%s4591] ss:$2 sm:$0xf]
      %s4593 = scalar_lea.vmem [#allocation2], 722
      %v4594 = vld [vmem:[%s4593] ss:$2 sm:$0xf]
      %s4595 = scalar_lea.vmem [#allocation2], 738
      %v4596 = vld [vmem:[%s4595] ss:$2 sm:$0xf]
      %s4597 = scalar_lea.vmem [#allocation2], 754
      %v4598 = vld [vmem:[%s4597] ss:$2 sm:$0xf]
      %s4599 = scalar_lea.vmem [#allocation2], 770
      %v4600 = vld [vmem:[%s4599] ss:$2 sm:$0xf]
      %s4601 = scalar_lea.vmem [#allocation2], 786
      %v4602 = vld [vmem:[%s4601] ss:$2 sm:$0xf]
      %s4603 = scalar_lea.vmem [#allocation2], 802
      %v4604 = vld [vmem:[%s4603] ss:$2 sm:$0xf]
      %s4605 = scalar_lea.vmem [#allocation2], 818
      %v4606 = vld [vmem:[%s4605] ss:$2 sm:$0xf]
      %s4607 = scalar_lea.vmem [#allocation2], 834
      %v4608 = vld [vmem:[%s4607] ss:$2 sm:$0xf]
      %s4609 = scalar_lea.vmem [#allocation2], 850
      %v4610 = vld [vmem:[%s4609] ss:$2 sm:$0xf]
      %s4611 = scalar_lea.vmem [#allocation2], 866
      %v4612 = vld [vmem:[%s4611] ss:$2 sm:$0xf]
      %s4613 = scalar_lea.vmem [#allocation2], 882
      %v4614 = vld [vmem:[%s4613] ss:$2 sm:$0xf]
      %s4615 = scalar_lea.vmem [#allocation2], 898
      %v4616 = vld [vmem:[%s4615] ss:$2 sm:$0xf]
      %s4617 = scalar_lea.vmem [#allocation2], 914
      %v4618 = vld [vmem:[%s4617] ss:$2 sm:$0xf]
      %s4619 = scalar_lea.vmem [#allocation2], 930
      %v4620 = vld [vmem:[%s4619] ss:$2 sm:$0xf]
      %s4621 = scalar_lea.vmem [#allocation2], 946
      %v4622 = vld [vmem:[%s4621] ss:$2 sm:$0xf]
      %s4623 = scalar_lea.vmem [#allocation2], 962
      %v4624 = vld [vmem:[%s4623] ss:$2 sm:$0xf]
      %s4625 = scalar_lea.vmem [#allocation2], 978
      %v4626 = vld [vmem:[%s4625] ss:$2 sm:$0xf]
      %s4627 = scalar_lea.vmem [#allocation2], 994
      %v4628 = vld [vmem:[%s4627] ss:$2 sm:$0xf]
      %s4629 = scalar_lea.vmem [#allocation2], 1010
      %v4630 = vld [vmem:[%s4629] ss:$2 sm:$0xf]
      %4695 = vrot.lane.b32.xlu0 %v4376, 8
      %v4696 = vpop.permute.xlu0 %4695
      %4697 = vrot.lane.b32.xlu0 %v4378, 8
      %v4698 = vpop.permute.xlu0 %4697
      %4699 = vrot.lane.b32.xlu0 %v4380, 8
      %v4700 = vpop.permute.xlu0 %4699
      %4701 = vrot.lane.b32.xlu0 %v4382, 8
      %v4702 = vpop.permute.xlu0 %4701
      %4703 = vrot.lane.b32.xlu0 %v4384, 8
      %v4704 = vpop.permute.xlu0 %4703
      %4705 = vrot.lane.b32.xlu0 %v4386, 8
      %v4706 = vpop.permute.xlu0 %4705
      %4707 = vrot.lane.b32.xlu0 %v4388, 8
      %v4708 = vpop.permute.xlu0 %4707
      %4709 = vrot.lane.b32.xlu0 %v4390, 8
      %v4710 = vpop.permute.xlu0 %4709
      %4711 = vrot.lane.b32.xlu0 %v4392, 8
      %v4712 = vpop.permute.xlu0 %4711
      %4713 = vrot.lane.b32.xlu0 %v4394, 8
      %v4714 = vpop.permute.xlu0 %4713
      %4715 = vrot.lane.b32.xlu0 %v4396, 8
      %v4716 = vpop.permute.xlu0 %4715
      %4717 = vrot.lane.b32.xlu0 %v4398, 8
      %v4718 = vpop.permute.xlu0 %4717
      %4719 = vrot.lane.b32.xlu0 %v4400, 8
      %v4720 = vpop.permute.xlu0 %4719
      %4721 = vrot.lane.b32.xlu0 %v4402, 8
      %v4722 = vpop.permute.xlu0 %4721
      %4723 = vrot.lane.b32.xlu0 %v4404, 8
      %v4724 = vpop.permute.xlu0 %4723
      %4725 = vrot.lane.b32.xlu0 %v4406, 8
      %v4726 = vpop.permute.xlu0 %4725
      %4727 = vrot.lane.b32.xlu0 %v4408, 8
      %v4728 = vpop.permute.xlu0 %4727
      %4729 = vrot.lane.b32.xlu0 %v4410, 8
      %v4730 = vpop.permute.xlu0 %4729
      %4731 = vrot.lane.b32.xlu0 %v4412, 8
      %v4732 = vpop.permute.xlu0 %4731
      %4733 = vrot.lane.b32.xlu0 %v4414, 8
      %v4734 = vpop.permute.xlu0 %4733
      %4735 = vrot.lane.b32.xlu0 %v4416, 8
      %v4736 = vpop.permute.xlu0 %4735
      %4737 = vrot.lane.b32.xlu0 %v4418, 8
      %v4738 = vpop.permute.xlu0 %4737
      %4739 = vrot.lane.b32.xlu0 %v4420, 8
      %v4740 = vpop.permute.xlu0 %4739
      %4741 = vrot.lane.b32.xlu0 %v4422, 8
      %v4742 = vpop.permute.xlu0 %4741
      %4743 = vrot.lane.b32.xlu0 %v4424, 8
      %v4744 = vpop.permute.xlu0 %4743
      %4745 = vrot.lane.b32.xlu0 %v4426, 8
      %v4746 = vpop.permute.xlu0 %4745
      %4747 = vrot.lane.b32.xlu0 %v4428, 8
      %v4748 = vpop.permute.xlu0 %4747
      %4749 = vrot.lane.b32.xlu0 %v4430, 8
      %v4750 = vpop.permute.xlu0 %4749
      %4751 = vrot.lane.b32.xlu0 %v4432, 8
      %v4752 = vpop.permute.xlu0 %4751
      %4753 = vrot.lane.b32.xlu0 %v4434, 8
      %v4754 = vpop.permute.xlu0 %4753
      %4755 = vrot.lane.b32.xlu0 %v4436, 8
      %v4756 = vpop.permute.xlu0 %4755
      %4757 = vrot.lane.b32.xlu0 %v4438, 8
      %v4758 = vpop.permute.xlu0 %4757
      %4759 = vrot.lane.b32.xlu0 %v4440, 8
      %v4760 = vpop.permute.xlu0 %4759
      %4761 = vrot.lane.b32.xlu0 %v4442, 8
      %v4762 = vpop.permute.xlu0 %4761
      %4763 = vrot.lane.b32.xlu0 %v4444, 8
      %v4764 = vpop.permute.xlu0 %4763
      %4765 = vrot.lane.b32.xlu0 %v4446, 8
      %v4766 = vpop.permute.xlu0 %4765
      %4767 = vrot.lane.b32.xlu0 %v4448, 8
      %v4768 = vpop.permute.xlu0 %4767
      %4769 = vrot.lane.b32.xlu0 %v4450, 8
      %v4770 = vpop.permute.xlu0 %4769
      %4771 = vrot.lane.b32.xlu0 %v4452, 8
      %v4772 = vpop.permute.xlu0 %4771
      %4773 = vrot.lane.b32.xlu0 %v4454, 8
      %v4774 = vpop.permute.xlu0 %4773
      %4775 = vrot.lane.b32.xlu0 %v4456, 8
      %v4776 = vpop.permute.xlu0 %4775
      %4777 = vrot.lane.b32.xlu0 %v4458, 8
      %v4778 = vpop.permute.xlu0 %4777
      %4779 = vrot.lane.b32.xlu0 %v4460, 8
      %v4780 = vpop.permute.xlu0 %4779
      %4781 = vrot.lane.b32.xlu0 %v4462, 8
      %v4782 = vpop.permute.xlu0 %4781
      %4783 = vrot.lane.b32.xlu0 %v4464, 8
      %v4784 = vpop.permute.xlu0 %4783
      %4785 = vrot.lane.b32.xlu0 %v4466, 8
      %v4786 = vpop.permute.xlu0 %4785
      %4787 = vrot.lane.b32.xlu0 %v4468, 8
      %v4788 = vpop.permute.xlu0 %4787
      %4789 = vrot.lane.b32.xlu0 %v4470, 8
      %v4790 = vpop.permute.xlu0 %4789
      %4791 = vrot.lane.b32.xlu0 %v4472, 8
      %v4792 = vpop.permute.xlu0 %4791
      %4793 = vrot.lane.b32.xlu0 %v4474, 8
      %v4794 = vpop.permute.xlu0 %4793
      %4795 = vrot.lane.b32.xlu0 %v4476, 8
      %v4796 = vpop.permute.xlu0 %4795
      %4797 = vrot.lane.b32.xlu0 %v4478, 8
      %v4798 = vpop.permute.xlu0 %4797
      %4799 = vrot.lane.b32.xlu0 %v4480, 8
      %v4800 = vpop.permute.xlu0 %4799
      %4801 = vrot.lane.b32.xlu0 %v4482, 8
      %v4802 = vpop.permute.xlu0 %4801
      %4803 = vrot.lane.b32.xlu0 %v4484, 8
      %v4804 = vpop.permute.xlu0 %4803
      %4805 = vrot.lane.b32.xlu0 %v4486, 8
      %v4806 = vpop.permute.xlu0 %4805
      %4807 = vrot.lane.b32.xlu0 %v4488, 8
      %v4808 = vpop.permute.xlu0 %4807
      %4809 = vrot.lane.b32.xlu0 %v4490, 8
      %v4810 = vpop.permute.xlu0 %4809
      %4811 = vrot.lane.b32.xlu0 %v4492, 8
      %v4812 = vpop.permute.xlu0 %4811
      %4813 = vrot.lane.b32.xlu0 %v4494, 8
      %v4814 = vpop.permute.xlu0 %4813
      %4815 = vrot.lane.b32.xlu0 %v4496, 8
      %v4816 = vpop.permute.xlu0 %4815
      %4817 = vrot.lane.b32.xlu0 %v4498, 8
      %v4818 = vpop.permute.xlu0 %4817
      %4819 = vrot.lane.b32.xlu0 %v4500, 8
      %v4820 = vpop.permute.xlu0 %4819
      %4821 = vrot.lane.b32.xlu0 %v4502, 8
      %v4822 = vpop.permute.xlu0 %4821
      %4951 = vrot.lane.b32.xlu0 %v4504, 16
      %v4952 = vpop.permute.xlu0 %4951
      %4953 = vrot.lane.b32.xlu0 %v4506, 16
      %v4954 = vpop.permute.xlu0 %4953
      %4955 = vrot.lane.b32.xlu0 %v4508, 16
      %v4956 = vpop.permute.xlu0 %4955
      %4957 = vrot.lane.b32.xlu0 %v4510, 16
      %v4958 = vpop.permute.xlu0 %4957
      %4959 = vrot.lane.b32.xlu0 %v4512, 16
      %v4960 = vpop.permute.xlu0 %4959
      %4961 = vrot.lane.b32.xlu0 %v4514, 16
      %v4962 = vpop.permute.xlu0 %4961
      %4963 = vrot.lane.b32.xlu0 %v4516, 16
      %v4964 = vpop.permute.xlu0 %4963
      %4965 = vrot.lane.b32.xlu0 %v4518, 16
      %v4966 = vpop.permute.xlu0 %4965
      %4967 = vrot.lane.b32.xlu0 %v4520, 16
      %v4968 = vpop.permute.xlu0 %4967
      %4969 = vrot.lane.b32.xlu0 %v4522, 16
      %v4970 = vpop.permute.xlu0 %4969
      %4971 = vrot.lane.b32.xlu0 %v4524, 16
      %v4972 = vpop.permute.xlu0 %4971
      %4973 = vrot.lane.b32.xlu0 %v4526, 16
      %v4974 = vpop.permute.xlu0 %4973
      %4975 = vrot.lane.b32.xlu0 %v4528, 16
      %v4976 = vpop.permute.xlu0 %4975
      %4977 = vrot.lane.b32.xlu0 %v4530, 16
      %v4978 = vpop.permute.xlu0 %4977
      %4979 = vrot.lane.b32.xlu0 %v4532, 16
      %v4980 = vpop.permute.xlu0 %4979
      %4981 = vrot.lane.b32.xlu0 %v4534, 16
      %v4982 = vpop.permute.xlu0 %4981
      %4983 = vrot.lane.b32.xlu0 %v4536, 16
      %v4984 = vpop.permute.xlu0 %4983
      %4985 = vrot.lane.b32.xlu0 %v4538, 16
      %v4986 = vpop.permute.xlu0 %4985
      %4987 = vrot.lane.b32.xlu0 %v4540, 16
      %v4988 = vpop.permute.xlu0 %4987
      %4989 = vrot.lane.b32.xlu0 %v4542, 16
      %v4990 = vpop.permute.xlu0 %4989
      %4991 = vrot.lane.b32.xlu0 %v4544, 16
      %v4992 = vpop.permute.xlu0 %4991
      %4993 = vrot.lane.b32.xlu0 %v4546, 16
      %v4994 = vpop.permute.xlu0 %4993
      %4995 = vrot.lane.b32.xlu0 %v4548, 16
      %v4996 = vpop.permute.xlu0 %4995
      %4997 = vrot.lane.b32.xlu0 %v4550, 16
      %v4998 = vpop.permute.xlu0 %4997
      %4999 = vrot.lane.b32.xlu0 %v4552, 16
      %v5000 = vpop.permute.xlu0 %4999
      %5001 = vrot.lane.b32.xlu0 %v4554, 16
      %v5002 = vpop.permute.xlu0 %5001
      %5003 = vrot.lane.b32.xlu0 %v4556, 16
      %v5004 = vpop.permute.xlu0 %5003
      %5005 = vrot.lane.b32.xlu0 %v4558, 16
      %v5006 = vpop.permute.xlu0 %5005
      %5007 = vrot.lane.b32.xlu0 %v4560, 16
      %v5008 = vpop.permute.xlu0 %5007
      %5009 = vrot.lane.b32.xlu0 %v4562, 16
      %v5010 = vpop.permute.xlu0 %5009
      %5011 = vrot.lane.b32.xlu0 %v4564, 16
      %v5012 = vpop.permute.xlu0 %5011
      %5013 = vrot.lane.b32.xlu0 %v4566, 16
      %v5014 = vpop.permute.xlu0 %5013
      %5015 = vrot.lane.b32.xlu0 %v4568, 16
      %v5016 = vpop.permute.xlu0 %5015
      %5017 = vrot.lane.b32.xlu0 %v4570, 16
      %v5018 = vpop.permute.xlu0 %5017
      %5019 = vrot.lane.b32.xlu0 %v4572, 16
      %v5020 = vpop.permute.xlu0 %5019
      %5021 = vrot.lane.b32.xlu0 %v4574, 16
      %v5022 = vpop.permute.xlu0 %5021
      %5023 = vrot.lane.b32.xlu0 %v4576, 16
      %v5024 = vpop.permute.xlu0 %5023
      %5025 = vrot.lane.b32.xlu0 %v4578, 16
      %v5026 = vpop.permute.xlu0 %5025
      %5027 = vrot.lane.b32.xlu0 %v4580, 16
      %v5028 = vpop.permute.xlu0 %5027
      %5029 = vrot.lane.b32.xlu0 %v4582, 16
      %v5030 = vpop.permute.xlu0 %5029
      %5031 = vrot.lane.b32.xlu0 %v4584, 16
      %v5032 = vpop.permute.xlu0 %5031
      %5033 = vrot.lane.b32.xlu0 %v4586, 16
      %v5034 = vpop.permute.xlu0 %5033
      %5035 = vrot.lane.b32.xlu0 %v4588, 16
      %v5036 = vpop.permute.xlu0 %5035
      %5037 = vrot.lane.b32.xlu0 %v4590, 16
      %v5038 = vpop.permute.xlu0 %5037
      %5039 = vrot.lane.b32.xlu0 %v4592, 16
      %v5040 = vpop.permute.xlu0 %5039
      %5041 = vrot.lane.b32.xlu0 %v4594, 16
      %v5042 = vpop.permute.xlu0 %5041
      %5043 = vrot.lane.b32.xlu0 %v4596, 16
      %v5044 = vpop.permute.xlu0 %5043
      %5045 = vrot.lane.b32.xlu0 %v4598, 16
      %v5046 = vpop.permute.xlu0 %5045
      %5047 = vrot.lane.b32.xlu0 %v4600, 16
      %v5048 = vpop.permute.xlu0 %5047
      %5049 = vrot.lane.b32.xlu0 %v4602, 16
      %v5050 = vpop.permute.xlu0 %5049
      %5051 = vrot.lane.b32.xlu0 %v4604, 16
      %v5052 = vpop.permute.xlu0 %5051
      %5053 = vrot.lane.b32.xlu0 %v4606, 16
      %v5054 = vpop.permute.xlu0 %5053
      %5055 = vrot.lane.b32.xlu0 %v4608, 16
      %v5056 = vpop.permute.xlu0 %5055
      %5057 = vrot.lane.b32.xlu0 %v4610, 16
      %v5058 = vpop.permute.xlu0 %5057
      %5059 = vrot.lane.b32.xlu0 %v4612, 16
      %v5060 = vpop.permute.xlu0 %5059
      %5061 = vrot.lane.b32.xlu0 %v4614, 16
      %v5062 = vpop.permute.xlu0 %5061
      %5063 = vrot.lane.b32.xlu0 %v4616, 16
      %v5064 = vpop.permute.xlu0 %5063
      %5065 = vrot.lane.b32.xlu0 %v4618, 16
      %v5066 = vpop.permute.xlu0 %5065
      %5067 = vrot.lane.b32.xlu0 %v4620, 16
      %v5068 = vpop.permute.xlu0 %5067
      %5069 = vrot.lane.b32.xlu0 %v4622, 16
      %v5070 = vpop.permute.xlu0 %5069
      %5071 = vrot.lane.b32.xlu0 %v4624, 16
      %v5072 = vpop.permute.xlu0 %5071
      %5073 = vrot.lane.b32.xlu0 %v4626, 16
      %v5074 = vpop.permute.xlu0 %5073
      %5075 = vrot.lane.b32.xlu0 %v4628, 16
      %v5076 = vpop.permute.xlu0 %5075
      %5077 = vrot.lane.b32.xlu0 %v4630, 16
      %v5078 = vpop.permute.xlu0 %5077
      %v5143 = vsel %vm1354, %v4248, %v4696
      %v5144 = vsel %vm1354, %v4250, %v4698
      %v5145 = vsel %vm1354, %v4252, %v4700
      %v5146 = vsel %vm1354, %v4254, %v4702
      %v5147 = vsel %vm1354, %v4256, %v4704
      %v5148 = vsel %vm1354, %v4258, %v4706
      %v5149 = vsel %vm1354, %v4260, %v4708
      %v5150 = vsel %vm1354, %v4262, %v4710
      %v5151 = vsel %vm1354, %v4264, %v4712
      %v5152 = vsel %vm1354, %v4266, %v4714
      %v5153 = vsel %vm1354, %v4268, %v4716
      %v5154 = vsel %vm1354, %v4270, %v4718
      %v5155 = vsel %vm1354, %v4272, %v4720
      %v5156 = vsel %vm1354, %v4274, %v4722
      %v5157 = vsel %vm1354, %v4276, %v4724
      %v5158 = vsel %vm1354, %v4278, %v4726
      %v5159 = vsel %vm1354, %v4280, %v4728
      %v5160 = vsel %vm1354, %v4282, %v4730
      %v5161 = vsel %vm1354, %v4284, %v4732
      %v5162 = vsel %vm1354, %v4286, %v4734
      %v5163 = vsel %vm1354, %v4288, %v4736
      %v5164 = vsel %vm1354, %v4290, %v4738
      %v5165 = vsel %vm1354, %v4292, %v4740
      %v5166 = vsel %vm1354, %v4294, %v4742
      %v5167 = vsel %vm1354, %v4296, %v4744
      %v5168 = vsel %vm1354, %v4298, %v4746
      %v5169 = vsel %vm1354, %v4300, %v4748
      %v5170 = vsel %vm1354, %v4302, %v4750
      %v5171 = vsel %vm1354, %v4304, %v4752
      %v5172 = vsel %vm1354, %v4306, %v4754
      %v5173 = vsel %vm1354, %v4308, %v4756
      %v5174 = vsel %vm1354, %v4310, %v4758
      %v5175 = vsel %vm1354, %v4312, %v4760
      %v5176 = vsel %vm1354, %v4314, %v4762
      %v5177 = vsel %vm1354, %v4316, %v4764
      %v5178 = vsel %vm1354, %v4318, %v4766
      %v5179 = vsel %vm1354, %v4320, %v4768
      %v5180 = vsel %vm1354, %v4322, %v4770
      %v5181 = vsel %vm1354, %v4324, %v4772
      %v5182 = vsel %vm1354, %v4326, %v4774
      %v5183 = vsel %vm1354, %v4328, %v4776
      %v5184 = vsel %vm1354, %v4330, %v4778
      %v5185 = vsel %vm1354, %v4332, %v4780
      %v5186 = vsel %vm1354, %v4334, %v4782
      %v5187 = vsel %vm1354, %v4336, %v4784
      %v5188 = vsel %vm1354, %v4338, %v4786
      %v5189 = vsel %vm1354, %v4340, %v4788
      %v5190 = vsel %vm1354, %v4342, %v4790
      %v5191 = vsel %vm1354, %v4344, %v4792
      %v5192 = vsel %vm1354, %v4346, %v4794
      %v5193 = vsel %vm1354, %v4348, %v4796
      %v5194 = vsel %vm1354, %v4350, %v4798
      %v5195 = vsel %vm1354, %v4352, %v4800
      %v5196 = vsel %vm1354, %v4354, %v4802
      %v5197 = vsel %vm1354, %v4356, %v4804
      %v5198 = vsel %vm1354, %v4358, %v4806
      %v5199 = vsel %vm1354, %v4360, %v4808
      %v5200 = vsel %vm1354, %v4362, %v4810
      %v5201 = vsel %vm1354, %v4364, %v4812
      %v5202 = vsel %vm1354, %v4366, %v4814
      %v5203 = vsel %vm1354, %v4368, %v4816
      %v5204 = vsel %vm1354, %v4370, %v4818
      %v5205 = vsel %vm1354, %v4372, %v4820
      %v5206 = vsel %vm1354, %v4374, %v4822
      %vm5207 = vcmask 130048
      %v5208 = vsel %vm5207, %v5143, %v4952
      %v5209 = vsel %vm5207, %v5144, %v4954
      %v5210 = vsel %vm5207, %v5145, %v4956
      %v5211 = vsel %vm5207, %v5146, %v4958
      %v5212 = vsel %vm5207, %v5147, %v4960
      %v5213 = vsel %vm5207, %v5148, %v4962
      %v5214 = vsel %vm5207, %v5149, %v4964
      %v5215 = vsel %vm5207, %v5150, %v4966
      %v5216 = vsel %vm5207, %v5151, %v4968
      %v5217 = vsel %vm5207, %v5152, %v4970
      %v5218 = vsel %vm5207, %v5153, %v4972
      %v5219 = vsel %vm5207, %v5154, %v4974
      %v5220 = vsel %vm5207, %v5155, %v4976
      %v5221 = vsel %vm5207, %v5156, %v4978
      %v5222 = vsel %vm5207, %v5157, %v4980
      %v5223 = vsel %vm5207, %v5158, %v4982
      %v5224 = vsel %vm5207, %v5159, %v4984
      %v5225 = vsel %vm5207, %v5160, %v4986
      %v5226 = vsel %vm5207, %v5161, %v4988
      %v5227 = vsel %vm5207, %v5162, %v4990
      %v5228 = vsel %vm5207, %v5163, %v4992
      %v5229 = vsel %vm5207, %v5164, %v4994
      %v5230 = vsel %vm5207, %v5165, %v4996
      %v5231 = vsel %vm5207, %v5166, %v4998
      %v5232 = vsel %vm5207, %v5167, %v5000
      %v5233 = vsel %vm5207, %v5168, %v5002
      %v5234 = vsel %vm5207, %v5169, %v5004
      %v5235 = vsel %vm5207, %v5170, %v5006
      %v5236 = vsel %vm5207, %v5171, %v5008
      %v5237 = vsel %vm5207, %v5172, %v5010
      %v5238 = vsel %vm5207, %v5173, %v5012
      %v5239 = vsel %vm5207, %v5174, %v5014
      %v5240 = vsel %vm5207, %v5175, %v5016
      %v5241 = vsel %vm5207, %v5176, %v5018
      %v5242 = vsel %vm5207, %v5177, %v5020
      %v5243 = vsel %vm5207, %v5178, %v5022
      %v5244 = vsel %vm5207, %v5179, %v5024
      %v5245 = vsel %vm5207, %v5180, %v5026
      %v5246 = vsel %vm5207, %v5181, %v5028
      %v5247 = vsel %vm5207, %v5182, %v5030
      %v5248 = vsel %vm5207, %v5183, %v5032
      %v5249 = vsel %vm5207, %v5184, %v5034
      %v5250 = vsel %vm5207, %v5185, %v5036
      %v5251 = vsel %vm5207, %v5186, %v5038
      %v5252 = vsel %vm5207, %v5187, %v5040
      %v5253 = vsel %vm5207, %v5188, %v5042
      %v5254 = vsel %vm5207, %v5189, %v5044
      %v5255 = vsel %vm5207, %v5190, %v5046
      %v5256 = vsel %vm5207, %v5191, %v5048
      %v5257 = vsel %vm5207, %v5192, %v5050
      %v5258 = vsel %vm5207, %v5193, %v5052
      %v5259 = vsel %vm5207, %v5194, %v5054
      %v5260 = vsel %vm5207, %v5195, %v5056
      %v5261 = vsel %vm5207, %v5196, %v5058
      %v5262 = vsel %vm5207, %v5197, %v5060
      %v5263 = vsel %vm5207, %v5198, %v5062
      %v5264 = vsel %vm5207, %v5199, %v5064
      %v5265 = vsel %vm5207, %v5200, %v5066
      %v5266 = vsel %vm5207, %v5201, %v5068
      %v5267 = vsel %vm5207, %v5202, %v5070
      %v5268 = vsel %vm5207, %v5203, %v5072
      %v5269 = vsel %vm5207, %v5204, %v5074
      %v5270 = vsel %vm5207, %v5205, %v5076
      %v5271 = vsel %vm5207, %v5206, %v5078
      %5336 = vst [vmem:[#allocation1] ss:$2 sm:$0xff] %v5208
      %s5337 = scalar_lea.vmem [#allocation1], 1
      %5338 = vst [vmem:[%s5337] ss:$2 sm:$0xff] %v5209
      %s5339 = scalar_lea.vmem [#allocation1], 16
      %5340 = vst [vmem:[%s5339] ss:$2 sm:$0xff] %v5210
      %s5341 = scalar_lea.vmem [#allocation1], 17
      %5342 = vst [vmem:[%s5341] ss:$2 sm:$0xff] %v5211
      %s5343 = scalar_lea.vmem [#allocation1], 32
      %5344 = vst [vmem:[%s5343] ss:$2 sm:$0xff] %v5212
      %s5345 = scalar_lea.vmem [#allocation1], 33
      %5346 = vst [vmem:[%s5345] ss:$2 sm:$0xff] %v5213
      %s5347 = scalar_lea.vmem [#allocation1], 48
      %5348 = vst [vmem:[%s5347] ss:$2 sm:$0xff] %v5214
      %s5349 = scalar_lea.vmem [#allocation1], 49
      %5350 = vst [vmem:[%s5349] ss:$2 sm:$0xff] %v5215
      %v5351 = vld.sshfl [vmem:[#allocation1] sm:$0xff pattern:$0x75316420]
      %v5352 = vld.sshfl [vmem:[#allocation1 + $0x10] sm:$0xff pattern:$0x75316420]
      %v5353 = vld.sshfl [vmem:[#allocation1 + $0x20] sm:$0xff pattern:$0x75316420]
      %v5354 = vld.sshfl [vmem:[#allocation1 + $0x30] sm:$0xff pattern:$0x75316420]
      %5355 = vst [vmem:[#allocation1] ss:$2 sm:$0xff] %v5216
      %5356 = vst [vmem:[%s5337] ss:$2 sm:$0xff] %v5217
      %5357 = vst [vmem:[%s5339] ss:$2 sm:$0xff] %v5218
      %5358 = vst [vmem:[%s5341] ss:$2 sm:$0xff] %v5219
      %5359 = vst [vmem:[%s5343] ss:$2 sm:$0xff] %v5220
      %5360 = vst [vmem:[%s5345] ss:$2 sm:$0xff] %v5221
      %5361 = vst [vmem:[%s5347] ss:$2 sm:$0xff] %v5222
      %5362 = vst [vmem:[%s5349] ss:$2 sm:$0xff] %v5223
      %v5363 = vld.sshfl [vmem:[#allocation1] sm:$0xff pattern:$0x75316420]
      %v5364 = vld.sshfl [vmem:[#allocation1 + $0x10] sm:$0xff pattern:$0x75316420]
      %v5365 = vld.sshfl [vmem:[#allocation1 + $0x20] sm:$0xff pattern:$0x75316420]
      %v5366 = vld.sshfl [vmem:[#allocation1 + $0x30] sm:$0xff pattern:$0x75316420]
      %5367 = vst [vmem:[#allocation1] ss:$2 sm:$0xff] %v5224
      %5368 = vst [vmem:[%s5337] ss:$2 sm:$0xff] %v5225
      %5369 = vst [vmem:[%s5339] ss:$2 sm:$0xff] %v5226
      %5370 = vst [vmem:[%s5341] ss:$2 sm:$0xff] %v5227
      %5371 = vst [vmem:[%s5343] ss:$2 sm:$0xff] %v5228
      %5372 = vst [vmem:[%s5345] ss:$2 sm:$0xff] %v5229
      %5373 = vst [vmem:[%s5347] ss:$2 sm:$0xff] %v5230
      %5374 = vst [vmem:[%s5349] ss:$2 sm:$0xff] %v5231
      %v5375 = vld.sshfl [vmem:[#allocation1] sm:$0xff pattern:$0x75316420]
      %v5376 = vld.sshfl [vmem:[#allocation1 + $0x10] sm:$0xff pattern:$0x75316420]
      %v5377 = vld.sshfl [vmem:[#allocation1 + $0x20] sm:$0xff pattern:$0x75316420]
      %v5378 = vld.sshfl [vmem:[#allocation1 + $0x30] sm:$0xff pattern:$0x75316420]
      %5379 = vst [vmem:[#allocation1] ss:$2 sm:$0xff] %v5232
      %5380 = vst [vmem:[%s5337] ss:$2 sm:$0xff] %v5233
      %5381 = vst [vmem:[%s5339] ss:$2 sm:$0xff] %v5234
      %5382 = vst [vmem:[%s5341] ss:$2 sm:$0xff] %v5235
      %5383 = vst [vmem:[%s5343] ss:$2 sm:$0xff] %v5236
      %5384 = vst [vmem:[%s5345] ss:$2 sm:$0xff] %v5237
      %5385 = vst [vmem:[%s5347] ss:$2 sm:$0xff] %v5238
      %5386 = vst [vmem:[%s5349] ss:$2 sm:$0xff] %v5239
      %v5387 = vld.sshfl [vmem:[#allocation1] sm:$0xff pattern:$0x75316420]
      %v5388 = vld.sshfl [vmem:[#allocation1 + $0x10] sm:$0xff pattern:$0x75316420]
      %v5389 = vld.sshfl [vmem:[#allocation1 + $0x20] sm:$0xff pattern:$0x75316420]
      %v5390 = vld.sshfl [vmem:[#allocation1 + $0x30] sm:$0xff pattern:$0x75316420]
      %5391 = vst [vmem:[#allocation1] ss:$2 sm:$0xff] %v5240
      %5392 = vst [vmem:[%s5337] ss:$2 sm:$0xff] %v5241
      %5393 = vst [vmem:[%s5339] ss:$2 sm:$0xff] %v5242
      %5394 = vst [vmem:[%s5341] ss:$2 sm:$0xff] %v5243
      %5395 = vst [vmem:[%s5343] ss:$2 sm:$0xff] %v5244
      %5396 = vst [vmem:[%s5345] ss:$2 sm:$0xff] %v5245
      %5397 = vst [vmem:[%s5347] ss:$2 sm:$0xff] %v5246
      %5398 = vst [vmem:[%s5349] ss:$2 sm:$0xff] %v5247
      %v5399 = vld.sshfl [vmem:[#allocation1] sm:$0xff pattern:$0x75316420]
      %v5400 = vld.sshfl [vmem:[#allocation1 + $0x10] sm:$0xff pattern:$0x75316420]
      %v5401 = vld.sshfl [vmem:[#allocation1 + $0x20] sm:$0xff pattern:$0x75316420]
      %v5402 = vld.sshfl [vmem:[#allocation1 + $0x30] sm:$0xff pattern:$0x75316420]
      %5403 = vst [vmem:[#allocation1] ss:$2 sm:$0xff] %v5248
      %5404 = vst [vmem:[%s5337] ss:$2 sm:$0xff] %v5249
      %5405 = vst [vmem:[%s5339] ss:$2 sm:$0xff] %v5250
      %5406 = vst [vmem:[%s5341] ss:$2 sm:$0xff] %v5251
      %5407 = vst [vmem:[%s5343] ss:$2 sm:$0xff] %v5252
      %5408 = vst [vmem:[%s5345] ss:$2 sm:$0xff] %v5253
      %5409 = vst [vmem:[%s5347] ss:$2 sm:$0xff] %v5254
      %5410 = vst [vmem:[%s5349] ss:$2 sm:$0xff] %v5255
      %v5411 = vld.sshfl [vmem:[#allocation1] sm:$0xff pattern:$0x75316420]
      %v5412 = vld.sshfl [vmem:[#allocation1 + $0x10] sm:$0xff pattern:$0x75316420]
      %v5413 = vld.sshfl [vmem:[#allocation1 + $0x20] sm:$0xff pattern:$0x75316420]
      %v5414 = vld.sshfl [vmem:[#allocation1 + $0x30] sm:$0xff pattern:$0x75316420]
      %5415 = vst [vmem:[#allocation1] ss:$2 sm:$0xff] %v5256
      %5416 = vst [vmem:[%s5337] ss:$2 sm:$0xff] %v5257
      %5417 = vst [vmem:[%s5339] ss:$2 sm:$0xff] %v5258
      %5418 = vst [vmem:[%s5341] ss:$2 sm:$0xff] %v5259
      %5419 = vst [vmem:[%s5343] ss:$2 sm:$0xff] %v5260
      %5420 = vst [vmem:[%s5345] ss:$2 sm:$0xff] %v5261
      %5421 = vst [vmem:[%s5347] ss:$2 sm:$0xff] %v5262
      %5422 = vst [vmem:[%s5349] ss:$2 sm:$0xff] %v5263
      %v5423 = vld.sshfl [vmem:[#allocation1] sm:$0xff pattern:$0x75316420]
      %v5424 = vld.sshfl [vmem:[#allocation1 + $0x10] sm:$0xff pattern:$0x75316420]
      %v5425 = vld.sshfl [vmem:[#allocation1 + $0x20] sm:$0xff pattern:$0x75316420]
      %v5426 = vld.sshfl [vmem:[#allocation1 + $0x30] sm:$0xff pattern:$0x75316420]
      %5427 = vst [vmem:[#allocation1] ss:$2 sm:$0xff] %v5264
      %5428 = vst [vmem:[%s5337] ss:$2 sm:$0xff] %v5265
      %5429 = vst [vmem:[%s5339] ss:$2 sm:$0xff] %v5266
      %5430 = vst [vmem:[%s5341] ss:$2 sm:$0xff] %v5267
      %5431 = vst [vmem:[%s5343] ss:$2 sm:$0xff] %v5268
      %5432 = vst [vmem:[%s5345] ss:$2 sm:$0xff] %v5269
      %5433 = vst [vmem:[%s5347] ss:$2 sm:$0xff] %v5270
      %5434 = vst [vmem:[%s5349] ss:$2 sm:$0xff] %v5271
      %v5435 = vld.sshfl [vmem:[#allocation1] sm:$0xff pattern:$0x75316420]
      %v5436 = vld.sshfl [vmem:[#allocation1 + $0x10] sm:$0xff pattern:$0x75316420]
      %v5437 = vld.sshfl [vmem:[#allocation1 + $0x20] sm:$0xff pattern:$0x75316420]
      %v5438 = vld.sshfl [vmem:[#allocation1 + $0x30] sm:$0xff pattern:$0x75316420]
      %v5471 = vpack.c.bf16 %v5352, %v5351
      %v5472 = vpack.c.bf16 %v5354, %v5353
      %v5473 = vpack.c.bf16 %v5364, %v5363
      %v5474 = vpack.c.bf16 %v5366, %v5365
      %v5475 = vpack.c.bf16 %v5376, %v5375
      %v5476 = vpack.c.bf16 %v5378, %v5377
      %v5477 = vpack.c.bf16 %v5388, %v5387
      %v5478 = vpack.c.bf16 %v5390, %v5389
      %v5479 = vpack.c.bf16 %v5400, %v5399
      %v5480 = vpack.c.bf16 %v5402, %v5401
      %v5481 = vpack.c.bf16 %v5412, %v5411
      %v5482 = vpack.c.bf16 %v5414, %v5413
      %v5483 = vpack.c.bf16 %v5424, %v5423
      %v5484 = vpack.c.bf16 %v5426, %v5425
      %v5485 = vpack.c.bf16 %v5436, %v5435
      %v5486 = vpack.c.bf16 %v5438, %v5437
      %v5487 = vld [vmem:[%s5] sm:$0xf]
      %v5488 = vld [vmem:[%s5 + $0x4] sm:$0xf]
      %v5489 = vld [vmem:[%s5 + $0x8] sm:$0xf]
      %v5490 = vld [vmem:[%s6] sm:$0x1]
      %v5492 = vperm.slane %v5490, 0
      %v5497 = vunpack.c.l.b16 %v5487
      %v5498 = vunpack.c.l.b16 %v5488
      %v5499 = vunpack.c.l.b16 %v5489
      %v5500 = vpack.c.b16 %v5498, %v5497
      %v5501 = vpack.c.b16 %v5499, %v5499
      %vm5503 = vcmask 195584
      %v5505 = vsel %vm5503, %v5471, 0
      %v5508 = vsel %vm5503, %v5472, 0
      %v5511 = vsel %vm5503, %v5473, 0
      %v5514 = vsel %vm5503, %v5474, 0
      %v5517 = vsel %vm5503, %v5475, 0
      %v5520 = vsel %vm5503, %v5476, 0
      %v5523 = vsel %vm5503, %v5477, 0
      %v5526 = vsel %vm5503, %v5478, 0
      %v5529 = vsel %vm5503, %v5479, 0
      %v5532 = vsel %vm5503, %v5480, 0
      %v5535 = vsel %vm5503, %v5481, 0
      %v5538 = vsel %vm5503, %v5482, 0
      %v5541 = vsel %vm5503, %v5483, 0
      %v5544 = vsel %vm5503, %v5484, 0
      %v5547 = vsel %vm5503, %v5485, 0
      %v5550 = vsel %vm5503, %v5486, 0
      %vm5552 = vcmask 1043456
      %v5554 = vsel %vm5552, %v5501, 0
      %5556 = vmatpush.bf16.msra.mxu0 0
      %5557 = vmatpush.bf16.msra.mxu0 0
      %5558 = vmatpush.bf16.msra.mxu0 0
      %5559 = vmatpush.bf16.msra.mxu0 0
      %5560 = vmatpush.bf16.msra.mxu0 0
      %5561 = vmatpush.bf16.msra.mxu0 0
      %5562 = vmatpush.bf16.msra.mxu0 %v5554
      %5563 = vmatpush.bf16.msra.mxu0 %v5500
      %5564 = vmatmul.bf16.gmra.mxu0 %v5505
      %v5565 = vpop.f32.mrf.mxu0
      %v5566 = vadd.f32 %v5492, %v5565
      %v5567 = vpop.f32.mrf.mxu0
      %v5568 = vadd.f32 %v5492, %v5567
      %5569 = vmatmul.bf16.gmra.mxu0 %v5508
      %v5570 = vpop.f32.mrf.mxu0
      %v5571 = vadd.f32 %v5492, %v5570
      %v5572 = vpop.f32.mrf.mxu0
      %v5573 = vadd.f32 %v5492, %v5572
      %5574 = vmatmul.bf16.gmra.mxu0 %v5511
      %v5575 = vpop.f32.mrf.mxu0
      %v5576 = vadd.f32 %v5492, %v5575
      %v5577 = vpop.f32.mrf.mxu0
      %v5578 = vadd.f32 %v5492, %v5577
      %5579 = vmatmul.bf16.gmra.mxu0 %v5514
      %v5580 = vpop.f32.mrf.mxu0
      %v5581 = vadd.f32 %v5492, %v5580
      %v5582 = vpop.f32.mrf.mxu0
      %v5583 = vadd.f32 %v5492, %v5582
      %5584 = vmatmul.bf16.gmra.mxu0 %v5517
      %v5585 = vpop.f32.mrf.mxu0
      %v5586 = vadd.f32 %v5492, %v5585
      %v5587 = vpop.f32.mrf.mxu0
      %v5588 = vadd.f32 %v5492, %v5587
      %5589 = vmatmul.bf16.gmra.mxu0 %v5520
      %v5590 = vpop.f32.mrf.mxu0
      %v5591 = vadd.f32 %v5492, %v5590
      %v5592 = vpop.f32.mrf.mxu0
      %v5593 = vadd.f32 %v5492, %v5592
      %5594 = vmatmul.bf16.gmra.mxu0 %v5523
      %v5595 = vpop.f32.mrf.mxu0
      %v5596 = vadd.f32 %v5492, %v5595
      %v5597 = vpop.f32.mrf.mxu0
      %v5598 = vadd.f32 %v5492, %v5597
      %5599 = vmatmul.bf16.gmra.mxu0 %v5526
      %v5600 = vpop.f32.mrf.mxu0
      %v5601 = vadd.f32 %v5492, %v5600
      %v5602 = vpop.f32.mrf.mxu0
      %v5603 = vadd.f32 %v5492, %v5602
      %5604 = vmatmul.bf16.gmra.mxu0 %v5529
      %v5605 = vpop.f32.mrf.mxu0
      %v5606 = vadd.f32 %v5492, %v5605
      %v5607 = vpop.f32.mrf.mxu0
      %v5608 = vadd.f32 %v5492, %v5607
      %5609 = vmatmul.bf16.gmra.mxu0 %v5532
      %v5610 = vpop.f32.mrf.mxu0
      %v5611 = vadd.f32 %v5492, %v5610
      %v5612 = vpop.f32.mrf.mxu0
      %v5613 = vadd.f32 %v5492, %v5612
      %5614 = vmatmul.bf16.gmra.mxu0 %v5535
      %v5615 = vpop.f32.mrf.mxu0
      %v5616 = vadd.f32 %v5492, %v5615
      %v5617 = vpop.f32.mrf.mxu0
      %v5618 = vadd.f32 %v5492, %v5617
      %5619 = vmatmul.bf16.gmra.mxu0 %v5538
      %v5620 = vpop.f32.mrf.mxu0
      %v5621 = vadd.f32 %v5492, %v5620
      %v5622 = vpop.f32.mrf.mxu0
      %v5623 = vadd.f32 %v5492, %v5622
      %5624 = vmatmul.bf16.gmra.mxu0 %v5541
      %v5625 = vpop.f32.mrf.mxu0
      %v5626 = vadd.f32 %v5492, %v5625
      %v5627 = vpop.f32.mrf.mxu0
      %v5628 = vadd.f32 %v5492, %v5627
      %5629 = vmatmul.bf16.gmra.mxu0 %v5544
      %v5630 = vpop.f32.mrf.mxu0
      %v5631 = vadd.f32 %v5492, %v5630
      %v5632 = vpop.f32.mrf.mxu0
      %v5633 = vadd.f32 %v5492, %v5632
      %5634 = vmatmul.bf16.gmra.mxu0 %v5547
      %v5635 = vpop.f32.mrf.mxu0
      %v5636 = vadd.f32 %v5492, %v5635
      %v5637 = vpop.f32.mrf.mxu0
      %v5638 = vadd.f32 %v5492, %v5637
      %5639 = vmatmul.bf16.gmra.mxu0 %v5550
      %v5640 = vpop.f32.mrf.mxu0
      %v5641 = vadd.f32 %v5492, %v5640
      %v5642 = vpop.f32.mrf.mxu0
      %v5643 = vadd.f32 %v5492, %v5642
      %5644 = vdwg.mxu0
      %v5677 = vrot.slane %v5566, 4
      %v5678 = vrot.slane %v5568, 4
      %v5679 = vrot.slane %v5571, 4
      %v5680 = vrot.slane %v5573, 4
      %v5681 = vrot.slane %v5576, 4
      %v5682 = vrot.slane %v5578, 4
      %v5683 = vrot.slane %v5581, 4
      %v5684 = vrot.slane %v5583, 4
      %v5685 = vrot.slane %v5586, 4
      %v5686 = vrot.slane %v5588, 4
      %v5687 = vrot.slane %v5591, 4
      %v5688 = vrot.slane %v5593, 4
      %v5689 = vrot.slane %v5596, 4
      %v5690 = vrot.slane %v5598, 4
      %v5691 = vrot.slane %v5601, 4
      %v5692 = vrot.slane %v5603, 4
      %v5693 = vrot.slane %v5606, 4
      %v5694 = vrot.slane %v5608, 4
      %v5695 = vrot.slane %v5611, 4
      %v5696 = vrot.slane %v5613, 4
      %v5697 = vrot.slane %v5616, 4
      %v5698 = vrot.slane %v5618, 4
      %v5699 = vrot.slane %v5621, 4
      %v5700 = vrot.slane %v5623, 4
      %v5701 = vrot.slane %v5626, 4
      %v5702 = vrot.slane %v5628, 4
      %v5703 = vrot.slane %v5631, 4
      %v5704 = vrot.slane %v5633, 4
      %v5705 = vrot.slane %v5636, 4
      %v5706 = vrot.slane %v5638, 4
      %v5707 = vrot.slane %v5641, 4
      %v5708 = vrot.slane %v5643, 4
      %vm5741 = vcmask 125952
      %v5742 = vsel %vm5741, %v5566, 0.0
      %v5743 = vrot.slane %v5742, 4
      %v5744 = vadd.f32 %v5742, %v5743
      %v5745 = vrot.slane %v5744, 2
      %v5746 = vadd.f32 %v5744, %v5745
      %v5747 = vrot.slane %v5746, 1
      %v5748 = vadd.f32 %v5746, %v5747
      %v5749 = vsel %vm5741, %v5677, 0.0
      %v5750 = vrot.slane %v5749, 4
      %v5751 = vadd.f32 %v5749, %v5750
      %v5752 = vrot.slane %v5751, 2
      %v5753 = vadd.f32 %v5751, %v5752
      %v5754 = vrot.slane %v5753, 1
      %v5755 = vadd.f32 %v5753, %v5754
      %v5756 = vsel %vm5741, %v5568, 0.0
      %v5757 = vrot.slane %v5756, 4
      %v5758 = vadd.f32 %v5756, %v5757
      %v5759 = vrot.slane %v5758, 2
      %v5760 = vadd.f32 %v5758, %v5759
      %v5761 = vrot.slane %v5760, 1
      %v5762 = vadd.f32 %v5760, %v5761
      %v5763 = vsel %vm5741, %v5678, 0.0
      %v5764 = vrot.slane %v5763, 4
      %v5765 = vadd.f32 %v5763, %v5764
      %v5766 = vrot.slane %v5765, 2
      %v5767 = vadd.f32 %v5765, %v5766
      %v5768 = vrot.slane %v5767, 1
      %v5769 = vadd.f32 %v5767, %v5768
      %v5770 = vsel %vm5741, %v5571, 0.0
      %v5771 = vrot.slane %v5770, 4
      %v5772 = vadd.f32 %v5770, %v5771
      %v5773 = vrot.slane %v5772, 2
      %v5774 = vadd.f32 %v5772, %v5773
      %v5775 = vrot.slane %v5774, 1
      %v5776 = vadd.f32 %v5774, %v5775
      %v5777 = vsel %vm5741, %v5679, 0.0
      %v5778 = vrot.slane %v5777, 4
      %v5779 = vadd.f32 %v5777, %v5778
      %v5780 = vrot.slane %v5779, 2
      %v5781 = vadd.f32 %v5779, %v5780
      %v5782 = vrot.slane %v5781, 1
      %v5783 = vadd.f32 %v5781, %v5782
      %v5784 = vsel %vm5741, %v5573, 0.0
      %v5785 = vrot.slane %v5784, 4
      %v5786 = vadd.f32 %v5784, %v5785
      %v5787 = vrot.slane %v5786, 2
      %v5788 = vadd.f32 %v5786, %v5787
      %v5789 = vrot.slane %v5788, 1
      %v5790 = vadd.f32 %v5788, %v5789
      %v5791 = vsel %vm5741, %v5680, 0.0
      %v5792 = vrot.slane %v5791, 4
      %v5793 = vadd.f32 %v5791, %v5792
      %v5794 = vrot.slane %v5793, 2
      %v5795 = vadd.f32 %v5793, %v5794
      %v5796 = vrot.slane %v5795, 1
      %v5797 = vadd.f32 %v5795, %v5796
      %v5798 = vsel %vm5741, %v5576, 0.0
      %v5799 = vrot.slane %v5798, 4
      %v5800 = vadd.f32 %v5798, %v5799
      %v5801 = vrot.slane %v5800, 2
      %v5802 = vadd.f32 %v5800, %v5801
      %v5803 = vrot.slane %v5802, 1
      %v5804 = vadd.f32 %v5802, %v5803
      %v5805 = vsel %vm5741, %v5681, 0.0
      %v5806 = vrot.slane %v5805, 4
      %v5807 = vadd.f32 %v5805, %v5806
      %v5808 = vrot.slane %v5807, 2
      %v5809 = vadd.f32 %v5807, %v5808
      %v5810 = vrot.slane %v5809, 1
      %v5811 = vadd.f32 %v5809, %v5810
      %v5812 = vsel %vm5741, %v5578, 0.0
      %v5813 = vrot.slane %v5812, 4
      %v5814 = vadd.f32 %v5812, %v5813
      %v5815 = vrot.slane %v5814, 2
      %v5816 = vadd.f32 %v5814, %v5815
      %v5817 = vrot.slane %v5816, 1
      %v5818 = vadd.f32 %v5816, %v5817
      %v5819 = vsel %vm5741, %v5682, 0.0
      %v5820 = vrot.slane %v5819, 4
      %v5821 = vadd.f32 %v5819, %v5820
      %v5822 = vrot.slane %v5821, 2
      %v5823 = vadd.f32 %v5821, %v5822
      %v5824 = vrot.slane %v5823, 1
      %v5825 = vadd.f32 %v5823, %v5824
      %v5826 = vsel %vm5741, %v5581, 0.0
      %v5827 = vrot.slane %v5826, 4
      %v5828 = vadd.f32 %v5826, %v5827
      %v5829 = vrot.slane %v5828, 2
      %v5830 = vadd.f32 %v5828, %v5829
      %v5831 = vrot.slane %v5830, 1
      %v5832 = vadd.f32 %v5830, %v5831
      %v5833 = vsel %vm5741, %v5683, 0.0
      %v5834 = vrot.slane %v5833, 4
      %v5835 = vadd.f32 %v5833, %v5834
      %v5836 = vrot.slane %v5835, 2
      %v5837 = vadd.f32 %v5835, %v5836
      %v5838 = vrot.slane %v5837, 1
      %v5839 = vadd.f32 %v5837, %v5838
      %v5840 = vsel %vm5741, %v5583, 0.0
      %v5841 = vrot.slane %v5840, 4
      %v5842 = vadd.f32 %v5840, %v5841
      %v5843 = vrot.slane %v5842, 2
      %v5844 = vadd.f32 %v5842, %v5843
      %v5845 = vrot.slane %v5844, 1
      %v5846 = vadd.f32 %v5844, %v5845
      %v5847 = vsel %vm5741, %v5684, 0.0
      %v5848 = vrot.slane %v5847, 4
      %v5849 = vadd.f32 %v5847, %v5848
      %v5850 = vrot.slane %v5849, 2
      %v5851 = vadd.f32 %v5849, %v5850
      %v5852 = vrot.slane %v5851, 1
      %v5853 = vadd.f32 %v5851, %v5852
      %v5854 = vsel %vm5741, %v5586, 0.0
      %v5855 = vrot.slane %v5854, 4
      %v5856 = vadd.f32 %v5854, %v5855
      %v5857 = vrot.slane %v5856, 2
      %v5858 = vadd.f32 %v5856, %v5857
      %v5859 = vrot.slane %v5858, 1
      %v5860 = vadd.f32 %v5858, %v5859
      %v5861 = vsel %vm5741, %v5685, 0.0
      %v5862 = vrot.slane %v5861, 4
      %v5863 = vadd.f32 %v5861, %v5862
      %v5864 = vrot.slane %v5863, 2
      %v5865 = vadd.f32 %v5863, %v5864
      %v5866 = vrot.slane %v5865, 1
      %v5867 = vadd.f32 %v5865, %v5866
      %v5868 = vsel %vm5741, %v5588, 0.0
      %v5869 = vrot.slane %v5868, 4
      %v5870 = vadd.f32 %v5868, %v5869
      %v5871 = vrot.slane %v5870, 2
      %v5872 = vadd.f32 %v5870, %v5871
      %v5873 = vrot.slane %v5872, 1
      %v5874 = vadd.f32 %v5872, %v5873
      %v5875 = vsel %vm5741, %v5686, 0.0
      %v5876 = vrot.slane %v5875, 4
      %v5877 = vadd.f32 %v5875, %v5876
      %v5878 = vrot.slane %v5877, 2
      %v5879 = vadd.f32 %v5877, %v5878
      %v5880 = vrot.slane %v5879, 1
      %v5881 = vadd.f32 %v5879, %v5880
      %v5882 = vsel %vm5741, %v5591, 0.0
      %v5883 = vrot.slane %v5882, 4
      %v5884 = vadd.f32 %v5882, %v5883
      %v5885 = vrot.slane %v5884, 2
      %v5886 = vadd.f32 %v5884, %v5885
      %v5887 = vrot.slane %v5886, 1
      %v5888 = vadd.f32 %v5886, %v5887
      %v5889 = vsel %vm5741, %v5687, 0.0
      %v5890 = vrot.slane %v5889, 4
      %v5891 = vadd.f32 %v5889, %v5890
      %v5892 = vrot.slane %v5891, 2
      %v5893 = vadd.f32 %v5891, %v5892
      %v5894 = vrot.slane %v5893, 1
      %v5895 = vadd.f32 %v5893, %v5894
      %v5896 = vsel %vm5741, %v5593, 0.0
      %v5897 = vrot.slane %v5896, 4
      %v5898 = vadd.f32 %v5896, %v5897
      %v5899 = vrot.slane %v5898, 2
      %v5900 = vadd.f32 %v5898, %v5899
      %v5901 = vrot.slane %v5900, 1
      %v5902 = vadd.f32 %v5900, %v5901
      %v5903 = vsel %vm5741, %v5688, 0.0
      %v5904 = vrot.slane %v5903, 4
      %v5905 = vadd.f32 %v5903, %v5904
      %v5906 = vrot.slane %v5905, 2
      %v5907 = vadd.f32 %v5905, %v5906
      %v5908 = vrot.slane %v5907, 1
      %v5909 = vadd.f32 %v5907, %v5908
      %v5910 = vsel %vm5741, %v5596, 0.0
      %v5911 = vrot.slane %v5910, 4
      %v5912 = vadd.f32 %v5910, %v5911
      %v5913 = vrot.slane %v5912, 2
      %v5914 = vadd.f32 %v5912, %v5913
      %v5915 = vrot.slane %v5914, 1
      %v5916 = vadd.f32 %v5914, %v5915
      %v5917 = vsel %vm5741, %v5689, 0.0
      %v5918 = vrot.slane %v5917, 4
      %v5919 = vadd.f32 %v5917, %v5918
      %v5920 = vrot.slane %v5919, 2
      %v5921 = vadd.f32 %v5919, %v5920
      %v5922 = vrot.slane %v5921, 1
      %v5923 = vadd.f32 %v5921, %v5922
      %v5924 = vsel %vm5741, %v5598, 0.0
      %v5925 = vrot.slane %v5924, 4
      %v5926 = vadd.f32 %v5924, %v5925
      %v5927 = vrot.slane %v5926, 2
      %v5928 = vadd.f32 %v5926, %v5927
      %v5929 = vrot.slane %v5928, 1
      %v5930 = vadd.f32 %v5928, %v5929
      %v5931 = vsel %vm5741, %v5690, 0.0
      %v5932 = vrot.slane %v5931, 4
      %v5933 = vadd.f32 %v5931, %v5932
      %v5934 = vrot.slane %v5933, 2
      %v5935 = vadd.f32 %v5933, %v5934
      %v5936 = vrot.slane %v5935, 1
      %v5937 = vadd.f32 %v5935, %v5936
      %v5938 = vsel %vm5741, %v5601, 0.0
      %v5939 = vrot.slane %v5938, 4
      %v5940 = vadd.f32 %v5938, %v5939
      %v5941 = vrot.slane %v5940, 2
      %v5942 = vadd.f32 %v5940, %v5941
      %v5943 = vrot.slane %v5942, 1
      %v5944 = vadd.f32 %v5942, %v5943
      %v5945 = vsel %vm5741, %v5691, 0.0
      %v5946 = vrot.slane %v5945, 4
      %v5947 = vadd.f32 %v5945, %v5946
      %v5948 = vrot.slane %v5947, 2
      %v5949 = vadd.f32 %v5947, %v5948
      %v5950 = vrot.slane %v5949, 1
      %v5951 = vadd.f32 %v5949, %v5950
      %v5952 = vsel %vm5741, %v5603, 0.0
      %v5953 = vrot.slane %v5952, 4
      %v5954 = vadd.f32 %v5952, %v5953
      %v5955 = vrot.slane %v5954, 2
      %v5956 = vadd.f32 %v5954, %v5955
      %v5957 = vrot.slane %v5956, 1
      %v5958 = vadd.f32 %v5956, %v5957
      %v5959 = vsel %vm5741, %v5692, 0.0
      %v5960 = vrot.slane %v5959, 4
      %v5961 = vadd.f32 %v5959, %v5960
      %v5962 = vrot.slane %v5961, 2
      %v5963 = vadd.f32 %v5961, %v5962
      %v5964 = vrot.slane %v5963, 1
      %v5965 = vadd.f32 %v5963, %v5964
      %v5966 = vsel %vm5741, %v5606, 0.0
      %v5967 = vrot.slane %v5966, 4
      %v5968 = vadd.f32 %v5966, %v5967
      %v5969 = vrot.slane %v5968, 2
      %v5970 = vadd.f32 %v5968, %v5969
      %v5971 = vrot.slane %v5970, 1
      %v5972 = vadd.f32 %v5970, %v5971
      %v5973 = vsel %vm5741, %v5693, 0.0
      %v5974 = vrot.slane %v5973, 4
      %v5975 = vadd.f32 %v5973, %v5974
      %v5976 = vrot.slane %v5975, 2
      %v5977 = vadd.f32 %v5975, %v5976
      %v5978 = vrot.slane %v5977, 1
      %v5979 = vadd.f32 %v5977, %v5978
      %v5980 = vsel %vm5741, %v5608, 0.0
      %v5981 = vrot.slane %v5980, 4
      %v5982 = vadd.f32 %v5980, %v5981
      %v5983 = vrot.slane %v5982, 2
      %v5984 = vadd.f32 %v5982, %v5983
      %v5985 = vrot.slane %v5984, 1
      %v5986 = vadd.f32 %v5984, %v5985
      %v5987 = vsel %vm5741, %v5694, 0.0
      %v5988 = vrot.slane %v5987, 4
      %v5989 = vadd.f32 %v5987, %v5988
      %v5990 = vrot.slane %v5989, 2
      %v5991 = vadd.f32 %v5989, %v5990
      %v5992 = vrot.slane %v5991, 1
      %v5993 = vadd.f32 %v5991, %v5992
      %v5994 = vsel %vm5741, %v5611, 0.0
      %v5995 = vrot.slane %v5994, 4
      %v5996 = vadd.f32 %v5994, %v5995
      %v5997 = vrot.slane %v5996, 2
      %v5998 = vadd.f32 %v5996, %v5997
      %v5999 = vrot.slane %v5998, 1
      %v6000 = vadd.f32 %v5998, %v5999
      %v6001 = vsel %vm5741, %v5695, 0.0
      %v6002 = vrot.slane %v6001, 4
      %v6003 = vadd.f32 %v6001, %v6002
      %v6004 = vrot.slane %v6003, 2
      %v6005 = vadd.f32 %v6003, %v6004
      %v6006 = vrot.slane %v6005, 1
      %v6007 = vadd.f32 %v6005, %v6006
      %v6008 = vsel %vm5741, %v5613, 0.0
      %v6009 = vrot.slane %v6008, 4
      %v6010 = vadd.f32 %v6008, %v6009
      %v6011 = vrot.slane %v6010, 2
      %v6012 = vadd.f32 %v6010, %v6011
      %v6013 = vrot.slane %v6012, 1
      %v6014 = vadd.f32 %v6012, %v6013
      %v6015 = vsel %vm5741, %v5696, 0.0
      %v6016 = vrot.slane %v6015, 4
      %v6017 = vadd.f32 %v6015, %v6016
      %v6018 = vrot.slane %v6017, 2
      %v6019 = vadd.f32 %v6017, %v6018
      %v6020 = vrot.slane %v6019, 1
      %v6021 = vadd.f32 %v6019, %v6020
      %v6022 = vsel %vm5741, %v5616, 0.0
      %v6023 = vrot.slane %v6022, 4
      %v6024 = vadd.f32 %v6022, %v6023
      %v6025 = vrot.slane %v6024, 2
      %v6026 = vadd.f32 %v6024, %v6025
      %v6027 = vrot.slane %v6026, 1
      %v6028 = vadd.f32 %v6026, %v6027
      %v6029 = vsel %vm5741, %v5697, 0.0
      %v6030 = vrot.slane %v6029, 4
      %v6031 = vadd.f32 %v6029, %v6030
      %v6032 = vrot.slane %v6031, 2
      %v6033 = vadd.f32 %v6031, %v6032
      %v6034 = vrot.slane %v6033, 1
      %v6035 = vadd.f32 %v6033, %v6034
      %v6036 = vsel %vm5741, %v5618, 0.0
      %v6037 = vrot.slane %v6036, 4
      %v6038 = vadd.f32 %v6036, %v6037
      %v6039 = vrot.slane %v6038, 2
      %v6040 = vadd.f32 %v6038, %v6039
      %v6041 = vrot.slane %v6040, 1
      %v6042 = vadd.f32 %v6040, %v6041
      %v6043 = vsel %vm5741, %v5698, 0.0
      %v6044 = vrot.slane %v6043, 4
      %v6045 = vadd.f32 %v6043, %v6044
      %v6046 = vrot.slane %v6045, 2
      %v6047 = vadd.f32 %v6045, %v6046
      %v6048 = vrot.slane %v6047, 1
      %v6049 = vadd.f32 %v6047, %v6048
      %v6050 = vsel %vm5741, %v5621, 0.0
      %v6051 = vrot.slane %v6050, 4
      %v6052 = vadd.f32 %v6050, %v6051
      %v6053 = vrot.slane %v6052, 2
      %v6054 = vadd.f32 %v6052, %v6053
      %v6055 = vrot.slane %v6054, 1
      %v6056 = vadd.f32 %v6054, %v6055
      %v6057 = vsel %vm5741, %v5699, 0.0
      %v6058 = vrot.slane %v6057, 4
      %v6059 = vadd.f32 %v6057, %v6058
      %v6060 = vrot.slane %v6059, 2
      %v6061 = vadd.f32 %v6059, %v6060
      %v6062 = vrot.slane %v6061, 1
      %v6063 = vadd.f32 %v6061, %v6062
      %v6064 = vsel %vm5741, %v5623, 0.0
      %v6065 = vrot.slane %v6064, 4
      %v6066 = vadd.f32 %v6064, %v6065
      %v6067 = vrot.slane %v6066, 2
      %v6068 = vadd.f32 %v6066, %v6067
      %v6069 = vrot.slane %v6068, 1
      %v6070 = vadd.f32 %v6068, %v6069
      %v6071 = vsel %vm5741, %v5700, 0.0
      %v6072 = vrot.slane %v6071, 4
      %v6073 = vadd.f32 %v6071, %v6072
      %v6074 = vrot.slane %v6073, 2
      %v6075 = vadd.f32 %v6073, %v6074
      %v6076 = vrot.slane %v6075, 1
      %v6077 = vadd.f32 %v6075, %v6076
      %v6078 = vsel %vm5741, %v5626, 0.0
      %v6079 = vrot.slane %v6078, 4
      %v6080 = vadd.f32 %v6078, %v6079
      %v6081 = vrot.slane %v6080, 2
      %v6082 = vadd.f32 %v6080, %v6081
      %v6083 = vrot.slane %v6082, 1
      %v6084 = vadd.f32 %v6082, %v6083
      %v6085 = vsel %vm5741, %v5701, 0.0
      %v6086 = vrot.slane %v6085, 4
      %v6087 = vadd.f32 %v6085, %v6086
      %v6088 = vrot.slane %v6087, 2
      %v6089 = vadd.f32 %v6087, %v6088
      %v6090 = vrot.slane %v6089, 1
      %v6091 = vadd.f32 %v6089, %v6090
      %v6092 = vsel %vm5741, %v5628, 0.0
      %v6093 = vrot.slane %v6092, 4
      %v6094 = vadd.f32 %v6092, %v6093
      %v6095 = vrot.slane %v6094, 2
      %v6096 = vadd.f32 %v6094, %v6095
      %v6097 = vrot.slane %v6096, 1
      %v6098 = vadd.f32 %v6096, %v6097
      %v6099 = vsel %vm5741, %v5702, 0.0
      %v6100 = vrot.slane %v6099, 4
      %v6101 = vadd.f32 %v6099, %v6100
      %v6102 = vrot.slane %v6101, 2
      %v6103 = vadd.f32 %v6101, %v6102
      %v6104 = vrot.slane %v6103, 1
      %v6105 = vadd.f32 %v6103, %v6104
      %v6106 = vsel %vm5741, %v5631, 0.0
      %v6107 = vrot.slane %v6106, 4
      %v6108 = vadd.f32 %v6106, %v6107
      %v6109 = vrot.slane %v6108, 2
      %v6110 = vadd.f32 %v6108, %v6109
      %v6111 = vrot.slane %v6110, 1
      %v6112 = vadd.f32 %v6110, %v6111
      %v6113 = vsel %vm5741, %v5703, 0.0
      %v6114 = vrot.slane %v6113, 4
      %v6115 = vadd.f32 %v6113, %v6114
      %v6116 = vrot.slane %v6115, 2
      %v6117 = vadd.f32 %v6115, %v6116
      %v6118 = vrot.slane %v6117, 1
      %v6119 = vadd.f32 %v6117, %v6118
      %v6120 = vsel %vm5741, %v5633, 0.0
      %v6121 = vrot.slane %v6120, 4
      %v6122 = vadd.f32 %v6120, %v6121
      %v6123 = vrot.slane %v6122, 2
      %v6124 = vadd.f32 %v6122, %v6123
      %v6125 = vrot.slane %v6124, 1
      %v6126 = vadd.f32 %v6124, %v6125
      %v6127 = vsel %vm5741, %v5704, 0.0
      %v6128 = vrot.slane %v6127, 4
      %v6129 = vadd.f32 %v6127, %v6128
      %v6130 = vrot.slane %v6129, 2
      %v6131 = vadd.f32 %v6129, %v6130
      %v6132 = vrot.slane %v6131, 1
      %v6133 = vadd.f32 %v6131, %v6132
      %v6134 = vsel %vm5741, %v5636, 0.0
      %v6135 = vrot.slane %v6134, 4
      %v6136 = vadd.f32 %v6134, %v6135
      %v6137 = vrot.slane %v6136, 2
      %v6138 = vadd.f32 %v6136, %v6137
      %v6139 = vrot.slane %v6138, 1
      %v6140 = vadd.f32 %v6138, %v6139
      %v6141 = vsel %vm5741, %v5705, 0.0
      %v6142 = vrot.slane %v6141, 4
      %v6143 = vadd.f32 %v6141, %v6142
      %v6144 = vrot.slane %v6143, 2
      %v6145 = vadd.f32 %v6143, %v6144
      %v6146 = vrot.slane %v6145, 1
      %v6147 = vadd.f32 %v6145, %v6146
      %v6148 = vsel %vm5741, %v5638, 0.0
      %v6149 = vrot.slane %v6148, 4
      %v6150 = vadd.f32 %v6148, %v6149
      %v6151 = vrot.slane %v6150, 2
      %v6152 = vadd.f32 %v6150, %v6151
      %v6153 = vrot.slane %v6152, 1
      %v6154 = vadd.f32 %v6152, %v6153
      %v6155 = vsel %vm5741, %v5706, 0.0
      %v6156 = vrot.slane %v6155, 4
      %v6157 = vadd.f32 %v6155, %v6156
      %v6158 = vrot.slane %v6157, 2
      %v6159 = vadd.f32 %v6157, %v6158
      %v6160 = vrot.slane %v6159, 1
      %v6161 = vadd.f32 %v6159, %v6160
      %v6162 = vsel %vm5741, %v5641, 0.0
      %v6163 = vrot.slane %v6162, 4
      %v6164 = vadd.f32 %v6162, %v6163
      %v6165 = vrot.slane %v6164, 2
      %v6166 = vadd.f32 %v6164, %v6165
      %v6167 = vrot.slane %v6166, 1
      %v6168 = vadd.f32 %v6166, %v6167
      %v6169 = vsel %vm5741, %v5707, 0.0
      %v6170 = vrot.slane %v6169, 4
      %v6171 = vadd.f32 %v6169, %v6170
      %v6172 = vrot.slane %v6171, 2
      %v6173 = vadd.f32 %v6171, %v6172
      %v6174 = vrot.slane %v6173, 1
      %v6175 = vadd.f32 %v6173, %v6174
      %v6176 = vsel %vm5741, %v5643, 0.0
      %v6177 = vrot.slane %v6176, 4
      %v6178 = vadd.f32 %v6176, %v6177
      %v6179 = vrot.slane %v6178, 2
      %v6180 = vadd.f32 %v6178, %v6179
      %v6181 = vrot.slane %v6180, 1
      %v6182 = vadd.f32 %v6180, %v6181
      %v6183 = vsel %vm5741, %v5708, 0.0
      %v6184 = vrot.slane %v6183, 4
      %v6185 = vadd.f32 %v6183, %v6184
      %v6186 = vrot.slane %v6185, 2
      %v6187 = vadd.f32 %v6185, %v6186
      %v6188 = vrot.slane %v6187, 1
      %v6189 = vadd.f32 %v6187, %v6188
      %v6190 = vrcp.pop 4.0
      %v6191 = vmul.f32 4.0, %v6190
      %v6192 = vsub.f32 1.0, %v6191
      %v6193 = vmul.f32 %v6190, %v6192
      %v6194 = vadd.f32 %v6190, %v6193
      %vm6195 = vweird.f32 %v6190
      %v6196 = vsel %vm6195, %v6190, %v6194
      %v6197 = vmul.f32 %v5748, %v6196
      %v6198 = vmul.f32 %v5755, %v6196
      %v6199 = vmul.f32 %v5762, %v6196
      %v6200 = vmul.f32 %v5769, %v6196
      %v6201 = vmul.f32 %v5776, %v6196
      %v6202 = vmul.f32 %v5783, %v6196
      %v6203 = vmul.f32 %v5790, %v6196
      %v6204 = vmul.f32 %v5797, %v6196
      %v6205 = vmul.f32 %v5804, %v6196
      %v6206 = vmul.f32 %v5811, %v6196
      %v6207 = vmul.f32 %v5818, %v6196
      %v6208 = vmul.f32 %v5825, %v6196
      %v6209 = vmul.f32 %v5832, %v6196
      %v6210 = vmul.f32 %v5839, %v6196
      %v6211 = vmul.f32 %v5846, %v6196
      %v6212 = vmul.f32 %v5853, %v6196
      %v6213 = vmul.f32 %v5860, %v6196
      %v6214 = vmul.f32 %v5867, %v6196
      %v6215 = vmul.f32 %v5874, %v6196
      %v6216 = vmul.f32 %v5881, %v6196
      %v6217 = vmul.f32 %v5888, %v6196
      %v6218 = vmul.f32 %v5895, %v6196
      %v6219 = vmul.f32 %v5902, %v6196
      %v6220 = vmul.f32 %v5909, %v6196
      %v6221 = vmul.f32 %v5916, %v6196
      %v6222 = vmul.f32 %v5923, %v6196
      %v6223 = vmul.f32 %v5930, %v6196
      %v6224 = vmul.f32 %v5937, %v6196
      %v6225 = vmul.f32 %v5944, %v6196
      %v6226 = vmul.f32 %v5951, %v6196
      %v6227 = vmul.f32 %v5958, %v6196
      %v6228 = vmul.f32 %v5965, %v6196
      %v6229 = vmul.f32 %v5972, %v6196
      %v6230 = vmul.f32 %v5979, %v6196
      %v6231 = vmul.f32 %v5986, %v6196
      %v6232 = vmul.f32 %v5993, %v6196
      %v6233 = vmul.f32 %v6000, %v6196
      %v6234 = vmul.f32 %v6007, %v6196
      %v6235 = vmul.f32 %v6014, %v6196
      %v6236 = vmul.f32 %v6021, %v6196
      %v6237 = vmul.f32 %v6028, %v6196
      %v6238 = vmul.f32 %v6035, %v6196
      %v6239 = vmul.f32 %v6042, %v6196
      %v6240 = vmul.f32 %v6049, %v6196
      %v6241 = vmul.f32 %v6056, %v6196
      %v6242 = vmul.f32 %v6063, %v6196
      %v6243 = vmul.f32 %v6070, %v6196
      %v6244 = vmul.f32 %v6077, %v6196
      %v6245 = vmul.f32 %v6084, %v6196
      %v6246 = vmul.f32 %v6091, %v6196
      %v6247 = vmul.f32 %v6098, %v6196
      %v6248 = vmul.f32 %v6105, %v6196
      %v6249 = vmul.f32 %v6112, %v6196
      %v6250 = vmul.f32 %v6119, %v6196
      %v6251 = vmul.f32 %v6126, %v6196
      %v6252 = vmul.f32 %v6133, %v6196
      %v6253 = vmul.f32 %v6140, %v6196
      %v6254 = vmul.f32 %v6147, %v6196
      %v6255 = vmul.f32 %v6154, %v6196
      %v6256 = vmul.f32 %v6161, %v6196
      %v6257 = vmul.f32 %v6168, %v6196
      %v6258 = vmul.f32 %v6175, %v6196
      %v6259 = vmul.f32 %v6182, %v6196
      %v6260 = vmul.f32 %v6189, %v6196
      %v6261 = vmul.f32 %v5566, %v5566
      %v6262 = vmul.f32 %v5677, %v5677
      %v6263 = vmul.f32 %v5568, %v5568
      %v6264 = vmul.f32 %v5678, %v5678
      %v6265 = vmul.f32 %v5571, %v5571
      %v6266 = vmul.f32 %v5679, %v5679
      %v6267 = vmul.f32 %v5573, %v5573
      %v6268 = vmul.f32 %v5680, %v5680
      %v6269 = vmul.f32 %v5576, %v5576
      %v6270 = vmul.f32 %v5681, %v5681
      %v6271 = vmul.f32 %v5578, %v5578
      %v6272 = vmul.f32 %v5682, %v5682
      %v6273 = vmul.f32 %v5581, %v5581
      %v6274 = vmul.f32 %v5683, %v5683
      %v6275 = vmul.f32 %v5583, %v5583
      %v6276 = vmul.f32 %v5684, %v5684
      %v6277 = vmul.f32 %v5586, %v5586
      %v6278 = vmul.f32 %v5685, %v5685
      %v6279 = vmul.f32 %v5588, %v5588
      %v6280 = vmul.f32 %v5686, %v5686
      %v6281 = vmul.f32 %v5591, %v5591
      %v6282 = vmul.f32 %v5687, %v5687
      %v6283 = vmul.f32 %v5593, %v5593
      %v6284 = vmul.f32 %v5688, %v5688
      %v6285 = vmul.f32 %v5596, %v5596
      %v6286 = vmul.f32 %v5689, %v5689
      %v6287 = vmul.f32 %v5598, %v5598
      %v6288 = vmul.f32 %v5690, %v5690
      %v6289 = vmul.f32 %v5601, %v5601
      %v6290 = vmul.f32 %v5691, %v5691
      %v6291 = vmul.f32 %v5603, %v5603
      %v6292 = vmul.f32 %v5692, %v5692
      %v6293 = vmul.f32 %v5606, %v5606
      %v6294 = vmul.f32 %v5693, %v5693
      %v6295 = vmul.f32 %v5608, %v5608
      %v6296 = vmul.f32 %v5694, %v5694
      %v6297 = vmul.f32 %v5611, %v5611
      %v6298 = vmul.f32 %v5695, %v5695
      %v6299 = vmul.f32 %v5613, %v5613
      %v6300 = vmul.f32 %v5696, %v5696
      %v6301 = vmul.f32 %v5616, %v5616
      %v6302 = vmul.f32 %v5697, %v5697
      %v6303 = vmul.f32 %v5618, %v5618
      %v6304 = vmul.f32 %v5698, %v5698
      %v6305 = vmul.f32 %v5621, %v5621
      %v6306 = vmul.f32 %v5699, %v5699
      %v6307 = vmul.f32 %v5623, %v5623
      %v6308 = vmul.f32 %v5700, %v5700
      %v6309 = vmul.f32 %v5626, %v5626
      %v6310 = vmul.f32 %v5701, %v5701
      %v6311 = vmul.f32 %v5628, %v5628
      %v6312 = vmul.f32 %v5702, %v5702
      %v6313 = vmul.f32 %v5631, %v5631
      %v6314 = vmul.f32 %v5703, %v5703
      %v6315 = vmul.f32 %v5633, %v5633
      %v6316 = vmul.f32 %v5704, %v5704
      %v6317 = vmul.f32 %v5636, %v5636
      %v6318 = vmul.f32 %v5705, %v5705
      %v6319 = vmul.f32 %v5638, %v5638
      %v6320 = vmul.f32 %v5706, %v5706
      %v6321 = vmul.f32 %v5641, %v5641
      %v6322 = vmul.f32 %v5707, %v5707
      %v6323 = vmul.f32 %v5643, %v5643
      %v6324 = vmul.f32 %v5708, %v5708
      %v6325 = vsel %vm5741, %v6261, 0.0
      %v6326 = vrot.slane %v6325, 4
      %v6327 = vadd.f32 %v6325, %v6326
      %v6328 = vrot.slane %v6327, 2
      %v6329 = vadd.f32 %v6327, %v6328
      %v6330 = vrot.slane %v6329, 1
      %v6331 = vadd.f32 %v6329, %v6330
      %v6332 = vsel %vm5741, %v6262, 0.0
      %v6333 = vrot.slane %v6332, 4
      %v6334 = vadd.f32 %v6332, %v6333
      %v6335 = vrot.slane %v6334, 2
      %v6336 = vadd.f32 %v6334, %v6335
      %v6337 = vrot.slane %v6336, 1
      %v6338 = vadd.f32 %v6336, %v6337
      %v6339 = vsel %vm5741, %v6263, 0.0
      %v6340 = vrot.slane %v6339, 4
      %v6341 = vadd.f32 %v6339, %v6340
      %v6342 = vrot.slane %v6341, 2
      %v6343 = vadd.f32 %v6341, %v6342
      %v6344 = vrot.slane %v6343, 1
      %v6345 = vadd.f32 %v6343, %v6344
      %v6346 = vsel %vm5741, %v6264, 0.0
      %v6347 = vrot.slane %v6346, 4
      %v6348 = vadd.f32 %v6346, %v6347
      %v6349 = vrot.slane %v6348, 2
      %v6350 = vadd.f32 %v6348, %v6349
      %v6351 = vrot.slane %v6350, 1
      %v6352 = vadd.f32 %v6350, %v6351
      %v6353 = vsel %vm5741, %v6265, 0.0
      %v6354 = vrot.slane %v6353, 4
      %v6355 = vadd.f32 %v6353, %v6354
      %v6356 = vrot.slane %v6355, 2
      %v6357 = vadd.f32 %v6355, %v6356
      %v6358 = vrot.slane %v6357, 1
      %v6359 = vadd.f32 %v6357, %v6358
      %v6360 = vsel %vm5741, %v6266, 0.0
      %v6361 = vrot.slane %v6360, 4
      %v6362 = vadd.f32 %v6360, %v6361
      %v6363 = vrot.slane %v6362, 2
      %v6364 = vadd.f32 %v6362, %v6363
      %v6365 = vrot.slane %v6364, 1
      %v6366 = vadd.f32 %v6364, %v6365
      %v6367 = vsel %vm5741, %v6267, 0.0
      %v6368 = vrot.slane %v6367, 4
      %v6369 = vadd.f32 %v6367, %v6368
      %v6370 = vrot.slane %v6369, 2
      %v6371 = vadd.f32 %v6369, %v6370
      %v6372 = vrot.slane %v6371, 1
      %v6373 = vadd.f32 %v6371, %v6372
      %v6374 = vsel %vm5741, %v6268, 0.0
      %v6375 = vrot.slane %v6374, 4
      %v6376 = vadd.f32 %v6374, %v6375
      %v6377 = vrot.slane %v6376, 2
      %v6378 = vadd.f32 %v6376, %v6377
      %v6379 = vrot.slane %v6378, 1
      %v6380 = vadd.f32 %v6378, %v6379
      %v6381 = vsel %vm5741, %v6269, 0.0
      %v6382 = vrot.slane %v6381, 4
      %v6383 = vadd.f32 %v6381, %v6382
      %v6384 = vrot.slane %v6383, 2
      %v6385 = vadd.f32 %v6383, %v6384
      %v6386 = vrot.slane %v6385, 1
      %v6387 = vadd.f32 %v6385, %v6386
      %v6388 = vsel %vm5741, %v6270, 0.0
      %v6389 = vrot.slane %v6388, 4
      %v6390 = vadd.f32 %v6388, %v6389
      %v6391 = vrot.slane %v6390, 2
      %v6392 = vadd.f32 %v6390, %v6391
      %v6393 = vrot.slane %v6392, 1
      %v6394 = vadd.f32 %v6392, %v6393
      %v6395 = vsel %vm5741, %v6271, 0.0
      %v6396 = vrot.slane %v6395, 4
      %v6397 = vadd.f32 %v6395, %v6396
      %v6398 = vrot.slane %v6397, 2
      %v6399 = vadd.f32 %v6397, %v6398
      %v6400 = vrot.slane %v6399, 1
      %v6401 = vadd.f32 %v6399, %v6400
      %v6402 = vsel %vm5741, %v6272, 0.0
      %v6403 = vrot.slane %v6402, 4
      %v6404 = vadd.f32 %v6402, %v6403
      %v6405 = vrot.slane %v6404, 2
      %v6406 = vadd.f32 %v6404, %v6405
      %v6407 = vrot.slane %v6406, 1
      %v6408 = vadd.f32 %v6406, %v6407
      %v6409 = vsel %vm5741, %v6273, 0.0
      %v6410 = vrot.slane %v6409, 4
      %v6411 = vadd.f32 %v6409, %v6410
      %v6412 = vrot.slane %v6411, 2
      %v6413 = vadd.f32 %v6411, %v6412
      %v6414 = vrot.slane %v6413, 1
      %v6415 = vadd.f32 %v6413, %v6414
      %v6416 = vsel %vm5741, %v6274, 0.0
      %v6417 = vrot.slane %v6416, 4
      %v6418 = vadd.f32 %v6416, %v6417
      %v6419 = vrot.slane %v6418, 2
      %v6420 = vadd.f32 %v6418, %v6419
      %v6421 = vrot.slane %v6420, 1
      %v6422 = vadd.f32 %v6420, %v6421
      %v6423 = vsel %vm5741, %v6275, 0.0
      %v6424 = vrot.slane %v6423, 4
      %v6425 = vadd.f32 %v6423, %v6424
      %v6426 = vrot.slane %v6425, 2
      %v6427 = vadd.f32 %v6425, %v6426
      %v6428 = vrot.slane %v6427, 1
      %v6429 = vadd.f32 %v6427, %v6428
      %v6430 = vsel %vm5741, %v6276, 0.0
      %v6431 = vrot.slane %v6430, 4
      %v6432 = vadd.f32 %v6430, %v6431
      %v6433 = vrot.slane %v6432, 2
      %v6434 = vadd.f32 %v6432, %v6433
      %v6435 = vrot.slane %v6434, 1
      %v6436 = vadd.f32 %v6434, %v6435
      %v6437 = vsel %vm5741, %v6277, 0.0
      %v6438 = vrot.slane %v6437, 4
      %v6439 = vadd.f32 %v6437, %v6438
      %v6440 = vrot.slane %v6439, 2
      %v6441 = vadd.f32 %v6439, %v6440
      %v6442 = vrot.slane %v6441, 1
      %v6443 = vadd.f32 %v6441, %v6442
      %v6444 = vsel %vm5741, %v6278, 0.0
      %v6445 = vrot.slane %v6444, 4
      %v6446 = vadd.f32 %v6444, %v6445
      %v6447 = vrot.slane %v6446, 2
      %v6448 = vadd.f32 %v6446, %v6447
      %v6449 = vrot.slane %v6448, 1
      %v6450 = vadd.f32 %v6448, %v6449
      %v6451 = vsel %vm5741, %v6279, 0.0
      %v6452 = vrot.slane %v6451, 4
      %v6453 = vadd.f32 %v6451, %v6452
      %v6454 = vrot.slane %v6453, 2
      %v6455 = vadd.f32 %v6453, %v6454
      %v6456 = vrot.slane %v6455, 1
      %v6457 = vadd.f32 %v6455, %v6456
      %v6458 = vsel %vm5741, %v6280, 0.0
      %v6459 = vrot.slane %v6458, 4
      %v6460 = vadd.f32 %v6458, %v6459
      %v6461 = vrot.slane %v6460, 2
      %v6462 = vadd.f32 %v6460, %v6461
      %v6463 = vrot.slane %v6462, 1
      %v6464 = vadd.f32 %v6462, %v6463
      %v6465 = vsel %vm5741, %v6281, 0.0
      %v6466 = vrot.slane %v6465, 4
      %v6467 = vadd.f32 %v6465, %v6466
      %v6468 = vrot.slane %v6467, 2
      %v6469 = vadd.f32 %v6467, %v6468
      %v6470 = vrot.slane %v6469, 1
      %v6471 = vadd.f32 %v6469, %v6470
      %v6472 = vsel %vm5741, %v6282, 0.0
      %v6473 = vrot.slane %v6472, 4
      %v6474 = vadd.f32 %v6472, %v6473
      %v6475 = vrot.slane %v6474, 2
      %v6476 = vadd.f32 %v6474, %v6475
      %v6477 = vrot.slane %v6476, 1
      %v6478 = vadd.f32 %v6476, %v6477
      %v6479 = vsel %vm5741, %v6283, 0.0
      %v6480 = vrot.slane %v6479, 4
      %v6481 = vadd.f32 %v6479, %v6480
      %v6482 = vrot.slane %v6481, 2
      %v6483 = vadd.f32 %v6481, %v6482
      %v6484 = vrot.slane %v6483, 1
      %v6485 = vadd.f32 %v6483, %v6484
      %v6486 = vsel %vm5741, %v6284, 0.0
      %v6487 = vrot.slane %v6486, 4
      %v6488 = vadd.f32 %v6486, %v6487
      %v6489 = vrot.slane %v6488, 2
      %v6490 = vadd.f32 %v6488, %v6489
      %v6491 = vrot.slane %v6490, 1
      %v6492 = vadd.f32 %v6490, %v6491
      %v6493 = vsel %vm5741, %v6285, 0.0
      %v6494 = vrot.slane %v6493, 4
      %v6495 = vadd.f32 %v6493, %v6494
      %v6496 = vrot.slane %v6495, 2
      %v6497 = vadd.f32 %v6495, %v6496
      %v6498 = vrot.slane %v6497, 1
      %v6499 = vadd.f32 %v6497, %v6498
      %v6500 = vsel %vm5741, %v6286, 0.0
      %v6501 = vrot.slane %v6500, 4
      %v6502 = vadd.f32 %v6500, %v6501
      %v6503 = vrot.slane %v6502, 2
      %v6504 = vadd.f32 %v6502, %v6503
      %v6505 = vrot.slane %v6504, 1
      %v6506 = vadd.f32 %v6504, %v6505
      %v6507 = vsel %vm5741, %v6287, 0.0
      %v6508 = vrot.slane %v6507, 4
      %v6509 = vadd.f32 %v6507, %v6508
      %v6510 = vrot.slane %v6509, 2
      %v6511 = vadd.f32 %v6509, %v6510
      %v6512 = vrot.slane %v6511, 1
      %v6513 = vadd.f32 %v6511, %v6512
      %v6514 = vsel %vm5741, %v6288, 0.0
      %v6515 = vrot.slane %v6514, 4
      %v6516 = vadd.f32 %v6514, %v6515
      %v6517 = vrot.slane %v6516, 2
      %v6518 = vadd.f32 %v6516, %v6517
      %v6519 = vrot.slane %v6518, 1
      %v6520 = vadd.f32 %v6518, %v6519
      %v6521 = vsel %vm5741, %v6289, 0.0
      %v6522 = vrot.slane %v6521, 4
      %v6523 = vadd.f32 %v6521, %v6522
      %v6524 = vrot.slane %v6523, 2
      %v6525 = vadd.f32 %v6523, %v6524
      %v6526 = vrot.slane %v6525, 1
      %v6527 = vadd.f32 %v6525, %v6526
      %v6528 = vsel %vm5741, %v6290, 0.0
      %v6529 = vrot.slane %v6528, 4
      %v6530 = vadd.f32 %v6528, %v6529
      %v6531 = vrot.slane %v6530, 2
      %v6532 = vadd.f32 %v6530, %v6531
      %v6533 = vrot.slane %v6532, 1
      %v6534 = vadd.f32 %v6532, %v6533
      %v6535 = vsel %vm5741, %v6291, 0.0
      %v6536 = vrot.slane %v6535, 4
      %v6537 = vadd.f32 %v6535, %v6536
      %v6538 = vrot.slane %v6537, 2
      %v6539 = vadd.f32 %v6537, %v6538
      %v6540 = vrot.slane %v6539, 1
      %v6541 = vadd.f32 %v6539, %v6540
      %v6542 = vsel %vm5741, %v6292, 0.0
      %v6543 = vrot.slane %v6542, 4
      %v6544 = vadd.f32 %v6542, %v6543
      %v6545 = vrot.slane %v6544, 2
      %v6546 = vadd.f32 %v6544, %v6545
      %v6547 = vrot.slane %v6546, 1
      %v6548 = vadd.f32 %v6546, %v6547
      %v6549 = vsel %vm5741, %v6293, 0.0
      %v6550 = vrot.slane %v6549, 4
      %v6551 = vadd.f32 %v6549, %v6550
      %v6552 = vrot.slane %v6551, 2
      %v6553 = vadd.f32 %v6551, %v6552
      %v6554 = vrot.slane %v6553, 1
      %v6555 = vadd.f32 %v6553, %v6554
      %v6556 = vsel %vm5741, %v6294, 0.0
      %v6557 = vrot.slane %v6556, 4
      %v6558 = vadd.f32 %v6556, %v6557
      %v6559 = vrot.slane %v6558, 2
      %v6560 = vadd.f32 %v6558, %v6559
      %v6561 = vrot.slane %v6560, 1
      %v6562 = vadd.f32 %v6560, %v6561
      %v6563 = vsel %vm5741, %v6295, 0.0
      %v6564 = vrot.slane %v6563, 4
      %v6565 = vadd.f32 %v6563, %v6564
      %v6566 = vrot.slane %v6565, 2
      %v6567 = vadd.f32 %v6565, %v6566
      %v6568 = vrot.slane %v6567, 1
      %v6569 = vadd.f32 %v6567, %v6568
      %v6570 = vsel %vm5741, %v6296, 0.0
      %v6571 = vrot.slane %v6570, 4
      %v6572 = vadd.f32 %v6570, %v6571
      %v6573 = vrot.slane %v6572, 2
      %v6574 = vadd.f32 %v6572, %v6573
      %v6575 = vrot.slane %v6574, 1
      %v6576 = vadd.f32 %v6574, %v6575
      %v6577 = vsel %vm5741, %v6297, 0.0
      %v6578 = vrot.slane %v6577, 4
      %v6579 = vadd.f32 %v6577, %v6578
      %v6580 = vrot.slane %v6579, 2
      %v6581 = vadd.f32 %v6579, %v6580
      %v6582 = vrot.slane %v6581, 1
      %v6583 = vadd.f32 %v6581, %v6582
      %v6584 = vsel %vm5741, %v6298, 0.0
      %v6585 = vrot.slane %v6584, 4
      %v6586 = vadd.f32 %v6584, %v6585
      %v6587 = vrot.slane %v6586, 2
      %v6588 = vadd.f32 %v6586, %v6587
      %v6589 = vrot.slane %v6588, 1
      %v6590 = vadd.f32 %v6588, %v6589
      %v6591 = vsel %vm5741, %v6299, 0.0
      %v6592 = vrot.slane %v6591, 4
      %v6593 = vadd.f32 %v6591, %v6592
      %v6594 = vrot.slane %v6593, 2
      %v6595 = vadd.f32 %v6593, %v6594
      %v6596 = vrot.slane %v6595, 1
      %v6597 = vadd.f32 %v6595, %v6596
      %v6598 = vsel %vm5741, %v6300, 0.0
      %v6599 = vrot.slane %v6598, 4
      %v6600 = vadd.f32 %v6598, %v6599
      %v6601 = vrot.slane %v6600, 2
      %v6602 = vadd.f32 %v6600, %v6601
      %v6603 = vrot.slane %v6602, 1
      %v6604 = vadd.f32 %v6602, %v6603
      %v6605 = vsel %vm5741, %v6301, 0.0
      %v6606 = vrot.slane %v6605, 4
      %v6607 = vadd.f32 %v6605, %v6606
      %v6608 = vrot.slane %v6607, 2
      %v6609 = vadd.f32 %v6607, %v6608
      %v6610 = vrot.slane %v6609, 1
      %v6611 = vadd.f32 %v6609, %v6610
      %v6612 = vsel %vm5741, %v6302, 0.0
      %v6613 = vrot.slane %v6612, 4
      %v6614 = vadd.f32 %v6612, %v6613
      %v6615 = vrot.slane %v6614, 2
      %v6616 = vadd.f32 %v6614, %v6615
      %v6617 = vrot.slane %v6616, 1
      %v6618 = vadd.f32 %v6616, %v6617
      %v6619 = vsel %vm5741, %v6303, 0.0
      %v6620 = vrot.slane %v6619, 4
      %v6621 = vadd.f32 %v6619, %v6620
      %v6622 = vrot.slane %v6621, 2
      %v6623 = vadd.f32 %v6621, %v6622
      %v6624 = vrot.slane %v6623, 1
      %v6625 = vadd.f32 %v6623, %v6624
      %v6626 = vsel %vm5741, %v6304, 0.0
      %v6627 = vrot.slane %v6626, 4
      %v6628 = vadd.f32 %v6626, %v6627
      %v6629 = vrot.slane %v6628, 2
      %v6630 = vadd.f32 %v6628, %v6629
      %v6631 = vrot.slane %v6630, 1
      %v6632 = vadd.f32 %v6630, %v6631
      %v6633 = vsel %vm5741, %v6305, 0.0
      %v6634 = vrot.slane %v6633, 4
      %v6635 = vadd.f32 %v6633, %v6634
      %v6636 = vrot.slane %v6635, 2
      %v6637 = vadd.f32 %v6635, %v6636
      %v6638 = vrot.slane %v6637, 1
      %v6639 = vadd.f32 %v6637, %v6638
      %v6640 = vsel %vm5741, %v6306, 0.0
      %v6641 = vrot.slane %v6640, 4
      %v6642 = vadd.f32 %v6640, %v6641
      %v6643 = vrot.slane %v6642, 2
      %v6644 = vadd.f32 %v6642, %v6643
      %v6645 = vrot.slane %v6644, 1
      %v6646 = vadd.f32 %v6644, %v6645
      %v6647 = vsel %vm5741, %v6307, 0.0
      %v6648 = vrot.slane %v6647, 4
      %v6649 = vadd.f32 %v6647, %v6648
      %v6650 = vrot.slane %v6649, 2
      %v6651 = vadd.f32 %v6649, %v6650
      %v6652 = vrot.slane %v6651, 1
      %v6653 = vadd.f32 %v6651, %v6652
      %v6654 = vsel %vm5741, %v6308, 0.0
      %v6655 = vrot.slane %v6654, 4
      %v6656 = vadd.f32 %v6654, %v6655
      %v6657 = vrot.slane %v6656, 2
      %v6658 = vadd.f32 %v6656, %v6657
      %v6659 = vrot.slane %v6658, 1
      %v6660 = vadd.f32 %v6658, %v6659
      %v6661 = vsel %vm5741, %v6309, 0.0
      %v6662 = vrot.slane %v6661, 4
      %v6663 = vadd.f32 %v6661, %v6662
      %v6664 = vrot.slane %v6663, 2
      %v6665 = vadd.f32 %v6663, %v6664
      %v6666 = vrot.slane %v6665, 1
      %v6667 = vadd.f32 %v6665, %v6666
      %v6668 = vsel %vm5741, %v6310, 0.0
      %v6669 = vrot.slane %v6668, 4
      %v6670 = vadd.f32 %v6668, %v6669
      %v6671 = vrot.slane %v6670, 2
      %v6672 = vadd.f32 %v6670, %v6671
      %v6673 = vrot.slane %v6672, 1
      %v6674 = vadd.f32 %v6672, %v6673
      %v6675 = vsel %vm5741, %v6311, 0.0
      %v6676 = vrot.slane %v6675, 4
      %v6677 = vadd.f32 %v6675, %v6676
      %v6678 = vrot.slane %v6677, 2
      %v6679 = vadd.f32 %v6677, %v6678
      %v6680 = vrot.slane %v6679, 1
      %v6681 = vadd.f32 %v6679, %v6680
      %v6682 = vsel %vm5741, %v6312, 0.0
      %v6683 = vrot.slane %v6682, 4
      %v6684 = vadd.f32 %v6682, %v6683
      %v6685 = vrot.slane %v6684, 2
      %v6686 = vadd.f32 %v6684, %v6685
      %v6687 = vrot.slane %v6686, 1
      %v6688 = vadd.f32 %v6686, %v6687
      %v6689 = vsel %vm5741, %v6313, 0.0
      %v6690 = vrot.slane %v6689, 4
      %v6691 = vadd.f32 %v6689, %v6690
      %v6692 = vrot.slane %v6691, 2
      %v6693 = vadd.f32 %v6691, %v6692
      %v6694 = vrot.slane %v6693, 1
      %v6695 = vadd.f32 %v6693, %v6694
      %v6696 = vsel %vm5741, %v6314, 0.0
      %v6697 = vrot.slane %v6696, 4
      %v6698 = vadd.f32 %v6696, %v6697
      %v6699 = vrot.slane %v6698, 2
      %v6700 = vadd.f32 %v6698, %v6699
      %v6701 = vrot.slane %v6700, 1
      %v6702 = vadd.f32 %v6700, %v6701
      %v6703 = vsel %vm5741, %v6315, 0.0
      %v6704 = vrot.slane %v6703, 4
      %v6705 = vadd.f32 %v6703, %v6704
      %v6706 = vrot.slane %v6705, 2
      %v6707 = vadd.f32 %v6705, %v6706
      %v6708 = vrot.slane %v6707, 1
      %v6709 = vadd.f32 %v6707, %v6708
      %v6710 = vsel %vm5741, %v6316, 0.0
      %v6711 = vrot.slane %v6710, 4
      %v6712 = vadd.f32 %v6710, %v6711
      %v6713 = vrot.slane %v6712, 2
      %v6714 = vadd.f32 %v6712, %v6713
      %v6715 = vrot.slane %v6714, 1
      %v6716 = vadd.f32 %v6714, %v6715
      %v6717 = vsel %vm5741, %v6317, 0.0
      %v6718 = vrot.slane %v6717, 4
      %v6719 = vadd.f32 %v6717, %v6718
      %v6720 = vrot.slane %v6719, 2
      %v6721 = vadd.f32 %v6719, %v6720
      %v6722 = vrot.slane %v6721, 1
      %v6723 = vadd.f32 %v6721, %v6722
      %v6724 = vsel %vm5741, %v6318, 0.0
      %v6725 = vrot.slane %v6724, 4
      %v6726 = vadd.f32 %v6724, %v6725
      %v6727 = vrot.slane %v6726, 2
      %v6728 = vadd.f32 %v6726, %v6727
      %v6729 = vrot.slane %v6728, 1
      %v6730 = vadd.f32 %v6728, %v6729
      %v6731 = vsel %vm5741, %v6319, 0.0
      %v6732 = vrot.slane %v6731, 4
      %v6733 = vadd.f32 %v6731, %v6732
      %v6734 = vrot.slane %v6733, 2
      %v6735 = vadd.f32 %v6733, %v6734
      %v6736 = vrot.slane %v6735, 1
      %v6737 = vadd.f32 %v6735, %v6736
      %v6738 = vsel %vm5741, %v6320, 0.0
      %v6739 = vrot.slane %v6738, 4
      %v6740 = vadd.f32 %v6738, %v6739
      %v6741 = vrot.slane %v6740, 2
      %v6742 = vadd.f32 %v6740, %v6741
      %v6743 = vrot.slane %v6742, 1
      %v6744 = vadd.f32 %v6742, %v6743
      %v6745 = vsel %vm5741, %v6321, 0.0
      %v6746 = vrot.slane %v6745, 4
      %v6747 = vadd.f32 %v6745, %v6746
      %v6748 = vrot.slane %v6747, 2
      %v6749 = vadd.f32 %v6747, %v6748
      %v6750 = vrot.slane %v6749, 1
      %v6751 = vadd.f32 %v6749, %v6750
      %v6752 = vsel %vm5741, %v6322, 0.0
      %v6753 = vrot.slane %v6752, 4
      %v6754 = vadd.f32 %v6752, %v6753
      %v6755 = vrot.slane %v6754, 2
      %v6756 = vadd.f32 %v6754, %v6755
      %v6757 = vrot.slane %v6756, 1
      %v6758 = vadd.f32 %v6756, %v6757
      %v6759 = vsel %vm5741, %v6323, 0.0
      %v6760 = vrot.slane %v6759, 4
      %v6761 = vadd.f32 %v6759, %v6760
      %v6762 = vrot.slane %v6761, 2
      %v6763 = vadd.f32 %v6761, %v6762
      %v6764 = vrot.slane %v6763, 1
      %v6765 = vadd.f32 %v6763, %v6764
      %v6766 = vsel %vm5741, %v6324, 0.0
      %v6767 = vrot.slane %v6766, 4
      %v6768 = vadd.f32 %v6766, %v6767
      %v6769 = vrot.slane %v6768, 2
      %v6770 = vadd.f32 %v6768, %v6769
      %v6771 = vrot.slane %v6770, 1
      %v6772 = vadd.f32 %v6770, %v6771
      %v6773 = vmul.f32 %v6331, %v6196
      %v6774 = vmul.f32 %v6338, %v6196
      %v6775 = vmul.f32 %v6345, %v6196
      %v6776 = vmul.f32 %v6352, %v6196
      %v6777 = vmul.f32 %v6359, %v6196
      %v6778 = vmul.f32 %v6366, %v6196
      %v6779 = vmul.f32 %v6373, %v6196
      %v6780 = vmul.f32 %v6380, %v6196
      %v6781 = vmul.f32 %v6387, %v6196
      %v6782 = vmul.f32 %v6394, %v6196
      %v6783 = vmul.f32 %v6401, %v6196
      %v6784 = vmul.f32 %v6408, %v6196
      %v6785 = vmul.f32 %v6415, %v6196
      %v6786 = vmul.f32 %v6422, %v6196
      %v6787 = vmul.f32 %v6429, %v6196
      %v6788 = vmul.f32 %v6436, %v6196
      %v6789 = vmul.f32 %v6443, %v6196
      %v6790 = vmul.f32 %v6450, %v6196
      %v6791 = vmul.f32 %v6457, %v6196
      %v6792 = vmul.f32 %v6464, %v6196
      %v6793 = vmul.f32 %v6471, %v6196
      %v6794 = vmul.f32 %v6478, %v6196
      %v6795 = vmul.f32 %v6485, %v6196
      %v6796 = vmul.f32 %v6492, %v6196
      %v6797 = vmul.f32 %v6499, %v6196
      %v6798 = vmul.f32 %v6506, %v6196
      %v6799 = vmul.f32 %v6513, %v6196
      %v6800 = vmul.f32 %v6520, %v6196
      %v6801 = vmul.f32 %v6527, %v6196
      %v6802 = vmul.f32 %v6534, %v6196
      %v6803 = vmul.f32 %v6541, %v6196
      %v6804 = vmul.f32 %v6548, %v6196
      %v6805 = vmul.f32 %v6555, %v6196
      %v6806 = vmul.f32 %v6562, %v6196
      %v6807 = vmul.f32 %v6569, %v6196
      %v6808 = vmul.f32 %v6576, %v6196
      %v6809 = vmul.f32 %v6583, %v6196
      %v6810 = vmul.f32 %v6590, %v6196
      %v6811 = vmul.f32 %v6597, %v6196
      %v6812 = vmul.f32 %v6604, %v6196
      %v6813 = vmul.f32 %v6611, %v6196
      %v6814 = vmul.f32 %v6618, %v6196
      %v6815 = vmul.f32 %v6625, %v6196
      %v6816 = vmul.f32 %v6632, %v6196
      %v6817 = vmul.f32 %v6639, %v6196
      %v6818 = vmul.f32 %v6646, %v6196
      %v6819 = vmul.f32 %v6653, %v6196
      %v6820 = vmul.f32 %v6660, %v6196
      %v6821 = vmul.f32 %v6667, %v6196
      %v6822 = vmul.f32 %v6674, %v6196
      %v6823 = vmul.f32 %v6681, %v6196
      %v6824 = vmul.f32 %v6688, %v6196
      %v6825 = vmul.f32 %v6695, %v6196
      %v6826 = vmul.f32 %v6702, %v6196
      %v6827 = vmul.f32 %v6709, %v6196
      %v6828 = vmul.f32 %v6716, %v6196
      %v6829 = vmul.f32 %v6723, %v6196
      %v6830 = vmul.f32 %v6730, %v6196
      %v6831 = vmul.f32 %v6737, %v6196
      %v6832 = vmul.f32 %v6744, %v6196
      %v6833 = vmul.f32 %v6751, %v6196
      %v6834 = vmul.f32 %v6758, %v6196
      %v6835 = vmul.f32 %v6765, %v6196
      %v6836 = vmul.f32 %v6772, %v6196
      %v6837 = vmul.f32 %v6197, %v6197
      %v6838 = vmul.f32 %v6198, %v6198
      %v6839 = vmul.f32 %v6199, %v6199
      %v6840 = vmul.f32 %v6200, %v6200
      %v6841 = vmul.f32 %v6201, %v6201
      %v6842 = vmul.f32 %v6202, %v6202
      %v6843 = vmul.f32 %v6203, %v6203
      %v6844 = vmul.f32 %v6204, %v6204
      %v6845 = vmul.f32 %v6205, %v6205
      %v6846 = vmul.f32 %v6206, %v6206
      %v6847 = vmul.f32 %v6207, %v6207
      %v6848 = vmul.f32 %v6208, %v6208
      %v6849 = vmul.f32 %v6209, %v6209
      %v6850 = vmul.f32 %v6210, %v6210
      %v6851 = vmul.f32 %v6211, %v6211
      %v6852 = vmul.f32 %v6212, %v6212
      %v6853 = vmul.f32 %v6213, %v6213
      %v6854 = vmul.f32 %v6214, %v6214
      %v6855 = vmul.f32 %v6215, %v6215
      %v6856 = vmul.f32 %v6216, %v6216
      %v6857 = vmul.f32 %v6217, %v6217
      %v6858 = vmul.f32 %v6218, %v6218
      %v6859 = vmul.f32 %v6219, %v6219
      %v6860 = vmul.f32 %v6220, %v6220
      %v6861 = vmul.f32 %v6221, %v6221
      %v6862 = vmul.f32 %v6222, %v6222
      %v6863 = vmul.f32 %v6223, %v6223
      %v6864 = vmul.f32 %v6224, %v6224
      %v6865 = vmul.f32 %v6225, %v6225
      %v6866 = vmul.f32 %v6226, %v6226
      %v6867 = vmul.f32 %v6227, %v6227
      %v6868 = vmul.f32 %v6228, %v6228
      %v6869 = vmul.f32 %v6229, %v6229
      %v6870 = vmul.f32 %v6230, %v6230
      %v6871 = vmul.f32 %v6231, %v6231
      %v6872 = vmul.f32 %v6232, %v6232
      %v6873 = vmul.f32 %v6233, %v6233
      %v6874 = vmul.f32 %v6234, %v6234
      %v6875 = vmul.f32 %v6235, %v6235
      %v6876 = vmul.f32 %v6236, %v6236
      %v6877 = vmul.f32 %v6237, %v6237
      %v6878 = vmul.f32 %v6238, %v6238
      %v6879 = vmul.f32 %v6239, %v6239
      %v6880 = vmul.f32 %v6240, %v6240
      %v6881 = vmul.f32 %v6241, %v6241
      %v6882 = vmul.f32 %v6242, %v6242
      %v6883 = vmul.f32 %v6243, %v6243
      %v6884 = vmul.f32 %v6244, %v6244
      %v6885 = vmul.f32 %v6245, %v6245
      %v6886 = vmul.f32 %v6246, %v6246
      %v6887 = vmul.f32 %v6247, %v6247
      %v6888 = vmul.f32 %v6248, %v6248
      %v6889 = vmul.f32 %v6249, %v6249
      %v6890 = vmul.f32 %v6250, %v6250
      %v6891 = vmul.f32 %v6251, %v6251
      %v6892 = vmul.f32 %v6252, %v6252
      %v6893 = vmul.f32 %v6253, %v6253
      %v6894 = vmul.f32 %v6254, %v6254
      %v6895 = vmul.f32 %v6255, %v6255
      %v6896 = vmul.f32 %v6256, %v6256
      %v6897 = vmul.f32 %v6257, %v6257
      %v6898 = vmul.f32 %v6258, %v6258
      %v6899 = vmul.f32 %v6259, %v6259
      %v6900 = vmul.f32 %v6260, %v6260
      %v6901 = vsub.f32 %v6773, %v6837
      %v6902 = vsub.f32 %v6774, %v6838
      %v6903 = vsub.f32 %v6775, %v6839
      %v6904 = vsub.f32 %v6776, %v6840
      %v6905 = vsub.f32 %v6777, %v6841
      %v6906 = vsub.f32 %v6778, %v6842
      %v6907 = vsub.f32 %v6779, %v6843
      %v6908 = vsub.f32 %v6780, %v6844
      %v6909 = vsub.f32 %v6781, %v6845
      %v6910 = vsub.f32 %v6782, %v6846
      %v6911 = vsub.f32 %v6783, %v6847
      %v6912 = vsub.f32 %v6784, %v6848
      %v6913 = vsub.f32 %v6785, %v6849
      %v6914 = vsub.f32 %v6786, %v6850
      %v6915 = vsub.f32 %v6787, %v6851
      %v6916 = vsub.f32 %v6788, %v6852
      %v6917 = vsub.f32 %v6789, %v6853
      %v6918 = vsub.f32 %v6790, %v6854
      %v6919 = vsub.f32 %v6791, %v6855
      %v6920 = vsub.f32 %v6792, %v6856
      %v6921 = vsub.f32 %v6793, %v6857
      %v6922 = vsub.f32 %v6794, %v6858
      %v6923 = vsub.f32 %v6795, %v6859
      %v6924 = vsub.f32 %v6796, %v6860
      %v6925 = vsub.f32 %v6797, %v6861
      %v6926 = vsub.f32 %v6798, %v6862
      %v6927 = vsub.f32 %v6799, %v6863
      %v6928 = vsub.f32 %v6800, %v6864
      %v6929 = vsub.f32 %v6801, %v6865
      %v6930 = vsub.f32 %v6802, %v6866
      %v6931 = vsub.f32 %v6803, %v6867
      %v6932 = vsub.f32 %v6804, %v6868
      %v6933 = vsub.f32 %v6805, %v6869
      %v6934 = vsub.f32 %v6806, %v6870
      %v6935 = vsub.f32 %v6807, %v6871
      %v6936 = vsub.f32 %v6808, %v6872
      %v6937 = vsub.f32 %v6809, %v6873
      %v6938 = vsub.f32 %v6810, %v6874
      %v6939 = vsub.f32 %v6811, %v6875
      %v6940 = vsub.f32 %v6812, %v6876
      %v6941 = vsub.f32 %v6813, %v6877
      %v6942 = vsub.f32 %v6814, %v6878
      %v6943 = vsub.f32 %v6815, %v6879
      %v6944 = vsub.f32 %v6816, %v6880
      %v6945 = vsub.f32 %v6817, %v6881
      %v6946 = vsub.f32 %v6818, %v6882
      %v6947 = vsub.f32 %v6819, %v6883
      %v6948 = vsub.f32 %v6820, %v6884
      %v6949 = vsub.f32 %v6821, %v6885
      %v6950 = vsub.f32 %v6822, %v6886
      %v6951 = vsub.f32 %v6823, %v6887
      %v6952 = vsub.f32 %v6824, %v6888
      %v6953 = vsub.f32 %v6825, %v6889
      %v6954 = vsub.f32 %v6826, %v6890
      %v6955 = vsub.f32 %v6827, %v6891
      %v6956 = vsub.f32 %v6828, %v6892
      %v6957 = vsub.f32 %v6829, %v6893
      %v6958 = vsub.f32 %v6830, %v6894
      %v6959 = vsub.f32 %v6831, %v6895
      %v6960 = vsub.f32 %v6832, %v6896
      %v6961 = vsub.f32 %v6833, %v6897
      %v6962 = vsub.f32 %v6834, %v6898
      %v6963 = vsub.f32 %v6835, %v6899
      %v6964 = vsub.f32 %v6836, %v6900
      %v6965 = vsub.f32 %v5566, %v6197
      %v6966 = vsub.f32 %v5677, %v6198
      %v6967 = vsub.f32 %v5568, %v6199
      %v6968 = vsub.f32 %v5678, %v6200
      %v6969 = vsub.f32 %v5571, %v6201
      %v6970 = vsub.f32 %v5679, %v6202
      %v6971 = vsub.f32 %v5573, %v6203
      %v6972 = vsub.f32 %v5680, %v6204
      %v6973 = vsub.f32 %v5576, %v6205
      %v6974 = vsub.f32 %v5681, %v6206
      %v6975 = vsub.f32 %v5578, %v6207
      %v6976 = vsub.f32 %v5682, %v6208
      %v6977 = vsub.f32 %v5581, %v6209
      %v6978 = vsub.f32 %v5683, %v6210
      %v6979 = vsub.f32 %v5583, %v6211
      %v6980 = vsub.f32 %v5684, %v6212
      %v6981 = vsub.f32 %v5586, %v6213
      %v6982 = vsub.f32 %v5685, %v6214
      %v6983 = vsub.f32 %v5588, %v6215
      %v6984 = vsub.f32 %v5686, %v6216
      %v6985 = vsub.f32 %v5591, %v6217
      %v6986 = vsub.f32 %v5687, %v6218
      %v6987 = vsub.f32 %v5593, %v6219
      %v6988 = vsub.f32 %v5688, %v6220
      %v6989 = vsub.f32 %v5596, %v6221
      %v6990 = vsub.f32 %v5689, %v6222
      %v6991 = vsub.f32 %v5598, %v6223
      %v6992 = vsub.f32 %v5690, %v6224
      %v6993 = vsub.f32 %v5601, %v6225
      %v6994 = vsub.f32 %v5691, %v6226
      %v6995 = vsub.f32 %v5603, %v6227
      %v6996 = vsub.f32 %v5692, %v6228
      %v6997 = vsub.f32 %v5606, %v6229
      %v6998 = vsub.f32 %v5693, %v6230
      %v6999 = vsub.f32 %v5608, %v6231
      %v7000 = vsub.f32 %v5694, %v6232
      %v7001 = vsub.f32 %v5611, %v6233
      %v7002 = vsub.f32 %v5695, %v6234
      %v7003 = vsub.f32 %v5613, %v6235
      %v7004 = vsub.f32 %v5696, %v6236
      %v7005 = vsub.f32 %v5616, %v6237
      %v7006 = vsub.f32 %v5697, %v6238
      %v7007 = vsub.f32 %v5618, %v6239
      %v7008 = vsub.f32 %v5698, %v6240
      %v7009 = vsub.f32 %v5621, %v6241
      %v7010 = vsub.f32 %v5699, %v6242
      %v7011 = vsub.f32 %v5623, %v6243
      %v7012 = vsub.f32 %v5700, %v6244
      %v7013 = vsub.f32 %v5626, %v6245
      %v7014 = vsub.f32 %v5701, %v6246
      %v7015 = vsub.f32 %v5628, %v6247
      %v7016 = vsub.f32 %v5702, %v6248
      %v7017 = vsub.f32 %v5631, %v6249
      %v7018 = vsub.f32 %v5703, %v6250
      %v7019 = vsub.f32 %v5633, %v6251
      %v7020 = vsub.f32 %v5704, %v6252
      %v7021 = vsub.f32 %v5636, %v6253
      %v7022 = vsub.f32 %v5705, %v6254
      %v7023 = vsub.f32 %v5638, %v6255
      %v7024 = vsub.f32 %v5706, %v6256
      %v7025 = vsub.f32 %v5641, %v6257
      %v7026 = vsub.f32 %v5707, %v6258
      %v7027 = vsub.f32 %v5643, %v6259
      %v7028 = vsub.f32 %v5708, %v6260
      %v7029 = vadd.f32 %v6901, 1e-05
      %v7030 = vadd.f32 %v6902, 1e-05
      %v7031 = vadd.f32 %v6903, 1e-05
      %v7032 = vadd.f32 %v6904, 1e-05
      %v7033 = vadd.f32 %v6905, 1e-05
      %v7034 = vadd.f32 %v6906, 1e-05
      %v7035 = vadd.f32 %v6907, 1e-05
      %v7036 = vadd.f32 %v6908, 1e-05
      %v7037 = vadd.f32 %v6909, 1e-05
      %v7038 = vadd.f32 %v6910, 1e-05
      %v7039 = vadd.f32 %v6911, 1e-05
      %v7040 = vadd.f32 %v6912, 1e-05
      %v7041 = vadd.f32 %v6913, 1e-05
      %v7042 = vadd.f32 %v6914, 1e-05
      %v7043 = vadd.f32 %v6915, 1e-05
      %v7044 = vadd.f32 %v6916, 1e-05
      %v7045 = vadd.f32 %v6917, 1e-05
      %v7046 = vadd.f32 %v6918, 1e-05
      %v7047 = vadd.f32 %v6919, 1e-05
      %v7048 = vadd.f32 %v6920, 1e-05
      %v7049 = vadd.f32 %v6921, 1e-05
      %v7050 = vadd.f32 %v6922, 1e-05
      %v7051 = vadd.f32 %v6923, 1e-05
      %v7052 = vadd.f32 %v6924, 1e-05
      %v7053 = vadd.f32 %v6925, 1e-05
      %v7054 = vadd.f32 %v6926, 1e-05
      %v7055 = vadd.f32 %v6927, 1e-05
      %v7056 = vadd.f32 %v6928, 1e-05
      %v7057 = vadd.f32 %v6929, 1e-05
      %v7058 = vadd.f32 %v6930, 1e-05
      %v7059 = vadd.f32 %v6931, 1e-05
      %v7060 = vadd.f32 %v6932, 1e-05
      %v7061 = vadd.f32 %v6933, 1e-05
      %v7062 = vadd.f32 %v6934, 1e-05
      %v7063 = vadd.f32 %v6935, 1e-05
      %v7064 = vadd.f32 %v6936, 1e-05
      %v7065 = vadd.f32 %v6937, 1e-05
      %v7066 = vadd.f32 %v6938, 1e-05
      %v7067 = vadd.f32 %v6939, 1e-05
      %v7068 = vadd.f32 %v6940, 1e-05
      %v7069 = vadd.f32 %v6941, 1e-05
      %v7070 = vadd.f32 %v6942, 1e-05
      %v7071 = vadd.f32 %v6943, 1e-05
      %v7072 = vadd.f32 %v6944, 1e-05
      %v7073 = vadd.f32 %v6945, 1e-05
      %v7074 = vadd.f32 %v6946, 1e-05
      %v7075 = vadd.f32 %v6947, 1e-05
      %v7076 = vadd.f32 %v6948, 1e-05
      %v7077 = vadd.f32 %v6949, 1e-05
      %v7078 = vadd.f32 %v6950, 1e-05
      %v7079 = vadd.f32 %v6951, 1e-05
      %v7080 = vadd.f32 %v6952, 1e-05
      %v7081 = vadd.f32 %v6953, 1e-05
      %v7082 = vadd.f32 %v6954, 1e-05
      %v7083 = vadd.f32 %v6955, 1e-05
      %v7084 = vadd.f32 %v6956, 1e-05
      %v7085 = vadd.f32 %v6957, 1e-05
      %v7086 = vadd.f32 %v6958, 1e-05
      %v7087 = vadd.f32 %v6959, 1e-05
      %v7088 = vadd.f32 %v6960, 1e-05
      %v7089 = vadd.f32 %v6961, 1e-05
      %v7090 = vadd.f32 %v6962, 1e-05
      %v7091 = vadd.f32 %v6963, 1e-05
      %v7092 = vadd.f32 %v6964, 1e-05
      %v7093 = vrsqrt.pop %v7029
      %v7094 = vmul.f32 %v7093, %v7029
      %v7095 = vmul.f32 %v7094, %v7093
      %v7096 = vmul.f32 0.5, %v7095
      %v7097 = vsub.f32 1.5, %v7096
      %v7098 = vmul.f32 %v7093, %v7097
      %vm7099 = vweird.f32 %v7029
      %vm7100 = vweird.f32 %v7093
      %vm7101 = vmor %vm7099, %vm7100
      %v7102 = vsel %vm7101, %v7093, %v7098
      %v7103 = vrsqrt.pop %v7030
      %v7104 = vmul.f32 %v7103, %v7030
      %v7105 = vmul.f32 %v7104, %v7103
      %v7106 = vmul.f32 0.5, %v7105
      %v7107 = vsub.f32 1.5, %v7106
      %v7108 = vmul.f32 %v7103, %v7107
      %vm7109 = vweird.f32 %v7030
      %vm7110 = vweird.f32 %v7103
      %vm7111 = vmor %vm7109, %vm7110
      %v7112 = vsel %vm7111, %v7103, %v7108
      %v7113 = vrsqrt.pop %v7031
      %v7114 = vmul.f32 %v7113, %v7031
      %v7115 = vmul.f32 %v7114, %v7113
      %v7116 = vmul.f32 0.5, %v7115
      %v7117 = vsub.f32 1.5, %v7116
      %v7118 = vmul.f32 %v7113, %v7117
      %vm7119 = vweird.f32 %v7031
      %vm7120 = vweird.f32 %v7113
      %vm7121 = vmor %vm7119, %vm7120
      %v7122 = vsel %vm7121, %v7113, %v7118
      %v7123 = vrsqrt.pop %v7032
      %v7124 = vmul.f32 %v7123, %v7032
      %v7125 = vmul.f32 %v7124, %v7123
      %v7126 = vmul.f32 0.5, %v7125
      %v7127 = vsub.f32 1.5, %v7126
      %v7128 = vmul.f32 %v7123, %v7127
      %vm7129 = vweird.f32 %v7032
      %vm7130 = vweird.f32 %v7123
      %vm7131 = vmor %vm7129, %vm7130
      %v7132 = vsel %vm7131, %v7123, %v7128
      %v7133 = vrsqrt.pop %v7033
      %v7134 = vmul.f32 %v7133, %v7033
      %v7135 = vmul.f32 %v7134, %v7133
      %v7136 = vmul.f32 0.5, %v7135
      %v7137 = vsub.f32 1.5, %v7136
      %v7138 = vmul.f32 %v7133, %v7137
      %vm7139 = vweird.f32 %v7033
      %vm7140 = vweird.f32 %v7133
      %vm7141 = vmor %vm7139, %vm7140
      %v7142 = vsel %vm7141, %v7133, %v7138
      %v7143 = vrsqrt.pop %v7034
      %v7144 = vmul.f32 %v7143, %v7034
      %v7145 = vmul.f32 %v7144, %v7143
      %v7146 = vmul.f32 0.5, %v7145
      %v7147 = vsub.f32 1.5, %v7146
      %v7148 = vmul.f32 %v7143, %v7147
      %vm7149 = vweird.f32 %v7034
      %vm7150 = vweird.f32 %v7143
      %vm7151 = vmor %vm7149, %vm7150
      %v7152 = vsel %vm7151, %v7143, %v7148
      %v7153 = vrsqrt.pop %v7035
      %v7154 = vmul.f32 %v7153, %v7035
      %v7155 = vmul.f32 %v7154, %v7153
      %v7156 = vmul.f32 0.5, %v7155
      %v7157 = vsub.f32 1.5, %v7156
      %v7158 = vmul.f32 %v7153, %v7157
      %vm7159 = vweird.f32 %v7035
      %vm7160 = vweird.f32 %v7153
      %vm7161 = vmor %vm7159, %vm7160
      %v7162 = vsel %vm7161, %v7153, %v7158
      %v7163 = vrsqrt.pop %v7036
      %v7164 = vmul.f32 %v7163, %v7036
      %v7165 = vmul.f32 %v7164, %v7163
      %v7166 = vmul.f32 0.5, %v7165
      %v7167 = vsub.f32 1.5, %v7166
      %v7168 = vmul.f32 %v7163, %v7167
      %vm7169 = vweird.f32 %v7036
      %vm7170 = vweird.f32 %v7163
      %vm7171 = vmor %vm7169, %vm7170
      %v7172 = vsel %vm7171, %v7163, %v7168
      %v7173 = vrsqrt.pop %v7037
      %v7174 = vmul.f32 %v7173, %v7037
      %v7175 = vmul.f32 %v7174, %v7173
      %v7176 = vmul.f32 0.5, %v7175
      %v7177 = vsub.f32 1.5, %v7176
      %v7178 = vmul.f32 %v7173, %v7177
      %vm7179 = vweird.f32 %v7037
      %vm7180 = vweird.f32 %v7173
      %vm7181 = vmor %vm7179, %vm7180
      %v7182 = vsel %vm7181, %v7173, %v7178
      %v7183 = vrsqrt.pop %v7038
      %v7184 = vmul.f32 %v7183, %v7038
      %v7185 = vmul.f32 %v7184, %v7183
      %v7186 = vmul.f32 0.5, %v7185
      %v7187 = vsub.f32 1.5, %v7186
      %v7188 = vmul.f32 %v7183, %v7187
      %vm7189 = vweird.f32 %v7038
      %vm7190 = vweird.f32 %v7183
      %vm7191 = vmor %vm7189, %vm7190
      %v7192 = vsel %vm7191, %v7183, %v7188
      %v7193 = vrsqrt.pop %v7039
      %v7194 = vmul.f32 %v7193, %v7039
      %v7195 = vmul.f32 %v7194, %v7193
      %v7196 = vmul.f32 0.5, %v7195
      %v7197 = vsub.f32 1.5, %v7196
      %v7198 = vmul.f32 %v7193, %v7197
      %vm7199 = vweird.f32 %v7039
      %vm7200 = vweird.f32 %v7193
      %vm7201 = vmor %vm7199, %vm7200
      %v7202 = vsel %vm7201, %v7193, %v7198
      %v7203 = vrsqrt.pop %v7040
      %v7204 = vmul.f32 %v7203, %v7040
      %v7205 = vmul.f32 %v7204, %v7203
      %v7206 = vmul.f32 0.5, %v7205
      %v7207 = vsub.f32 1.5, %v7206
      %v7208 = vmul.f32 %v7203, %v7207
      %vm7209 = vweird.f32 %v7040
      %vm7210 = vweird.f32 %v7203
      %vm7211 = vmor %vm7209, %vm7210
      %v7212 = vsel %vm7211, %v7203, %v7208
      %v7213 = vrsqrt.pop %v7041
      %v7214 = vmul.f32 %v7213, %v7041
      %v7215 = vmul.f32 %v7214, %v7213
      %v7216 = vmul.f32 0.5, %v7215
      %v7217 = vsub.f32 1.5, %v7216
      %v7218 = vmul.f32 %v7213, %v7217
      %vm7219 = vweird.f32 %v7041
      %vm7220 = vweird.f32 %v7213
      %vm7221 = vmor %vm7219, %vm7220
      %v7222 = vsel %vm7221, %v7213, %v7218
      %v7223 = vrsqrt.pop %v7042
      %v7224 = vmul.f32 %v7223, %v7042
      %v7225 = vmul.f32 %v7224, %v7223
      %v7226 = vmul.f32 0.5, %v7225
      %v7227 = vsub.f32 1.5, %v7226
      %v7228 = vmul.f32 %v7223, %v7227
      %vm7229 = vweird.f32 %v7042
      %vm7230 = vweird.f32 %v7223
      %vm7231 = vmor %vm7229, %vm7230
      %v7232 = vsel %vm7231, %v7223, %v7228
      %v7233 = vrsqrt.pop %v7043
      %v7234 = vmul.f32 %v7233, %v7043
      %v7235 = vmul.f32 %v7234, %v7233
      %v7236 = vmul.f32 0.5, %v7235
      %v7237 = vsub.f32 1.5, %v7236
      %v7238 = vmul.f32 %v7233, %v7237
      %vm7239 = vweird.f32 %v7043
      %vm7240 = vweird.f32 %v7233
      %vm7241 = vmor %vm7239, %vm7240
      %v7242 = vsel %vm7241, %v7233, %v7238
      %v7243 = vrsqrt.pop %v7044
      %v7244 = vmul.f32 %v7243, %v7044
      %v7245 = vmul.f32 %v7244, %v7243
      %v7246 = vmul.f32 0.5, %v7245
      %v7247 = vsub.f32 1.5, %v7246
      %v7248 = vmul.f32 %v7243, %v7247
      %vm7249 = vweird.f32 %v7044
      %vm7250 = vweird.f32 %v7243
      %vm7251 = vmor %vm7249, %vm7250
      %v7252 = vsel %vm7251, %v7243, %v7248
      %v7253 = vrsqrt.pop %v7045
      %v7254 = vmul.f32 %v7253, %v7045
      %v7255 = vmul.f32 %v7254, %v7253
      %v7256 = vmul.f32 0.5, %v7255
      %v7257 = vsub.f32 1.5, %v7256
      %v7258 = vmul.f32 %v7253, %v7257
      %vm7259 = vweird.f32 %v7045
      %vm7260 = vweird.f32 %v7253
      %vm7261 = vmor %vm7259, %vm7260
      %v7262 = vsel %vm7261, %v7253, %v7258
      %v7263 = vrsqrt.pop %v7046
      %v7264 = vmul.f32 %v7263, %v7046
      %v7265 = vmul.f32 %v7264, %v7263
      %v7266 = vmul.f32 0.5, %v7265
      %v7267 = vsub.f32 1.5, %v7266
      %v7268 = vmul.f32 %v7263, %v7267
      %vm7269 = vweird.f32 %v7046
      %vm7270 = vweird.f32 %v7263
      %vm7271 = vmor %vm7269, %vm7270
      %v7272 = vsel %vm7271, %v7263, %v7268
      %v7273 = vrsqrt.pop %v7047
      %v7274 = vmul.f32 %v7273, %v7047
      %v7275 = vmul.f32 %v7274, %v7273
      %v7276 = vmul.f32 0.5, %v7275
      %v7277 = vsub.f32 1.5, %v7276
      %v7278 = vmul.f32 %v7273, %v7277
      %vm7279 = vweird.f32 %v7047
      %vm7280 = vweird.f32 %v7273
      %vm7281 = vmor %vm7279, %vm7280
      %v7282 = vsel %vm7281, %v7273, %v7278
      %v7283 = vrsqrt.pop %v7048
      %v7284 = vmul.f32 %v7283, %v7048
      %v7285 = vmul.f32 %v7284, %v7283
      %v7286 = vmul.f32 0.5, %v7285
      %v7287 = vsub.f32 1.5, %v7286
      %v7288 = vmul.f32 %v7283, %v7287
      %vm7289 = vweird.f32 %v7048
      %vm7290 = vweird.f32 %v7283
      %vm7291 = vmor %vm7289, %vm7290
      %v7292 = vsel %vm7291, %v7283, %v7288
      %v7293 = vrsqrt.pop %v7049
      %v7294 = vmul.f32 %v7293, %v7049
      %v7295 = vmul.f32 %v7294, %v7293
      %v7296 = vmul.f32 0.5, %v7295
      %v7297 = vsub.f32 1.5, %v7296
      %v7298 = vmul.f32 %v7293, %v7297
      %vm7299 = vweird.f32 %v7049
      %vm7300 = vweird.f32 %v7293
      %vm7301 = vmor %vm7299, %vm7300
      %v7302 = vsel %vm7301, %v7293, %v7298
      %v7303 = vrsqrt.pop %v7050
      %v7304 = vmul.f32 %v7303, %v7050
      %v7305 = vmul.f32 %v7304, %v7303
      %v7306 = vmul.f32 0.5, %v7305
      %v7307 = vsub.f32 1.5, %v7306
      %v7308 = vmul.f32 %v7303, %v7307
      %vm7309 = vweird.f32 %v7050
      %vm7310 = vweird.f32 %v7303
      %vm7311 = vmor %vm7309, %vm7310
      %v7312 = vsel %vm7311, %v7303, %v7308
      %v7313 = vrsqrt.pop %v7051
      %v7314 = vmul.f32 %v7313, %v7051
      %v7315 = vmul.f32 %v7314, %v7313
      %v7316 = vmul.f32 0.5, %v7315
      %v7317 = vsub.f32 1.5, %v7316
      %v7318 = vmul.f32 %v7313, %v7317
      %vm7319 = vweird.f32 %v7051
      %vm7320 = vweird.f32 %v7313
      %vm7321 = vmor %vm7319, %vm7320
      %v7322 = vsel %vm7321, %v7313, %v7318
      %v7323 = vrsqrt.pop %v7052
      %v7324 = vmul.f32 %v7323, %v7052
      %v7325 = vmul.f32 %v7324, %v7323
      %v7326 = vmul.f32 0.5, %v7325
      %v7327 = vsub.f32 1.5, %v7326
      %v7328 = vmul.f32 %v7323, %v7327
      %vm7329 = vweird.f32 %v7052
      %vm7330 = vweird.f32 %v7323
      %vm7331 = vmor %vm7329, %vm7330
      %v7332 = vsel %vm7331, %v7323, %v7328
      %v7333 = vrsqrt.pop %v7053
      %v7334 = vmul.f32 %v7333, %v7053
      %v7335 = vmul.f32 %v7334, %v7333
      %v7336 = vmul.f32 0.5, %v7335
      %v7337 = vsub.f32 1.5, %v7336
      %v7338 = vmul.f32 %v7333, %v7337
      %vm7339 = vweird.f32 %v7053
      %vm7340 = vweird.f32 %v7333
      %vm7341 = vmor %vm7339, %vm7340
      %v7342 = vsel %vm7341, %v7333, %v7338
      %v7343 = vrsqrt.pop %v7054
      %v7344 = vmul.f32 %v7343, %v7054
      %v7345 = vmul.f32 %v7344, %v7343
      %v7346 = vmul.f32 0.5, %v7345
      %v7347 = vsub.f32 1.5, %v7346
      %v7348 = vmul.f32 %v7343, %v7347
      %vm7349 = vweird.f32 %v7054
      %vm7350 = vweird.f32 %v7343
      %vm7351 = vmor %vm7349, %vm7350
      %v7352 = vsel %vm7351, %v7343, %v7348
      %v7353 = vrsqrt.pop %v7055
      %v7354 = vmul.f32 %v7353, %v7055
      %v7355 = vmul.f32 %v7354, %v7353
      %v7356 = vmul.f32 0.5, %v7355
      %v7357 = vsub.f32 1.5, %v7356
      %v7358 = vmul.f32 %v7353, %v7357
      %vm7359 = vweird.f32 %v7055
      %vm7360 = vweird.f32 %v7353
      %vm7361 = vmor %vm7359, %vm7360
      %v7362 = vsel %vm7361, %v7353, %v7358
      %v7363 = vrsqrt.pop %v7056
      %v7364 = vmul.f32 %v7363, %v7056
      %v7365 = vmul.f32 %v7364, %v7363
      %v7366 = vmul.f32 0.5, %v7365
      %v7367 = vsub.f32 1.5, %v7366
      %v7368 = vmul.f32 %v7363, %v7367
      %vm7369 = vweird.f32 %v7056
      %vm7370 = vweird.f32 %v7363
      %vm7371 = vmor %vm7369, %vm7370
      %v7372 = vsel %vm7371, %v7363, %v7368
      %v7373 = vrsqrt.pop %v7057
      %v7374 = vmul.f32 %v7373, %v7057
      %v7375 = vmul.f32 %v7374, %v7373
      %v7376 = vmul.f32 0.5, %v7375
      %v7377 = vsub.f32 1.5, %v7376
      %v7378 = vmul.f32 %v7373, %v7377
      %vm7379 = vweird.f32 %v7057
      %vm7380 = vweird.f32 %v7373
      %vm7381 = vmor %vm7379, %vm7380
      %v7382 = vsel %vm7381, %v7373, %v7378
      %v7383 = vrsqrt.pop %v7058
      %v7384 = vmul.f32 %v7383, %v7058
      %v7385 = vmul.f32 %v7384, %v7383
      %v7386 = vmul.f32 0.5, %v7385
      %v7387 = vsub.f32 1.5, %v7386
      %v7388 = vmul.f32 %v7383, %v7387
      %vm7389 = vweird.f32 %v7058
      %vm7390 = vweird.f32 %v7383
      %vm7391 = vmor %vm7389, %vm7390
      %v7392 = vsel %vm7391, %v7383, %v7388
      %v7393 = vrsqrt.pop %v7059
      %v7394 = vmul.f32 %v7393, %v7059
      %v7395 = vmul.f32 %v7394, %v7393
      %v7396 = vmul.f32 0.5, %v7395
      %v7397 = vsub.f32 1.5, %v7396
      %v7398 = vmul.f32 %v7393, %v7397
      %vm7399 = vweird.f32 %v7059
      %vm7400 = vweird.f32 %v7393
      %vm7401 = vmor %vm7399, %vm7400
      %v7402 = vsel %vm7401, %v7393, %v7398
      %v7403 = vrsqrt.pop %v7060
      %v7404 = vmul.f32 %v7403, %v7060
      %v7405 = vmul.f32 %v7404, %v7403
      %v7406 = vmul.f32 0.5, %v7405
      %v7407 = vsub.f32 1.5, %v7406
      %v7408 = vmul.f32 %v7403, %v7407
      %vm7409 = vweird.f32 %v7060
      %vm7410 = vweird.f32 %v7403
      %vm7411 = vmor %vm7409, %vm7410
      %v7412 = vsel %vm7411, %v7403, %v7408
      %v7413 = vrsqrt.pop %v7061
      %v7414 = vmul.f32 %v7413, %v7061
      %v7415 = vmul.f32 %v7414, %v7413
      %v7416 = vmul.f32 0.5, %v7415
      %v7417 = vsub.f32 1.5, %v7416
      %v7418 = vmul.f32 %v7413, %v7417
      %vm7419 = vweird.f32 %v7061
      %vm7420 = vweird.f32 %v7413
      %vm7421 = vmor %vm7419, %vm7420
      %v7422 = vsel %vm7421, %v7413, %v7418
      %v7423 = vrsqrt.pop %v7062
      %v7424 = vmul.f32 %v7423, %v7062
      %v7425 = vmul.f32 %v7424, %v7423
      %v7426 = vmul.f32 0.5, %v7425
      %v7427 = vsub.f32 1.5, %v7426
      %v7428 = vmul.f32 %v7423, %v7427
      %vm7429 = vweird.f32 %v7062
      %vm7430 = vweird.f32 %v7423
      %vm7431 = vmor %vm7429, %vm7430
      %v7432 = vsel %vm7431, %v7423, %v7428
      %v7433 = vrsqrt.pop %v7063
      %v7434 = vmul.f32 %v7433, %v7063
      %v7435 = vmul.f32 %v7434, %v7433
      %v7436 = vmul.f32 0.5, %v7435
      %v7437 = vsub.f32 1.5, %v7436
      %v7438 = vmul.f32 %v7433, %v7437
      %vm7439 = vweird.f32 %v7063
      %vm7440 = vweird.f32 %v7433
      %vm7441 = vmor %vm7439, %vm7440
      %v7442 = vsel %vm7441, %v7433, %v7438
      %v7443 = vrsqrt.pop %v7064
      %v7444 = vmul.f32 %v7443, %v7064
      %v7445 = vmul.f32 %v7444, %v7443
      %v7446 = vmul.f32 0.5, %v7445
      %v7447 = vsub.f32 1.5, %v7446
      %v7448 = vmul.f32 %v7443, %v7447
      %vm7449 = vweird.f32 %v7064
      %vm7450 = vweird.f32 %v7443
      %vm7451 = vmor %vm7449, %vm7450
      %v7452 = vsel %vm7451, %v7443, %v7448
      %v7453 = vrsqrt.pop %v7065
      %v7454 = vmul.f32 %v7453, %v7065
      %v7455 = vmul.f32 %v7454, %v7453
      %v7456 = vmul.f32 0.5, %v7455
      %v7457 = vsub.f32 1.5, %v7456
      %v7458 = vmul.f32 %v7453, %v7457
      %vm7459 = vweird.f32 %v7065
      %vm7460 = vweird.f32 %v7453
      %vm7461 = vmor %vm7459, %vm7460
      %v7462 = vsel %vm7461, %v7453, %v7458
      %v7463 = vrsqrt.pop %v7066
      %v7464 = vmul.f32 %v7463, %v7066
      %v7465 = vmul.f32 %v7464, %v7463
      %v7466 = vmul.f32 0.5, %v7465
      %v7467 = vsub.f32 1.5, %v7466
      %v7468 = vmul.f32 %v7463, %v7467
      %vm7469 = vweird.f32 %v7066
      %vm7470 = vweird.f32 %v7463
      %vm7471 = vmor %vm7469, %vm7470
      %v7472 = vsel %vm7471, %v7463, %v7468
      %v7473 = vrsqrt.pop %v7067
      %v7474 = vmul.f32 %v7473, %v7067
      %v7475 = vmul.f32 %v7474, %v7473
      %v7476 = vmul.f32 0.5, %v7475
      %v7477 = vsub.f32 1.5, %v7476
      %v7478 = vmul.f32 %v7473, %v7477
      %vm7479 = vweird.f32 %v7067
      %vm7480 = vweird.f32 %v7473
      %vm7481 = vmor %vm7479, %vm7480
      %v7482 = vsel %vm7481, %v7473, %v7478
      %v7483 = vrsqrt.pop %v7068
      %v7484 = vmul.f32 %v7483, %v7068
      %v7485 = vmul.f32 %v7484, %v7483
      %v7486 = vmul.f32 0.5, %v7485
      %v7487 = vsub.f32 1.5, %v7486
      %v7488 = vmul.f32 %v7483, %v7487
      %vm7489 = vweird.f32 %v7068
      %vm7490 = vweird.f32 %v7483
      %vm7491 = vmor %vm7489, %vm7490
      %v7492 = vsel %vm7491, %v7483, %v7488
      %v7493 = vrsqrt.pop %v7069
      %v7494 = vmul.f32 %v7493, %v7069
      %v7495 = vmul.f32 %v7494, %v7493
      %v7496 = vmul.f32 0.5, %v7495
      %v7497 = vsub.f32 1.5, %v7496
      %v7498 = vmul.f32 %v7493, %v7497
      %vm7499 = vweird.f32 %v7069
      %vm7500 = vweird.f32 %v7493
      %vm7501 = vmor %vm7499, %vm7500
      %v7502 = vsel %vm7501, %v7493, %v7498
      %v7503 = vrsqrt.pop %v7070
      %v7504 = vmul.f32 %v7503, %v7070
      %v7505 = vmul.f32 %v7504, %v7503
      %v7506 = vmul.f32 0.5, %v7505
      %v7507 = vsub.f32 1.5, %v7506
      %v7508 = vmul.f32 %v7503, %v7507
      %vm7509 = vweird.f32 %v7070
      %vm7510 = vweird.f32 %v7503
      %vm7511 = vmor %vm7509, %vm7510
      %v7512 = vsel %vm7511, %v7503, %v7508
      %v7513 = vrsqrt.pop %v7071
      %v7514 = vmul.f32 %v7513, %v7071
      %v7515 = vmul.f32 %v7514, %v7513
      %v7516 = vmul.f32 0.5, %v7515
      %v7517 = vsub.f32 1.5, %v7516
      %v7518 = vmul.f32 %v7513, %v7517
      %vm7519 = vweird.f32 %v7071
      %vm7520 = vweird.f32 %v7513
      %vm7521 = vmor %vm7519, %vm7520
      %v7522 = vsel %vm7521, %v7513, %v7518
      %v7523 = vrsqrt.pop %v7072
      %v7524 = vmul.f32 %v7523, %v7072
      %v7525 = vmul.f32 %v7524, %v7523
      %v7526 = vmul.f32 0.5, %v7525
      %v7527 = vsub.f32 1.5, %v7526
      %v7528 = vmul.f32 %v7523, %v7527
      %vm7529 = vweird.f32 %v7072
      %vm7530 = vweird.f32 %v7523
      %vm7531 = vmor %vm7529, %vm7530
      %v7532 = vsel %vm7531, %v7523, %v7528
      %v7533 = vrsqrt.pop %v7073
      %v7534 = vmul.f32 %v7533, %v7073
      %v7535 = vmul.f32 %v7534, %v7533
      %v7536 = vmul.f32 0.5, %v7535
      %v7537 = vsub.f32 1.5, %v7536
      %v7538 = vmul.f32 %v7533, %v7537
      %vm7539 = vweird.f32 %v7073
      %vm7540 = vweird.f32 %v7533
      %vm7541 = vmor %vm7539, %vm7540
      %v7542 = vsel %vm7541, %v7533, %v7538
      %v7543 = vrsqrt.pop %v7074
      %v7544 = vmul.f32 %v7543, %v7074
      %v7545 = vmul.f32 %v7544, %v7543
      %v7546 = vmul.f32 0.5, %v7545
      %v7547 = vsub.f32 1.5, %v7546
      %v7548 = vmul.f32 %v7543, %v7547
      %vm7549 = vweird.f32 %v7074
      %vm7550 = vweird.f32 %v7543
      %vm7551 = vmor %vm7549, %vm7550
      %v7552 = vsel %vm7551, %v7543, %v7548
      %v7553 = vrsqrt.pop %v7075
      %v7554 = vmul.f32 %v7553, %v7075
      %v7555 = vmul.f32 %v7554, %v7553
      %v7556 = vmul.f32 0.5, %v7555
      %v7557 = vsub.f32 1.5, %v7556
      %v7558 = vmul.f32 %v7553, %v7557
      %vm7559 = vweird.f32 %v7075
      %vm7560 = vweird.f32 %v7553
      %vm7561 = vmor %vm7559, %vm7560
      %v7562 = vsel %vm7561, %v7553, %v7558
      %v7563 = vrsqrt.pop %v7076
      %v7564 = vmul.f32 %v7563, %v7076
      %v7565 = vmul.f32 %v7564, %v7563
      %v7566 = vmul.f32 0.5, %v7565
      %v7567 = vsub.f32 1.5, %v7566
      %v7568 = vmul.f32 %v7563, %v7567
      %vm7569 = vweird.f32 %v7076
      %vm7570 = vweird.f32 %v7563
      %vm7571 = vmor %vm7569, %vm7570
      %v7572 = vsel %vm7571, %v7563, %v7568
      %v7573 = vrsqrt.pop %v7077
      %v7574 = vmul.f32 %v7573, %v7077
      %v7575 = vmul.f32 %v7574, %v7573
      %v7576 = vmul.f32 0.5, %v7575
      %v7577 = vsub.f32 1.5, %v7576
      %v7578 = vmul.f32 %v7573, %v7577
      %vm7579 = vweird.f32 %v7077
      %vm7580 = vweird.f32 %v7573
      %vm7581 = vmor %vm7579, %vm7580
      %v7582 = vsel %vm7581, %v7573, %v7578
      %v7583 = vrsqrt.pop %v7078
      %v7584 = vmul.f32 %v7583, %v7078
      %v7585 = vmul.f32 %v7584, %v7583
      %v7586 = vmul.f32 0.5, %v7585
      %v7587 = vsub.f32 1.5, %v7586
      %v7588 = vmul.f32 %v7583, %v7587
      %vm7589 = vweird.f32 %v7078
      %vm7590 = vweird.f32 %v7583
      %vm7591 = vmor %vm7589, %vm7590
      %v7592 = vsel %vm7591, %v7583, %v7588
      %v7593 = vrsqrt.pop %v7079
      %v7594 = vmul.f32 %v7593, %v7079
      %v7595 = vmul.f32 %v7594, %v7593
      %v7596 = vmul.f32 0.5, %v7595
      %v7597 = vsub.f32 1.5, %v7596
      %v7598 = vmul.f32 %v7593, %v7597
      %vm7599 = vweird.f32 %v7079
      %vm7600 = vweird.f32 %v7593
      %vm7601 = vmor %vm7599, %vm7600
      %v7602 = vsel %vm7601, %v7593, %v7598
      %v7603 = vrsqrt.pop %v7080
      %v7604 = vmul.f32 %v7603, %v7080
      %v7605 = vmul.f32 %v7604, %v7603
      %v7606 = vmul.f32 0.5, %v7605
      %v7607 = vsub.f32 1.5, %v7606
      %v7608 = vmul.f32 %v7603, %v7607
      %vm7609 = vweird.f32 %v7080
      %vm7610 = vweird.f32 %v7603
      %vm7611 = vmor %vm7609, %vm7610
      %v7612 = vsel %vm7611, %v7603, %v7608
      %v7613 = vrsqrt.pop %v7081
      %v7614 = vmul.f32 %v7613, %v7081
      %v7615 = vmul.f32 %v7614, %v7613
      %v7616 = vmul.f32 0.5, %v7615
      %v7617 = vsub.f32 1.5, %v7616
      %v7618 = vmul.f32 %v7613, %v7617
      %vm7619 = vweird.f32 %v7081
      %vm7620 = vweird.f32 %v7613
      %vm7621 = vmor %vm7619, %vm7620
      %v7622 = vsel %vm7621, %v7613, %v7618
      %v7623 = vrsqrt.pop %v7082
      %v7624 = vmul.f32 %v7623, %v7082
      %v7625 = vmul.f32 %v7624, %v7623
      %v7626 = vmul.f32 0.5, %v7625
      %v7627 = vsub.f32 1.5, %v7626
      %v7628 = vmul.f32 %v7623, %v7627
      %vm7629 = vweird.f32 %v7082
      %vm7630 = vweird.f32 %v7623
      %vm7631 = vmor %vm7629, %vm7630
      %v7632 = vsel %vm7631, %v7623, %v7628
      %v7633 = vrsqrt.pop %v7083
      %v7634 = vmul.f32 %v7633, %v7083
      %v7635 = vmul.f32 %v7634, %v7633
      %v7636 = vmul.f32 0.5, %v7635
      %v7637 = vsub.f32 1.5, %v7636
      %v7638 = vmul.f32 %v7633, %v7637
      %vm7639 = vweird.f32 %v7083
      %vm7640 = vweird.f32 %v7633
      %vm7641 = vmor %vm7639, %vm7640
      %v7642 = vsel %vm7641, %v7633, %v7638
      %v7643 = vrsqrt.pop %v7084
      %v7644 = vmul.f32 %v7643, %v7084
      %v7645 = vmul.f32 %v7644, %v7643
      %v7646 = vmul.f32 0.5, %v7645
      %v7647 = vsub.f32 1.5, %v7646
      %v7648 = vmul.f32 %v7643, %v7647
      %vm7649 = vweird.f32 %v7084
      %vm7650 = vweird.f32 %v7643
      %vm7651 = vmor %vm7649, %vm7650
      %v7652 = vsel %vm7651, %v7643, %v7648
      %v7653 = vrsqrt.pop %v7085
      %v7654 = vmul.f32 %v7653, %v7085
      %v7655 = vmul.f32 %v7654, %v7653
      %v7656 = vmul.f32 0.5, %v7655
      %v7657 = vsub.f32 1.5, %v7656
      %v7658 = vmul.f32 %v7653, %v7657
      %vm7659 = vweird.f32 %v7085
      %vm7660 = vweird.f32 %v7653
      %vm7661 = vmor %vm7659, %vm7660
      %v7662 = vsel %vm7661, %v7653, %v7658
      %v7663 = vrsqrt.pop %v7086
      %v7664 = vmul.f32 %v7663, %v7086
      %v7665 = vmul.f32 %v7664, %v7663
      %v7666 = vmul.f32 0.5, %v7665
      %v7667 = vsub.f32 1.5, %v7666
      %v7668 = vmul.f32 %v7663, %v7667
      %vm7669 = vweird.f32 %v7086
      %vm7670 = vweird.f32 %v7663
      %vm7671 = vmor %vm7669, %vm7670
      %v7672 = vsel %vm7671, %v7663, %v7668
      %v7673 = vrsqrt.pop %v7087
      %v7674 = vmul.f32 %v7673, %v7087
      %v7675 = vmul.f32 %v7674, %v7673
      %v7676 = vmul.f32 0.5, %v7675
      %v7677 = vsub.f32 1.5, %v7676
      %v7678 = vmul.f32 %v7673, %v7677
      %vm7679 = vweird.f32 %v7087
      %vm7680 = vweird.f32 %v7673
      %vm7681 = vmor %vm7679, %vm7680
      %v7682 = vsel %vm7681, %v7673, %v7678
      %v7683 = vrsqrt.pop %v7088
      %v7684 = vmul.f32 %v7683, %v7088
      %v7685 = vmul.f32 %v7684, %v7683
      %v7686 = vmul.f32 0.5, %v7685
      %v7687 = vsub.f32 1.5, %v7686
      %v7688 = vmul.f32 %v7683, %v7687
      %vm7689 = vweird.f32 %v7088
      %vm7690 = vweird.f32 %v7683
      %vm7691 = vmor %vm7689, %vm7690
      %v7692 = vsel %vm7691, %v7683, %v7688
      %v7693 = vrsqrt.pop %v7089
      %v7694 = vmul.f32 %v7693, %v7089
      %v7695 = vmul.f32 %v7694, %v7693
      %v7696 = vmul.f32 0.5, %v7695
      %v7697 = vsub.f32 1.5, %v7696
      %v7698 = vmul.f32 %v7693, %v7697
      %vm7699 = vweird.f32 %v7089
      %vm7700 = vweird.f32 %v7693
      %vm7701 = vmor %vm7699, %vm7700
      %v7702 = vsel %vm7701, %v7693, %v7698
      %v7703 = vrsqrt.pop %v7090
      %v7704 = vmul.f32 %v7703, %v7090
      %v7705 = vmul.f32 %v7704, %v7703
      %v7706 = vmul.f32 0.5, %v7705
      %v7707 = vsub.f32 1.5, %v7706
      %v7708 = vmul.f32 %v7703, %v7707
      %vm7709 = vweird.f32 %v7090
      %vm7710 = vweird.f32 %v7703
      %vm7711 = vmor %vm7709, %vm7710
      %v7712 = vsel %vm7711, %v7703, %v7708
      %v7713 = vrsqrt.pop %v7091
      %v7714 = vmul.f32 %v7713, %v7091
      %v7715 = vmul.f32 %v7714, %v7713
      %v7716 = vmul.f32 0.5, %v7715
      %v7717 = vsub.f32 1.5, %v7716
      %v7718 = vmul.f32 %v7713, %v7717
      %vm7719 = vweird.f32 %v7091
      %vm7720 = vweird.f32 %v7713
      %vm7721 = vmor %vm7719, %vm7720
      %v7722 = vsel %vm7721, %v7713, %v7718
      %v7723 = vrsqrt.pop %v7092
      %v7724 = vmul.f32 %v7723, %v7092
      %v7725 = vmul.f32 %v7724, %v7723
      %v7726 = vmul.f32 0.5, %v7725
      %v7727 = vsub.f32 1.5, %v7726
      %v7728 = vmul.f32 %v7723, %v7727
      %vm7729 = vweird.f32 %v7092
      %vm7730 = vweird.f32 %v7723
      %vm7731 = vmor %vm7729, %vm7730
      %v7732 = vsel %vm7731, %v7723, %v7728
      %v7733 = vmul.f32 %v6965, %v7102
      %v7734 = vmul.f32 %v6966, %v7112
      %v7735 = vmul.f32 %v6967, %v7122
      %v7736 = vmul.f32 %v6968, %v7132
      %v7737 = vmul.f32 %v6969, %v7142
      %v7738 = vmul.f32 %v6970, %v7152
      %v7739 = vmul.f32 %v6971, %v7162
      %v7740 = vmul.f32 %v6972, %v7172
      %v7741 = vmul.f32 %v6973, %v7182
      %v7742 = vmul.f32 %v6974, %v7192
      %v7743 = vmul.f32 %v6975, %v7202
      %v7744 = vmul.f32 %v6976, %v7212
      %v7745 = vmul.f32 %v6977, %v7222
      %v7746 = vmul.f32 %v6978, %v7232
      %v7747 = vmul.f32 %v6979, %v7242
      %v7748 = vmul.f32 %v6980, %v7252
      %v7749 = vmul.f32 %v6981, %v7262
      %v7750 = vmul.f32 %v6982, %v7272
      %v7751 = vmul.f32 %v6983, %v7282
      %v7752 = vmul.f32 %v6984, %v7292
      %v7753 = vmul.f32 %v6985, %v7302
      %v7754 = vmul.f32 %v6986, %v7312
      %v7755 = vmul.f32 %v6987, %v7322
      %v7756 = vmul.f32 %v6988, %v7332
      %v7757 = vmul.f32 %v6989, %v7342
      %v7758 = vmul.f32 %v6990, %v7352
      %v7759 = vmul.f32 %v6991, %v7362
      %v7760 = vmul.f32 %v6992, %v7372
      %v7761 = vmul.f32 %v6993, %v7382
      %v7762 = vmul.f32 %v6994, %v7392
      %v7763 = vmul.f32 %v6995, %v7402
      %v7764 = vmul.f32 %v6996, %v7412
      %v7765 = vmul.f32 %v6997, %v7422
      %v7766 = vmul.f32 %v6998, %v7432
      %v7767 = vmul.f32 %v6999, %v7442
      %v7768 = vmul.f32 %v7000, %v7452
      %v7769 = vmul.f32 %v7001, %v7462
      %v7770 = vmul.f32 %v7002, %v7472
      %v7771 = vmul.f32 %v7003, %v7482
      %v7772 = vmul.f32 %v7004, %v7492
      %v7773 = vmul.f32 %v7005, %v7502
      %v7774 = vmul.f32 %v7006, %v7512
      %v7775 = vmul.f32 %v7007, %v7522
      %v7776 = vmul.f32 %v7008, %v7532
      %v7777 = vmul.f32 %v7009, %v7542
      %v7778 = vmul.f32 %v7010, %v7552
      %v7779 = vmul.f32 %v7011, %v7562
      %v7780 = vmul.f32 %v7012, %v7572
      %v7781 = vmul.f32 %v7013, %v7582
      %v7782 = vmul.f32 %v7014, %v7592
      %v7783 = vmul.f32 %v7015, %v7602
      %v7784 = vmul.f32 %v7016, %v7612
      %v7785 = vmul.f32 %v7017, %v7622
      %v7786 = vmul.f32 %v7018, %v7632
      %v7787 = vmul.f32 %v7019, %v7642
      %v7788 = vmul.f32 %v7020, %v7652
      %v7789 = vmul.f32 %v7021, %v7662
      %v7790 = vmul.f32 %v7022, %v7672
      %v7791 = vmul.f32 %v7023, %v7682
      %v7792 = vmul.f32 %v7024, %v7692
      %v7793 = vmul.f32 %v7025, %v7702
      %v7794 = vmul.f32 %v7026, %v7712
      %v7795 = vmul.f32 %v7027, %v7722
      %v7796 = vmul.f32 %v7028, %v7732
      %v7797 = vld [vmem:[%s7] sm:$0xf]
      %7799 = vset.pattern.permute.xlu0 0
      %7800 = vperm.xlu0 %7799, %v7797
      %v7801 = vpop.permute.xlu0 %7800
      %v7803 = vmul.f32 %v7733, %v7801
      %v7804 = vmul.f32 %v7734, %v7801
      %v7805 = vmul.f32 %v7735, %v7801
      %v7806 = vmul.f32 %v7736, %v7801
      %v7807 = vmul.f32 %v7737, %v7801
      %v7808 = vmul.f32 %v7738, %v7801
      %v7809 = vmul.f32 %v7739, %v7801
      %v7810 = vmul.f32 %v7740, %v7801
      %v7811 = vmul.f32 %v7741, %v7801
      %v7812 = vmul.f32 %v7742, %v7801
      %v7813 = vmul.f32 %v7743, %v7801
      %v7814 = vmul.f32 %v7744, %v7801
      %v7815 = vmul.f32 %v7745, %v7801
      %v7816 = vmul.f32 %v7746, %v7801
      %v7817 = vmul.f32 %v7747, %v7801
      %v7818 = vmul.f32 %v7748, %v7801
      %v7819 = vmul.f32 %v7749, %v7801
      %v7820 = vmul.f32 %v7750, %v7801
      %v7821 = vmul.f32 %v7751, %v7801
      %v7822 = vmul.f32 %v7752, %v7801
      %v7823 = vmul.f32 %v7753, %v7801
      %v7824 = vmul.f32 %v7754, %v7801
      %v7825 = vmul.f32 %v7755, %v7801
      %v7826 = vmul.f32 %v7756, %v7801
      %v7827 = vmul.f32 %v7757, %v7801
      %v7828 = vmul.f32 %v7758, %v7801
      %v7829 = vmul.f32 %v7759, %v7801
      %v7830 = vmul.f32 %v7760, %v7801
      %v7831 = vmul.f32 %v7761, %v7801
      %v7832 = vmul.f32 %v7762, %v7801
      %v7833 = vmul.f32 %v7763, %v7801
      %v7834 = vmul.f32 %v7764, %v7801
      %v7835 = vmul.f32 %v7765, %v7801
      %v7836 = vmul.f32 %v7766, %v7801
      %v7837 = vmul.f32 %v7767, %v7801
      %v7838 = vmul.f32 %v7768, %v7801
      %v7839 = vmul.f32 %v7769, %v7801
      %v7840 = vmul.f32 %v7770, %v7801
      %v7841 = vmul.f32 %v7771, %v7801
      %v7842 = vmul.f32 %v7772, %v7801
      %v7843 = vmul.f32 %v7773, %v7801
      %v7844 = vmul.f32 %v7774, %v7801
      %v7845 = vmul.f32 %v7775, %v7801
      %v7846 = vmul.f32 %v7776, %v7801
      %v7847 = vmul.f32 %v7777, %v7801
      %v7848 = vmul.f32 %v7778, %v7801
      %v7849 = vmul.f32 %v7779, %v7801
      %v7850 = vmul.f32 %v7780, %v7801
      %v7851 = vmul.f32 %v7781, %v7801
      %v7852 = vmul.f32 %v7782, %v7801
      %v7853 = vmul.f32 %v7783, %v7801
      %v7854 = vmul.f32 %v7784, %v7801
      %v7855 = vmul.f32 %v7785, %v7801
      %v7856 = vmul.f32 %v7786, %v7801
      %v7857 = vmul.f32 %v7787, %v7801
      %v7858 = vmul.f32 %v7788, %v7801
      %v7859 = vmul.f32 %v7789, %v7801
      %v7860 = vmul.f32 %v7790, %v7801
      %v7861 = vmul.f32 %v7791, %v7801
      %v7862 = vmul.f32 %v7792, %v7801
      %v7863 = vmul.f32 %v7793, %v7801
      %v7864 = vmul.f32 %v7794, %v7801
      %v7865 = vmul.f32 %v7795, %v7801
      %v7866 = vmul.f32 %v7796, %v7801
      %v7867 = vld [vmem:[%s8] sm:$0xf]
      %7869 = vset.pattern.permute.xlu0 0
      %7870 = vperm.xlu0 %7869, %v7867
      %v7871 = vpop.permute.xlu0 %7870
      %v7873 = vadd.f32 %v7803, %v7871
      %v7874 = vadd.f32 %v7804, %v7871
      %v7875 = vadd.f32 %v7805, %v7871
      %v7876 = vadd.f32 %v7806, %v7871
      %v7877 = vadd.f32 %v7807, %v7871
      %v7878 = vadd.f32 %v7808, %v7871
      %v7879 = vadd.f32 %v7809, %v7871
      %v7880 = vadd.f32 %v7810, %v7871
      %v7881 = vadd.f32 %v7811, %v7871
      %v7882 = vadd.f32 %v7812, %v7871
      %v7883 = vadd.f32 %v7813, %v7871
      %v7884 = vadd.f32 %v7814, %v7871
      %v7885 = vadd.f32 %v7815, %v7871
      %v7886 = vadd.f32 %v7816, %v7871
      %v7887 = vadd.f32 %v7817, %v7871
      %v7888 = vadd.f32 %v7818, %v7871
      %v7889 = vadd.f32 %v7819, %v7871
      %v7890 = vadd.f32 %v7820, %v7871
      %v7891 = vadd.f32 %v7821, %v7871
      %v7892 = vadd.f32 %v7822, %v7871
      %v7893 = vadd.f32 %v7823, %v7871
      %v7894 = vadd.f32 %v7824, %v7871
      %v7895 = vadd.f32 %v7825, %v7871
      %v7896 = vadd.f32 %v7826, %v7871
      %v7897 = vadd.f32 %v7827, %v7871
      %v7898 = vadd.f32 %v7828, %v7871
      %v7899 = vadd.f32 %v7829, %v7871
      %v7900 = vadd.f32 %v7830, %v7871
      %v7901 = vadd.f32 %v7831, %v7871
      %v7902 = vadd.f32 %v7832, %v7871
      %v7903 = vadd.f32 %v7833, %v7871
      %v7904 = vadd.f32 %v7834, %v7871
      %v7905 = vadd.f32 %v7835, %v7871
      %v7906 = vadd.f32 %v7836, %v7871
      %v7907 = vadd.f32 %v7837, %v7871
      %v7908 = vadd.f32 %v7838, %v7871
      %v7909 = vadd.f32 %v7839, %v7871
      %v7910 = vadd.f32 %v7840, %v7871
      %v7911 = vadd.f32 %v7841, %v7871
      %v7912 = vadd.f32 %v7842, %v7871
      %v7913 = vadd.f32 %v7843, %v7871
      %v7914 = vadd.f32 %v7844, %v7871
      %v7915 = vadd.f32 %v7845, %v7871
      %v7916 = vadd.f32 %v7846, %v7871
      %v7917 = vadd.f32 %v7847, %v7871
      %v7918 = vadd.f32 %v7848, %v7871
      %v7919 = vadd.f32 %v7849, %v7871
      %v7920 = vadd.f32 %v7850, %v7871
      %v7921 = vadd.f32 %v7851, %v7871
      %v7922 = vadd.f32 %v7852, %v7871
      %v7923 = vadd.f32 %v7853, %v7871
      %v7924 = vadd.f32 %v7854, %v7871
      %v7925 = vadd.f32 %v7855, %v7871
      %v7926 = vadd.f32 %v7856, %v7871
      %v7927 = vadd.f32 %v7857, %v7871
      %v7928 = vadd.f32 %v7858, %v7871
      %v7929 = vadd.f32 %v7859, %v7871
      %v7930 = vadd.f32 %v7860, %v7871
      %v7931 = vadd.f32 %v7861, %v7871
      %v7932 = vadd.f32 %v7862, %v7871
      %v7933 = vadd.f32 %v7863, %v7871
      %v7934 = vadd.f32 %v7864, %v7871
      %v7935 = vadd.f32 %v7865, %v7871
      %v7936 = vadd.f32 %v7866, %v7871
      %vm7937 = vcmp.ge.f32.partialorder %v7873, 0.0
      %vm7938 = vcmp.ge.f32.partialorder %v7874, 0.0
      %vm7939 = vcmp.ge.f32.partialorder %v7875, 0.0
      %vm7940 = vcmp.ge.f32.partialorder %v7876, 0.0
      %vm7941 = vcmp.ge.f32.partialorder %v7877, 0.0
      %vm7942 = vcmp.ge.f32.partialorder %v7878, 0.0
      %vm7943 = vcmp.ge.f32.partialorder %v7879, 0.0
      %vm7944 = vcmp.ge.f32.partialorder %v7880, 0.0
      %vm7945 = vcmp.ge.f32.partialorder %v7881, 0.0
      %vm7946 = vcmp.ge.f32.partialorder %v7882, 0.0
      %vm7947 = vcmp.ge.f32.partialorder %v7883, 0.0
      %vm7948 = vcmp.ge.f32.partialorder %v7884, 0.0
      %vm7949 = vcmp.ge.f32.partialorder %v7885, 0.0
      %vm7950 = vcmp.ge.f32.partialorder %v7886, 0.0
      %vm7951 = vcmp.ge.f32.partialorder %v7887, 0.0
      %vm7952 = vcmp.ge.f32.partialorder %v7888, 0.0
      %vm7953 = vcmp.ge.f32.partialorder %v7889, 0.0
      %vm7954 = vcmp.ge.f32.partialorder %v7890, 0.0
      %vm7955 = vcmp.ge.f32.partialorder %v7891, 0.0
      %vm7956 = vcmp.ge.f32.partialorder %v7892, 0.0
      %vm7957 = vcmp.ge.f32.partialorder %v7893, 0.0
      %vm7958 = vcmp.ge.f32.partialorder %v7894, 0.0
      %vm7959 = vcmp.ge.f32.partialorder %v7895, 0.0
      %vm7960 = vcmp.ge.f32.partialorder %v7896, 0.0
      %vm7961 = vcmp.ge.f32.partialorder %v7897, 0.0
      %vm7962 = vcmp.ge.f32.partialorder %v7898, 0.0
      %vm7963 = vcmp.ge.f32.partialorder %v7899, 0.0
      %vm7964 = vcmp.ge.f32.partialorder %v7900, 0.0
      %vm7965 = vcmp.ge.f32.partialorder %v7901, 0.0
      %vm7966 = vcmp.ge.f32.partialorder %v7902, 0.0
      %vm7967 = vcmp.ge.f32.partialorder %v7903, 0.0
      %vm7968 = vcmp.ge.f32.partialorder %v7904, 0.0
      %vm7969 = vcmp.ge.f32.partialorder %v7905, 0.0
      %vm7970 = vcmp.ge.f32.partialorder %v7906, 0.0
      %vm7971 = vcmp.ge.f32.partialorder %v7907, 0.0
      %vm7972 = vcmp.ge.f32.partialorder %v7908, 0.0
      %vm7973 = vcmp.ge.f32.partialorder %v7909, 0.0
      %vm7974 = vcmp.ge.f32.partialorder %v7910, 0.0
      %vm7975 = vcmp.ge.f32.partialorder %v7911, 0.0
      %vm7976 = vcmp.ge.f32.partialorder %v7912, 0.0
      %vm7977 = vcmp.ge.f32.partialorder %v7913, 0.0
      %vm7978 = vcmp.ge.f32.partialorder %v7914, 0.0
      %vm7979 = vcmp.ge.f32.partialorder %v7915, 0.0
      %vm7980 = vcmp.ge.f32.partialorder %v7916, 0.0
      %vm7981 = vcmp.ge.f32.partialorder %v7917, 0.0
      %vm7982 = vcmp.ge.f32.partialorder %v7918, 0.0
      %vm7983 = vcmp.ge.f32.partialorder %v7919, 0.0
      %vm7984 = vcmp.ge.f32.partialorder %v7920, 0.0
      %vm7985 = vcmp.ge.f32.partialorder %v7921, 0.0
      %vm7986 = vcmp.ge.f32.partialorder %v7922, 0.0
      %vm7987 = vcmp.ge.f32.partialorder %v7923, 0.0
      %vm7988 = vcmp.ge.f32.partialorder %v7924, 0.0
      %vm7989 = vcmp.ge.f32.partialorder %v7925, 0.0
      %vm7990 = vcmp.ge.f32.partialorder %v7926, 0.0
      %vm7991 = vcmp.ge.f32.partialorder %v7927, 0.0
      %vm7992 = vcmp.ge.f32.partialorder %v7928, 0.0
      %vm7993 = vcmp.ge.f32.partialorder %v7929, 0.0
      %vm7994 = vcmp.ge.f32.partialorder %v7930, 0.0
      %vm7995 = vcmp.ge.f32.partialorder %v7931, 0.0
      %vm7996 = vcmp.ge.f32.partialorder %v7932, 0.0
      %vm7997 = vcmp.ge.f32.partialorder %v7933, 0.0
      %vm7998 = vcmp.ge.f32.partialorder %v7934, 0.0
      %vm7999 = vcmp.ge.f32.partialorder %v7935, 0.0
      %vm8000 = vcmp.ge.f32.partialorder %v7936, 0.0
      %v8001 = vmul.f32 %v7873, 0.01
      %v8002 = vmul.f32 %v7874, 0.01
      %v8003 = vmul.f32 %v7875, 0.01
      %v8004 = vmul.f32 %v7876, 0.01
      %v8005 = vmul.f32 %v7877, 0.01
      %v8006 = vmul.f32 %v7878, 0.01
      %v8007 = vmul.f32 %v7879, 0.01
      %v8008 = vmul.f32 %v7880, 0.01
      %v8009 = vmul.f32 %v7881, 0.01
      %v8010 = vmul.f32 %v7882, 0.01
      %v8011 = vmul.f32 %v7883, 0.01
      %v8012 = vmul.f32 %v7884, 0.01
      %v8013 = vmul.f32 %v7885, 0.01
      %v8014 = vmul.f32 %v7886, 0.01
      %v8015 = vmul.f32 %v7887, 0.01
      %v8016 = vmul.f32 %v7888, 0.01
      %v8017 = vmul.f32 %v7889, 0.01
      %v8018 = vmul.f32 %v7890, 0.01
      %v8019 = vmul.f32 %v7891, 0.01
      %v8020 = vmul.f32 %v7892, 0.01
      %v8021 = vmul.f32 %v7893, 0.01
      %v8022 = vmul.f32 %v7894, 0.01
      %v8023 = vmul.f32 %v7895, 0.01
      %v8024 = vmul.f32 %v7896, 0.01
      %v8025 = vmul.f32 %v7897, 0.01
      %v8026 = vmul.f32 %v7898, 0.01
      %v8027 = vmul.f32 %v7899, 0.01
      %v8028 = vmul.f32 %v7900, 0.01
      %v8029 = vmul.f32 %v7901, 0.01
      %v8030 = vmul.f32 %v7902, 0.01
      %v8031 = vmul.f32 %v7903, 0.01
      %v8032 = vmul.f32 %v7904, 0.01
      %v8033 = vmul.f32 %v7905, 0.01
      %v8034 = vmul.f32 %v7906, 0.01
      %v8035 = vmul.f32 %v7907, 0.01
      %v8036 = vmul.f32 %v7908, 0.01
      %v8037 = vmul.f32 %v7909, 0.01
      %v8038 = vmul.f32 %v7910, 0.01
      %v8039 = vmul.f32 %v7911, 0.01
      %v8040 = vmul.f32 %v7912, 0.01
      %v8041 = vmul.f32 %v7913, 0.01
      %v8042 = vmul.f32 %v7914, 0.01
      %v8043 = vmul.f32 %v7915, 0.01
      %v8044 = vmul.f32 %v7916, 0.01
      %v8045 = vmul.f32 %v7917, 0.01
      %v8046 = vmul.f32 %v7918, 0.01
      %v8047 = vmul.f32 %v7919, 0.01
      %v8048 = vmul.f32 %v7920, 0.01
      %v8049 = vmul.f32 %v7921, 0.01
      %v8050 = vmul.f32 %v7922, 0.01
      %v8051 = vmul.f32 %v7923, 0.01
      %v8052 = vmul.f32 %v7924, 0.01
      %v8053 = vmul.f32 %v7925, 0.01
      %v8054 = vmul.f32 %v7926, 0.01
      %v8055 = vmul.f32 %v7927, 0.01
      %v8056 = vmul.f32 %v7928, 0.01
      %v8057 = vmul.f32 %v7929, 0.01
      %v8058 = vmul.f32 %v7930, 0.01
      %v8059 = vmul.f32 %v7931, 0.01
      %v8060 = vmul.f32 %v7932, 0.01
      %v8061 = vmul.f32 %v7933, 0.01
      %v8062 = vmul.f32 %v7934, 0.01
      %v8063 = vmul.f32 %v7935, 0.01
      %v8064 = vmul.f32 %v7936, 0.01
      %v8065 = vsel %vm7937, %v7873, %v8001
      %v8066 = vsel %vm7938, %v7874, %v8002
      %v8067 = vsel %vm7939, %v7875, %v8003
      %v8068 = vsel %vm7940, %v7876, %v8004
      %v8069 = vsel %vm7941, %v7877, %v8005
      %v8070 = vsel %vm7942, %v7878, %v8006
      %v8071 = vsel %vm7943, %v7879, %v8007
      %v8072 = vsel %vm7944, %v7880, %v8008
      %v8073 = vsel %vm7945, %v7881, %v8009
      %v8074 = vsel %vm7946, %v7882, %v8010
      %v8075 = vsel %vm7947, %v7883, %v8011
      %v8076 = vsel %vm7948, %v7884, %v8012
      %v8077 = vsel %vm7949, %v7885, %v8013
      %v8078 = vsel %vm7950, %v7886, %v8014
      %v8079 = vsel %vm7951, %v7887, %v8015
      %v8080 = vsel %vm7952, %v7888, %v8016
      %v8081 = vsel %vm7953, %v7889, %v8017
      %v8082 = vsel %vm7954, %v7890, %v8018
      %v8083 = vsel %vm7955, %v7891, %v8019
      %v8084 = vsel %vm7956, %v7892, %v8020
      %v8085 = vsel %vm7957, %v7893, %v8021
      %v8086 = vsel %vm7958, %v7894, %v8022
      %v8087 = vsel %vm7959, %v7895, %v8023
      %v8088 = vsel %vm7960, %v7896, %v8024
      %v8089 = vsel %vm7961, %v7897, %v8025
      %v8090 = vsel %vm7962, %v7898, %v8026
      %v8091 = vsel %vm7963, %v7899, %v8027
      %v8092 = vsel %vm7964, %v7900, %v8028
      %v8093 = vsel %vm7965, %v7901, %v8029
      %v8094 = vsel %vm7966, %v7902, %v8030
      %v8095 = vsel %vm7967, %v7903, %v8031
      %v8096 = vsel %vm7968, %v7904, %v8032
      %v8097 = vsel %vm7969, %v7905, %v8033
      %v8098 = vsel %vm7970, %v7906, %v8034
      %v8099 = vsel %vm7971, %v7907, %v8035
      %v8100 = vsel %vm7972, %v7908, %v8036
      %v8101 = vsel %vm7973, %v7909, %v8037
      %v8102 = vsel %vm7974, %v7910, %v8038
      %v8103 = vsel %vm7975, %v7911, %v8039
      %v8104 = vsel %vm7976, %v7912, %v8040
      %v8105 = vsel %vm7977, %v7913, %v8041
      %v8106 = vsel %vm7978, %v7914, %v8042
      %v8107 = vsel %vm7979, %v7915, %v8043
      %v8108 = vsel %vm7980, %v7916, %v8044
      %v8109 = vsel %vm7981, %v7917, %v8045
      %v8110 = vsel %vm7982, %v7918, %v8046
      %v8111 = vsel %vm7983, %v7919, %v8047
      %v8112 = vsel %vm7984, %v7920, %v8048
      %v8113 = vsel %vm7985, %v7921, %v8049
      %v8114 = vsel %vm7986, %v7922, %v8050
      %v8115 = vsel %vm7987, %v7923, %v8051
      %v8116 = vsel %vm7988, %v7924, %v8052
      %v8117 = vsel %vm7989, %v7925, %v8053
      %v8118 = vsel %vm7990, %v7926, %v8054
      %v8119 = vsel %vm7991, %v7927, %v8055
      %v8120 = vsel %vm7992, %v7928, %v8056
      %v8121 = vsel %vm7993, %v7929, %v8057
      %v8122 = vsel %vm7994, %v7930, %v8058
      %v8123 = vsel %vm7995, %v7931, %v8059
      %v8124 = vsel %vm7996, %v7932, %v8060
      %v8125 = vsel %vm7997, %v7933, %v8061
      %v8126 = vsel %vm7998, %v7934, %v8062
      %v8127 = vsel %vm7999, %v7935, %v8063
      %v8128 = vsel %vm8000, %v7936, %v8064
      %v8193 = vperm.slane %v8065, 0
      %v8194 = vperm.slane %v8066, 0
      %v8195 = vperm.slane %v8067, 0
      %v8196 = vperm.slane %v8068, 0
      %v8197 = vperm.slane %v8069, 0
      %v8198 = vperm.slane %v8070, 0
      %v8199 = vperm.slane %v8071, 0
      %v8200 = vperm.slane %v8072, 0
      %v8201 = vperm.slane %v8073, 0
      %v8202 = vperm.slane %v8074, 0
      %v8203 = vperm.slane %v8075, 0
      %v8204 = vperm.slane %v8076, 0
      %v8205 = vperm.slane %v8077, 0
      %v8206 = vperm.slane %v8078, 0
      %v8207 = vperm.slane %v8079, 0
      %v8208 = vperm.slane %v8080, 0
      %v8209 = vperm.slane %v8081, 0
      %v8210 = vperm.slane %v8082, 0
      %v8211 = vperm.slane %v8083, 0
      %v8212 = vperm.slane %v8084, 0
      %v8213 = vperm.slane %v8085, 0
      %v8214 = vperm.slane %v8086, 0
      %v8215 = vperm.slane %v8087, 0
      %v8216 = vperm.slane %v8088, 0
      %v8217 = vperm.slane %v8089, 0
      %v8218 = vperm.slane %v8090, 0
      %v8219 = vperm.slane %v8091, 0
      %v8220 = vperm.slane %v8092, 0
      %v8221 = vperm.slane %v8093, 0
      %v8222 = vperm.slane %v8094, 0
      %v8223 = vperm.slane %v8095, 0
      %v8224 = vperm.slane %v8096, 0
      %v8225 = vperm.slane %v8097, 0
      %v8226 = vperm.slane %v8098, 0
      %v8227 = vperm.slane %v8099, 0
      %v8228 = vperm.slane %v8100, 0
      %v8229 = vperm.slane %v8101, 0
      %v8230 = vperm.slane %v8102, 0
      %v8231 = vperm.slane %v8103, 0
      %v8232 = vperm.slane %v8104, 0
      %v8233 = vperm.slane %v8105, 0
      %v8234 = vperm.slane %v8106, 0
      %v8235 = vperm.slane %v8107, 0
      %v8236 = vperm.slane %v8108, 0
      %v8237 = vperm.slane %v8109, 0
      %v8238 = vperm.slane %v8110, 0
      %v8239 = vperm.slane %v8111, 0
      %v8240 = vperm.slane %v8112, 0
      %v8241 = vperm.slane %v8113, 0
      %v8242 = vperm.slane %v8114, 0
      %v8243 = vperm.slane %v8115, 0
      %v8244 = vperm.slane %v8116, 0
      %v8245 = vperm.slane %v8117, 0
      %v8246 = vperm.slane %v8118, 0
      %v8247 = vperm.slane %v8119, 0
      %v8248 = vperm.slane %v8120, 0
      %v8249 = vperm.slane %v8121, 0
      %v8250 = vperm.slane %v8122, 0
      %v8251 = vperm.slane %v8123, 0
      %v8252 = vperm.slane %v8124, 0
      %v8253 = vperm.slane %v8125, 0
      %v8254 = vperm.slane %v8126, 0
      %v8255 = vperm.slane %v8127, 0
      %v8256 = vperm.slane %v8128, 0
      %vm8257 = vcmask 1041409
      %v8258 = vsel %vm8257, %v8194, %v8193
      %vm8259 = vcmask 1042434
      %v8260 = vsel %vm8259, %v8195, %v8258
      %vm8261 = vcmask 1043459
      %v8262 = vsel %vm8261, %v8196, %v8260
      %vm8263 = vcmask 1044484
      %v8264 = vsel %vm8263, %v8197, %v8262
      %vm8265 = vcmask 1045509
      %v8266 = vsel %vm8265, %v8198, %v8264
      %vm8267 = vcmask 1046534
      %v8268 = vsel %vm8267, %v8199, %v8266
      %vm8269 = vcmask 1047559
      %v8270 = vsel %vm8269, %v8200, %v8268
      %v8271 = vsel %vm8257, %v8202, %v8201
      %v8272 = vsel %vm8259, %v8203, %v8271
      %v8273 = vsel %vm8261, %v8204, %v8272
      %v8274 = vsel %vm8263, %v8205, %v8273
      %v8275 = vsel %vm8265, %v8206, %v8274
      %v8276 = vsel %vm8267, %v8207, %v8275
      %v8277 = vsel %vm8269, %v8208, %v8276
      %v8278 = vsel %vm8257, %v8210, %v8209
      %v8279 = vsel %vm8259, %v8211, %v8278
      %v8280 = vsel %vm8261, %v8212, %v8279
      %v8281 = vsel %vm8263, %v8213, %v8280
      %v8282 = vsel %vm8265, %v8214, %v8281
      %v8283 = vsel %vm8267, %v8215, %v8282
      %v8284 = vsel %vm8269, %v8216, %v8283
      %v8285 = vsel %vm8257, %v8218, %v8217
      %v8286 = vsel %vm8259, %v8219, %v8285
      %v8287 = vsel %vm8261, %v8220, %v8286
      %v8288 = vsel %vm8263, %v8221, %v8287
      %v8289 = vsel %vm8265, %v8222, %v8288
      %v8290 = vsel %vm8267, %v8223, %v8289
      %v8291 = vsel %vm8269, %v8224, %v8290
      %v8292 = vsel %vm8257, %v8226, %v8225
      %v8293 = vsel %vm8259, %v8227, %v8292
      %v8294 = vsel %vm8261, %v8228, %v8293
      %v8295 = vsel %vm8263, %v8229, %v8294
      %v8296 = vsel %vm8265, %v8230, %v8295
      %v8297 = vsel %vm8267, %v8231, %v8296
      %v8298 = vsel %vm8269, %v8232, %v8297
      %v8299 = vsel %vm8257, %v8234, %v8233
      %v8300 = vsel %vm8259, %v8235, %v8299
      %v8301 = vsel %vm8261, %v8236, %v8300
      %v8302 = vsel %vm8263, %v8237, %v8301
      %v8303 = vsel %vm8265, %v8238, %v8302
      %v8304 = vsel %vm8267, %v8239, %v8303
      %v8305 = vsel %vm8269, %v8240, %v8304
      %v8306 = vsel %vm8257, %v8242, %v8241
      %v8307 = vsel %vm8259, %v8243, %v8306
      %v8308 = vsel %vm8261, %v8244, %v8307
      %v8309 = vsel %vm8263, %v8245, %v8308
      %v8310 = vsel %vm8265, %v8246, %v8309
      %v8311 = vsel %vm8267, %v8247, %v8310
      %v8312 = vsel %vm8269, %v8248, %v8311
      %v8313 = vsel %vm8257, %v8250, %v8249
      %v8314 = vsel %vm8259, %v8251, %v8313
      %v8315 = vsel %vm8261, %v8252, %v8314
      %v8316 = vsel %vm8263, %v8253, %v8315
      %v8317 = vsel %vm8265, %v8254, %v8316
      %v8318 = vsel %vm8267, %v8255, %v8317
      %v8319 = vsel %vm8269, %v8256, %v8318
      %8328 = vst.msk [vmem:[#allocation3] sm:$0xff] %vm5207, %v8270
      %8329 = vst.msk [vmem:[#allocation3 + $0x8] sm:$0xff] %vm5207, %v8277
      %8330 = vst.msk [vmem:[#allocation3 + $0x10] sm:$0xff] %vm5207, %v8284
      %8331 = vst.msk [vmem:[#allocation3 + $0x18] sm:$0xff] %vm5207, %v8291
      %8332 = vst.msk [vmem:[#allocation3 + $0x20] sm:$0xff] %vm5207, %v8298
      %8333 = vst.msk [vmem:[#allocation3 + $0x28] sm:$0xff] %vm5207, %v8305
      %8334 = vst.msk [vmem:[#allocation3 + $0x30] sm:$0xff] %vm5207, %v8312
      %8335 = vst.msk [vmem:[#allocation3 + $0x38] sm:$0xff] %vm5207, %v8319
      %v8336 = vperm.slane %v8065, 1
      %v8337 = vperm.slane %v8066, 1
      %v8338 = vperm.slane %v8067, 1
      %v8339 = vperm.slane %v8068, 1
      %v8340 = vperm.slane %v8069, 1
      %v8341 = vperm.slane %v8070, 1
      %v8342 = vperm.slane %v8071, 1
      %v8343 = vperm.slane %v8072, 1
      %v8344 = vperm.slane %v8073, 1
      %v8345 = vperm.slane %v8074, 1
      %v8346 = vperm.slane %v8075, 1
      %v8347 = vperm.slane %v8076, 1
      %v8348 = vperm.slane %v8077, 1
      %v8349 = vperm.slane %v8078, 1
      %v8350 = vperm.slane %v8079, 1
      %v8351 = vperm.slane %v8080, 1
      %v8352 = vperm.slane %v8081, 1
      %v8353 = vperm.slane %v8082, 1
      %v8354 = vperm.slane %v8083, 1
      %v8355 = vperm.slane %v8084, 1
      %v8356 = vperm.slane %v8085, 1
      %v8357 = vperm.slane %v8086, 1
      %v8358 = vperm.slane %v8087, 1
      %v8359 = vperm.slane %v8088, 1
      %v8360 = vperm.slane %v8089, 1
      %v8361 = vperm.slane %v8090, 1
      %v8362 = vperm.slane %v8091, 1
      %v8363 = vperm.slane %v8092, 1
      %v8364 = vperm.slane %v8093, 1
      %v8365 = vperm.slane %v8094, 1
      %v8366 = vperm.slane %v8095, 1
      %v8367 = vperm.slane %v8096, 1
      %v8368 = vperm.slane %v8097, 1
      %v8369 = vperm.slane %v8098, 1
      %v8370 = vperm.slane %v8099, 1
      %v8371 = vperm.slane %v8100, 1
      %v8372 = vperm.slane %v8101, 1
      %v8373 = vperm.slane %v8102, 1
      %v8374 = vperm.slane %v8103, 1
      %v8375 = vperm.slane %v8104, 1
      %v8376 = vperm.slane %v8105, 1
      %v8377 = vperm.slane %v8106, 1
      %v8378 = vperm.slane %v8107, 1
      %v8379 = vperm.slane %v8108, 1
      %v8380 = vperm.slane %v8109, 1
      %v8381 = vperm.slane %v8110, 1
      %v8382 = vperm.slane %v8111, 1
      %v8383 = vperm.slane %v8112, 1
      %v8384 = vperm.slane %v8113, 1
      %v8385 = vperm.slane %v8114, 1
      %v8386 = vperm.slane %v8115, 1
      %v8387 = vperm.slane %v8116, 1
      %v8388 = vperm.slane %v8117, 1
      %v8389 = vperm.slane %v8118, 1
      %v8390 = vperm.slane %v8119, 1
      %v8391 = vperm.slane %v8120, 1
      %v8392 = vperm.slane %v8121, 1
      %v8393 = vperm.slane %v8122, 1
      %v8394 = vperm.slane %v8123, 1
      %v8395 = vperm.slane %v8124, 1
      %v8396 = vperm.slane %v8125, 1
      %v8397 = vperm.slane %v8126, 1
      %v8398 = vperm.slane %v8127, 1
      %v8399 = vperm.slane %v8128, 1
      %v8400 = vsel %vm8259, %v8337, %v8336
      %v8401 = vsel %vm8261, %v8338, %v8400
      %v8402 = vsel %vm8263, %v8339, %v8401
      %v8403 = vsel %vm8265, %v8340, %v8402
      %v8404 = vsel %vm8267, %v8341, %v8403
      %v8405 = vsel %vm8269, %v8342, %v8404
      %v8406 = vsel %vm8257, %v8344, %v8343
      %v8407 = vsel %vm8259, %v8345, %v8406
      %v8408 = vsel %vm8261, %v8346, %v8407
      %v8409 = vsel %vm8263, %v8347, %v8408
      %v8410 = vsel %vm8265, %v8348, %v8409
      %v8411 = vsel %vm8267, %v8349, %v8410
      %v8412 = vsel %vm8269, %v8350, %v8411
      %v8413 = vsel %vm8257, %v8352, %v8351
      %v8414 = vsel %vm8259, %v8353, %v8413
      %v8415 = vsel %vm8261, %v8354, %v8414
      %v8416 = vsel %vm8263, %v8355, %v8415
      %v8417 = vsel %vm8265, %v8356, %v8416
      %v8418 = vsel %vm8267, %v8357, %v8417
      %v8419 = vsel %vm8269, %v8358, %v8418
      %v8420 = vsel %vm8257, %v8360, %v8359
      %v8421 = vsel %vm8259, %v8361, %v8420
      %v8422 = vsel %vm8261, %v8362, %v8421
      %v8423 = vsel %vm8263, %v8363, %v8422
      %v8424 = vsel %vm8265, %v8364, %v8423
      %v8425 = vsel %vm8267, %v8365, %v8424
      %v8426 = vsel %vm8269, %v8366, %v8425
      %v8427 = vsel %vm8257, %v8368, %v8367
      %v8428 = vsel %vm8259, %v8369, %v8427
      %v8429 = vsel %vm8261, %v8370, %v8428
      %v8430 = vsel %vm8263, %v8371, %v8429
      %v8431 = vsel %vm8265, %v8372, %v8430
      %v8432 = vsel %vm8267, %v8373, %v8431
      %v8433 = vsel %vm8269, %v8374, %v8432
      %v8434 = vsel %vm8257, %v8376, %v8375
      %v8435 = vsel %vm8259, %v8377, %v8434
      %v8436 = vsel %vm8261, %v8378, %v8435
      %v8437 = vsel %vm8263, %v8379, %v8436
      %v8438 = vsel %vm8265, %v8380, %v8437
      %v8439 = vsel %vm8267, %v8381, %v8438
      %v8440 = vsel %vm8269, %v8382, %v8439
      %v8441 = vsel %vm8257, %v8384, %v8383
      %v8442 = vsel %vm8259, %v8385, %v8441
      %v8443 = vsel %vm8261, %v8386, %v8442
      %v8444 = vsel %vm8263, %v8387, %v8443
      %v8445 = vsel %vm8265, %v8388, %v8444
      %v8446 = vsel %vm8267, %v8389, %v8445
      %v8447 = vsel %vm8269, %v8390, %v8446
      %v8448 = vsel %vm8257, %v8392, %v8391
      %v8449 = vsel %vm8259, %v8393, %v8448
      %v8450 = vsel %vm8261, %v8394, %v8449
      %v8451 = vsel %vm8263, %v8395, %v8450
      %v8452 = vsel %vm8265, %v8396, %v8451
      %v8453 = vsel %vm8267, %v8397, %v8452
      %v8454 = vsel %vm8269, %v8398, %v8453
      %8455 = vrot.lane.b32.xlu0 %v8405, 16
      %v8456 = vpop.permute.xlu0 %8455
      %8457 = vrot.lane.b32.xlu0 %v8412, 16
      %v8458 = vpop.permute.xlu0 %8457
      %8459 = vrot.lane.b32.xlu0 %v8419, 16
      %v8460 = vpop.permute.xlu0 %8459
      %8461 = vrot.lane.b32.xlu0 %v8426, 16
      %v8462 = vpop.permute.xlu0 %8461
      %8463 = vrot.lane.b32.xlu0 %v8433, 16
      %v8464 = vpop.permute.xlu0 %8463
      %8465 = vrot.lane.b32.xlu0 %v8440, 16
      %v8466 = vpop.permute.xlu0 %8465
      %8467 = vrot.lane.b32.xlu0 %v8447, 16
      %v8468 = vpop.permute.xlu0 %8467
      %8469 = vrot.lane.b32.xlu0 %v8454, 16
      %v8470 = vpop.permute.xlu0 %8469
      %8471 = vrot.lane.b32.xlu0 %v8399, 16
      %v8472 = vpop.permute.xlu0 %8471
      %vm8482 = vcmask 261249
      %8483 = vst.msk [vmem:[#allocation3 - $0x1] sm:$0xfe] %vm8482, %v8456
      %vm8484 = vcmask 261248
      %8485 = vst.msk [vmem:[#allocation3 + $0x7] sm:$0xff] %vm8484, %v8458
      %8486 = vst.msk [vmem:[#allocation3 + $0xf] sm:$0xff] %vm8484, %v8460
      %8487 = vst.msk [vmem:[#allocation3 + $0x17] sm:$0xff] %vm8484, %v8462
      %8488 = vst.msk [vmem:[#allocation3 + $0x1f] sm:$0xff] %vm8484, %v8464
      %8489 = vst.msk [vmem:[#allocation3 + $0x27] sm:$0xff] %vm8484, %v8466
      %8490 = vst.msk [vmem:[#allocation3 + $0x2f] sm:$0xff] %vm8484, %v8468
      %8491 = vst.msk [vmem:[#allocation3 + $0x37] sm:$0xff] %vm8484, %v8470
      %vm8492 = vcmask 254080
      %8493 = vst.msk [vmem:[#allocation3 + $0x3f] sm:$0x1] %vm8492, %v8472
      %v8494 = vperm.slane %v8065, 2
      %v8495 = vperm.slane %v8066, 2
      %v8496 = vperm.slane %v8067, 2
      %v8497 = vperm.slane %v8068, 2
      %v8498 = vperm.slane %v8069, 2
      %v8499 = vperm.slane %v8070, 2
      %v8500 = vperm.slane %v8071, 2
      %v8501 = vperm.slane %v8072, 2
      %v8502 = vperm.slane %v8073, 2
      %v8503 = vperm.slane %v8074, 2
      %v8504 = vperm.slane %v8075, 2
      %v8505 = vperm.slane %v8076, 2
      %v8506 = vperm.slane %v8077, 2
      %v8507 = vperm.slane %v8078, 2
      %v8508 = vperm.slane %v8079, 2
      %v8509 = vperm.slane %v8080, 2
      %v8510 = vperm.slane %v8081, 2
      %v8511 = vperm.slane %v8082, 2
      %v8512 = vperm.slane %v8083, 2
      %v8513 = vperm.slane %v8084, 2
      %v8514 = vperm.slane %v8085, 2
      %v8515 = vperm.slane %v8086, 2
      %v8516 = vperm.slane %v8087, 2
      %v8517 = vperm.slane %v8088, 2
      %v8518 = vperm.slane %v8089, 2
      %v8519 = vperm.slane %v8090, 2
      %v8520 = vperm.slane %v8091, 2
      %v8521 = vperm.slane %v8092, 2
      %v8522 = vperm.slane %v8093, 2
      %v8523 = vperm.slane %v8094, 2
      %v8524 = vperm.slane %v8095, 2
      %v8525 = vperm.slane %v8096, 2
      %v8526 = vperm.slane %v8097, 2
      %v8527 = vperm.slane %v8098, 2
      %v8528 = vperm.slane %v8099, 2
      %v8529 = vperm.slane %v8100, 2
      %v8530 = vperm.slane %v8101, 2
      %v8531 = vperm.slane %v8102, 2
      %v8532 = vperm.slane %v8103, 2
      %v8533 = vperm.slane %v8104, 2
      %v8534 = vperm.slane %v8105, 2
      %v8535 = vperm.slane %v8106, 2
      %v8536 = vperm.slane %v8107, 2
      %v8537 = vperm.slane %v8108, 2
      %v8538 = vperm.slane %v8109, 2
      %v8539 = vperm.slane %v8110, 2
      %v8540 = vperm.slane %v8111, 2
      %v8541 = vperm.slane %v8112, 2
      %v8542 = vperm.slane %v8113, 2
      %v8543 = vperm.slane %v8114, 2
      %v8544 = vperm.slane %v8115, 2
      %v8545 = vperm.slane %v8116, 2
      %v8546 = vperm.slane %v8117, 2
      %v8547 = vperm.slane %v8118, 2
      %v8548 = vperm.slane %v8119, 2
      %v8549 = vperm.slane %v8120, 2
      %v8550 = vperm.slane %v8121, 2
      %v8551 = vperm.slane %v8122, 2
      %v8552 = vperm.slane %v8123, 2
      %v8553 = vperm.slane %v8124, 2
      %v8554 = vperm.slane %v8125, 2
      %v8555 = vperm.slane %v8126, 2
      %v8556 = vperm.slane %v8127, 2
      %v8557 = vperm.slane %v8128, 2
      %v8558 = vsel %vm8261, %v8495, %v8494
      %v8559 = vsel %vm8263, %v8496, %v8558
      %v8560 = vsel %vm8265, %v8497, %v8559
      %v8561 = vsel %vm8267, %v8498, %v8560
      %v8562 = vsel %vm8269, %v8499, %v8561
      %v8563 = vsel %vm8257, %v8501, %v8500
      %v8564 = vsel %vm8259, %v8502, %v8563
      %v8565 = vsel %vm8261, %v8503, %v8564
      %v8566 = vsel %vm8263, %v8504, %v8565
      %v8567 = vsel %vm8265, %v8505, %v8566
      %v8568 = vsel %vm8267, %v8506, %v8567
      %v8569 = vsel %vm8269, %v8507, %v8568
      %v8570 = vsel %vm8257, %v8509, %v8508
      %v8571 = vsel %vm8259, %v8510, %v8570
      %v8572 = vsel %vm8261, %v8511, %v8571
      %v8573 = vsel %vm8263, %v8512, %v8572
      %v8574 = vsel %vm8265, %v8513, %v8573
      %v8575 = vsel %vm8267, %v8514, %v8574
      %v8576 = vsel %vm8269, %v8515, %v8575
      %v8577 = vsel %vm8257, %v8517, %v8516
      %v8578 = vsel %vm8259, %v8518, %v8577
      %v8579 = vsel %vm8261, %v8519, %v8578
      %v8580 = vsel %vm8263, %v8520, %v8579
      %v8581 = vsel %vm8265, %v8521, %v8580
      %v8582 = vsel %vm8267, %v8522, %v8581
      %v8583 = vsel %vm8269, %v8523, %v8582
      %v8584 = vsel %vm8257, %v8525, %v8524
      %v8585 = vsel %vm8259, %v8526, %v8584
      %v8586 = vsel %vm8261, %v8527, %v8585
      %v8587 = vsel %vm8263, %v8528, %v8586
      %v8588 = vsel %vm8265, %v8529, %v8587
      %v8589 = vsel %vm8267, %v8530, %v8588
      %v8590 = vsel %vm8269, %v8531, %v8589
      %v8591 = vsel %vm8257, %v8533, %v8532
      %v8592 = vsel %vm8259, %v8534, %v8591
      %v8593 = vsel %vm8261, %v8535, %v8592
      %v8594 = vsel %vm8263, %v8536, %v8593
      %v8595 = vsel %vm8265, %v8537, %v8594
      %v8596 = vsel %vm8267, %v8538, %v8595
      %v8597 = vsel %vm8269, %v8539, %v8596
      %v8598 = vsel %vm8257, %v8541, %v8540
      %v8599 = vsel %vm8259, %v8542, %v8598
      %v8600 = vsel %vm8261, %v8543, %v8599
      %v8601 = vsel %vm8263, %v8544, %v8600
      %v8602 = vsel %vm8265, %v8545, %v8601
      %v8603 = vsel %vm8267, %v8546, %v8602
      %v8604 = vsel %vm8269, %v8547, %v8603
      %v8605 = vsel %vm8257, %v8549, %v8548
      %v8606 = vsel %vm8259, %v8550, %v8605
      %v8607 = vsel %vm8261, %v8551, %v8606
      %v8608 = vsel %vm8263, %v8552, %v8607
      %v8609 = vsel %vm8265, %v8553, %v8608
      %v8610 = vsel %vm8267, %v8554, %v8609
      %v8611 = vsel %vm8269, %v8555, %v8610
      %v8612 = vsel %vm8257, %v8557, %v8556
      %8613 = vrot.lane.b32.xlu0 %v8562, 32
      %v8614 = vpop.permute.xlu0 %8613
      %8615 = vrot.lane.b32.xlu0 %v8569, 32
      %v8616 = vpop.permute.xlu0 %8615
      %8617 = vrot.lane.b32.xlu0 %v8576, 32
      %v8618 = vpop.permute.xlu0 %8617
      %8619 = vrot.lane.b32.xlu0 %v8583, 32
      %v8620 = vpop.permute.xlu0 %8619
      %8621 = vrot.lane.b32.xlu0 %v8590, 32
      %v8622 = vpop.permute.xlu0 %8621
      %8623 = vrot.lane.b32.xlu0 %v8597, 32
      %v8624 = vpop.permute.xlu0 %8623
      %8625 = vrot.lane.b32.xlu0 %v8604, 32
      %v8626 = vpop.permute.xlu0 %8625
      %8627 = vrot.lane.b32.xlu0 %v8611, 32
      %v8628 = vpop.permute.xlu0 %8627
      %8629 = vrot.lane.b32.xlu0 %v8612, 32
      %v8630 = vpop.permute.xlu0 %8629
      %vm8640 = vcmask 392450
      %8641 = vst.msk [vmem:[#allocation3 - $0x2] sm:$0xfc] %vm8640, %v8614
      %vm8642 = vcmask 392448
      %8643 = vst.msk [vmem:[#allocation3 + $0x6] sm:$0xff] %vm8642, %v8616
      %8644 = vst.msk [vmem:[#allocation3 + $0xe] sm:$0xff] %vm8642, %v8618
      %8645 = vst.msk [vmem:[#allocation3 + $0x16] sm:$0xff] %vm8642, %v8620
      %8646 = vst.msk [vmem:[#allocation3 + $0x1e] sm:$0xff] %vm8642, %v8622
      %8647 = vst.msk [vmem:[#allocation3 + $0x26] sm:$0xff] %vm8642, %v8624
      %8648 = vst.msk [vmem:[#allocation3 + $0x2e] sm:$0xff] %vm8642, %v8626
      %8649 = vst.msk [vmem:[#allocation3 + $0x36] sm:$0xff] %vm8642, %v8628
      %vm8650 = vcmask 386304
      %8651 = vst.msk [vmem:[#allocation3 + $0x3e] sm:$0x3] %vm8650, %v8630
      %v8652 = vperm.slane %v8065, 3
      %v8653 = vperm.slane %v8066, 3
      %v8654 = vperm.slane %v8067, 3
      %v8655 = vperm.slane %v8068, 3
      %v8656 = vperm.slane %v8069, 3
      %v8657 = vperm.slane %v8070, 3
      %v8658 = vperm.slane %v8071, 3
      %v8659 = vperm.slane %v8072, 3
      %v8660 = vperm.slane %v8073, 3
      %v8661 = vperm.slane %v8074, 3
      %v8662 = vperm.slane %v8075, 3
      %v8663 = vperm.slane %v8076, 3
      %v8664 = vperm.slane %v8077, 3
      %v8665 = vperm.slane %v8078, 3
      %v8666 = vperm.slane %v8079, 3
      %v8667 = vperm.slane %v8080, 3
      %v8668 = vperm.slane %v8081, 3
      %v8669 = vperm.slane %v8082, 3
      %v8670 = vperm.slane %v8083, 3
      %v8671 = vperm.slane %v8084, 3
      %v8672 = vperm.slane %v8085, 3
      %v8673 = vperm.slane %v8086, 3
      %v8674 = vperm.slane %v8087, 3
      %v8675 = vperm.slane %v8088, 3
      %v8676 = vperm.slane %v8089, 3
      %v8677 = vperm.slane %v8090, 3
      %v8678 = vperm.slane %v8091, 3
      %v8679 = vperm.slane %v8092, 3
      %v8680 = vperm.slane %v8093, 3
      %v8681 = vperm.slane %v8094, 3
      %v8682 = vperm.slane %v8095, 3
      %v8683 = vperm.slane %v8096, 3
      %v8684 = vperm.slane %v8097, 3
      %v8685 = vperm.slane %v8098, 3
      %v8686 = vperm.slane %v8099, 3
      %v8687 = vperm.slane %v8100, 3
      %v8688 = vperm.slane %v8101, 3
      %v8689 = vperm.slane %v8102, 3
      %v8690 = vperm.slane %v8103, 3
      %v8691 = vperm.slane %v8104, 3
      %v8692 = vperm.slane %v8105, 3
      %v8693 = vperm.slane %v8106, 3
      %v8694 = vperm.slane %v8107, 3
      %v8695 = vperm.slane %v8108, 3
      %v8696 = vperm.slane %v8109, 3
      %v8697 = vperm.slane %v8110, 3
      %v8698 = vperm.slane %v8111, 3
      %v8699 = vperm.slane %v8112, 3
      %v8700 = vperm.slane %v8113, 3
      %v8701 = vperm.slane %v8114, 3
      %v8702 = vperm.slane %v8115, 3
      %v8703 = vperm.slane %v8116, 3
      %v8704 = vperm.slane %v8117, 3
      %v8705 = vperm.slane %v8118, 3
      %v8706 = vperm.slane %v8119, 3
      %v8707 = vperm.slane %v8120, 3
      %v8708 = vperm.slane %v8121, 3
      %v8709 = vperm.slane %v8122, 3
      %v8710 = vperm.slane %v8123, 3
      %v8711 = vperm.slane %v8124, 3
      %v8712 = vperm.slane %v8125, 3
      %v8713 = vperm.slane %v8126, 3
      %v8714 = vperm.slane %v8127, 3
      %v8715 = vperm.slane %v8128, 3
      %v8716 = vsel %vm8263, %v8653, %v8652
      %v8717 = vsel %vm8265, %v8654, %v8716
      %v8718 = vsel %vm8267, %v8655, %v8717
      %v8719 = vsel %vm8269, %v8656, %v8718
      %v8720 = vsel %vm8257, %v8658, %v8657
      %v8721 = vsel %vm8259, %v8659, %v8720
      %v8722 = vsel %vm8261, %v8660, %v8721
      %v8723 = vsel %vm8263, %v8661, %v8722
      %v8724 = vsel %vm8265, %v8662, %v8723
      %v8725 = vsel %vm8267, %v8663, %v8724
      %v8726 = vsel %vm8269, %v8664, %v8725
      %v8727 = vsel %vm8257, %v8666, %v8665
      %v8728 = vsel %vm8259, %v8667, %v8727
      %v8729 = vsel %vm8261, %v8668, %v8728
      %v8730 = vsel %vm8263, %v8669, %v8729
      %v8731 = vsel %vm8265, %v8670, %v8730
      %v8732 = vsel %vm8267, %v8671, %v8731
      %v8733 = vsel %vm8269, %v8672, %v8732
      %v8734 = vsel %vm8257, %v8674, %v8673
      %v8735 = vsel %vm8259, %v8675, %v8734
      %v8736 = vsel %vm8261, %v8676, %v8735
      %v8737 = vsel %vm8263, %v8677, %v8736
      %v8738 = vsel %vm8265, %v8678, %v8737
      %v8739 = vsel %vm8267, %v8679, %v8738
      %v8740 = vsel %vm8269, %v8680, %v8739
      %v8741 = vsel %vm8257, %v8682, %v8681
      %v8742 = vsel %vm8259, %v8683, %v8741
      %v8743 = vsel %vm8261, %v8684, %v8742
      %v8744 = vsel %vm8263, %v8685, %v8743
      %v8745 = vsel %vm8265, %v8686, %v8744
      %v8746 = vsel %vm8267, %v8687, %v8745
      %v8747 = vsel %vm8269, %v8688, %v8746
      %v8748 = vsel %vm8257, %v8690, %v8689
      %v8749 = vsel %vm8259, %v8691, %v8748
      %v8750 = vsel %vm8261, %v8692, %v8749
      %v8751 = vsel %vm8263, %v8693, %v8750
      %v8752 = vsel %vm8265, %v8694, %v8751
      %v8753 = vsel %vm8267, %v8695, %v8752
      %v8754 = vsel %vm8269, %v8696, %v8753
      %v8755 = vsel %vm8257, %v8698, %v8697
      %v8756 = vsel %vm8259, %v8699, %v8755
      %v8757 = vsel %vm8261, %v8700, %v8756
      %v8758 = vsel %vm8263, %v8701, %v8757
      %v8759 = vsel %vm8265, %v8702, %v8758
      %v8760 = vsel %vm8267, %v8703, %v8759
      %v8761 = vsel %vm8269, %v8704, %v8760
      %v8762 = vsel %vm8257, %v8706, %v8705
      %v8763 = vsel %vm8259, %v8707, %v8762
      %v8764 = vsel %vm8261, %v8708, %v8763
      %v8765 = vsel %vm8263, %v8709, %v8764
      %v8766 = vsel %vm8265, %v8710, %v8765
      %v8767 = vsel %vm8267, %v8711, %v8766
      %v8768 = vsel %vm8269, %v8712, %v8767
      %v8769 = vsel %vm8257, %v8714, %v8713
      %v8770 = vsel %vm8259, %v8715, %v8769
      %8771 = vrot.lane.b32.xlu0 %v8719, 48
      %v8772 = vpop.permute.xlu0 %8771
      %8773 = vrot.lane.b32.xlu0 %v8726, 48
      %v8774 = vpop.permute.xlu0 %8773
      %8775 = vrot.lane.b32.xlu0 %v8733, 48
      %v8776 = vpop.permute.xlu0 %8775
      %8777 = vrot.lane.b32.xlu0 %v8740, 48
      %v8778 = vpop.permute.xlu0 %8777
      %8779 = vrot.lane.b32.xlu0 %v8747, 48
      %v8780 = vpop.permute.xlu0 %8779
      %8781 = vrot.lane.b32.xlu0 %v8754, 48
      %v8782 = vpop.permute.xlu0 %8781
      %8783 = vrot.lane.b32.xlu0 %v8761, 48
      %v8784 = vpop.permute.xlu0 %8783
      %8785 = vrot.lane.b32.xlu0 %v8768, 48
      %v8786 = vpop.permute.xlu0 %8785
      %8787 = vrot.lane.b32.xlu0 %v8770, 48
      %v8788 = vpop.permute.xlu0 %8787
      %vm8798 = vcmask 523651
      %8799 = vst.msk [vmem:[#allocation3 - $0x3] sm:$0xf8] %vm8798, %v8772
      %vm8800 = vcmask 523648
      %8801 = vst.msk [vmem:[#allocation3 + $0x5] sm:$0xff] %vm8800, %v8774
      %8802 = vst.msk [vmem:[#allocation3 + $0xd] sm:$0xff] %vm8800, %v8776
      %8803 = vst.msk [vmem:[#allocation3 + $0x15] sm:$0xff] %vm8800, %v8778
      %8804 = vst.msk [vmem:[#allocation3 + $0x1d] sm:$0xff] %vm8800, %v8780
      %8805 = vst.msk [vmem:[#allocation3 + $0x25] sm:$0xff] %vm8800, %v8782
      %8806 = vst.msk [vmem:[#allocation3 + $0x2d] sm:$0xff] %vm8800, %v8784
      %8807 = vst.msk [vmem:[#allocation3 + $0x35] sm:$0xff] %vm8800, %v8786
      %vm8808 = vcmask 518528
      %8809 = vst.msk [vmem:[#allocation3 + $0x3d] sm:$0x7] %vm8808, %v8788
      %v8810 = vld [vmem:[#allocation3] sm:$0xff]
      %v8811 = vld [vmem:[#allocation3 + $0x8] sm:$0xff]
      %v8812 = vld [vmem:[#allocation3 + $0x10] sm:$0xff]
      %v8813 = vld [vmem:[#allocation3 + $0x18] sm:$0xff]
      %v8814 = vld [vmem:[#allocation3 + $0x20] sm:$0xff]
      %v8815 = vld [vmem:[#allocation3 + $0x28] sm:$0xff]
      %v8816 = vld [vmem:[#allocation3 + $0x30] sm:$0xff]
      %v8817 = vld [vmem:[#allocation3 + $0x38] sm:$0xff]
      %v8818 = vpack.c.bf16 %v8811, %v8810
      %v8819 = vpack.c.bf16 %v8813, %v8812
      %v8820 = vpack.c.bf16 %v8815, %v8814
      %v8821 = vpack.c.bf16 %v8817, %v8816
      %v8822 = vld [vmem:[%s9] sm:$0xf]
      %v8823 = vld [vmem:[%s9 + $0x4] sm:$0xf]
      %v8824 = vld [vmem:[%s9 + $0x8] sm:$0xf]
      %v8825 = vld [vmem:[%s9 + $0xc] sm:$0xf]
      %v8826 = vld [vmem:[%s9 + $0x10] sm:$0xf]
      %v8827 = vld [vmem:[%s9 + $0x14] sm:$0xf]
      %v8828 = vld [vmem:[%s9 + $0x18] sm:$0xf]
      %v8829 = vld [vmem:[%s9 + $0x1c] sm:$0xf]
      %v8830 = vld [vmem:[%s10] sm:$0x1]
      %v8832 = vperm.slane %v8830, 0
      %v8842 = vunpack.c.l.b16 %v8822
      %v8843 = vunpack.c.l.b16 %v8823
      %v8844 = vunpack.c.l.b16 %v8824
      %v8845 = vunpack.c.l.b16 %v8825
      %v8846 = vunpack.c.l.b16 %v8826
      %v8847 = vunpack.c.l.b16 %v8827
      %v8848 = vunpack.c.l.b16 %v8828
      %v8849 = vunpack.c.l.b16 %v8829
      %v8850 = vpack.c.b16 %v8843, %v8842
      %v8851 = vpack.c.b16 %v8845, %v8844
      %v8852 = vpack.c.b16 %v8847, %v8846
      %v8853 = vpack.c.b16 %v8849, %v8848
      %vm8858 = vcmask 523264
      %v8860 = vsel %vm8858, %v8818, 0
      %v8863 = vsel %vm8858, %v8819, 0
      %v8866 = vsel %vm8858, %v8820, 0
      %v8869 = vsel %vm8858, %v8821, 0
      %8871 = vmatpush.bf16.msra.mxu0 0
      %8872 = vmatpush.bf16.msra.mxu0 0
      %8873 = vmatpush.bf16.msra.mxu0 0
      %8874 = vmatpush.bf16.msra.mxu0 0
      %8875 = vmatpush.bf16.msra.mxu0 %v8853
      %8876 = vmatpush.bf16.msra.mxu0 %v8852
      %8877 = vmatpush.bf16.msra.mxu0 %v8851
      %8878 = vmatpush.bf16.msra.mxu0 %v8850
      %8879 = vmatmul.bf16.gmra.mxu0 %v8860
      %v8880 = vpop.f32.mrf.mxu0
      %v8881 = vadd.f32 %v8832, %v8880
      %v8882 = vpop.f32.mrf.mxu0
      %v8883 = vadd.f32 %v8832, %v8882
      %8884 = vmatmul.bf16.gmra.mxu0 %v8863
      %v8885 = vpop.f32.mrf.mxu0
      %v8886 = vadd.f32 %v8832, %v8885
      %v8887 = vpop.f32.mrf.mxu0
      %v8888 = vadd.f32 %v8832, %v8887
      %8889 = vmatmul.bf16.gmra.mxu0 %v8866
      %v8890 = vpop.f32.mrf.mxu0
      %v8891 = vadd.f32 %v8832, %v8890
      %v8892 = vpop.f32.mrf.mxu0
      %v8893 = vadd.f32 %v8832, %v8892
      %8894 = vmatmul.bf16.gmra.mxu0 %v8869
      %v8895 = vpop.f32.mrf.mxu0
      %v8896 = vadd.f32 %v8832, %v8895
      %v8897 = vpop.f32.mrf.mxu0
      %v8898 = vadd.f32 %v8832, %v8897
      %8899 = vdwg.mxu0
      %vm8900 = vcmp.ge.f32.partialorder %v8881, 0.0
      %vm8901 = vcmp.ge.f32.partialorder %v8883, 0.0
      %vm8902 = vcmp.ge.f32.partialorder %v8886, 0.0
      %vm8903 = vcmp.ge.f32.partialorder %v8888, 0.0
      %vm8904 = vcmp.ge.f32.partialorder %v8891, 0.0
      %vm8905 = vcmp.ge.f32.partialorder %v8893, 0.0
      %vm8906 = vcmp.ge.f32.partialorder %v8896, 0.0
      %vm8907 = vcmp.ge.f32.partialorder %v8898, 0.0
      %v8908 = vmul.f32 %v8881, 0.01
      %v8909 = vmul.f32 %v8883, 0.01
      %v8910 = vmul.f32 %v8886, 0.01
      %v8911 = vmul.f32 %v8888, 0.01
      %v8912 = vmul.f32 %v8891, 0.01
      %v8913 = vmul.f32 %v8893, 0.01
      %v8914 = vmul.f32 %v8896, 0.01
      %v8915 = vmul.f32 %v8898, 0.01
      %v8916 = vsel %vm8900, %v8881, %v8908
      %v8917 = vsel %vm8901, %v8883, %v8909
      %v8918 = vsel %vm8902, %v8886, %v8910
      %v8919 = vsel %vm8903, %v8888, %v8911
      %v8920 = vsel %vm8904, %v8891, %v8912
      %v8921 = vsel %vm8905, %v8893, %v8913
      %v8922 = vsel %vm8906, %v8896, %v8914
      %v8923 = vsel %vm8907, %v8898, %v8915
      %8924 = vst [vmem:[%s391] sm:$0xff] %v8916
      %8925 = vst [vmem:[%s391 + $0x8] sm:$0xff] %v8917
      %8926 = vst [vmem:[%s391 + $0x10] sm:$0xff] %v8918
      %8927 = vst [vmem:[%s391 + $0x18] sm:$0xff] %v8919
      %8928 = vst [vmem:[%s391 + $0x20] sm:$0xff] %v8920
      %8929 = vst [vmem:[%s391 + $0x28] sm:$0xff] %v8921
      %8930 = vst [vmem:[%s391 + $0x30] sm:$0xff] %v8922
      %8931 = vst [vmem:[%s391 + $0x38] sm:$0xff] %v8923
      %s8932 = smul.u32 8, %s22
      %p8933 = scmp.lt.s32.totalorder %s8932, 15
      %s8934 = scalar_select %p8933, %s8932, 15
      %s8935 = smul.addr %s8934, 8
      %s8936 = scalar_lea.vmem %s11, %s8935
      // Predicated region
      $region65: #{_lambda_.1} parent=63 // pred_check
        %p8937 = pneg %p276
      $region66: #{_lambda_.1} parent=63 // pred_check_branch
        %8939 = sbr.rel (%p8937) target = $region68
      $region67: #{_lambda_.1} parent=63 // pred_region
        %s8940 = smul.u32 8, %s22
      $region68: #{_lambda_.1} parent=63 // pred_fallthru
        _
    $region64: #{_lambda_.1} parent=5 // pred_fallthru
      _
    %p8941 = scmp.le.s32.totalorder 2, %s17
    // Predicated region
    $region69: #{_lambda_.1} parent=5 // pred_check
      %p8942 = pneg %p8941
    $region70: #{_lambda_.1} parent=5 // pred_check_branch
      %8944 = sbr.rel (%p8942) target = $region72
    $region71: #{_lambda_.1} parent=5 // pred_region
      %s8945 = ssub.s32 %s17, 2
      // Predicated region
      $region73: #{_lambda_.1} parent=71 // pred_check
        %p8946 = pneg %p282
      $region74: #{_lambda_.1} parent=71 // pred_check_branch
        %8948 = sbr.rel (%p8946) target = $region76
      $region75: #{_lambda_.1} parent=71 // pred_region
        %s8949 = smul.u32 8, %s23
        %p8950 = scmp.lt.s32.totalorder %s8949, 15
        %s8951 = scalar_select %p8950, %s8949, 15
        %s8952 = smul.addr %s8951, 8
        %s8953 = scalar_lea.vmem %s11, %s8952
      $region76: #{_lambda_.1} parent=71 // pred_fallthru
        _
    $region72: #{_lambda_.1} parent=5 // pred_fallthru
      _
  $region6: #{_lambda_.1} parent=0 // loop_footer
    %s21 = sadd.s32 1, %s17
  $region7: #{_lambda_.1} parent=0 // loop_footer_branch
    %16 = sbr.rel target = $region3
  $region8: #{_lambda_.1} parent=0 // loop_exit
    _

</llo_original>
